<compile_context>
chip_gen: v5e
topology: v5e:2x2
jax: 0.10.0
libtpu: 0.0.40
codegen_flags: <defaults>
</compile_context>

<pallas_src>
import jax
import jax.numpy as jnp
import numpy as np
from jax.experimental import pallas as pl
from jax.experimental.pallas import tpu as pltpu

EPS = 1e-5
NEG_SLOPE = 0.2
C_OUT = 64          # conv output channels
S_OUT = 256         # 16x16 conv output spatial positions
CH_PER_STEP = 16    # conv channels consumed per grid step (tk = 16*256 = 4096)


def _leaky_relu(y):
    return jnp.where(y > 0, y, NEG_SLOPE * y)


# ---------------------------------------------------------------------------
# Fused kernel: conv+BN2d+LReLU prologue, K-tiled bf16 FC1, full head epilogue
# ---------------------------------------------------------------------------
def dis_fused_kernel(p_ref, wc_ref, g0_ref, b0_ref,
                     w1_ref, b1_ref, g1_ref, be1_ref,
                     w2_ref, b2_ref, g2_ref, be2_ref,
                     w3_ref, b3_ref,
                     o_ref,
                     acc_ref, act0_ref, act1_ref):
    k = pl.program_id(0)
    n1 = w1_ref.shape[1]                     # 512

    # ---- prologue: conv (transposed matmul) + BatchNorm2d + LeakyReLU ------
    @pl.when(k == 0)
    def _():
        acc_ref[...] = jnp.zeros_like(acc_ref)
        # per-sample:  (64, 16C) @ (16C, 256) -> (64 cout, 256 spatial)
        y0 = jnp.dot(wc_ref[...], p_ref[0], preferred_element_type=jnp.float32)
        y1 = jnp.dot(wc_ref[...], p_ref[1], preferred_element_type=jnp.float32)
        # BatchNorm2d training stats: per channel over (batch, spatial) = 512
        n = 2.0 * S_OUT
        mean = (jnp.sum(y0, axis=1, keepdims=True) +
                jnp.sum(y1, axis=1, keepdims=True)) / n
        d0 = y0 - mean
        d1 = y1 - mean
        var = (jnp.sum(d0 * d0, axis=1, keepdims=True) +
               jnp.sum(d1 * d1, axis=1, keepdims=True)) / n          # biased
        scale = jax.lax.rsqrt(var + EPS) * g0_ref[...]
        act0_ref[...] = _leaky_relu(d0 * scale + b0_ref[...])
        act1_ref[...] = _leaky_relu(d1 * scale + b1_ref_dummy(b0_ref))

    # ---- FC1 partial: consume CH_PER_STEP conv channels of the bf16 W1 -----
    c_start = pl.multiple_of(k * CH_PER_STEP, CH_PER_STEP)
    slab0 = act0_ref[pl.ds(c_start, CH_PER_STEP), :]     # (16, 256) f32
    slab1 = act1_ref[pl.ds(c_start, CH_PER_STEP), :]     # (16, 256) f32
    partial = jnp.zeros((2, n1), jnp.float32)
    for c in range(CH_PER_STEP):
        lhs = jnp.concatenate([slab0[c:c + 1, :], slab1[c:c + 1, :]], axis=0)
        rhs = w1_ref[c * S_OUT:(c + 1) * S_OUT, :]        # (256, 512) bf16
        partial = partial + jnp.dot(lhs.astype(jnp.bfloat16), rhs,
                                    preferred_element_type=jnp.float32)
    acc_ref[...] += partial

    # ---- epilogue: bias -> BN1d+LReLU -> FC2 -> BN1d+LReLU -> FC3 -> sigmoid
    @pl.when(k == pl.num_programs(0) - 1)
    def _():
        def bn_rows(h, g, b):                 # training BN1d, biased, two-pass
            m = jnp.mean(h, axis=0, keepdims=True)
            d = h - m
            v = jnp.mean(d * d, axis=0, keepdims=True)
            return d * jax.lax.rsqrt(v + EPS) * g + b

        h = acc_ref[...] + b1_ref[...]                                 # (2,512)
        h = _leaky_relu(bn_rows(h, g1_ref[...], be1_ref[...]))
        h = jnp.dot(h.astype(jnp.bfloat16), w2_ref[...],
                    preferred_element_type=jnp.float32) + b2_ref[...]  # (2,256)
        h = _leaky_relu(bn_rows(h, g2_ref[...], be2_ref[...]))
        logit = jnp.sum(h * w3_ref[...], axis=1, keepdims=True) + b3_ref[...]
        o_ref[...] = 1.0 / (1.0 + jnp.exp(-logit))


def b1_ref_dummy(b0_ref):
    # (helper kept trivial so the prologue reads the *conv* BN beta for both
    #  samples; b0_ref is the BatchNorm2d shift)
    return b0_ref[...]


def dis_fused(pt, q):
    B = pt.shape[0]
    assert B == 2, "kernel is specialized for batch=2 (two per-sample scratches)"
    n_steps = C_OUT // CH_PER_STEP            # 4  -> W1 streamed in 4 MiB blocks

    def full(a):
        return pl.BlockSpec(a.shape, lambda k, _nd=a.ndim: (0,) * _nd)

    return pl.pallas_call(
        dis_fused_kernel,
        out_shape=jax.ShapeDtypeStruct((B, 1), jnp.float32),
        grid_spec=pltpu.PrefetchScalarGridSpec(
            num_scalar_prefetch=0,
            grid=(n_steps,),
            in_specs=[
                full(pt),                 # patches^T (B, 16C, 256) f32
                full(q['wc']),            # (64, 16C) f32
                full(q['g0']),            # (64, 1)
                full(q['b0']),            # (64, 1)
                pl.BlockSpec((CH_PER_STEP * S_OUT, 512), lambda k: (k, 0)),  # W1 bf16
                full(q['b1']), full(q['g1']), full(q['be1']),
                full(q['w2']),            # (512, 256) bf16
                full(q['b2']), full(q['g2']), full(q['be2']),
                full(q['w3']), full(q['b3']),
            ],
            out_specs=pl.BlockSpec((B, 1), lambda k: (0, 0)),
            scratch_shapes=[
                pltpu.VMEM((B, 512), jnp.float32),        # FC1 accumulator
                pltpu.VMEM((C_OUT, S_OUT), jnp.float32),  # conv act, sample 0
                pltpu.VMEM((C_OUT, S_OUT), jnp.float32),  # conv act, sample 1
            ],
        ),
        compiler_params=pltpu.CompilerParams(
            dimension_semantics=("arbitrary",)),
    )(pt, q['wc'], q['g0'], q['b0'],
      q['w1'], q['b1'], q['g1'], q['be1'],
      q['w2'], q['b2'], q['g2'], q['be2'],
      q['w3'], q['b3'])


# ---------------------------------------------------------------------------
# JAX glue
# ---------------------------------------------------------------------------
def im2col_transposed(x):
    # x: (B, C, 32, 32) NCHW; conv k=4, s=2, p=1 -> 16x16 output.
    # Returns per-sample transposed patch matrix (B, 16*C, 256),
    # patch-feature order (kh, kw, ci), spatial order (oh, ow).
    B, C, H, W = x.shape
    OH, OW = H // 2, W // 2
    xp = jnp.pad(x, ((0, 0), (0, 0), (1, 1), (1, 1)))
    slabs = [xp[:, :, kh:kh + 2 * OH:2, kw:kw + 2 * OW:2]
             for kh in range(4) for kw in range(4)]       # 16 x (B, C, OH, OW)
    pt = jnp.concatenate(slabs, axis=1)                   # (B, 16*C, OH, OW)
    return pt.reshape(B, 16 * C, OH * OW)                 # (B, 16*C, 256)


def prepare_params(p, input_dim):
    """One-time weight relayout: conv weight rows match the (kh, kw, ci) patch
    order; W1/W2 pre-transposed to (K, N) and stored bf16 for the HBM stream."""
    C = input_dim
    q = {}
    q['wc'] = p['wc'].transpose(0, 2, 3, 1).reshape(64, 16 * C)   # (64, 16C)
    q['g0'] = p['g0'].reshape(64, 1)
    q['b0'] = p['b0'].reshape(64, 1)
    # FC1 input features are PyTorch's (c, oh, ow) order, which is exactly the
    # kernel's (channel, spatial) activation layout -> just transpose + bf16.
    q['w1'] = p['w1'].T.astype(jnp.bfloat16)                      # (16384, 512)
    q['b1'] = p['b1'].reshape(1, -1)
    q['g1'] = p['g1'].reshape(1, -1)
    q['be1'] = p['be1'].reshape(1, -1)
    q['w2'] = p['w2'].T.astype(jnp.bfloat16)                      # (512, 256)
    q['b2'] = p['b2'].reshape(1, -1)
    q['g2'] = p['g2'].reshape(1, -1)
    q['be2'] = p['be2'].reshape(1, -1)
    q['w3'] = p['w3'].reshape(1, 256)                             # used as a row
    q['b3'] = p['b3'].reshape(1, 1)
    return q


def dis_forward(x, q):
    pt = im2col_transposed(x)            # (B, 16*C, 256)
    out = dis_fused(pt, q)               # (B, 1)
    return out.reshape(x.shape[0])       # == x.view(x.size(0))


def dis_reference(x, p):
    # Pure-JAX reference mirroring the kernel's deliberate precision policy
    # (bf16-stored W1/W2, bf16-rounded activations feeding the two large
    # matmuls, f32 accumulation) so the check validates the kernel logic.
    f32, bf = jnp.float32, jnp.bfloat16
    w1 = p['w1'].astype(bf).astype(f32)
    w2 = p['w2'].astype(bf).astype(f32)
    y = jax.lax.conv_general_dilated(
        x, p['wc'], (2, 2), ((1, 1), (1, 1)),
        dimension_numbers=('NCHW', 'OIHW', 'NCHW'))
    m = y.mean(axis=(0, 2, 3), keepdims=True)
    v = ((y - m) ** 2).mean(axis=(0, 2, 3), keepdims=True)
    y = (y - m) / jnp.sqrt(v + EPS)
    y = y * p['g0'][None, :, None, None] + p['b0'][None, :, None, None]
    y = jnp.where(y > 0, y, NEG_SLOPE * y)
    y = y.reshape(x.shape[0], -1)

    def bn1d(z, g, b):
        mm = z.mean(0, keepdims=True)
        vv = ((z - mm) ** 2).mean(0, keepdims=True)
        return (z - mm) / jnp.sqrt(vv + EPS) * g + b

    h = y.astype(bf).astype(f32) @ w1.T + p['b1']
    h = bn1d(h, p['g1'], p['be1'])
    h = jnp.where(h > 0, h, NEG_SLOPE * h)
    h = h.astype(bf).astype(f32) @ w2.T + p['b2']
    h = bn1d(h, p['g2'], p['be2'])
    h = jnp.where(h > 0, h, NEG_SLOPE * h)
    h = h @ p['w3'].T + p['b3']
    return jax.nn.sigmoid(h).reshape(x.shape[0])


def init_params(key, input_dim):
    ks = jax.random.split(key, 12)
    f32 = jnp.float32
    p = {}
    p['wc'] = 0.05 * jax.random.normal(ks[0], (64, input_dim, 4, 4), f32)
    p['g0'] = 1.0 + 0.1 * jax.random.normal(ks[1], (64,), f32)
    p['b0'] = 0.1 * jax.random.normal(ks[2], (64,), f32)
    p['w1'] = 0.01 * jax.random.normal(ks[3], (512, 64 * 16 * 16), f32)
    p['b1'] = 0.1 * jax.random.normal(ks[4], (512,), f32)
    p['g1'] = 1.0 + 0.1 * jax.random.normal(ks[5], (512,), f32)
    p['be1'] = 0.1 * jax.random.normal(ks[6], (512,), f32)
    p['w2'] = 0.05 * jax.random.normal(ks[7], (256, 512), f32)
    p['b2'] = 0.1 * jax.random.normal(ks[8], (256,), f32)
    p['g2'] = 1.0 + 0.1 * jax.random.normal(ks[9], (256,), f32)
    p['be2'] = 0.1 * jax.random.normal(ks[10], (256,), f32)
    p['w3'] = 0.05 * jax.random.normal(ks[11], (1, 256), f32)
    p['b3'] = jnp.zeros((1,), f32)
    return p


if __name__ == "__main__":
    key = jax.random.PRNGKey(0)
    kx, kp = jax.random.split(key)
    batch, input_dim = 2, 4
    # Dis.fc hard-codes 64*16*16 features -> conv (k=4,s=2,p=1) output must be
    # 16x16, i.e. the input must be 32x32.
    x = jax.random.normal(kx, (batch, input_dim, 32, 32), jnp.float32)
    params = init_params(kp, input_dim)
    prepped = prepare_params(params, input_dim)   # one-time weight relayout

    fwd = jax.jit(dis_forward)
    out = jax.block_until_ready(fwd(x, prepped))
    assert out.shape == (batch,)

    ref = dis_reference(x, params)
    np.testing.assert_allclose(np.asarray(out), np.asarray(ref),
                               atol=1e-2, rtol=1e-2)
    print("KERNEL_OK")
</pallas_src>

<mosaic_0001>
module attributes {stable_mosaic.version = 11 : i64} {
  func.func @dis_fused_kernel(%arg0: i32, %arg1: memref<2x64x256xf32, #tpu.memory_space<vmem>>, %arg2: memref<64x64xf32, #tpu.memory_space<vmem>>, %arg3: memref<64x1xf32, #tpu.memory_space<vmem>>, %arg4: memref<64x1xf32, #tpu.memory_space<vmem>>, %arg5: memref<4096x512xbf16, #tpu.memory_space<vmem>>, %arg6: memref<1x512xf32, #tpu.memory_space<vmem>>, %arg7: memref<1x512xf32, #tpu.memory_space<vmem>>, %arg8: memref<1x512xf32, #tpu.memory_space<vmem>>, %arg9: memref<512x256xbf16, #tpu.memory_space<vmem>>, %arg10: memref<1x256xf32, #tpu.memory_space<vmem>>, %arg11: memref<1x256xf32, #tpu.memory_space<vmem>>, %arg12: memref<1x256xf32, #tpu.memory_space<vmem>>, %arg13: memref<1x256xf32, #tpu.memory_space<vmem>>, %arg14: memref<1x1xf32, #tpu.memory_space<vmem>>, %arg15: memref<2x1xf32, #tpu.memory_space<vmem>>, %arg16: memref<2x512xf32, #tpu.memory_space<vmem>>, %arg17: memref<64x256xf32, #tpu.memory_space<vmem>>, %arg18: memref<64x256xf32, #tpu.memory_space<vmem>>) attributes {dimension_semantics = [#tpu.dimension_semantics<arbitrary>], iteration_bounds = array<i64: 4>, scalar_prefetch = 0 : i64, scratch_operands = 3 : i64, tpu.core_type = #tpu.core_type<tc>, window_params = [{pipeline_mode = #tpu.pipeline_mode<synchronous>, transform_indices = @transform_0, window_bounds = array<i64: 2, 64, 256>}, {pipeline_mode = #tpu.pipeline_mode<synchronous>, transform_indices = @transform_1, window_bounds = array<i64: 64, 64>}, {pipeline_mode = #tpu.pipeline_mode<synchronous>, transform_indices = @transform_2, window_bounds = array<i64: 64, 1>}, {pipeline_mode = #tpu.pipeline_mode<synchronous>, transform_indices = @transform_3, window_bounds = array<i64: 64, 1>}, {transform_indices = @transform_4, window_bounds = array<i64: 4096, 512>}, {pipeline_mode = #tpu.pipeline_mode<synchronous>, transform_indices = @transform_5, window_bounds = array<i64: 1, 512>}, {pipeline_mode = #tpu.pipeline_mode<synchronous>, transform_indices = @transform_6, window_bounds = array<i64: 1, 512>}, {pipeline_mode = #tpu.pipeline_mode<synchronous>, transform_indices = @transform_7, window_bounds = array<i64: 1, 512>}, {pipeline_mode = #tpu.pipeline_mode<synchronous>, transform_indices = @transform_8, window_bounds = array<i64: 512, 256>}, {pipeline_mode = #tpu.pipeline_mode<synchronous>, transform_indices = @transform_9, window_bounds = array<i64: 1, 256>}, {pipeline_mode = #tpu.pipeline_mode<synchronous>, transform_indices = @transform_10, window_bounds = array<i64: 1, 256>}, {pipeline_mode = #tpu.pipeline_mode<synchronous>, transform_indices = @transform_11, window_bounds = array<i64: 1, 256>}, {pipeline_mode = #tpu.pipeline_mode<synchronous>, transform_indices = @transform_12, window_bounds = array<i64: 1, 256>}, {pipeline_mode = #tpu.pipeline_mode<synchronous>, transform_indices = @transform_13, window_bounds = array<i64: 1, 1>}, {pipeline_mode = #tpu.pipeline_mode<synchronous>, transform_indices = @transform_14, window_bounds = array<i64: 2, 1>}]} {
    %c0_i32 = arith.constant 0 : i32
    %0 = arith.cmpi eq, %arg0, %c0_i32 : i32
    %1 = arith.extui %0 : i1 to i32
    %c0_i32_0 = arith.constant 0 : i32
    %2 = arith.cmpi ne, %1, %c0_i32_0 : i32
    scf.if %2 {
      %cst_40 = arith.constant 0.000000e+00 : f32
      %128 = vector.broadcast %cst_40 : f32 to vector<2x512xf32>
      %c0_41 = arith.constant 0 : index
      %c0_42 = arith.constant 0 : index
      %129 = vector.load %arg16[%c0_41, %c0_42] : memref<2x512xf32, #tpu.memory_space<vmem>>, vector<2x512xf32>
      tpu.vector_store %arg16[%c0_41, %c0_42], %128 {strides = array<i32>} : memref<2x512xf32, #tpu.memory_space<vmem>>, vector<2x512xf32>,
      %c0_43 = arith.constant 0 : index
      %c0_44 = arith.constant 0 : index
      %130 = vector.load %arg2[%c0_43, %c0_44] : memref<64x64xf32, #tpu.memory_space<vmem>>, vector<64x64xf32>
      %c0_45 = arith.constant 0 : index
      %c0_46 = arith.constant 0 : index
      %c0_47 = arith.constant 0 : index
      %131 = vector.load %arg1[%c0_45, %c0_46, %c0_47] : memref<2x64x256xf32, #tpu.memory_space<vmem>>, vector<1x64x256xf32>
      %132 = vector.shape_cast %131 : vector<1x64x256xf32> to vector<64x256xf32>
      %cst_48 = arith.constant dense<0.000000e+00> : vector<64x256xf32>
      %133 = tpu.matmul %130, %132, %cst_48 {dimension_numbers = #tpu.dot_dimension_numbers<[1], [0], [0], [1], [0, 0, 1, 1], [], []>} : vector<64x64xf32>, vector<64x256xf32>, vector<64x256xf32> -> vector<64x256xf32>
      %c0_49 = arith.constant 0 : index
      %c0_50 = arith.constant 0 : index
      %134 = vector.load %arg2[%c0_49, %c0_50] : memref<64x64xf32, #tpu.memory_space<vmem>>, vector<64x64xf32>
      %c1 = arith.constant 1 : index
      %c0_51 = arith.constant 0 : index
      %c0_52 = arith.constant 0 : index
      %135 = vector.load %arg1[%c1, %c0_51, %c0_52] : memref<2x64x256xf32, #tpu.memory_space<vmem>>, vector<1x64x256xf32>
      %136 = vector.shape_cast %135 : vector<1x64x256xf32> to vector<64x256xf32>
      %cst_53 = arith.constant dense<0.000000e+00> : vector<64x256xf32>
      %137 = tpu.matmul %134, %136, %cst_53 {dimension_numbers = #tpu.dot_dimension_numbers<[1], [0], [0], [1], [0, 0, 1, 1], [], []>} : vector<64x64xf32>, vector<64x256xf32>, vector<64x256xf32> -> vector<64x256xf32>
      %cst_54 = arith.constant dense<0.000000e+00> : vector<64xf32>
      %138 = vector.multi_reduction <add>, %133, %cst_54 [1] : vector<64x256xf32> to vector<64xf32>
      %139 = vector.shape_cast %138 : vector<64xf32> to vector<64x1xf32>
      %cst_55 = arith.constant dense<0.000000e+00> : vector<64xf32>
      %140 = vector.multi_reduction <add>, %137, %cst_55 [1] : vector<64x256xf32> to vector<64xf32>
      %141 = vector.shape_cast %140 : vector<64xf32> to vector<64x1xf32>
      %142 = arith.addf %139, %141 : vector<64x1xf32>
      %cst_56 = arith.constant 5.120000e+02 : f32
      %143 = vector.broadcast %cst_56 : f32 to vector<64x1xf32>
      %144 = arith.divf %142, %143 : vector<64x1xf32>
      %145 = vector.broadcast %144 : vector<64x1xf32> to vector<64x256xf32>
      %146 = arith.subf %133, %145 : vector<64x256xf32>
      %147 = vector.broadcast %144 : vector<64x1xf32> to vector<64x256xf32>
      %148 = arith.subf %137, %147 : vector<64x256xf32>
      %149 = arith.mulf %146, %146 : vector<64x256xf32>
      %cst_57 = arith.constant dense<0.000000e+00> : vector<64xf32>
      %150 = vector.multi_reduction <add>, %149, %cst_57 [1] : vector<64x256xf32> to vector<64xf32>
      %151 = vector.shape_cast %150 : vector<64xf32> to vector<64x1xf32>
      %152 = arith.mulf %148, %148 : vector<64x256xf32>
      %cst_58 = arith.constant dense<0.000000e+00> : vector<64xf32>
      %153 = vector.multi_reduction <add>, %152, %cst_58 [1] : vector<64x256xf32> to vector<64xf32>
      %154 = vector.shape_cast %153 : vector<64xf32> to vector<64x1xf32>
      %155 = arith.addf %151, %154 : vector<64x1xf32>
      %cst_59 = arith.constant 5.120000e+02 : f32
      %156 = vector.broadcast %cst_59 : f32 to vector<64x1xf32>
      %157 = arith.divf %155, %156 : vector<64x1xf32>
      %cst_60 = arith.constant 9.99999974E-6 : f32
      %158 = vector.broadcast %cst_60 : f32 to vector<64x1xf32>
      %159 = arith.addf %157, %158 : vector<64x1xf32>
      %160 = math.rsqrt %159 : vector<64x1xf32>
      %c0_61 = arith.constant 0 : index
      %c0_62 = arith.constant 0 : index
      %161 = vector.load %arg3[%c0_61, %c0_62] : memref<64x1xf32, #tpu.memory_space<vmem>>, vector<64x1xf32>
      %162 = arith.mulf %160, %161 : vector<64x1xf32>
      %163 = vector.broadcast %162 : vector<64x1xf32> to vector<64x256xf32>
      %164 = arith.mulf %146, %163 : vector<64x256xf32>
      %c0_63 = arith.constant 0 : index
      %c0_64 = arith.constant 0 : index
      %165 = vector.load %arg4[%c0_63, %c0_64] : memref<64x1xf32, #tpu.memory_space<vmem>>, vector<64x1xf32>
      %166 = vector.broadcast %165 : vector<64x1xf32> to vector<64x256xf32>
      %167 = arith.addf %164, %166 : vector<64x256xf32>
      %cst_65 = arith.constant 0.000000e+00 : f32
      %168 = vector.broadcast %cst_65 : f32 to vector<64x256xf32>
      %169 = arith.cmpf ogt, %167, %168 : vector<64x256xf32>
      %cst_66 = arith.constant 2.000000e-01 : f32
      %170 = vector.broadcast %cst_66 : f32 to vector<64x256xf32>
      %171 = arith.mulf %170, %167 : vector<64x256xf32>
      %172 = arith.select %169, %167, %171 : vector<64x256xi1>, vector<64x256xf32>
      %c0_67 = arith.constant 0 : index
      %c0_68 = arith.constant 0 : index
      %173 = vector.load %arg17[%c0_67, %c0_68] : memref<64x256xf32, #tpu.memory_space<vmem>>, vector<64x256xf32>
      tpu.vector_store %arg17[%c0_67, %c0_68], %172 {strides = array<i32>} : memref<64x256xf32, #tpu.memory_space<vmem>>, vector<64x256xf32>,
      %174 = vector.broadcast %162 : vector<64x1xf32> to vector<64x256xf32>
      %175 = arith.mulf %148, %174 : vector<64x256xf32>
      %c0_69 = arith.constant 0 : index
      %c0_70 = arith.constant 0 : index
      %176 = vector.load %arg4[%c0_69, %c0_70] : memref<64x1xf32, #tpu.memory_space<vmem>>, vector<64x1xf32>
      %177 = vector.broadcast %176 : vector<64x1xf32> to vector<64x256xf32>
      %178 = arith.addf %175, %177 : vector<64x256xf32>
      %cst_71 = arith.constant 0.000000e+00 : f32
      %179 = vector.broadcast %cst_71 : f32 to vector<64x256xf32>
      %180 = arith.cmpf ogt, %178, %179 : vector<64x256xf32>
      %cst_72 = arith.constant 2.000000e-01 : f32
      %181 = vector.broadcast %cst_72 : f32 to vector<64x256xf32>
      %182 = arith.mulf %181, %178 : vector<64x256xf32>
      %183 = arith.select %180, %178, %182 : vector<64x256xi1>, vector<64x256xf32>
      %c0_73 = arith.constant 0 : index
      %c0_74 = arith.constant 0 : index
      %184 = vector.load %arg18[%c0_73, %c0_74] : memref<64x256xf32, #tpu.memory_space<vmem>>, vector<64x256xf32>
      tpu.vector_store %arg18[%c0_73, %c0_74], %183 {strides = array<i32>} : memref<64x256xf32, #tpu.memory_space<vmem>>, vector<64x256xf32>,
    } else {
    }
    %c16_i32 = arith.constant 16 : i32
    %3 = arith.muli %arg0, %c16_i32 : i32
    %4 = tpu.assume_multiple %3, 16 : i32
    %5 = arith.index_cast %4 : i32 to index
    %c0 = arith.constant 0 : index
    %6 = vector.load %arg17[%5, %c0] : memref<64x256xf32, #tpu.memory_space<vmem>>, vector<16x256xf32>
    %7 = arith.index_cast %4 : i32 to index
    %c0_1 = arith.constant 0 : index
    %8 = vector.load %arg18[%7, %c0_1] : memref<64x256xf32, #tpu.memory_space<vmem>>, vector<16x256xf32>
    %cst = arith.constant 0.000000e+00 : f32
    %9 = vector.broadcast %cst : f32 to vector<2x512xf32>
    %10 = vector.extract_strided_slice %6 {offsets = [0, 0], sizes = [1, 256], strides = [1, 1]} : vector<16x256xf32> to vector<1x256xf32>
    %11 = vector.extract_strided_slice %8 {offsets = [0, 0], sizes = [1, 256], strides = [1, 1]} : vector<16x256xf32> to vector<1x256xf32>
    %12 = tpu.concatenate %10, %11 in 0 : vector<1x256xf32>, vector<1x256xf32> -> vector<2x256xf32>
    %c0_2 = arith.constant 0 : index
    %c0_3 = arith.constant 0 : index
    %13 = vector.load %arg5[%c0_2, %c0_3] : memref<4096x512xbf16, #tpu.memory_space<vmem>>, vector<256x512xbf16>
    %14 = arith.truncf %12 : vector<2x256xf32> to vector<2x256xbf16>
    %cst_4 = arith.constant dense<0.000000e+00> : vector<2x512xf32>
    %15 = tpu.matmul %14, %13, %cst_4 {dimension_numbers = #tpu.dot_dimension_numbers<[1], [0], [0], [1], [0, 0, 1, 1], [], []>} : vector<2x256xbf16>, vector<256x512xbf16>, vector<2x512xf32> -> vector<2x512xf32>
    %16 = arith.addf %9, %15 : vector<2x512xf32>
    %17 = vector.extract_strided_slice %6 {offsets = [1, 0], sizes = [1, 256], strides = [1, 1]} : vector<16x256xf32> to vector<1x256xf32>
    %18 = vector.extract_strided_slice %8 {offsets = [1, 0], sizes = [1, 256], strides = [1, 1]} : vector<16x256xf32> to vector<1x256xf32>
    %19 = tpu.concatenate %17, %18 in 0 : vector<1x256xf32>, vector<1x256xf32> -> vector<2x256xf32>
    %c256 = arith.constant 256 : index
    %c0_5 = arith.constant 0 : index
    %20 = vector.load %arg5[%c256, %c0_5] : memref<4096x512xbf16, #tpu.memory_space<vmem>>, vector<256x512xbf16>
    %21 = arith.truncf %19 : vector<2x256xf32> to vector<2x256xbf16>
    %cst_6 = arith.constant dense<0.000000e+00> : vector<2x512xf32>
    %22 = tpu.matmul %21, %20, %cst_6 {dimension_numbers = #tpu.dot_dimension_numbers<[1], [0], [0], [1], [0, 0, 1, 1], [], []>} : vector<2x256xbf16>, vector<256x512xbf16>, vector<2x512xf32> -> vector<2x512xf32>
    %23 = arith.addf %16, %22 : vector<2x512xf32>
    %24 = vector.extract_strided_slice %6 {offsets = [2, 0], sizes = [1, 256], strides = [1, 1]} : vector<16x256xf32> to vector<1x256xf32>
    %25 = vector.extract_strided_slice %8 {offsets = [2, 0], sizes = [1, 256], strides = [1, 1]} : vector<16x256xf32> to vector<1x256xf32>
    %26 = tpu.concatenate %24, %25 in 0 : vector<1x256xf32>, vector<1x256xf32> -> vector<2x256xf32>
    %c512 = arith.constant 512 : index
    %c0_7 = arith.constant 0 : index
    %27 = vector.load %arg5[%c512, %c0_7] : memref<4096x512xbf16, #tpu.memory_space<vmem>>, vector<256x512xbf16>
    %28 = arith.truncf %26 : vector<2x256xf32> to vector<2x256xbf16>
    %cst_8 = arith.constant dense<0.000000e+00> : vector<2x512xf32>
    %29 = tpu.matmul %28, %27, %cst_8 {dimension_numbers = #tpu.dot_dimension_numbers<[1], [0], [0], [1], [0, 0, 1, 1], [], []>} : vector<2x256xbf16>, vector<256x512xbf16>, vector<2x512xf32> -> vector<2x512xf32>
    %30 = arith.addf %23, %29 : vector<2x512xf32>
    %31 = vector.extract_strided_slice %6 {offsets = [3, 0], sizes = [1, 256], strides = [1, 1]} : vector<16x256xf32> to vector<1x256xf32>
    %32 = vector.extract_strided_slice %8 {offsets = [3, 0], sizes = [1, 256], strides = [1, 1]} : vector<16x256xf32> to vector<1x256xf32>
    %33 = tpu.concatenate %31, %32 in 0 : vector<1x256xf32>, vector<1x256xf32> -> vector<2x256xf32>
    %c768 = arith.constant 768 : index
    %c0_9 = arith.constant 0 : index
    %34 = vector.load %arg5[%c768, %c0_9] : memref<4096x512xbf16, #tpu.memory_space<vmem>>, vector<256x512xbf16>
    %35 = arith.truncf %33 : vector<2x256xf32> to vector<2x256xbf16>
    %cst_10 = arith.constant dense<0.000000e+00> : vector<2x512xf32>
    %36 = tpu.matmul %35, %34, %cst_10 {dimension_numbers = #tpu.dot_dimension_numbers<[1], [0], [0], [1], [0, 0, 1, 1], [], []>} : vector<2x256xbf16>, vector<256x512xbf16>, vector<2x512xf32> -> vector<2x512xf32>
    %37 = arith.addf %30, %36 : vector<2x512xf32>
    %38 = vector.extract_strided_slice %6 {offsets = [4, 0], sizes = [1, 256], strides = [1, 1]} : vector<16x256xf32> to vector<1x256xf32>
    %39 = vector.extract_strided_slice %8 {offsets = [4, 0], sizes = [1, 256], strides = [1, 1]} : vector<16x256xf32> to vector<1x256xf32>
    %40 = tpu.concatenate %38, %39 in 0 : vector<1x256xf32>, vector<1x256xf32> -> vector<2x256xf32>
    %c1024 = arith.constant 1024 : index
    %c0_11 = arith.constant 0 : index
    %41 = vector.load %arg5[%c1024, %c0_11] : memref<4096x512xbf16, #tpu.memory_space<vmem>>, vector<256x512xbf16>
    %42 = arith.truncf %40 : vector<2x256xf32> to vector<2x256xbf16>
    %cst_12 = arith.constant dense<0.000000e+00> : vector<2x512xf32>
    %43 = tpu.matmul %42, %41, %cst_12 {dimension_numbers = #tpu.dot_dimension_numbers<[1], [0], [0], [1], [0, 0, 1, 1], [], []>} : vector<2x256xbf16>, vector<256x512xbf16>, vector<2x512xf32> -> vector<2x512xf32>
    %44 = arith.addf %37, %43 : vector<2x512xf32>
    %45 = vector.extract_strided_slice %6 {offsets = [5, 0], sizes = [1, 256], strides = [1, 1]} : vector<16x256xf32> to vector<1x256xf32>
    %46 = vector.extract_strided_slice %8 {offsets = [5, 0], sizes = [1, 256], strides = [1, 1]} : vector<16x256xf32> to vector<1x256xf32>
    %47 = tpu.concatenate %45, %46 in 0 : vector<1x256xf32>, vector<1x256xf32> -> vector<2x256xf32>
    %c1280 = arith.constant 1280 : index
    %c0_13 = arith.constant 0 : index
    %48 = vector.load %arg5[%c1280, %c0_13] : memref<4096x512xbf16, #tpu.memory_space<vmem>>, vector<256x512xbf16>
    %49 = arith.truncf %47 : vector<2x256xf32> to vector<2x256xbf16>
    %cst_14 = arith.constant dense<0.000000e+00> : vector<2x512xf32>
    %50 = tpu.matmul %49, %48, %cst_14 {dimension_numbers = #tpu.dot_dimension_numbers<[1], [0], [0], [1], [0, 0, 1, 1], [], []>} : vector<2x256xbf16>, vector<256x512xbf16>, vector<2x512xf32> -> vector<2x512xf32>
    %51 = arith.addf %44, %50 : vector<2x512xf32>
    %52 = vector.extract_strided_slice %6 {offsets = [6, 0], sizes = [1, 256], strides = [1, 1]} : vector<16x256xf32> to vector<1x256xf32>
    %53 = vector.extract_strided_slice %8 {offsets = [6, 0], sizes = [1, 256], strides = [1, 1]} : vector<16x256xf32> to vector<1x256xf32>
    %54 = tpu.concatenate %52, %53 in 0 : vector<1x256xf32>, vector<1x256xf32> -> vector<2x256xf32>
    %c1536 = arith.constant 1536 : index
    %c0_15 = arith.constant 0 : index
    %55 = vector.load %arg5[%c1536, %c0_15] : memref<4096x512xbf16, #tpu.memory_space<vmem>>, vector<256x512xbf16>
    %56 = arith.truncf %54 : vector<2x256xf32> to vector<2x256xbf16>
    %cst_16 = arith.constant dense<0.000000e+00> : vector<2x512xf32>
    %57 = tpu.matmul %56, %55, %cst_16 {dimension_numbers = #tpu.dot_dimension_numbers<[1], [0], [0], [1], [0, 0, 1, 1], [], []>} : vector<2x256xbf16>, vector<256x512xbf16>, vector<2x512xf32> -> vector<2x512xf32>
    %58 = arith.addf %51, %57 : vector<2x512xf32>
    %59 = vector.extract_strided_slice %6 {offsets = [7, 0], sizes = [1, 256], strides = [1, 1]} : vector<16x256xf32> to vector<1x256xf32>
    %60 = vector.extract_strided_slice %8 {offsets = [7, 0], sizes = [1, 256], strides = [1, 1]} : vector<16x256xf32> to vector<1x256xf32>
    %61 = tpu.concatenate %59, %60 in 0 : vector<1x256xf32>, vector<1x256xf32> -> vector<2x256xf32>
    %c1792 = arith.constant 1792 : index
    %c0_17 = arith.constant 0 : index
    %62 = vector.load %arg5[%c1792, %c0_17] : memref<4096x512xbf16, #tpu.memory_space<vmem>>, vector<256x512xbf16>
    %63 = arith.truncf %61 : vector<2x256xf32> to vector<2x256xbf16>
    %cst_18 = arith.constant dense<0.000000e+00> : vector<2x512xf32>
    %64 = tpu.matmul %63, %62, %cst_18 {dimension_numbers = #tpu.dot_dimension_numbers<[1], [0], [0], [1], [0, 0, 1, 1], [], []>} : vector<2x256xbf16>, vector<256x512xbf16>, vector<2x512xf32> -> vector<2x512xf32>
    %65 = arith.addf %58, %64 : vector<2x512xf32>
    %66 = vector.extract_strided_slice %6 {offsets = [8, 0], sizes = [1, 256], strides = [1, 1]} : vector<16x256xf32> to vector<1x256xf32>
    %67 = vector.extract_strided_slice %8 {offsets = [8, 0], sizes = [1, 256], strides = [1, 1]} : vector<16x256xf32> to vector<1x256xf32>
    %68 = tpu.concatenate %66, %67 in 0 : vector<1x256xf32>, vector<1x256xf32> -> vector<2x256xf32>
    %c2048 = arith.constant 2048 : index
    %c0_19 = arith.constant 0 : index
    %69 = vector.load %arg5[%c2048, %c0_19] : memref<4096x512xbf16, #tpu.memory_space<vmem>>, vector<256x512xbf16>
    %70 = arith.truncf %68 : vector<2x256xf32> to vector<2x256xbf16>
    %cst_20 = arith.constant dense<0.000000e+00> : vector<2x512xf32>
    %71 = tpu.matmul %70, %69, %cst_20 {dimension_numbers = #tpu.dot_dimension_numbers<[1], [0], [0], [1], [0, 0, 1, 1], [], []>} : vector<2x256xbf16>, vector<256x512xbf16>, vector<2x512xf32> -> vector<2x512xf32>
    %72 = arith.addf %65, %71 : vector<2x512xf32>
    %73 = vector.extract_strided_slice %6 {offsets = [9, 0], sizes = [1, 256], strides = [1, 1]} : vector<16x256xf32> to vector<1x256xf32>
    %74 = vector.extract_strided_slice %8 {offsets = [9, 0], sizes = [1, 256], strides = [1, 1]} : vector<16x256xf32> to vector<1x256xf32>
    %75 = tpu.concatenate %73, %74 in 0 : vector<1x256xf32>, vector<1x256xf32> -> vector<2x256xf32>
    %c2304 = arith.constant 2304 : index
    %c0_21 = arith.constant 0 : index
    %76 = vector.load %arg5[%c2304, %c0_21] : memref<4096x512xbf16, #tpu.memory_space<vmem>>, vector<256x512xbf16>
    %77 = arith.truncf %75 : vector<2x256xf32> to vector<2x256xbf16>
    %cst_22 = arith.constant dense<0.000000e+00> : vector<2x512xf32>
    %78 = tpu.matmul %77, %76, %cst_22 {dimension_numbers = #tpu.dot_dimension_numbers<[1], [0], [0], [1], [0, 0, 1, 1], [], []>} : vector<2x256xbf16>, vector<256x512xbf16>, vector<2x512xf32> -> vector<2x512xf32>
    %79 = arith.addf %72, %78 : vector<2x512xf32>
    %80 = vector.extract_strided_slice %6 {offsets = [10, 0], sizes = [1, 256], strides = [1, 1]} : vector<16x256xf32> to vector<1x256xf32>
    %81 = vector.extract_strided_slice %8 {offsets = [10, 0], sizes = [1, 256], strides = [1, 1]} : vector<16x256xf32> to vector<1x256xf32>
    %82 = tpu.concatenate %80, %81 in 0 : vector<1x256xf32>, vector<1x256xf32> -> vector<2x256xf32>
    %c2560 = arith.constant 2560 : index
    %c0_23 = arith.constant 0 : index
    %83 = vector.load %arg5[%c2560, %c0_23] : memref<4096x512xbf16, #tpu.memory_space<vmem>>, vector<256x512xbf16>
    %84 = arith.truncf %82 : vector<2x256xf32> to vector<2x256xbf16>
    %cst_24 = arith.constant dense<0.000000e+00> : vector<2x512xf32>
    %85 = tpu.matmul %84, %83, %cst_24 {dimension_numbers = #tpu.dot_dimension_numbers<[1], [0], [0], [1], [0, 0, 1, 1], [], []>} : vector<2x256xbf16>, vector<256x512xbf16>, vector<2x512xf32> -> vector<2x512xf32>
    %86 = arith.addf %79, %85 : vector<2x512xf32>
    %87 = vector.extract_strided_slice %6 {offsets = [11, 0], sizes = [1, 256], strides = [1, 1]} : vector<16x256xf32> to vector<1x256xf32>
    %88 = vector.extract_strided_slice %8 {offsets = [11, 0], sizes = [1, 256], strides = [1, 1]} : vector<16x256xf32> to vector<1x256xf32>
    %89 = tpu.concatenate %87, %88 in 0 : vector<1x256xf32>, vector<1x256xf32> -> vector<2x256xf32>
    %c2816 = arith.constant 2816 : index
    %c0_25 = arith.constant 0 : index
    %90 = vector.load %arg5[%c2816, %c0_25] : memref<4096x512xbf16, #tpu.memory_space<vmem>>, vector<256x512xbf16>
    %91 = arith.truncf %89 : vector<2x256xf32> to vector<2x256xbf16>
    %cst_26 = arith.constant dense<0.000000e+00> : vector<2x512xf32>
    %92 = tpu.matmul %91, %90, %cst_26 {dimension_numbers = #tpu.dot_dimension_numbers<[1], [0], [0], [1], [0, 0, 1, 1], [], []>} : vector<2x256xbf16>, vector<256x512xbf16>, vector<2x512xf32> -> vector<2x512xf32>
    %93 = arith.addf %86, %92 : vector<2x512xf32>
    %94 = vector.extract_strided_slice %6 {offsets = [12, 0], sizes = [1, 256], strides = [1, 1]} : vector<16x256xf32> to vector<1x256xf32>
    %95 = vector.extract_strided_slice %8 {offsets = [12, 0], sizes = [1, 256], strides = [1, 1]} : vector<16x256xf32> to vector<1x256xf32>
    %96 = tpu.concatenate %94, %95 in 0 : vector<1x256xf32>, vector<1x256xf32> -> vector<2x256xf32>
    %c3072 = arith.constant 3072 : index
    %c0_27 = arith.constant 0 : index
    %97 = vector.load %arg5[%c3072, %c0_27] : memref<4096x512xbf16, #tpu.memory_space<vmem>>, vector<256x512xbf16>
    %98 = arith.truncf %96 : vector<2x256xf32> to vector<2x256xbf16>
    %cst_28 = arith.constant dense<0.000000e+00> : vector<2x512xf32>
    %99 = tpu.matmul %98, %97, %cst_28 {dimension_numbers = #tpu.dot_dimension_numbers<[1], [0], [0], [1], [0, 0, 1, 1], [], []>} : vector<2x256xbf16>, vector<256x512xbf16>, vector<2x512xf32> -> vector<2x512xf32>
    %100 = arith.addf %93, %99 : vector<2x512xf32>
    %101 = vector.extract_strided_slice %6 {offsets = [13, 0], sizes = [1, 256], strides = [1, 1]} : vector<16x256xf32> to vector<1x256xf32>
    %102 = vector.extract_strided_slice %8 {offsets = [13, 0], sizes = [1, 256], strides = [1, 1]} : vector<16x256xf32> to vector<1x256xf32>
    %103 = tpu.concatenate %101, %102 in 0 : vector<1x256xf32>, vector<1x256xf32> -> vector<2x256xf32>
    %c3328 = arith.constant 3328 : index
    %c0_29 = arith.constant 0 : index
    %104 = vector.load %arg5[%c3328, %c0_29] : memref<4096x512xbf16, #tpu.memory_space<vmem>>, vector<256x512xbf16>
    %105 = arith.truncf %103 : vector<2x256xf32> to vector<2x256xbf16>
    %cst_30 = arith.constant dense<0.000000e+00> : vector<2x512xf32>
    %106 = tpu.matmul %105, %104, %cst_30 {dimension_numbers = #tpu.dot_dimension_numbers<[1], [0], [0], [1], [0, 0, 1, 1], [], []>} : vector<2x256xbf16>, vector<256x512xbf16>, vector<2x512xf32> -> vector<2x512xf32>
    %107 = arith.addf %100, %106 : vector<2x512xf32>
    %108 = vector.extract_strided_slice %6 {offsets = [14, 0], sizes = [1, 256], strides = [1, 1]} : vector<16x256xf32> to vector<1x256xf32>
    %109 = vector.extract_strided_slice %8 {offsets = [14, 0], sizes = [1, 256], strides = [1, 1]} : vector<16x256xf32> to vector<1x256xf32>
    %110 = tpu.concatenate %108, %109 in 0 : vector<1x256xf32>, vector<1x256xf32> -> vector<2x256xf32>
    %c3584 = arith.constant 3584 : index
    %c0_31 = arith.constant 0 : index
    %111 = vector.load %arg5[%c3584, %c0_31] : memref<4096x512xbf16, #tpu.memory_space<vmem>>, vector<256x512xbf16>
    %112 = arith.truncf %110 : vector<2x256xf32> to vector<2x256xbf16>
    %cst_32 = arith.constant dense<0.000000e+00> : vector<2x512xf32>
    %113 = tpu.matmul %112, %111, %cst_32 {dimension_numbers = #tpu.dot_dimension_numbers<[1], [0], [0], [1], [0, 0, 1, 1], [], []>} : vector<2x256xbf16>, vector<256x512xbf16>, vector<2x512xf32> -> vector<2x512xf32>
    %114 = arith.addf %107, %113 : vector<2x512xf32>
    %115 = vector.extract_strided_slice %6 {offsets = [15, 0], sizes = [1, 256], strides = [1, 1]} : vector<16x256xf32> to vector<1x256xf32>
    %116 = vector.extract_strided_slice %8 {offsets = [15, 0], sizes = [1, 256], strides = [1, 1]} : vector<16x256xf32> to vector<1x256xf32>
    %117 = tpu.concatenate %115, %116 in 0 : vector<1x256xf32>, vector<1x256xf32> -> vector<2x256xf32>
    %c3840 = arith.constant 3840 : index
    %c0_33 = arith.constant 0 : index
    %118 = vector.load %arg5[%c3840, %c0_33] : memref<4096x512xbf16, #tpu.memory_space<vmem>>, vector<256x512xbf16>
    %119 = arith.truncf %117 : vector<2x256xf32> to vector<2x256xbf16>
    %cst_34 = arith.constant dense<0.000000e+00> : vector<2x512xf32>
    %120 = tpu.matmul %119, %118, %cst_34 {dimension_numbers = #tpu.dot_dimension_numbers<[1], [0], [0], [1], [0, 0, 1, 1], [], []>} : vector<2x256xbf16>, vector<256x512xbf16>, vector<2x512xf32> -> vector<2x512xf32>
    %121 = arith.addf %114, %120 : vector<2x512xf32>
    %c0_35 = arith.constant 0 : index
    %c0_36 = arith.constant 0 : index
    %122 = vector.load %arg16[%c0_35, %c0_36] : memref<2x512xf32, #tpu.memory_space<vmem>>, vector<2x512xf32>
    %123 = arith.addf %122, %121 : vector<2x512xf32>
    %c0_37 = arith.constant 0 : index
    %c0_38 = arith.constant 0 : index
    %124 = vector.load %arg16[%c0_37, %c0_38] : memref<2x512xf32, #tpu.memory_space<vmem>>, vector<2x512xf32>
    tpu.vector_store %arg16[%c0_37, %c0_38], %123 {strides = array<i32>} : memref<2x512xf32, #tpu.memory_space<vmem>>, vector<2x512xf32>,
    %c3_i32 = arith.constant 3 : i32
    %125 = arith.cmpi eq, %arg0, %c3_i32 : i32
    %126 = arith.extui %125 : i1 to i32
    %c0_i32_39 = arith.constant 0 : i32
    %127 = arith.cmpi ne, %126, %c0_i32_39 : i32
    scf.if %127 {
      %c0_40 = arith.constant 0 : index
      %c0_41 = arith.constant 0 : index
      %128 = vector.load %arg16[%c0_40, %c0_41] : memref<2x512xf32, #tpu.memory_space<vmem>>, vector<2x512xf32>
      %c0_42 = arith.constant 0 : index
      %c0_43 = arith.constant 0 : index
      %129 = vector.load %arg6[%c0_42, %c0_43] : memref<1x512xf32, #tpu.memory_space<vmem>>, vector<1x512xf32>
      %130 = vector.broadcast %129 : vector<1x512xf32> to vector<2x512xf32>
      %131 = arith.addf %128, %130 : vector<2x512xf32>
      %c0_44 = arith.constant 0 : index
      %c0_45 = arith.constant 0 : index
      %132 = vector.load %arg7[%c0_44, %c0_45] : memref<1x512xf32, #tpu.memory_space<vmem>>, vector<1x512xf32>
      %c0_46 = arith.constant 0 : index
      %c0_47 = arith.constant 0 : index
      %133 = vector.load %arg8[%c0_46, %c0_47] : memref<1x512xf32, #tpu.memory_space<vmem>>, vector<1x512xf32>
      %cst_48 = arith.constant dense<0.000000e+00> : vector<512xf32>
      %134 = vector.multi_reduction <add>, %131, %cst_48 [0] : vector<2x512xf32> to vector<512xf32>
      %135 = vector.shape_cast %134 : vector<512xf32> to vector<1x512xf32>
      %cst_49 = arith.constant 2.000000e+00 : f32
      %136 = vector.broadcast %cst_49 : f32 to vector<1x512xf32>
      %137 = arith.divf %135, %136 : vector<1x512xf32>
      %138 = vector.broadcast %137 : vector<1x512xf32> to vector<2x512xf32>
      %139 = arith.subf %131, %138 : vector<2x512xf32>
      %140 = arith.mulf %139, %139 : vector<2x512xf32>
      %cst_50 = arith.constant dense<0.000000e+00> : vector<512xf32>
      %141 = vector.multi_reduction <add>, %140, %cst_50 [0] : vector<2x512xf32> to vector<512xf32>
      %142 = vector.shape_cast %141 : vector<512xf32> to vector<1x512xf32>
      %cst_51 = arith.constant 2.000000e+00 : f32
      %143 = vector.broadcast %cst_51 : f32 to vector<1x512xf32>
      %144 = arith.divf %142, %143 : vector<1x512xf32>
      %cst_52 = arith.constant 9.99999974E-6 : f32
      %145 = vector.broadcast %cst_52 : f32 to vector<1x512xf32>
      %146 = arith.addf %144, %145 : vector<1x512xf32>
      %147 = math.rsqrt %146 : vector<1x512xf32>
      %148 = vector.broadcast %147 : vector<1x512xf32> to vector<2x512xf32>
      %149 = arith.mulf %139, %148 : vector<2x512xf32>
      %150 = vector.broadcast %132 : vector<1x512xf32> to vector<2x512xf32>
      %151 = arith.mulf %149, %150 : vector<2x512xf32>
      %152 = vector.broadcast %133 : vector<1x512xf32> to vector<2x512xf32>
      %153 = arith.addf %151, %152 : vector<2x512xf32>
      %cst_53 = arith.constant 0.000000e+00 : f32
      %154 = vector.broadcast %cst_53 : f32 to vector<2x512xf32>
      %155 = arith.cmpf ogt, %153, %154 : vector<2x512xf32>
      %cst_54 = arith.constant 2.000000e-01 : f32
      %156 = vector.broadcast %cst_54 : f32 to vector<2x512xf32>
      %157 = arith.mulf %156, %153 : vector<2x512xf32>
      %158 = arith.select %155, %153, %157 : vector<2x512xi1>, vector<2x512xf32>
      %159 = arith.truncf %158 : vector<2x512xf32> to vector<2x512xbf16>
      %c0_55 = arith.constant 0 : index
      %c0_56 = arith.constant 0 : index
      %160 = vector.load %arg9[%c0_55, %c0_56] : memref<512x256xbf16, #tpu.memory_space<vmem>>, vector<512x256xbf16>
      %cst_57 = arith.constant dense<0.000000e+00> : vector<2x256xf32>
      %161 = tpu.matmul %159, %160, %cst_57 {dimension_numbers = #tpu.dot_dimension_numbers<[1], [0], [0], [1], [0, 0, 1, 1], [], []>} : vector<2x512xbf16>, vector<512x256xbf16>, vector<2x256xf32> -> vector<2x256xf32>
      %c0_58 = arith.constant 0 : index
      %c0_59 = arith.constant 0 : index
      %162 = vector.load %arg10[%c0_58, %c0_59] : memref<1x256xf32, #tpu.memory_space<vmem>>, vector<1x256xf32>
      %163 = vector.broadcast %162 : vector<1x256xf32> to vector<2x256xf32>
      %164 = arith.addf %161, %163 : vector<2x256xf32>
      %c0_60 = arith.constant 0 : index
      %c0_61 = arith.constant 0 : index
      %165 = vector.load %arg11[%c0_60, %c0_61] : memref<1x256xf32, #tpu.memory_space<vmem>>, vector<1x256xf32>
      %c0_62 = arith.constant 0 : index
      %c0_63 = arith.constant 0 : index
      %166 = vector.load %arg12[%c0_62, %c0_63] : memref<1x256xf32, #tpu.memory_space<vmem>>, vector<1x256xf32>
      %cst_64 = arith.constant dense<0.000000e+00> : vector<256xf32>
      %167 = vector.multi_reduction <add>, %164, %cst_64 [0] : vector<2x256xf32> to vector<256xf32>
      %168 = vector.shape_cast %167 : vector<256xf32> to vector<1x256xf32>
      %cst_65 = arith.constant 2.000000e+00 : f32
      %169 = vector.broadcast %cst_65 : f32 to vector<1x256xf32>
      %170 = arith.divf %168, %169 : vector<1x256xf32>
      %171 = vector.broadcast %170 : vector<1x256xf32> to vector<2x256xf32>
      %172 = arith.subf %164, %171 : vector<2x256xf32>
      %173 = arith.mulf %172, %172 : vector<2x256xf32>
      %cst_66 = arith.constant dense<0.000000e+00> : vector<256xf32>
      %174 = vector.multi_reduction <add>, %173, %cst_66 [0] : vector<2x256xf32> to vector<256xf32>
      %175 = vector.shape_cast %174 : vector<256xf32> to vector<1x256xf32>
      %cst_67 = arith.constant 2.000000e+00 : f32
      %176 = vector.broadcast %cst_67 : f32 to vector<1x256xf32>
      %177 = arith.divf %175, %176 : vector<1x256xf32>
      %cst_68 = arith.constant 9.99999974E-6 : f32
      %178 = vector.broadcast %cst_68 : f32 to vector<1x256xf32>
      %179 = arith.addf %177, %178 : vector<1x256xf32>
      %180 = math.rsqrt %179 : vector<1x256xf32>
      %181 = vector.broadcast %180 : vector<1x256xf32> to vector<2x256xf32>
      %182 = arith.mulf %172, %181 : vector<2x256xf32>
      %183 = vector.broadcast %165 : vector<1x256xf32> to vector<2x256xf32>
      %184 = arith.mulf %182, %183 : vector<2x256xf32>
      %185 = vector.broadcast %166 : vector<1x256xf32> to vector<2x256xf32>
      %186 = arith.addf %184, %185 : vector<2x256xf32>
      %cst_69 = arith.constant 0.000000e+00 : f32
      %187 = vector.broadcast %cst_69 : f32 to vector<2x256xf32>
      %188 = arith.cmpf ogt, %186, %187 : vector<2x256xf32>
      %cst_70 = arith.constant 2.000000e-01 : f32
      %189 = vector.broadcast %cst_70 : f32 to vector<2x256xf32>
      %190 = arith.mulf %189, %186 : vector<2x256xf32>
      %191 = arith.select %188, %186, %190 : vector<2x256xi1>, vector<2x256xf32>
      %c0_71 = arith.constant 0 : index
      %c0_72 = arith.constant 0 : index
      %192 = vector.load %arg13[%c0_71, %c0_72] : memref<1x256xf32, #tpu.memory_space<vmem>>, vector<1x256xf32>
      %193 = vector.broadcast %192 : vector<1x256xf32> to vector<2x256xf32>
      %194 = arith.mulf %191, %193 : vector<2x256xf32>
      %cst_73 = arith.constant dense<0.000000e+00> : vector<2xf32>
      %195 = vector.multi_reduction <add>, %194, %cst_73 [1] : vector<2x256xf32> to vector<2xf32>
      %196 = vector.shape_cast %195 : vector<2xf32> to vector<2x1xf32>
      %c0_74 = arith.constant 0 : index
      %c0_75 = arith.constant 0 : index
      %197 = vector.load %arg14[%c0_74, %c0_75] : memref<1x1xf32, #tpu.memory_space<vmem>>, vector<1x1xf32>
      %198 = vector.broadcast %197 : vector<1x1xf32> to vector<2x1xf32>
      %199 = arith.addf %196, %198 : vector<2x1xf32>
      %cst_76 = arith.constant 0.000000e+00 : f32
      %200 = vector.broadcast %cst_76 : f32 to vector<2x1xf32>
      %201 = arith.subf %200, %199 : vector<2x1xf32>
      %202 = math.exp %201 : vector<2x1xf32>
      %cst_77 = arith.constant 1.000000e+00 : f32
      %203 = vector.broadcast %cst_77 : f32 to vector<2x1xf32>
      %204 = arith.addf %203, %202 : vector<2x1xf32>
      %cst_78 = arith.constant 1.000000e+00 : f32
      %205 = vector.broadcast %cst_78 : f32 to vector<2x1xf32>
      %206 = arith.divf %205, %204 : vector<2x1xf32>
      %c0_79 = arith.constant 0 : index
      %c0_80 = arith.constant 0 : index
      %207 = vector.load %arg15[%c0_79, %c0_80] : memref<2x1xf32, #tpu.memory_space<vmem>>, vector<2x1xf32>
      tpu.vector_store %arg15[%c0_79, %c0_80], %206 {strides = array<i32>} : memref<2x1xf32, #tpu.memory_space<vmem>>, vector<2x1xf32>,
    } else {
    }
    return
  }
  func.func @transform_0(%arg0: i32) -> (i32, i32, i32) {
    %c0_i32 = arith.constant 0 : i32
    %c0_i32_0 = arith.constant 0 : i32
    %c0_i32_1 = arith.constant 0 : i32
    %c0_i32_2 = arith.constant 0 : i32
    return %c0_i32, %c0_i32_0, %c0_i32_1 : i32, i32, i32
  }
  func.func @transform_1(%arg0: i32) -> (i32, i32) {
    %c0_i32 = arith.constant 0 : i32
    %c0_i32_0 = arith.constant 0 : i32
    %c0_i32_1 = arith.constant 0 : i32
    return %c0_i32, %c0_i32_0 : i32, i32
  }
  func.func @transform_2(%arg0: i32) -> (i32, i32) {
    %c0_i32 = arith.constant 0 : i32
    %c0_i32_0 = arith.constant 0 : i32
    %c0_i32_1 = arith.constant 0 : i32
    return %c0_i32, %c0_i32_0 : i32, i32
  }
  func.func @transform_3(%arg0: i32) -> (i32, i32) {
    %c0_i32 = arith.constant 0 : i32
    %c0_i32_0 = arith.constant 0 : i32
    %c0_i32_1 = arith.constant 0 : i32
    return %c0_i32, %c0_i32_0 : i32, i32
  }
  func.func @transform_4(%arg0: i32) -> (i32, i32) {
    %c0_i32 = arith.constant 0 : i32
    %c0_i32_0 = arith.constant 0 : i32
    return %arg0, %c0_i32 : i32, i32
  }
  func.func @transform_5(%arg0: i32) -> (i32, i32) {
    %c0_i32 = arith.constant 0 : i32
    %c0_i32_0 = arith.constant 0 : i32
    %c0_i32_1 = arith.constant 0 : i32
    return %c0_i32, %c0_i32_0 : i32, i32
  }
  func.func @transform_6(%arg0: i32) -> (i32, i32) {
    %c0_i32 = arith.constant 0 : i32
    %c0_i32_0 = arith.constant 0 : i32
    %c0_i32_1 = arith.constant 0 : i32
    return %c0_i32, %c0_i32_0 : i32, i32
  }
  func.func @transform_7(%arg0: i32) -> (i32, i32) {
    %c0_i32 = arith.constant 0 : i32
    %c0_i32_0 = arith.constant 0 : i32
    %c0_i32_1 = arith.constant 0 : i32
    return %c0_i32, %c0_i32_0 : i32, i32
  }
  func.func @transform_8(%arg0: i32) -> (i32, i32) {
    %c0_i32 = arith.constant 0 : i32
    %c0_i32_0 = arith.constant 0 : i32
    %c0_i32_1 = arith.constant 0 : i32
    return %c0_i32, %c0_i32_0 : i32, i32
  }
  func.func @transform_9(%arg0: i32) -> (i32, i32) {
    %c0_i32 = arith.constant 0 : i32
    %c0_i32_0 = arith.constant 0 : i32
    %c0_i32_1 = arith.constant 0 : i32
    return %c0_i32, %c0_i32_0 : i32, i32
  }
  func.func @transform_10(%arg0: i32) -> (i32, i32) {
    %c0_i32 = arith.constant 0 : i32
    %c0_i32_0 = arith.constant 0 : i32
    %c0_i32_1 = arith.constant 0 : i32
    return %c0_i32, %c0_i32_0 : i32, i32
  }
  func.func @transform_11(%arg0: i32) -> (i32, i32) {
    %c0_i32 = arith.constant 0 : i32
    %c0_i32_0 = arith.constant 0 : i32
    %c0_i32_1 = arith.constant 0 : i32
    return %c0_i32, %c0_i32_0 : i32, i32
  }
  func.func @transform_12(%arg0: i32) -> (i32, i32) {
    %c0_i32 = arith.constant 0 : i32
    %c0_i32_0 = arith.constant 0 : i32
    %c0_i32_1 = arith.constant 0 : i32
    return %c0_i32, %c0_i32_0 : i32, i32
  }
  func.func @transform_13(%arg0: i32) -> (i32, i32) {
    %c0_i32 = arith.constant 0 : i32
    %c0_i32_0 = arith.constant 0 : i32
    %c0_i32_1 = arith.constant 0 : i32
    return %c0_i32, %c0_i32_0 : i32, i32
  }
  func.func @transform_14(%arg0: i32) -> (i32, i32) {
    %c0_i32 = arith.constant 0 : i32
    %c0_i32_0 = arith.constant 0 : i32
    %c0_i32_1 = arith.constant 0 : i32
    return %c0_i32, %c0_i32_0 : i32, i32
  }
}

</mosaic_0001>

<llo_original>
// kernel: dis_forward.1
$region0: #{dis_forward.1}
  #allocation0 [shape = 'u32[]', space=smem, size = 0x4, offset = 0x4, fixed_abs, tag = 'smem constant byte address 0x4 - core index']
  #allocation1 [shape = 'u32[72,128]{1,0:T(1,128)}', space=vmem, size = 0x9000, scoped, tag = 'internal scratch']
  #allocation2 [shape = 'f32[2,512]{1,0:T(2,128)}', space=vmem, size = 0x1000, scoped, tag = 'scratch operand']
  #allocation3 [shape = 'f32[64,256]{1,0:T(8,128)}', space=vmem, size = 0x10000, scoped, tag = 'scratch operand']
  #allocation4 [shape = 'f32[64,256]{1,0:T(8,128)}', space=vmem, size = 0x10000, scoped, tag = 'scratch operand']
  #allocation5 [shape = 'f32[1,1]{1,0:T(1,128)S(1)}', space=vmem, size = 0x200, scoped, tag = 'scoped memory for dis_forward.1']
  %s0 = inlined_call_operand.vmem [shape: f32[2,64,256], index: 0, kind: input, shape index: {}]
  %s1 = inlined_call_operand.vmem [shape: f32[64,64], index: 1, kind: input, shape index: {}]
  %s2 = inlined_call_operand.vmem [shape: f32[64,1], index: 2, kind: input, shape index: {}]
  %s3 = inlined_call_operand.vmem [shape: f32[64,1], index: 3, kind: input, shape index: {}]
  %s4 = inlined_call_operand.vmem [shape: bf16[16384,512], index: 4, kind: input, shape index: {}]
  %s5 = inlined_call_operand.vmem [shape: f32[1,512], index: 5, kind: input, shape index: {}]
  %s6 = inlined_call_operand.vmem [shape: f32[1,512], index: 6, kind: input, shape index: {}]
  %s7 = inlined_call_operand.vmem [shape: f32[1,512], index: 7, kind: input, shape index: {}]
  %s8 = inlined_call_operand.hbm [shape: bf16[512,256], index: 8, kind: input, shape index: {}]
  %s9 = inlined_call_operand.vmem [shape: f32[1,256], index: 9, kind: input, shape index: {}]
  %s10 = inlined_call_operand.vmem [shape: f32[1,256], index: 10, kind: input, shape index: {}]
  %s11 = inlined_call_operand.vmem [shape: f32[1,256], index: 11, kind: input, shape index: {}]
  %s12 = inlined_call_operand.vmem [shape: f32[1,256], index: 12, kind: input, shape index: {}]
  %s13 = inlined_call_operand.<no memory space> [shape: f32[1,1], index: 13, kind: input, shape index: {}]
  %s14 = inlined_call_operand.vmem [shape: f32[2,1], index: 14, kind: output, shape index: {}]
  %s15 = sld [smem:[#allocation0]]
  $region101: #{dis_forward.1} parent=0
    _
  %s17 = ssub.s32 1, %s15
  %s18 = scalar_select 0, %s17, %s15
  %v19 = vstv %s13
  %20 = vst [vmem:[#allocation5] sm:$0x1] %v19
  $region1: #{dis_forward.1} parent=0
    #allocation6 [shape = 'u8[262144]{0}', space=vmem, size = 0x40000, scoped, tag = 'input window, operand 8, single buffered']
    #allocation7 [shape = 's32[2]{0}', space=sflag, size = 0x8, scoped, tag = 'scoped memory for dis_forward.1']
    %21 = vsyncpa [#allocation7], 0
    loop: start=0, step=1, limit=6
    $region2: #{dis_forward.1} parent=1 // loop_pre_header
      _
    $region3: #{dis_forward.1} parent=1 // loop_header
      %s23 = sphi 0, %s27
      %p24 = scmp.ge.s32.totalorder %s23, 6
      %s31 = sphi 0, %s31
      %s33 = sphi 0, %s31
      %s34 = sphi 0, %s33
      %s48 = sphi 0, %s34
      %s52 = sphi 0, %s52
      %s54 = sphi 0, %s52
      %s55 = sphi 0, %s54
      %s69 = sphi 0, %s55
      %s73 = sphi 0, %s73
      %s75 = sphi 0, %s73
      %s76 = sphi 0, %s75
      %s90 = sphi 0, %s76
      %s94 = sphi 0, %s94
      %s96 = sphi 0, %s94
      %s97 = sphi 0, %s96
      %s111 = sphi 0, %s97
      %s117 = sphi 0, %s119
      %s120 = sphi 0, %s117
      %s121 = sphi 0, %s120
      %s137 = sphi 0, %s121
      %s141 = sphi 0, %s141
      %s143 = sphi 0, %s141
      %s144 = sphi 0, %s143
      %s158 = sphi 0, %s144
      %s162 = sphi 0, %s162
      %s164 = sphi 0, %s162
      %s165 = sphi 0, %s164
      %s179 = sphi 0, %s165
      %s183 = sphi 0, %s183
      %s185 = sphi 0, %s183
      %s186 = sphi 0, %s185
      %s200 = sphi 0, %s186
      %s204 = sphi 0, %s204
      %s206 = sphi 0, %s204
      %s207 = sphi 0, %s206
      %s221 = sphi 0, %s207
      %s225 = sphi 0, %s225
      %s227 = sphi 0, %s225
      %s228 = sphi 0, %s227
      %s242 = sphi 0, %s228
      %s246 = sphi 0, %s246
      %s248 = sphi 0, %s246
      %s249 = sphi 0, %s248
      %s263 = sphi 0, %s249
      %s267 = sphi 0, %s267
      %s269 = sphi 0, %s267
      %s270 = sphi 0, %s269
      %s284 = sphi 0, %s270
      %s288 = sphi 0, %s288
      %s290 = sphi 0, %s288
      %s291 = sphi 0, %s290
      %s305 = sphi 0, %s291
      %s309 = sphi 0, %s309
      %s311 = sphi 0, %s309
      %s312 = sphi 0, %s311
      %s326 = sphi 0, %s312
      %s330 = sphi 0, %s330
      %s332 = sphi 0, %s330
      %s333 = sphi 0, %s332
      %s347 = sphi 0, %s333
    $region4: #{dis_forward.1} parent=1 // loop_header_branch
      %26 = sbr.rel (%p24) target = $region8
    $region5: #{dis_forward.1} parent=1 // loop_body
      %s28 = ssub.s32 %s23, 1
      %s29 = ssub.s32 %s23, 2
      %s30 = sadd.s32 %s23, 1
      %s32 = sadd.s32 %s31, 1
      %p35 = scmp.eq.s32.totalorder %s23, 3
      %p36 = scmp.ne.s32.totalorder %s31, %s33
      %p37 = scmp.eq.s32.totalorder %s23, 0
      %p38 = por %p36, %p37
      %p39 = scmp.ne.s32.totalorder %s31, %s33
      %p40 = scmp.eq.s32.totalorder %s28, 3
      %p41 = por %p39, %p40
      %p42 = scmp.ne.s32.totalorder %s33, %s34
      %p43 = scmp.eq.s32.totalorder %s28, 0
      %p44 = por %p42, %p43
      %p45 = scmp.ne.s32.totalorder %s33, %s34
      %p46 = scmp.eq.s32.totalorder %s29, 3
      %p47 = por %p45, %p46
      %p49 = scmp.ne.s32.totalorder %s34, %s48
      %p50 = scmp.eq.s32.totalorder %s29, 0
      %p51 = por %p49, %p50
      %s53 = sadd.s32 %s52, 1
      %p56 = scmp.eq.s32.totalorder %s23, 3
      %p57 = scmp.ne.s32.totalorder %s52, %s54
      %p58 = scmp.eq.s32.totalorder %s23, 0
      %p59 = por %p57, %p58
      %p60 = scmp.ne.s32.totalorder %s52, %s54
      %p61 = scmp.eq.s32.totalorder %s28, 3
      %p62 = por %p60, %p61
      %p63 = scmp.ne.s32.totalorder %s54, %s55
      %p64 = scmp.eq.s32.totalorder %s28, 0
      %p65 = por %p63, %p64
      %p66 = scmp.ne.s32.totalorder %s54, %s55
      %p67 = scmp.eq.s32.totalorder %s29, 3
      %p68 = por %p66, %p67
      %p70 = scmp.ne.s32.totalorder %s55, %s69
      %p71 = scmp.eq.s32.totalorder %s29, 0
      %p72 = por %p70, %p71
      %s74 = sadd.s32 %s73, 1
      %p77 = scmp.eq.s32.totalorder %s23, 3
      %p78 = scmp.ne.s32.totalorder %s73, %s75
      %p79 = scmp.eq.s32.totalorder %s23, 0
      %p80 = por %p78, %p79
      %p81 = scmp.ne.s32.totalorder %s73, %s75
      %p82 = scmp.eq.s32.totalorder %s28, 3
      %p83 = por %p81, %p82
      %p84 = scmp.ne.s32.totalorder %s75, %s76
      %p85 = scmp.eq.s32.totalorder %s28, 0
      %p86 = por %p84, %p85
      %p87 = scmp.ne.s32.totalorder %s75, %s76
      %p88 = scmp.eq.s32.totalorder %s29, 3
      %p89 = por %p87, %p88
      %p91 = scmp.ne.s32.totalorder %s76, %s90
      %p92 = scmp.eq.s32.totalorder %s29, 0
      %p93 = por %p91, %p92
      %s95 = sadd.s32 %s94, 1
      %p98 = scmp.eq.s32.totalorder %s23, 3
      %p99 = scmp.ne.s32.totalorder %s94, %s96
      %p100 = scmp.eq.s32.totalorder %s23, 0
      %p101 = por %p99, %p100
      %p102 = scmp.ne.s32.totalorder %s94, %s96
      %p103 = scmp.eq.s32.totalorder %s28, 3
      %p104 = por %p102, %p103
      %p105 = scmp.ne.s32.totalorder %s96, %s97
      %p106 = scmp.eq.s32.totalorder %s28, 0
      %p107 = por %p105, %p106
      %p108 = scmp.ne.s32.totalorder %s96, %s97
      %p109 = scmp.eq.s32.totalorder %s29, 3
      %p110 = por %p108, %p109
      %p112 = scmp.ne.s32.totalorder %s97, %s111
      %p113 = scmp.eq.s32.totalorder %s29, 0
      %p114 = por %p112, %p113
      %s115 = ssub.s32 %s23, %s30
      %p116 = scmp.eq.s32.totalorder %s115, 0
      %s118 = sadd.s32 %s117, 1
      %s119 = scalar_select %p116, %s117, %s118
      %p122 = pneg %p116
      %p123 = scmp.eq.s32.totalorder %s23, 3
      %p124 = por %p122, %p123
      %p125 = scmp.ne.s32.totalorder %s117, %s120
      %p126 = scmp.eq.s32.totalorder %s23, 0
      %p127 = por %p125, %p126
      %p128 = scmp.ne.s32.totalorder %s117, %s120
      %p129 = scmp.eq.s32.totalorder %s28, 3
      %p130 = por %p128, %p129
      %p131 = scmp.ne.s32.totalorder %s120, %s121
      %p132 = scmp.eq.s32.totalorder %s28, 0
      %p133 = por %p131, %p132
      %p134 = scmp.ne.s32.totalorder %s120, %s121
      %p135 = scmp.eq.s32.totalorder %s29, 3
      %p136 = por %p134, %p135
      %p138 = scmp.ne.s32.totalorder %s121, %s137
      %p139 = scmp.eq.s32.totalorder %s29, 0
      %p140 = por %p138, %p139
      %s142 = sadd.s32 %s141, 1
      %p145 = scmp.eq.s32.totalorder %s23, 3
      %p146 = scmp.ne.s32.totalorder %s141, %s143
      %p147 = scmp.eq.s32.totalorder %s23, 0
      %p148 = por %p146, %p147
      %p149 = scmp.ne.s32.totalorder %s141, %s143
      %p150 = scmp.eq.s32.totalorder %s28, 3
      %p151 = por %p149, %p150
      %p152 = scmp.ne.s32.totalorder %s143, %s144
      %p153 = scmp.eq.s32.totalorder %s28, 0
      %p154 = por %p152, %p153
      %p155 = scmp.ne.s32.totalorder %s143, %s144
      %p156 = scmp.eq.s32.totalorder %s29, 3
      %p157 = por %p155, %p156
      %p159 = scmp.ne.s32.totalorder %s144, %s158
      %p160 = scmp.eq.s32.totalorder %s29, 0
      %p161 = por %p159, %p160
      %s163 = sadd.s32 %s162, 1
      %p166 = scmp.eq.s32.totalorder %s23, 3
      %p167 = scmp.ne.s32.totalorder %s162, %s164
      %p168 = scmp.eq.s32.totalorder %s23, 0
      %p169 = por %p167, %p168
      %p170 = scmp.ne.s32.totalorder %s162, %s164
      %p171 = scmp.eq.s32.totalorder %s28, 3
      %p172 = por %p170, %p171
      %p173 = scmp.ne.s32.totalorder %s164, %s165
      %p174 = scmp.eq.s32.totalorder %s28, 0
      %p175 = por %p173, %p174
      %p176 = scmp.ne.s32.totalorder %s164, %s165
      %p177 = scmp.eq.s32.totalorder %s29, 3
      %p178 = por %p176, %p177
      %p180 = scmp.ne.s32.totalorder %s165, %s179
      %p181 = scmp.eq.s32.totalorder %s29, 0
      %p182 = por %p180, %p181
      %s184 = sadd.s32 %s183, 1
      %p187 = scmp.eq.s32.totalorder %s23, 3
      %p188 = scmp.ne.s32.totalorder %s183, %s185
      %p189 = scmp.eq.s32.totalorder %s23, 0
      %p190 = por %p188, %p189
      %p191 = scmp.ne.s32.totalorder %s183, %s185
      %p192 = scmp.eq.s32.totalorder %s28, 3
      %p193 = por %p191, %p192
      %p194 = scmp.ne.s32.totalorder %s185, %s186
      %p195 = scmp.eq.s32.totalorder %s28, 0
      %p196 = por %p194, %p195
      %p197 = scmp.ne.s32.totalorder %s185, %s186
      %p198 = scmp.eq.s32.totalorder %s29, 3
      %p199 = por %p197, %p198
      %p201 = scmp.ne.s32.totalorder %s186, %s200
      %p202 = scmp.eq.s32.totalorder %s29, 0
      %p203 = por %p201, %p202
      %s205 = sadd.s32 %s204, 1
      %p208 = scmp.eq.s32.totalorder %s23, 3
      %p209 = scmp.ne.s32.totalorder %s204, %s206
      %p210 = scmp.eq.s32.totalorder %s23, 0
      %p211 = por %p209, %p210
      %p212 = scmp.ne.s32.totalorder %s204, %s206
      %p213 = scmp.eq.s32.totalorder %s28, 3
      %p214 = por %p212, %p213
      %p215 = scmp.ne.s32.totalorder %s206, %s207
      %p216 = scmp.eq.s32.totalorder %s28, 0
      %p217 = por %p215, %p216
      %p218 = scmp.ne.s32.totalorder %s206, %s207
      %p219 = scmp.eq.s32.totalorder %s29, 3
      %p220 = por %p218, %p219
      %p222 = scmp.ne.s32.totalorder %s207, %s221
      %p223 = scmp.eq.s32.totalorder %s29, 0
      %p224 = por %p222, %p223
      %s226 = sadd.s32 %s225, 1
      %p229 = scmp.eq.s32.totalorder %s23, 3
      %p230 = scmp.ne.s32.totalorder %s225, %s227
      %p231 = scmp.eq.s32.totalorder %s23, 0
      %p232 = por %p230, %p231
      %p233 = scmp.ne.s32.totalorder %s225, %s227
      %p234 = scmp.eq.s32.totalorder %s28, 3
      %p235 = por %p233, %p234
      %p236 = scmp.ne.s32.totalorder %s227, %s228
      %p237 = scmp.eq.s32.totalorder %s28, 0
      %p238 = por %p236, %p237
      %p239 = scmp.ne.s32.totalorder %s227, %s228
      %p240 = scmp.eq.s32.totalorder %s29, 3
      %p241 = por %p239, %p240
      %p243 = scmp.ne.s32.totalorder %s228, %s242
      %p244 = scmp.eq.s32.totalorder %s29, 0
      %p245 = por %p243, %p244
      %s247 = sadd.s32 %s246, 1
      %p250 = scmp.eq.s32.totalorder %s23, 3
      %p251 = scmp.ne.s32.totalorder %s246, %s248
      %p252 = scmp.eq.s32.totalorder %s23, 0
      %p253 = por %p251, %p252
      %p254 = scmp.ne.s32.totalorder %s246, %s248
      %p255 = scmp.eq.s32.totalorder %s28, 3
      %p256 = por %p254, %p255
      %p257 = scmp.ne.s32.totalorder %s248, %s249
      %p258 = scmp.eq.s32.totalorder %s28, 0
      %p259 = por %p257, %p258
      %p260 = scmp.ne.s32.totalorder %s248, %s249
      %p261 = scmp.eq.s32.totalorder %s29, 3
      %p262 = por %p260, %p261
      %p264 = scmp.ne.s32.totalorder %s249, %s263
      %p265 = scmp.eq.s32.totalorder %s29, 0
      %p266 = por %p264, %p265
      %s268 = sadd.s32 %s267, 1
      %p271 = scmp.eq.s32.totalorder %s23, 3
      %p272 = scmp.ne.s32.totalorder %s267, %s269
      %p273 = scmp.eq.s32.totalorder %s23, 0
      %p274 = por %p272, %p273
      %p275 = scmp.ne.s32.totalorder %s267, %s269
      %p276 = scmp.eq.s32.totalorder %s28, 3
      %p277 = por %p275, %p276
      %p278 = scmp.ne.s32.totalorder %s269, %s270
      %p279 = scmp.eq.s32.totalorder %s28, 0
      %p280 = por %p278, %p279
      %p281 = scmp.ne.s32.totalorder %s269, %s270
      %p282 = scmp.eq.s32.totalorder %s29, 3
      %p283 = por %p281, %p282
      %p285 = scmp.ne.s32.totalorder %s270, %s284
      %p286 = scmp.eq.s32.totalorder %s29, 0
      %p287 = por %p285, %p286
      %s289 = sadd.s32 %s288, 1
      %p292 = scmp.eq.s32.totalorder %s23, 3
      %p293 = scmp.ne.s32.totalorder %s288, %s290
      %p294 = scmp.eq.s32.totalorder %s23, 0
      %p295 = por %p293, %p294
      %p296 = scmp.ne.s32.totalorder %s288, %s290
      %p297 = scmp.eq.s32.totalorder %s28, 3
      %p298 = por %p296, %p297
      %p299 = scmp.ne.s32.totalorder %s290, %s291
      %p300 = scmp.eq.s32.totalorder %s28, 0
      %p301 = por %p299, %p300
      %p302 = scmp.ne.s32.totalorder %s290, %s291
      %p303 = scmp.eq.s32.totalorder %s29, 3
      %p304 = por %p302, %p303
      %p306 = scmp.ne.s32.totalorder %s291, %s305
      %p307 = scmp.eq.s32.totalorder %s29, 0
      %p308 = por %p306, %p307
      %s310 = sadd.s32 %s309, 1
      %p313 = scmp.eq.s32.totalorder %s23, 3
      %p314 = scmp.ne.s32.totalorder %s309, %s311
      %p315 = scmp.eq.s32.totalorder %s23, 0
      %p316 = por %p314, %p315
      %p317 = scmp.ne.s32.totalorder %s309, %s311
      %p318 = scmp.eq.s32.totalorder %s28, 3
      %p319 = por %p317, %p318
      %p320 = scmp.ne.s32.totalorder %s311, %s312
      %p321 = scmp.eq.s32.totalorder %s28, 0
      %p322 = por %p320, %p321
      %p323 = scmp.ne.s32.totalorder %s311, %s312
      %p324 = scmp.eq.s32.totalorder %s29, 3
      %p325 = por %p323, %p324
      %p327 = scmp.ne.s32.totalorder %s312, %s326
      %p328 = scmp.eq.s32.totalorder %s29, 0
      %p329 = por %p327, %p328
      %s331 = sadd.s32 %s330, 1
      %p334 = scmp.eq.s32.totalorder %s23, 3
      %p335 = scmp.ne.s32.totalorder %s330, %s332
      %p336 = scmp.eq.s32.totalorder %s23, 0
      %p337 = por %p335, %p336
      %p338 = scmp.ne.s32.totalorder %s330, %s332
      %p339 = scmp.eq.s32.totalorder %s28, 3
      %p340 = por %p338, %p339
      %p341 = scmp.ne.s32.totalorder %s332, %s333
      %p342 = scmp.eq.s32.totalorder %s28, 0
      %p343 = por %p341, %p342
      %p344 = scmp.ne.s32.totalorder %s332, %s333
      %p345 = scmp.eq.s32.totalorder %s29, 3
      %p346 = por %p344, %p345
      %p348 = scmp.ne.s32.totalorder %s333, %s347
      %p349 = scmp.eq.s32.totalorder %s29, 0
      %p350 = por %p348, %p349
      %p351 = scmp.le.s32.totalorder 1, %s23
      %p352 = scmp.lt.s32.totalorder %s23, 5
      %p353 = pnand %p351, %p352
      %p354 = pneg %p353
      // Predicated region
      $region9: #{dis_forward.1} parent=5 // pred_check
        _
      $region10: #{dis_forward.1} parent=5 // pred_check_branch
        %356 = sbr.rel (%p353) target = $region12
      $region11: #{dis_forward.1} parent=5 // pred_region
        %s357 = ssub.s32 %s23, 1
        // Predicated region
        $region13: #{dis_forward.1} parent=11 // pred_check
          %p358 = pneg %p44
        $region14: #{dis_forward.1} parent=11 // pred_check_branch
          %360 = sbr.rel (%p358) target = $region16
        $region15: #{dis_forward.1} parent=11 // pred_region
          _
        $region16: #{dis_forward.1} parent=11 // pred_fallthru
          _
        // Predicated region
        $region17: #{dis_forward.1} parent=11 // pred_check
          %p361 = pneg %p65
        $region18: #{dis_forward.1} parent=11 // pred_check_branch
          %363 = sbr.rel (%p361) target = $region20
        $region19: #{dis_forward.1} parent=11 // pred_region
          _
        $region20: #{dis_forward.1} parent=11 // pred_fallthru
          _
        // Predicated region
        $region21: #{dis_forward.1} parent=11 // pred_check
          %p364 = pneg %p86
        $region22: #{dis_forward.1} parent=11 // pred_check_branch
          %366 = sbr.rel (%p364) target = $region24
        $region23: #{dis_forward.1} parent=11 // pred_region
          _
        $region24: #{dis_forward.1} parent=11 // pred_fallthru
          _
        // Predicated region
        $region25: #{dis_forward.1} parent=11 // pred_check
          %p367 = pneg %p107
        $region26: #{dis_forward.1} parent=11 // pred_check_branch
          %369 = sbr.rel (%p367) target = $region28
        $region27: #{dis_forward.1} parent=11 // pred_region
          _
        $region28: #{dis_forward.1} parent=11 // pred_fallthru
          _
        // Predicated region
        $region29: #{dis_forward.1} parent=11 // pred_check
          %p370 = pneg %p154
        $region30: #{dis_forward.1} parent=11 // pred_check_branch
          %372 = sbr.rel (%p370) target = $region32
        $region31: #{dis_forward.1} parent=11 // pred_region
          _
        $region32: #{dis_forward.1} parent=11 // pred_fallthru
          _
        // Predicated region
        $region33: #{dis_forward.1} parent=11 // pred_check
          %p373 = pneg %p175
        $region34: #{dis_forward.1} parent=11 // pred_check_branch
          %375 = sbr.rel (%p373) target = $region36
        $region35: #{dis_forward.1} parent=11 // pred_region
          _
        $region36: #{dis_forward.1} parent=11 // pred_fallthru
          _
        // Predicated region
        $region37: #{dis_forward.1} parent=11 // pred_check
          %p376 = pneg %p196
        $region38: #{dis_forward.1} parent=11 // pred_check_branch
          %378 = sbr.rel (%p376) target = $region40
        $region39: #{dis_forward.1} parent=11 // pred_region
          _
        $region40: #{dis_forward.1} parent=11 // pred_fallthru
          _
        // Predicated region
        $region41: #{dis_forward.1} parent=11 // pred_check
          %p379 = pneg %p217
        $region42: #{dis_forward.1} parent=11 // pred_check_branch
          %381 = sbr.rel (%p379) target = $region44
        $region43: #{dis_forward.1} parent=11 // pred_region
          %383 = vsyncadd [#allocation7], 0
          %s384 = sshll.u32 %s8, 4
          %s385 = int_to_ptr.hbm [resolvable:$true] %s384
          %s386 = sshll.u32 [#allocation6], 4
          %s387 = int_to_ptr.vmem [resolvable:$true] %s386
          %392 = dma.hbm_to_vmem [thread:$0]  %s385, 8192, %s387, [#allocation7], 128, 128, 8
        $region44: #{dis_forward.1} parent=11 // pred_fallthru
          _
        // Predicated region
        $region45: #{dis_forward.1} parent=11 // pred_check
          %p393 = pneg %p238
        $region46: #{dis_forward.1} parent=11 // pred_check_branch
          %395 = sbr.rel (%p393) target = $region48
        $region47: #{dis_forward.1} parent=11 // pred_region
          _
        $region48: #{dis_forward.1} parent=11 // pred_fallthru
          _
        // Predicated region
        $region49: #{dis_forward.1} parent=11 // pred_check
          %p396 = pneg %p259
        $region50: #{dis_forward.1} parent=11 // pred_check_branch
          %398 = sbr.rel (%p396) target = $region52
        $region51: #{dis_forward.1} parent=11 // pred_region
          _
        $region52: #{dis_forward.1} parent=11 // pred_fallthru
          _
        // Predicated region
        $region53: #{dis_forward.1} parent=11 // pred_check
          %p399 = pneg %p280
        $region54: #{dis_forward.1} parent=11 // pred_check_branch
          %401 = sbr.rel (%p399) target = $region56
        $region55: #{dis_forward.1} parent=11 // pred_region
          _
        $region56: #{dis_forward.1} parent=11 // pred_fallthru
          _
        // Predicated region
        $region57: #{dis_forward.1} parent=11 // pred_check
          %p402 = pneg %p301
        $region58: #{dis_forward.1} parent=11 // pred_check_branch
          %404 = sbr.rel (%p402) target = $region60
        $region59: #{dis_forward.1} parent=11 // pred_region
          _
        $region60: #{dis_forward.1} parent=11 // pred_fallthru
          _
        // Predicated region
        $region61: #{dis_forward.1} parent=11 // pred_check
          %p405 = pneg %p322
        $region62: #{dis_forward.1} parent=11 // pred_check_branch
          %407 = sbr.rel (%p405) target = $region64
        $region63: #{dis_forward.1} parent=11 // pred_region
          _
        $region64: #{dis_forward.1} parent=11 // pred_fallthru
          _
      $region12: #{dis_forward.1} parent=5 // pred_fallthru
        _
      %p408 = scmp.lt.s32.totalorder %s23, 4
      // Predicated region
      $region65: #{dis_forward.1} parent=5 // pred_check
        %p409 = pneg %p408
      $region66: #{dis_forward.1} parent=5 // pred_check_branch
        %411 = sbr.rel (%p409) target = $region68
      $region67: #{dis_forward.1} parent=5 // pred_region
        // Predicated region
        $region69: #{dis_forward.1} parent=67 // pred_check
          %p412 = pneg %p127
        $region70: #{dis_forward.1} parent=67 // pred_check_branch
          %414 = sbr.rel (%p412) target = $region72
        $region71: #{dis_forward.1} parent=67 // pred_region
          %s415 = smul.u32 512, %s23
          %p416 = scmp.lt.s32.totalorder %s415, 2047
          %s417 = scalar_select %p416, %s415, 2047
          %s418 = smul.addr %s417, 4
          %s419 = smul.addr %s418, 4
          %s420 = scalar_lea.vmem %s4, %s419
          %s421 = smul.u32 512, %s23
        $region72: #{dis_forward.1} parent=67 // pred_fallthru
          _
      $region68: #{dis_forward.1} parent=5 // pred_fallthru
        _
      %p422 = scmp.le.s32.totalorder 1, %s23
      %p423 = scmp.lt.s32.totalorder %s23, 5
      %p424 = pnand %p422, %p423
      %p425 = pneg %p424
      // Predicated region
      $region73: #{dis_forward.1} parent=5 // pred_check
        _
      $region74: #{dis_forward.1} parent=5 // pred_check_branch
        %427 = sbr.rel (%p424) target = $region76
      $region75: #{dis_forward.1} parent=5 // pred_region
        %s428 = ssub.s32 %s23, 1
        // Predicated region
        $region77: #{dis_forward.1} parent=75 // pred_check
          %p429 = pneg %p217
        $region78: #{dis_forward.1} parent=75 // pred_check_branch
          %431 = sbr.rel (%p429) target = $region80
        $region79: #{dis_forward.1} parent=75 // pred_region
          %433 = dma.done [#allocation7], 8192
        $region80: #{dis_forward.1} parent=75 // pred_fallthru
          _
        %p434 = pneg %p44
        %p435 = pneg %p41
        %p436 = pneg %p65
        %p437 = pneg %p62
        %p438 = pneg %p86
        %p439 = pneg %p83
        %p440 = pneg %p107
        %p441 = pneg %p104
        %s442 = smul.u32 512, %s28
        %p443 = scmp.lt.s32.totalorder %s442, 2047
        %s444 = scalar_select %p443, %s442, 2047
        %s445 = smul.addr %s444, 4
        %s446 = smul.addr %s445, 4
        %s447 = scalar_lea.vmem %s4, %s446
        %p448 = pneg %p133
        %p449 = pneg %p130
        %p450 = pneg %p154
        %p451 = pneg %p151
        %p452 = pneg %p175
        %p453 = pneg %p172
        %p454 = pneg %p196
        %p455 = pneg %p193
        %p456 = pneg %p217
        %p457 = pneg %p214
        %p458 = pneg %p238
        %p459 = pneg %p235
        %p460 = pneg %p259
        %p461 = pneg %p256
        %p462 = pneg %p280
        %p463 = pneg %p277
        %p464 = pneg %p301
        %p465 = pneg %p298
        %p466 = pneg %p322
        %p467 = pneg %p319
        %p468 = pneg %p343
        %p469 = pneg %p340
        %s470 = smul.u32 512, %s28
        %p471 = scmp.lt.s32.totalorder %s470, 2047
        %s472 = scalar_select %p471, %s470, 2047
        %s473 = smul.addr %s472, 4
        %s474 = smul.addr %s473, 4
        %s475 = scalar_lea.vmem %s4, %s474
        %s476 = smul.u32 512, %s28
        %p477 = scmp.eq.s32.totalorder %s28, 0
        // Predicated region
        $region81: #{dis_forward.1} parent=75 // pred_check
          %p478 = pneg %p477
        $region82: #{dis_forward.1} parent=75 // pred_check_branch
          %480 = sbr.rel (%p478) target = $region84
        $region83: #{dis_forward.1} parent=75 // pred_region
          %481 = vst [vmem:[#allocation2] sm:$0xff] 0.0
          %v482 = vld [vmem:[%s1] sm:$0xff]
          %v483 = vld [vmem:[%s1 + $0x8] sm:$0xff]
          %v484 = vld [vmem:[%s1 + $0x10] sm:$0xff]
          %v485 = vld [vmem:[%s1 + $0x18] sm:$0xff]
          %v486 = vld [vmem:[%s1 + $0x20] sm:$0xff]
          %v487 = vld [vmem:[%s1 + $0x28] sm:$0xff]
          %v488 = vld [vmem:[%s1 + $0x30] sm:$0xff]
          %v489 = vld [vmem:[%s1 + $0x38] sm:$0xff]
          %v490 = vld [vmem:[%s0] sm:$0xff]
          %v491 = vld [vmem:[%s0 + $0x8] sm:$0xff]
          %v492 = vld [vmem:[%s0 + $0x10] sm:$0xff]
          %v493 = vld [vmem:[%s0 + $0x18] sm:$0xff]
          %v494 = vld [vmem:[%s0 + $0x20] sm:$0xff]
          %v495 = vld [vmem:[%s0 + $0x28] sm:$0xff]
          %v496 = vld [vmem:[%s0 + $0x30] sm:$0xff]
          %v497 = vld [vmem:[%s0 + $0x38] sm:$0xff]
          %v498 = vld [vmem:[%s0 + $0x40] sm:$0xff]
          %v499 = vld [vmem:[%s0 + $0x48] sm:$0xff]
          %v500 = vld [vmem:[%s0 + $0x50] sm:$0xff]
          %v501 = vld [vmem:[%s0 + $0x58] sm:$0xff]
          %v502 = vld [vmem:[%s0 + $0x60] sm:$0xff]
          %v503 = vld [vmem:[%s0 + $0x68] sm:$0xff]
          %v504 = vld [vmem:[%s0 + $0x70] sm:$0xff]
          %v505 = vld [vmem:[%s0 + $0x78] sm:$0xff]
          %vm506 = vcmask 523264
          %v508 = vsel %vm506, %v482, 0
          %v511 = vsel %vm506, %v483, 0
          %v514 = vsel %vm506, %v484, 0
          %v517 = vsel %vm506, %v485, 0
          %v520 = vsel %vm506, %v486, 0
          %v523 = vsel %vm506, %v487, 0
          %v526 = vsel %vm506, %v488, 0
          %v529 = vsel %vm506, %v489, 0
          %531 = vmatpush.msra.mxu0 0.0
          %532 = vmatpush.msra.mxu0 0.0
          %533 = vmatpush.msra.mxu0 0.0
          %534 = vmatpush.msra.mxu0 0.0
          %535 = vmatpush.msra.mxu0 0.0
          %536 = vmatpush.msra.mxu0 0.0
          %537 = vmatpush.msra.mxu0 0.0
          %538 = vmatpush.msra.mxu0 0.0
          %539 = vmatpush.msra.mxu0 %v504
          %540 = vmatpush.msra.mxu0 %v502
          %541 = vmatpush.msra.mxu0 %v500
          %542 = vmatpush.msra.mxu0 %v498
          %543 = vmatpush.msra.mxu0 %v496
          %544 = vmatpush.msra.mxu0 %v494
          %545 = vmatpush.msra.mxu0 %v492
          %546 = vmatpush.msra.mxu0 %v490
          %547 = vmatmul.f32.gmra.mxu0 %v508
          %v548 = vpop.f32.mrf.mxu0
          %v549 = vadd.f32 0.0, %v548
          %550 = vmatmul.f32.gmra.mxu0 %v511
          %v551 = vpop.f32.mrf.mxu0
          %v552 = vadd.f32 0.0, %v551
          %553 = vmatmul.f32.gmra.mxu0 %v514
          %v554 = vpop.f32.mrf.mxu0
          %v555 = vadd.f32 0.0, %v554
          %556 = vmatmul.f32.gmra.mxu0 %v517
          %v557 = vpop.f32.mrf.mxu0
          %v558 = vadd.f32 0.0, %v557
          %559 = vmatmul.f32.gmra.mxu0 %v520
          %v560 = vpop.f32.mrf.mxu0
          %v561 = vadd.f32 0.0, %v560
          %562 = vmatmul.f32.gmra.mxu0 %v523
          %v563 = vpop.f32.mrf.mxu0
          %v564 = vadd.f32 0.0, %v563
          %565 = vmatmul.f32.gmra.mxu0 %v526
          %v566 = vpop.f32.mrf.mxu0
          %v567 = vadd.f32 0.0, %v566
          %568 = vmatmul.f32.gmra.mxu0 %v529
          %v569 = vpop.f32.mrf.mxu0
          %v570 = vadd.f32 0.0, %v569
          %571 = vdwg.mxu0
          %572 = vmatpush.msra.mxu0 0.0
          %573 = vmatpush.msra.mxu0 0.0
          %574 = vmatpush.msra.mxu0 0.0
          %575 = vmatpush.msra.mxu0 0.0
          %576 = vmatpush.msra.mxu0 0.0
          %577 = vmatpush.msra.mxu0 0.0
          %578 = vmatpush.msra.mxu0 0.0
          %579 = vmatpush.msra.mxu0 0.0
          %580 = vmatpush.msra.mxu0 %v505
          %581 = vmatpush.msra.mxu0 %v503
          %582 = vmatpush.msra.mxu0 %v501
          %583 = vmatpush.msra.mxu0 %v499
          %584 = vmatpush.msra.mxu0 %v497
          %585 = vmatpush.msra.mxu0 %v495
          %586 = vmatpush.msra.mxu0 %v493
          %587 = vmatpush.msra.mxu0 %v491
          %588 = vmatmul.f32.gmra.mxu0 %v508
          %v589 = vpop.f32.mrf.mxu0
          %v590 = vadd.f32 0.0, %v589
          %591 = vmatmul.f32.gmra.mxu0 %v511
          %v592 = vpop.f32.mrf.mxu0
          %v593 = vadd.f32 0.0, %v592
          %594 = vmatmul.f32.gmra.mxu0 %v514
          %v595 = vpop.f32.mrf.mxu0
          %v596 = vadd.f32 0.0, %v595
          %597 = vmatmul.f32.gmra.mxu0 %v517
          %v598 = vpop.f32.mrf.mxu0
          %v599 = vadd.f32 0.0, %v598
          %600 = vmatmul.f32.gmra.mxu0 %v520
          %v601 = vpop.f32.mrf.mxu0
          %v602 = vadd.f32 0.0, %v601
          %603 = vmatmul.f32.gmra.mxu0 %v523
          %v604 = vpop.f32.mrf.mxu0
          %v605 = vadd.f32 0.0, %v604
          %606 = vmatmul.f32.gmra.mxu0 %v526
          %v607 = vpop.f32.mrf.mxu0
          %v608 = vadd.f32 0.0, %v607
          %609 = vmatmul.f32.gmra.mxu0 %v529
          %v610 = vpop.f32.mrf.mxu0
          %v611 = vadd.f32 0.0, %v610
          %612 = vdwg.mxu0
          %s613 = scalar_lea.vmem %s0, 128
          %v614 = vld [vmem:[%s613] sm:$0xff]
          %v615 = vld [vmem:[%s613 + $0x8] sm:$0xff]
          %v616 = vld [vmem:[%s613 + $0x10] sm:$0xff]
          %v617 = vld [vmem:[%s613 + $0x18] sm:$0xff]
          %v618 = vld [vmem:[%s613 + $0x20] sm:$0xff]
          %v619 = vld [vmem:[%s613 + $0x28] sm:$0xff]
          %v620 = vld [vmem:[%s613 + $0x30] sm:$0xff]
          %v621 = vld [vmem:[%s613 + $0x38] sm:$0xff]
          %v622 = vld [vmem:[%s613 + $0x40] sm:$0xff]
          %v623 = vld [vmem:[%s613 + $0x48] sm:$0xff]
          %v624 = vld [vmem:[%s613 + $0x50] sm:$0xff]
          %v625 = vld [vmem:[%s613 + $0x58] sm:$0xff]
          %v626 = vld [vmem:[%s613 + $0x60] sm:$0xff]
          %v627 = vld [vmem:[%s613 + $0x68] sm:$0xff]
          %v628 = vld [vmem:[%s613 + $0x70] sm:$0xff]
          %v629 = vld [vmem:[%s613 + $0x78] sm:$0xff]
          %630 = vmatpush.msra.mxu0 0.0
          %631 = vmatpush.msra.mxu0 0.0
          %632 = vmatpush.msra.mxu0 0.0
          %633 = vmatpush.msra.mxu0 0.0
          %634 = vmatpush.msra.mxu0 0.0
          %635 = vmatpush.msra.mxu0 0.0
          %636 = vmatpush.msra.mxu0 0.0
          %637 = vmatpush.msra.mxu0 0.0
          %638 = vmatpush.msra.mxu0 %v628
          %639 = vmatpush.msra.mxu0 %v626
          %640 = vmatpush.msra.mxu0 %v624
          %641 = vmatpush.msra.mxu0 %v622
          %642 = vmatpush.msra.mxu0 %v620
          %643 = vmatpush.msra.mxu0 %v618
          %644 = vmatpush.msra.mxu0 %v616
          %645 = vmatpush.msra.mxu0 %v614
          %646 = vmatmul.f32.gmra.mxu0 %v508
          %v647 = vpop.f32.mrf.mxu0
          %v648 = vadd.f32 0.0, %v647
          %649 = vmatmul.f32.gmra.mxu0 %v511
          %v650 = vpop.f32.mrf.mxu0
          %v651 = vadd.f32 0.0, %v650
          %652 = vmatmul.f32.gmra.mxu0 %v514
          %v653 = vpop.f32.mrf.mxu0
          %v654 = vadd.f32 0.0, %v653
          %655 = vmatmul.f32.gmra.mxu0 %v517
          %v656 = vpop.f32.mrf.mxu0
          %v657 = vadd.f32 0.0, %v656
          %658 = vmatmul.f32.gmra.mxu0 %v520
          %v659 = vpop.f32.mrf.mxu0
          %v660 = vadd.f32 0.0, %v659
          %661 = vmatmul.f32.gmra.mxu0 %v523
          %v662 = vpop.f32.mrf.mxu0
          %v663 = vadd.f32 0.0, %v662
          %664 = vmatmul.f32.gmra.mxu0 %v526
          %v665 = vpop.f32.mrf.mxu0
          %v666 = vadd.f32 0.0, %v665
          %667 = vmatmul.f32.gmra.mxu0 %v529
          %v668 = vpop.f32.mrf.mxu0
          %v669 = vadd.f32 0.0, %v668
          %670 = vdwg.mxu0
          %671 = vmatpush.msra.mxu0 0.0
          %672 = vmatpush.msra.mxu0 0.0
          %673 = vmatpush.msra.mxu0 0.0
          %674 = vmatpush.msra.mxu0 0.0
          %675 = vmatpush.msra.mxu0 0.0
          %676 = vmatpush.msra.mxu0 0.0
          %677 = vmatpush.msra.mxu0 0.0
          %678 = vmatpush.msra.mxu0 0.0
          %679 = vmatpush.msra.mxu0 %v629
          %680 = vmatpush.msra.mxu0 %v627
          %681 = vmatpush.msra.mxu0 %v625
          %682 = vmatpush.msra.mxu0 %v623
          %683 = vmatpush.msra.mxu0 %v621
          %684 = vmatpush.msra.mxu0 %v619
          %685 = vmatpush.msra.mxu0 %v617
          %686 = vmatpush.msra.mxu0 %v615
          %687 = vmatmul.f32.gmra.mxu0 %v508
          %v688 = vpop.f32.mrf.mxu0
          %v689 = vadd.f32 0.0, %v688
          %690 = vmatmul.f32.gmra.mxu0 %v511
          %v691 = vpop.f32.mrf.mxu0
          %v692 = vadd.f32 0.0, %v691
          %693 = vmatmul.f32.gmra.mxu0 %v514
          %v694 = vpop.f32.mrf.mxu0
          %v695 = vadd.f32 0.0, %v694
          %696 = vmatmul.f32.gmra.mxu0 %v517
          %v697 = vpop.f32.mrf.mxu0
          %v698 = vadd.f32 0.0, %v697
          %699 = vmatmul.f32.gmra.mxu0 %v520
          %v700 = vpop.f32.mrf.mxu0
          %v701 = vadd.f32 0.0, %v700
          %702 = vmatmul.f32.gmra.mxu0 %v523
          %v703 = vpop.f32.mrf.mxu0
          %v704 = vadd.f32 0.0, %v703
          %705 = vmatmul.f32.gmra.mxu0 %v526
          %v706 = vpop.f32.mrf.mxu0
          %v707 = vadd.f32 0.0, %v706
          %708 = vmatmul.f32.gmra.mxu0 %v529
          %v709 = vpop.f32.mrf.mxu0
          %v710 = vadd.f32 0.0, %v709
          %711 = vdwg.mxu0
          %v712 = vadd.f32 %v549, %v590
          %713 = vadd.xlane.f32.xlu0 %v712
          %v714 = vpop.xlane.xlu0 %713
          %v715 = vadd.f32 %v552, %v593
          %716 = vadd.xlane.f32.xlu0 %v715
          %v717 = vpop.xlane.xlu0 %716
          %v718 = vadd.f32 %v555, %v596
          %719 = vadd.xlane.f32.xlu0 %v718
          %v720 = vpop.xlane.xlu0 %719
          %v721 = vadd.f32 %v558, %v599
          %722 = vadd.xlane.f32.xlu0 %v721
          %v723 = vpop.xlane.xlu0 %722
          %v724 = vadd.f32 %v561, %v602
          %725 = vadd.xlane.f32.xlu0 %v724
          %v726 = vpop.xlane.xlu0 %725
          %v727 = vadd.f32 %v564, %v605
          %728 = vadd.xlane.f32.xlu0 %v727
          %v729 = vpop.xlane.xlu0 %728
          %v730 = vadd.f32 %v567, %v608
          %731 = vadd.xlane.f32.xlu0 %v730
          %v732 = vpop.xlane.xlu0 %731
          %v733 = vadd.f32 %v570, %v611
          %734 = vadd.xlane.f32.xlu0 %v733
          %v735 = vpop.xlane.xlu0 %734
          %v736 = vadd.f32 %v648, %v689
          %737 = vadd.xlane.f32.xlu0 %v736
          %v738 = vpop.xlane.xlu0 %737
          %v739 = vadd.f32 %v651, %v692
          %740 = vadd.xlane.f32.xlu0 %v739
          %v741 = vpop.xlane.xlu0 %740
          %v742 = vadd.f32 %v654, %v695
          %743 = vadd.xlane.f32.xlu0 %v742
          %v744 = vpop.xlane.xlu0 %743
          %v745 = vadd.f32 %v657, %v698
          %746 = vadd.xlane.f32.xlu0 %v745
          %v747 = vpop.xlane.xlu0 %746
          %v748 = vadd.f32 %v660, %v701
          %749 = vadd.xlane.f32.xlu0 %v748
          %v750 = vpop.xlane.xlu0 %749
          %v751 = vadd.f32 %v663, %v704
          %752 = vadd.xlane.f32.xlu0 %v751
          %v753 = vpop.xlane.xlu0 %752
          %v754 = vadd.f32 %v666, %v707
          %755 = vadd.xlane.f32.xlu0 %v754
          %v756 = vpop.xlane.xlu0 %755
          %v757 = vadd.f32 %v669, %v710
          %758 = vadd.xlane.f32.xlu0 %v757
          %v759 = vpop.xlane.xlu0 %758
          %v760 = vadd.f32 %v714, %v738
          %v761 = vadd.f32 %v717, %v741
          %v762 = vadd.f32 %v720, %v744
          %v763 = vadd.f32 %v723, %v747
          %v764 = vadd.f32 %v726, %v750
          %v765 = vadd.f32 %v729, %v753
          %v766 = vadd.f32 %v732, %v756
          %v767 = vadd.f32 %v735, %v759
          %v768 = vrcp.pop 512.0
          %v769 = vmul.f32 512.0, %v768
          %v770 = vsub.f32 1.0, %v769
          %v771 = vmul.f32 %v768, %v770
          %v772 = vadd.f32 %v768, %v771
          %vm773 = vweird.f32 %v768
          %v774 = vsel %vm773, %v768, %v772
          %v775 = vmul.f32 %v760, %v774
          %v776 = vmul.f32 %v761, %v774
          %v777 = vmul.f32 %v762, %v774
          %v778 = vmul.f32 %v763, %v774
          %v779 = vmul.f32 %v764, %v774
          %v780 = vmul.f32 %v765, %v774
          %v781 = vmul.f32 %v766, %v774
          %v782 = vmul.f32 %v767, %v774
          %v783 = vsub.f32 %v549, %v775
          %v784 = vsub.f32 %v590, %v775
          %v785 = vsub.f32 %v552, %v776
          %v786 = vsub.f32 %v593, %v776
          %v787 = vsub.f32 %v555, %v777
          %v788 = vsub.f32 %v596, %v777
          %v789 = vsub.f32 %v558, %v778
          %v790 = vsub.f32 %v599, %v778
          %v791 = vsub.f32 %v561, %v779
          %v792 = vsub.f32 %v602, %v779
          %v793 = vsub.f32 %v564, %v780
          %v794 = vsub.f32 %v605, %v780
          %v795 = vsub.f32 %v567, %v781
          %v796 = vsub.f32 %v608, %v781
          %v797 = vsub.f32 %v570, %v782
          %v798 = vsub.f32 %v611, %v782
          %v799 = vsub.f32 %v648, %v775
          %v800 = vsub.f32 %v689, %v775
          %v801 = vsub.f32 %v651, %v776
          %v802 = vsub.f32 %v692, %v776
          %v803 = vsub.f32 %v654, %v777
          %v804 = vsub.f32 %v695, %v777
          %v805 = vsub.f32 %v657, %v778
          %v806 = vsub.f32 %v698, %v778
          %v807 = vsub.f32 %v660, %v779
          %v808 = vsub.f32 %v701, %v779
          %v809 = vsub.f32 %v663, %v780
          %v810 = vsub.f32 %v704, %v780
          %v811 = vsub.f32 %v666, %v781
          %v812 = vsub.f32 %v707, %v781
          %v813 = vsub.f32 %v669, %v782
          %v814 = vsub.f32 %v710, %v782
          %v815 = vmul.f32 %v783, %v783
          %v816 = vmul.f32 %v784, %v784
          %v817 = vmul.f32 %v785, %v785
          %v818 = vmul.f32 %v786, %v786
          %v819 = vmul.f32 %v787, %v787
          %v820 = vmul.f32 %v788, %v788
          %v821 = vmul.f32 %v789, %v789
          %v822 = vmul.f32 %v790, %v790
          %v823 = vmul.f32 %v791, %v791
          %v824 = vmul.f32 %v792, %v792
          %v825 = vmul.f32 %v793, %v793
          %v826 = vmul.f32 %v794, %v794
          %v827 = vmul.f32 %v795, %v795
          %v828 = vmul.f32 %v796, %v796
          %v829 = vmul.f32 %v797, %v797
          %v830 = vmul.f32 %v798, %v798
          %v831 = vadd.f32 %v815, %v816
          %832 = vadd.xlane.f32.xlu0 %v831
          %v833 = vpop.xlane.xlu0 %832
          %v834 = vadd.f32 %v817, %v818
          %835 = vadd.xlane.f32.xlu0 %v834
          %v836 = vpop.xlane.xlu0 %835
          %v837 = vadd.f32 %v819, %v820
          %838 = vadd.xlane.f32.xlu0 %v837
          %v839 = vpop.xlane.xlu0 %838
          %v840 = vadd.f32 %v821, %v822
          %841 = vadd.xlane.f32.xlu0 %v840
          %v842 = vpop.xlane.xlu0 %841
          %v843 = vadd.f32 %v823, %v824
          %844 = vadd.xlane.f32.xlu0 %v843
          %v845 = vpop.xlane.xlu0 %844
          %v846 = vadd.f32 %v825, %v826
          %847 = vadd.xlane.f32.xlu0 %v846
          %v848 = vpop.xlane.xlu0 %847
          %v849 = vadd.f32 %v827, %v828
          %850 = vadd.xlane.f32.xlu0 %v849
          %v851 = vpop.xlane.xlu0 %850
          %v852 = vadd.f32 %v829, %v830
          %853 = vadd.xlane.f32.xlu0 %v852
          %v854 = vpop.xlane.xlu0 %853
          %v855 = vmul.f32 %v799, %v799
          %v856 = vmul.f32 %v800, %v800
          %v857 = vmul.f32 %v801, %v801
          %v858 = vmul.f32 %v802, %v802
          %v859 = vmul.f32 %v803, %v803
          %v860 = vmul.f32 %v804, %v804
          %v861 = vmul.f32 %v805, %v805
          %v862 = vmul.f32 %v806, %v806
          %v863 = vmul.f32 %v807, %v807
          %v864 = vmul.f32 %v808, %v808
          %v865 = vmul.f32 %v809, %v809
          %v866 = vmul.f32 %v810, %v810
          %v867 = vmul.f32 %v811, %v811
          %v868 = vmul.f32 %v812, %v812
          %v869 = vmul.f32 %v813, %v813
          %v870 = vmul.f32 %v814, %v814
          %v871 = vadd.f32 %v855, %v856
          %872 = vadd.xlane.f32.xlu0 %v871
          %v873 = vpop.xlane.xlu0 %872
          %v874 = vadd.f32 %v857, %v858
          %875 = vadd.xlane.f32.xlu0 %v874
          %v876 = vpop.xlane.xlu0 %875
          %v877 = vadd.f32 %v859, %v860
          %878 = vadd.xlane.f32.xlu0 %v877
          %v879 = vpop.xlane.xlu0 %878
          %v880 = vadd.f32 %v861, %v862
          %881 = vadd.xlane.f32.xlu0 %v880
          %v882 = vpop.xlane.xlu0 %881
          %v883 = vadd.f32 %v863, %v864
          %884 = vadd.xlane.f32.xlu0 %v883
          %v885 = vpop.xlane.xlu0 %884
          %v886 = vadd.f32 %v865, %v866
          %887 = vadd.xlane.f32.xlu0 %v886
          %v888 = vpop.xlane.xlu0 %887
          %v889 = vadd.f32 %v867, %v868
          %890 = vadd.xlane.f32.xlu0 %v889
          %v891 = vpop.xlane.xlu0 %890
          %v892 = vadd.f32 %v869, %v870
          %893 = vadd.xlane.f32.xlu0 %v892
          %v894 = vpop.xlane.xlu0 %893
          %v895 = vadd.f32 %v833, %v873
          %v896 = vadd.f32 %v836, %v876
          %v897 = vadd.f32 %v839, %v879
          %v898 = vadd.f32 %v842, %v882
          %v899 = vadd.f32 %v845, %v885
          %v900 = vadd.f32 %v848, %v888
          %v901 = vadd.f32 %v851, %v891
          %v902 = vadd.f32 %v854, %v894
          %v903 = vmul.f32 %v895, %v774
          %v904 = vmul.f32 %v896, %v774
          %v905 = vmul.f32 %v897, %v774
          %v906 = vmul.f32 %v898, %v774
          %v907 = vmul.f32 %v899, %v774
          %v908 = vmul.f32 %v900, %v774
          %v909 = vmul.f32 %v901, %v774
          %v910 = vmul.f32 %v902, %v774
          %v911 = vadd.f32 %v903, 1e-05
          %v912 = vadd.f32 %v904, 1e-05
          %v913 = vadd.f32 %v905, 1e-05
          %v914 = vadd.f32 %v906, 1e-05
          %v915 = vadd.f32 %v907, 1e-05
          %v916 = vadd.f32 %v908, 1e-05
          %v917 = vadd.f32 %v909, 1e-05
          %v918 = vadd.f32 %v910, 1e-05
          %v919 = vrsqrt.pop %v911
          %v920 = vmul.f32 %v919, %v911
          %v921 = vmul.f32 %v920, %v919
          %v922 = vmul.f32 0.5, %v921
          %v923 = vsub.f32 1.5, %v922
          %v924 = vmul.f32 %v919, %v923
          %vm925 = vweird.f32 %v911
          %vm926 = vweird.f32 %v919
          %vm927 = vmor %vm925, %vm926
          %v928 = vsel %vm927, %v919, %v924
          %v929 = vrsqrt.pop %v912
          %v930 = vmul.f32 %v929, %v912
          %v931 = vmul.f32 %v930, %v929
          %v932 = vmul.f32 0.5, %v931
          %v933 = vsub.f32 1.5, %v932
          %v934 = vmul.f32 %v929, %v933
          %vm935 = vweird.f32 %v912
          %vm936 = vweird.f32 %v929
          %vm937 = vmor %vm935, %vm936
          %v938 = vsel %vm937, %v929, %v934
          %v939 = vrsqrt.pop %v913
          %v940 = vmul.f32 %v939, %v913
          %v941 = vmul.f32 %v940, %v939
          %v942 = vmul.f32 0.5, %v941
          %v943 = vsub.f32 1.5, %v942
          %v944 = vmul.f32 %v939, %v943
          %vm945 = vweird.f32 %v913
          %vm946 = vweird.f32 %v939
          %vm947 = vmor %vm945, %vm946
          %v948 = vsel %vm947, %v939, %v944
          %v949 = vrsqrt.pop %v914
          %v950 = vmul.f32 %v949, %v914
          %v951 = vmul.f32 %v950, %v949
          %v952 = vmul.f32 0.5, %v951
          %v953 = vsub.f32 1.5, %v952
          %v954 = vmul.f32 %v949, %v953
          %vm955 = vweird.f32 %v914
          %vm956 = vweird.f32 %v949
          %vm957 = vmor %vm955, %vm956
          %v958 = vsel %vm957, %v949, %v954
          %v959 = vrsqrt.pop %v915
          %v960 = vmul.f32 %v959, %v915
          %v961 = vmul.f32 %v960, %v959
          %v962 = vmul.f32 0.5, %v961
          %v963 = vsub.f32 1.5, %v962
          %v964 = vmul.f32 %v959, %v963
          %vm965 = vweird.f32 %v915
          %vm966 = vweird.f32 %v959
          %vm967 = vmor %vm965, %vm966
          %v968 = vsel %vm967, %v959, %v964
          %v969 = vrsqrt.pop %v916
          %v970 = vmul.f32 %v969, %v916
          %v971 = vmul.f32 %v970, %v969
          %v972 = vmul.f32 0.5, %v971
          %v973 = vsub.f32 1.5, %v972
          %v974 = vmul.f32 %v969, %v973
          %vm975 = vweird.f32 %v916
          %vm976 = vweird.f32 %v969
          %vm977 = vmor %vm975, %vm976
          %v978 = vsel %vm977, %v969, %v974
          %v979 = vrsqrt.pop %v917
          %v980 = vmul.f32 %v979, %v917
          %v981 = vmul.f32 %v980, %v979
          %v982 = vmul.f32 0.5, %v981
          %v983 = vsub.f32 1.5, %v982
          %v984 = vmul.f32 %v979, %v983
          %vm985 = vweird.f32 %v917
          %vm986 = vweird.f32 %v979
          %vm987 = vmor %vm985, %vm986
          %v988 = vsel %vm987, %v979, %v984
          %v989 = vrsqrt.pop %v918
          %v990 = vmul.f32 %v989, %v918
          %v991 = vmul.f32 %v990, %v989
          %v992 = vmul.f32 0.5, %v991
          %v993 = vsub.f32 1.5, %v992
          %v994 = vmul.f32 %v989, %v993
          %vm995 = vweird.f32 %v918
          %vm996 = vweird.f32 %v989
          %vm997 = vmor %vm995, %vm996
          %v998 = vsel %vm997, %v989, %v994
          %v999 = vld [vmem:[%s2] sm:$0xff]
          %v1000 = vld [vmem:[%s2 + $0x8] sm:$0xff]
          %v1001 = vld [vmem:[%s2 + $0x10] sm:$0xff]
          %v1002 = vld [vmem:[%s2 + $0x18] sm:$0xff]
          %v1003 = vld [vmem:[%s2 + $0x20] sm:$0xff]
          %v1004 = vld [vmem:[%s2 + $0x28] sm:$0xff]
          %v1005 = vld [vmem:[%s2 + $0x30] sm:$0xff]
          %v1006 = vld [vmem:[%s2 + $0x38] sm:$0xff]
          %v1007 = vmul.f32 %v928, %v999
          %v1008 = vmul.f32 %v938, %v1000
          %v1009 = vmul.f32 %v948, %v1001
          %v1010 = vmul.f32 %v958, %v1002
          %v1011 = vmul.f32 %v968, %v1003
          %v1012 = vmul.f32 %v978, %v1004
          %v1013 = vmul.f32 %v988, %v1005
          %v1014 = vmul.f32 %v998, %v1006
          %1016 = vset.pattern.permute.xlu0 0
          %1017 = vperm.xlu0 %1016, %v1007
          %v1018 = vpop.permute.xlu0 %1017
          %1021 = vset.pattern.permute.xlu0 0
          %1022 = vperm.xlu0 %1021, %v1008
          %v1023 = vpop.permute.xlu0 %1022
          %1026 = vset.pattern.permute.xlu0 0
          %1027 = vperm.xlu0 %1026, %v1009
          %v1028 = vpop.permute.xlu0 %1027
          %1031 = vset.pattern.permute.xlu0 0
          %1032 = vperm.xlu0 %1031, %v1010
          %v1033 = vpop.permute.xlu0 %1032
          %1036 = vset.pattern.permute.xlu0 0
          %1037 = vperm.xlu0 %1036, %v1011
          %v1038 = vpop.permute.xlu0 %1037
          %1041 = vset.pattern.permute.xlu0 0
          %1042 = vperm.xlu0 %1041, %v1012
          %v1043 = vpop.permute.xlu0 %1042
          %1046 = vset.pattern.permute.xlu0 0
          %1047 = vperm.xlu0 %1046, %v1013
          %v1048 = vpop.permute.xlu0 %1047
          %1051 = vset.pattern.permute.xlu0 0
          %1052 = vperm.xlu0 %1051, %v1014
          %v1053 = vpop.permute.xlu0 %1052
          %v1055 = vmul.f32 %v783, %v1018
          %v1056 = vmul.f32 %v784, %v1018
          %v1057 = vmul.f32 %v785, %v1023
          %v1058 = vmul.f32 %v786, %v1023
          %v1059 = vmul.f32 %v787, %v1028
          %v1060 = vmul.f32 %v788, %v1028
          %v1061 = vmul.f32 %v789, %v1033
          %v1062 = vmul.f32 %v790, %v1033
          %v1063 = vmul.f32 %v791, %v1038
          %v1064 = vmul.f32 %v792, %v1038
          %v1065 = vmul.f32 %v793, %v1043
          %v1066 = vmul.f32 %v794, %v1043
          %v1067 = vmul.f32 %v795, %v1048
          %v1068 = vmul.f32 %v796, %v1048
          %v1069 = vmul.f32 %v797, %v1053
          %v1070 = vmul.f32 %v798, %v1053
          %v1071 = vld [vmem:[%s3] sm:$0xff]
          %v1072 = vld [vmem:[%s3 + $0x8] sm:$0xff]
          %v1073 = vld [vmem:[%s3 + $0x10] sm:$0xff]
          %v1074 = vld [vmem:[%s3 + $0x18] sm:$0xff]
          %v1075 = vld [vmem:[%s3 + $0x20] sm:$0xff]
          %v1076 = vld [vmem:[%s3 + $0x28] sm:$0xff]
          %v1077 = vld [vmem:[%s3 + $0x30] sm:$0xff]
          %v1078 = vld [vmem:[%s3 + $0x38] sm:$0xff]
          %1080 = vset.pattern.permute.xlu0 0
          %1081 = vperm.xlu0 %1080, %v1071
          %v1082 = vpop.permute.xlu0 %1081
          %1085 = vset.pattern.permute.xlu0 0
          %1086 = vperm.xlu0 %1085, %v1072
          %v1087 = vpop.permute.xlu0 %1086
          %1090 = vset.pattern.permute.xlu0 0
          %1091 = vperm.xlu0 %1090, %v1073
          %v1092 = vpop.permute.xlu0 %1091
          %1095 = vset.pattern.permute.xlu0 0
          %1096 = vperm.xlu0 %1095, %v1074
          %v1097 = vpop.permute.xlu0 %1096
          %1100 = vset.pattern.permute.xlu0 0
          %1101 = vperm.xlu0 %1100, %v1075
          %v1102 = vpop.permute.xlu0 %1101
          %1105 = vset.pattern.permute.xlu0 0
          %1106 = vperm.xlu0 %1105, %v1076
          %v1107 = vpop.permute.xlu0 %1106
          %1110 = vset.pattern.permute.xlu0 0
          %1111 = vperm.xlu0 %1110, %v1077
          %v1112 = vpop.permute.xlu0 %1111
          %1115 = vset.pattern.permute.xlu0 0
          %1116 = vperm.xlu0 %1115, %v1078
          %v1117 = vpop.permute.xlu0 %1116
          %v1119 = vadd.f32 %v1055, %v1082
          %v1120 = vadd.f32 %v1056, %v1082
          %v1121 = vadd.f32 %v1057, %v1087
          %v1122 = vadd.f32 %v1058, %v1087
          %v1123 = vadd.f32 %v1059, %v1092
          %v1124 = vadd.f32 %v1060, %v1092
          %v1125 = vadd.f32 %v1061, %v1097
          %v1126 = vadd.f32 %v1062, %v1097
          %v1127 = vadd.f32 %v1063, %v1102
          %v1128 = vadd.f32 %v1064, %v1102
          %v1129 = vadd.f32 %v1065, %v1107
          %v1130 = vadd.f32 %v1066, %v1107
          %v1131 = vadd.f32 %v1067, %v1112
          %v1132 = vadd.f32 %v1068, %v1112
          %v1133 = vadd.f32 %v1069, %v1117
          %v1134 = vadd.f32 %v1070, %v1117
          %vm1135 = vcmp.gt.f32.partialorder %v1119, 0.0
          %vm1136 = vcmp.gt.f32.partialorder %v1120, 0.0
          %vm1137 = vcmp.gt.f32.partialorder %v1121, 0.0
          %vm1138 = vcmp.gt.f32.partialorder %v1122, 0.0
          %vm1139 = vcmp.gt.f32.partialorder %v1123, 0.0
          %vm1140 = vcmp.gt.f32.partialorder %v1124, 0.0
          %vm1141 = vcmp.gt.f32.partialorder %v1125, 0.0
          %vm1142 = vcmp.gt.f32.partialorder %v1126, 0.0
          %vm1143 = vcmp.gt.f32.partialorder %v1127, 0.0
          %vm1144 = vcmp.gt.f32.partialorder %v1128, 0.0
          %vm1145 = vcmp.gt.f32.partialorder %v1129, 0.0
          %vm1146 = vcmp.gt.f32.partialorder %v1130, 0.0
          %vm1147 = vcmp.gt.f32.partialorder %v1131, 0.0
          %vm1148 = vcmp.gt.f32.partialorder %v1132, 0.0
          %vm1149 = vcmp.gt.f32.partialorder %v1133, 0.0
          %vm1150 = vcmp.gt.f32.partialorder %v1134, 0.0
          %v1151 = vmul.f32 %v1119, 0.2
          %v1152 = vmul.f32 %v1120, 0.2
          %v1153 = vmul.f32 %v1121, 0.2
          %v1154 = vmul.f32 %v1122, 0.2
          %v1155 = vmul.f32 %v1123, 0.2
          %v1156 = vmul.f32 %v1124, 0.2
          %v1157 = vmul.f32 %v1125, 0.2
          %v1158 = vmul.f32 %v1126, 0.2
          %v1159 = vmul.f32 %v1127, 0.2
          %v1160 = vmul.f32 %v1128, 0.2
          %v1161 = vmul.f32 %v1129, 0.2
          %v1162 = vmul.f32 %v1130, 0.2
          %v1163 = vmul.f32 %v1131, 0.2
          %v1164 = vmul.f32 %v1132, 0.2
          %v1165 = vmul.f32 %v1133, 0.2
          %v1166 = vmul.f32 %v1134, 0.2
          %v1167 = vsel %vm1135, %v1119, %v1151
          %v1168 = vsel %vm1136, %v1120, %v1152
          %v1169 = vsel %vm1137, %v1121, %v1153
          %v1170 = vsel %vm1138, %v1122, %v1154
          %v1171 = vsel %vm1139, %v1123, %v1155
          %v1172 = vsel %vm1140, %v1124, %v1156
          %v1173 = vsel %vm1141, %v1125, %v1157
          %v1174 = vsel %vm1142, %v1126, %v1158
          %v1175 = vsel %vm1143, %v1127, %v1159
          %v1176 = vsel %vm1144, %v1128, %v1160
          %v1177 = vsel %vm1145, %v1129, %v1161
          %v1178 = vsel %vm1146, %v1130, %v1162
          %v1179 = vsel %vm1147, %v1131, %v1163
          %v1180 = vsel %vm1148, %v1132, %v1164
          %v1181 = vsel %vm1149, %v1133, %v1165
          %v1182 = vsel %vm1150, %v1134, %v1166
          %1183 = vst [vmem:[#allocation3] sm:$0xff] %v1167
          %1184 = vst [vmem:[#allocation3 + $0x8] sm:$0xff] %v1168
          %1185 = vst [vmem:[#allocation3 + $0x10] sm:$0xff] %v1169
          %1186 = vst [vmem:[#allocation3 + $0x18] sm:$0xff] %v1170
          %1187 = vst [vmem:[#allocation3 + $0x20] sm:$0xff] %v1171
          %1188 = vst [vmem:[#allocation3 + $0x28] sm:$0xff] %v1172
          %1189 = vst [vmem:[#allocation3 + $0x30] sm:$0xff] %v1173
          %1190 = vst [vmem:[#allocation3 + $0x38] sm:$0xff] %v1174
          %1191 = vst [vmem:[#allocation3 + $0x40] sm:$0xff] %v1175
          %1192 = vst [vmem:[#allocation3 + $0x48] sm:$0xff] %v1176
          %1193 = vst [vmem:[#allocation3 + $0x50] sm:$0xff] %v1177
          %1194 = vst [vmem:[#allocation3 + $0x58] sm:$0xff] %v1178
          %1195 = vst [vmem:[#allocation3 + $0x60] sm:$0xff] %v1179
          %1196 = vst [vmem:[#allocation3 + $0x68] sm:$0xff] %v1180
          %1197 = vst [vmem:[#allocation3 + $0x70] sm:$0xff] %v1181
          %1198 = vst [vmem:[#allocation3 + $0x78] sm:$0xff] %v1182
          %v1199 = vmul.f32 %v799, %v1018
          %v1200 = vmul.f32 %v800, %v1018
          %v1201 = vmul.f32 %v801, %v1023
          %v1202 = vmul.f32 %v802, %v1023
          %v1203 = vmul.f32 %v803, %v1028
          %v1204 = vmul.f32 %v804, %v1028
          %v1205 = vmul.f32 %v805, %v1033
          %v1206 = vmul.f32 %v806, %v1033
          %v1207 = vmul.f32 %v807, %v1038
          %v1208 = vmul.f32 %v808, %v1038
          %v1209 = vmul.f32 %v809, %v1043
          %v1210 = vmul.f32 %v810, %v1043
          %v1211 = vmul.f32 %v811, %v1048
          %v1212 = vmul.f32 %v812, %v1048
          %v1213 = vmul.f32 %v813, %v1053
          %v1214 = vmul.f32 %v814, %v1053
          %v1215 = vld [vmem:[%s3] sm:$0xff]
          %v1216 = vld [vmem:[%s3 + $0x8] sm:$0xff]
          %v1217 = vld [vmem:[%s3 + $0x10] sm:$0xff]
          %v1218 = vld [vmem:[%s3 + $0x18] sm:$0xff]
          %v1219 = vld [vmem:[%s3 + $0x20] sm:$0xff]
          %v1220 = vld [vmem:[%s3 + $0x28] sm:$0xff]
          %v1221 = vld [vmem:[%s3 + $0x30] sm:$0xff]
          %v1222 = vld [vmem:[%s3 + $0x38] sm:$0xff]
          %1224 = vset.pattern.permute.xlu0 0
          %1225 = vperm.xlu0 %1224, %v1215
          %v1226 = vpop.permute.xlu0 %1225
          %1229 = vset.pattern.permute.xlu0 0
          %1230 = vperm.xlu0 %1229, %v1216
          %v1231 = vpop.permute.xlu0 %1230
          %1234 = vset.pattern.permute.xlu0 0
          %1235 = vperm.xlu0 %1234, %v1217
          %v1236 = vpop.permute.xlu0 %1235
          %1239 = vset.pattern.permute.xlu0 0
          %1240 = vperm.xlu0 %1239, %v1218
          %v1241 = vpop.permute.xlu0 %1240
          %1244 = vset.pattern.permute.xlu0 0
          %1245 = vperm.xlu0 %1244, %v1219
          %v1246 = vpop.permute.xlu0 %1245
          %1249 = vset.pattern.permute.xlu0 0
          %1250 = vperm.xlu0 %1249, %v1220
          %v1251 = vpop.permute.xlu0 %1250
          %1254 = vset.pattern.permute.xlu0 0
          %1255 = vperm.xlu0 %1254, %v1221
          %v1256 = vpop.permute.xlu0 %1255
          %1259 = vset.pattern.permute.xlu0 0
          %1260 = vperm.xlu0 %1259, %v1222
          %v1261 = vpop.permute.xlu0 %1260
          %v1263 = vadd.f32 %v1199, %v1226
          %v1264 = vadd.f32 %v1200, %v1226
          %v1265 = vadd.f32 %v1201, %v1231
          %v1266 = vadd.f32 %v1202, %v1231
          %v1267 = vadd.f32 %v1203, %v1236
          %v1268 = vadd.f32 %v1204, %v1236
          %v1269 = vadd.f32 %v1205, %v1241
          %v1270 = vadd.f32 %v1206, %v1241
          %v1271 = vadd.f32 %v1207, %v1246
          %v1272 = vadd.f32 %v1208, %v1246
          %v1273 = vadd.f32 %v1209, %v1251
          %v1274 = vadd.f32 %v1210, %v1251
          %v1275 = vadd.f32 %v1211, %v1256
          %v1276 = vadd.f32 %v1212, %v1256
          %v1277 = vadd.f32 %v1213, %v1261
          %v1278 = vadd.f32 %v1214, %v1261
          %vm1279 = vcmp.gt.f32.partialorder %v1263, 0.0
          %vm1280 = vcmp.gt.f32.partialorder %v1264, 0.0
          %vm1281 = vcmp.gt.f32.partialorder %v1265, 0.0
          %vm1282 = vcmp.gt.f32.partialorder %v1266, 0.0
          %vm1283 = vcmp.gt.f32.partialorder %v1267, 0.0
          %vm1284 = vcmp.gt.f32.partialorder %v1268, 0.0
          %vm1285 = vcmp.gt.f32.partialorder %v1269, 0.0
          %vm1286 = vcmp.gt.f32.partialorder %v1270, 0.0
          %vm1287 = vcmp.gt.f32.partialorder %v1271, 0.0
          %vm1288 = vcmp.gt.f32.partialorder %v1272, 0.0
          %vm1289 = vcmp.gt.f32.partialorder %v1273, 0.0
          %vm1290 = vcmp.gt.f32.partialorder %v1274, 0.0
          %vm1291 = vcmp.gt.f32.partialorder %v1275, 0.0
          %vm1292 = vcmp.gt.f32.partialorder %v1276, 0.0
          %vm1293 = vcmp.gt.f32.partialorder %v1277, 0.0
          %vm1294 = vcmp.gt.f32.partialorder %v1278, 0.0
          %v1295 = vmul.f32 %v1263, 0.2
          %v1296 = vmul.f32 %v1264, 0.2
          %v1297 = vmul.f32 %v1265, 0.2
          %v1298 = vmul.f32 %v1266, 0.2
          %v1299 = vmul.f32 %v1267, 0.2
          %v1300 = vmul.f32 %v1268, 0.2
          %v1301 = vmul.f32 %v1269, 0.2
          %v1302 = vmul.f32 %v1270, 0.2
          %v1303 = vmul.f32 %v1271, 0.2
          %v1304 = vmul.f32 %v1272, 0.2
          %v1305 = vmul.f32 %v1273, 0.2
          %v1306 = vmul.f32 %v1274, 0.2
          %v1307 = vmul.f32 %v1275, 0.2
          %v1308 = vmul.f32 %v1276, 0.2
          %v1309 = vmul.f32 %v1277, 0.2
          %v1310 = vmul.f32 %v1278, 0.2
          %v1311 = vsel %vm1279, %v1263, %v1295
          %v1312 = vsel %vm1280, %v1264, %v1296
          %v1313 = vsel %vm1281, %v1265, %v1297
          %v1314 = vsel %vm1282, %v1266, %v1298
          %v1315 = vsel %vm1283, %v1267, %v1299
          %v1316 = vsel %vm1284, %v1268, %v1300
          %v1317 = vsel %vm1285, %v1269, %v1301
          %v1318 = vsel %vm1286, %v1270, %v1302
          %v1319 = vsel %vm1287, %v1271, %v1303
          %v1320 = vsel %vm1288, %v1272, %v1304
          %v1321 = vsel %vm1289, %v1273, %v1305
          %v1322 = vsel %vm1290, %v1274, %v1306
          %v1323 = vsel %vm1291, %v1275, %v1307
          %v1324 = vsel %vm1292, %v1276, %v1308
          %v1325 = vsel %vm1293, %v1277, %v1309
          %v1326 = vsel %vm1294, %v1278, %v1310
          %1327 = vst [vmem:[#allocation4] sm:$0xff] %v1311
          %1328 = vst [vmem:[#allocation4 + $0x8] sm:$0xff] %v1312
          %1329 = vst [vmem:[#allocation4 + $0x10] sm:$0xff] %v1313
          %1330 = vst [vmem:[#allocation4 + $0x18] sm:$0xff] %v1314
          %1331 = vst [vmem:[#allocation4 + $0x20] sm:$0xff] %v1315
          %1332 = vst [vmem:[#allocation4 + $0x28] sm:$0xff] %v1316
          %1333 = vst [vmem:[#allocation4 + $0x30] sm:$0xff] %v1317
          %1334 = vst [vmem:[#allocation4 + $0x38] sm:$0xff] %v1318
          %1335 = vst [vmem:[#allocation4 + $0x40] sm:$0xff] %v1319
          %1336 = vst [vmem:[#allocation4 + $0x48] sm:$0xff] %v1320
          %1337 = vst [vmem:[#allocation4 + $0x50] sm:$0xff] %v1321
          %1338 = vst [vmem:[#allocation4 + $0x58] sm:$0xff] %v1322
          %1339 = vst [vmem:[#allocation4 + $0x60] sm:$0xff] %v1323
          %1340 = vst [vmem:[#allocation4 + $0x68] sm:$0xff] %v1324
          %1341 = vst [vmem:[#allocation4 + $0x70] sm:$0xff] %v1325
          %1342 = vst [vmem:[#allocation4 + $0x78] sm:$0xff] %v1326
        $region84: #{dis_forward.1} parent=75 // pred_fallthru
          _
        %s1343 = smul.u32 %s28, 16
        %s1344 = sshra.s32 %s1343, 3
        %s1345 = sand.u32 %s1343, 7
        %s1346 = smul.u32 %s1344, 2
        %s1347 = smul.addr %s1346, 8
        %s1348 = scalar_lea.vmem [#allocation3], %s1347
        %v1349 = vld [vmem:[%s1348] sm:$0xff]
        %v1350 = vld [vmem:[%s1348 + $0x8] sm:$0xff]
        %v1351 = vld [vmem:[%s1348 + $0x10] sm:$0xff]
        %v1352 = vld [vmem:[%s1348 + $0x18] sm:$0xff]
        %s1353 = smul.addr %s1346, 8
        %s1354 = scalar_lea.vmem [#allocation4], %s1353
        %v1355 = vld [vmem:[%s1354] sm:$0xff]
        %v1356 = vld [vmem:[%s1354 + $0x8] sm:$0xff]
        %v1357 = vld [vmem:[%s1354 + $0x10] sm:$0xff]
        %v1358 = vld [vmem:[%s1354 + $0x18] sm:$0xff]
        %v1361 = vrot.slane %v1355, 7
        %v1362 = vrot.slane %v1356, 7
        %vm1365 = vcmask 1040384
        %v1366 = vsel %vm1365, %v1349, %v1361
        %v1367 = vsel %vm1365, %v1350, %v1362
        %v1368 = vld [vmem:[%s475] sm:$0xff]
        %v1369 = vld [vmem:[%s475 + $0x8] sm:$0xff]
        %v1370 = vld [vmem:[%s475 + $0x10] sm:$0xff]
        %v1371 = vld [vmem:[%s475 + $0x18] sm:$0xff]
        %v1372 = vld [vmem:[%s475 + $0x20] sm:$0xff]
        %v1373 = vld [vmem:[%s475 + $0x28] sm:$0xff]
        %v1374 = vld [vmem:[%s475 + $0x30] sm:$0xff]
        %v1375 = vld [vmem:[%s475 + $0x38] sm:$0xff]
        %v1376 = vld [vmem:[%s475 + $0x40] sm:$0xff]
        %v1377 = vld [vmem:[%s475 + $0x48] sm:$0xff]
        %v1378 = vld [vmem:[%s475 + $0x50] sm:$0xff]
        %v1379 = vld [vmem:[%s475 + $0x58] sm:$0xff]
        %v1380 = vld [vmem:[%s475 + $0x60] sm:$0xff]
        %v1381 = vld [vmem:[%s475 + $0x68] sm:$0xff]
        %v1382 = vld [vmem:[%s475 + $0x70] sm:$0xff]
        %v1383 = vld [vmem:[%s475 + $0x78] sm:$0xff]
        %v1384 = vld [vmem:[%s475 + $0x80] sm:$0xff]
        %v1385 = vld [vmem:[%s475 + $0x88] sm:$0xff]
        %v1386 = vld [vmem:[%s475 + $0x90] sm:$0xff]
        %v1387 = vld [vmem:[%s475 + $0x98] sm:$0xff]
        %v1388 = vld [vmem:[%s475 + $0xa0] sm:$0xff]
        %v1389 = vld [vmem:[%s475 + $0xa8] sm:$0xff]
        %v1390 = vld [vmem:[%s475 + $0xb0] sm:$0xff]
        %v1391 = vld [vmem:[%s475 + $0xb8] sm:$0xff]
        %v1392 = vld [vmem:[%s475 + $0xc0] sm:$0xff]
        %v1393 = vld [vmem:[%s475 + $0xc8] sm:$0xff]
        %v1394 = vld [vmem:[%s475 + $0xd0] sm:$0xff]
        %v1395 = vld [vmem:[%s475 + $0xd8] sm:$0xff]
        %v1396 = vld [vmem:[%s475 + $0xe0] sm:$0xff]
        %v1397 = vld [vmem:[%s475 + $0xe8] sm:$0xff]
        %v1398 = vld [vmem:[%s475 + $0xf0] sm:$0xff]
        %v1399 = vld [vmem:[%s475 + $0xf8] sm:$0xff]
        %v1400 = vld [vmem:[%s475 + $0x100] sm:$0xff]
        %v1401 = vld [vmem:[%s475 + $0x108] sm:$0xff]
        %v1402 = vld [vmem:[%s475 + $0x110] sm:$0xff]
        %v1403 = vld [vmem:[%s475 + $0x118] sm:$0xff]
        %v1404 = vld [vmem:[%s475 + $0x120] sm:$0xff]
        %v1405 = vld [vmem:[%s475 + $0x128] sm:$0xff]
        %v1406 = vld [vmem:[%s475 + $0x130] sm:$0xff]
        %v1407 = vld [vmem:[%s475 + $0x138] sm:$0xff]
        %v1408 = vld [vmem:[%s475 + $0x140] sm:$0xff]
        %v1409 = vld [vmem:[%s475 + $0x148] sm:$0xff]
        %v1410 = vld [vmem:[%s475 + $0x150] sm:$0xff]
        %v1411 = vld [vmem:[%s475 + $0x158] sm:$0xff]
        %v1412 = vld [vmem:[%s475 + $0x160] sm:$0xff]
        %v1413 = vld [vmem:[%s475 + $0x168] sm:$0xff]
        %v1414 = vld [vmem:[%s475 + $0x170] sm:$0xff]
        %v1415 = vld [vmem:[%s475 + $0x178] sm:$0xff]
        %v1416 = vld [vmem:[%s475 + $0x180] sm:$0xff]
        %v1417 = vld [vmem:[%s475 + $0x188] sm:$0xff]
        %v1418 = vld [vmem:[%s475 + $0x190] sm:$0xff]
        %v1419 = vld [vmem:[%s475 + $0x198] sm:$0xff]
        %v1420 = vld [vmem:[%s475 + $0x1a0] sm:$0xff]
        %v1421 = vld [vmem:[%s475 + $0x1a8] sm:$0xff]
        %v1422 = vld [vmem:[%s475 + $0x1b0] sm:$0xff]
        %v1423 = vld [vmem:[%s475 + $0x1b8] sm:$0xff]
        %v1424 = vld [vmem:[%s475 + $0x1c0] sm:$0xff]
        %v1425 = vld [vmem:[%s475 + $0x1c8] sm:$0xff]
        %v1426 = vld [vmem:[%s475 + $0x1d0] sm:$0xff]
        %v1427 = vld [vmem:[%s475 + $0x1d8] sm:$0xff]
        %v1428 = vld [vmem:[%s475 + $0x1e0] sm:$0xff]
        %v1429 = vld [vmem:[%s475 + $0x1e8] sm:$0xff]
        %v1430 = vld [vmem:[%s475 + $0x1f0] sm:$0xff]
        %v1431 = vld [vmem:[%s475 + $0x1f8] sm:$0xff]
        %v1432 = vpack.c.bf16 %v1366, %v1366
        %v1433 = vpack.c.bf16 %v1367, %v1367
        %v1436 = vrot.slane %v1349, 1
        %v1437 = vrot.slane %v1350, 1
        %v1440 = vsel %vm1365, %v1436, %v1355
        %v1441 = vsel %vm1365, %v1437, %v1356
        %v1442 = vld [vmem:[%s475 + $0x200] sm:$0xff]
        %v1443 = vld [vmem:[%s475 + $0x208] sm:$0xff]
        %v1444 = vld [vmem:[%s475 + $0x210] sm:$0xff]
        %v1445 = vld [vmem:[%s475 + $0x218] sm:$0xff]
        %v1446 = vld [vmem:[%s475 + $0x220] sm:$0xff]
        %v1447 = vld [vmem:[%s475 + $0x228] sm:$0xff]
        %v1448 = vld [vmem:[%s475 + $0x230] sm:$0xff]
        %v1449 = vld [vmem:[%s475 + $0x238] sm:$0xff]
        %v1450 = vld [vmem:[%s475 + $0x240] sm:$0xff]
        %v1451 = vld [vmem:[%s475 + $0x248] sm:$0xff]
        %v1452 = vld [vmem:[%s475 + $0x250] sm:$0xff]
        %v1453 = vld [vmem:[%s475 + $0x258] sm:$0xff]
        %v1454 = vld [vmem:[%s475 + $0x260] sm:$0xff]
        %v1455 = vld [vmem:[%s475 + $0x268] sm:$0xff]
        %v1456 = vld [vmem:[%s475 + $0x270] sm:$0xff]
        %v1457 = vld [vmem:[%s475 + $0x278] sm:$0xff]
        %v1458 = vld [vmem:[%s475 + $0x280] sm:$0xff]
        %v1459 = vld [vmem:[%s475 + $0x288] sm:$0xff]
        %v1460 = vld [vmem:[%s475 + $0x290] sm:$0xff]
        %v1461 = vld [vmem:[%s475 + $0x298] sm:$0xff]
        %v1462 = vld [vmem:[%s475 + $0x2a0] sm:$0xff]
        %v1463 = vld [vmem:[%s475 + $0x2a8] sm:$0xff]
        %v1464 = vld [vmem:[%s475 + $0x2b0] sm:$0xff]
        %v1465 = vld [vmem:[%s475 + $0x2b8] sm:$0xff]
        %v1466 = vld [vmem:[%s475 + $0x2c0] sm:$0xff]
        %v1467 = vld [vmem:[%s475 + $0x2c8] sm:$0xff]
        %v1468 = vld [vmem:[%s475 + $0x2d0] sm:$0xff]
        %v1469 = vld [vmem:[%s475 + $0x2d8] sm:$0xff]
        %v1470 = vld [vmem:[%s475 + $0x2e0] sm:$0xff]
        %v1471 = vld [vmem:[%s475 + $0x2e8] sm:$0xff]
        %v1472 = vld [vmem:[%s475 + $0x2f0] sm:$0xff]
        %v1473 = vld [vmem:[%s475 + $0x2f8] sm:$0xff]
        %v1474 = vld [vmem:[%s475 + $0x300] sm:$0xff]
        %v1475 = vld [vmem:[%s475 + $0x308] sm:$0xff]
        %v1476 = vld [vmem:[%s475 + $0x310] sm:$0xff]
        %v1477 = vld [vmem:[%s475 + $0x318] sm:$0xff]
        %v1478 = vld [vmem:[%s475 + $0x320] sm:$0xff]
        %v1479 = vld [vmem:[%s475 + $0x328] sm:$0xff]
        %v1480 = vld [vmem:[%s475 + $0x330] sm:$0xff]
        %v1481 = vld [vmem:[%s475 + $0x338] sm:$0xff]
        %v1482 = vld [vmem:[%s475 + $0x340] sm:$0xff]
        %v1483 = vld [vmem:[%s475 + $0x348] sm:$0xff]
        %v1484 = vld [vmem:[%s475 + $0x350] sm:$0xff]
        %v1485 = vld [vmem:[%s475 + $0x358] sm:$0xff]
        %v1486 = vld [vmem:[%s475 + $0x360] sm:$0xff]
        %v1487 = vld [vmem:[%s475 + $0x368] sm:$0xff]
        %v1488 = vld [vmem:[%s475 + $0x370] sm:$0xff]
        %v1489 = vld [vmem:[%s475 + $0x378] sm:$0xff]
        %v1490 = vld [vmem:[%s475 + $0x380] sm:$0xff]
        %v1491 = vld [vmem:[%s475 + $0x388] sm:$0xff]
        %v1492 = vld [vmem:[%s475 + $0x390] sm:$0xff]
        %v1493 = vld [vmem:[%s475 + $0x398] sm:$0xff]
        %v1494 = vld [vmem:[%s475 + $0x3a0] sm:$0xff]
        %v1495 = vld [vmem:[%s475 + $0x3a8] sm:$0xff]
        %v1496 = vld [vmem:[%s475 + $0x3b0] sm:$0xff]
        %v1497 = vld [vmem:[%s475 + $0x3b8] sm:$0xff]
        %v1498 = vld [vmem:[%s475 + $0x3c0] sm:$0xff]
        %v1499 = vld [vmem:[%s475 + $0x3c8] sm:$0xff]
        %v1500 = vld [vmem:[%s475 + $0x3d0] sm:$0xff]
        %v1501 = vld [vmem:[%s475 + $0x3d8] sm:$0xff]
        %v1502 = vld [vmem:[%s475 + $0x3e0] sm:$0xff]
        %v1503 = vld [vmem:[%s475 + $0x3e8] sm:$0xff]
        %v1504 = vld [vmem:[%s475 + $0x3f0] sm:$0xff]
        %v1505 = vld [vmem:[%s475 + $0x3f8] sm:$0xff]
        %v1506 = vpack.c.bf16 %v1440, %v1440
        %v1507 = vpack.c.bf16 %v1441, %v1441
        %v1572 = vunpack.c.l.b16 %v1442
        %v1573 = vunpack.c.h.b16 %v1442
        %v1574 = vunpack.c.l.b16 %v1443
        %v1575 = vunpack.c.h.b16 %v1443
        %v1576 = vunpack.c.l.b16 %v1444
        %v1577 = vunpack.c.h.b16 %v1444
        %v1578 = vunpack.c.l.b16 %v1445
        %v1579 = vunpack.c.h.b16 %v1445
        %v1580 = vunpack.c.l.b16 %v1446
        %v1581 = vunpack.c.h.b16 %v1446
        %v1582 = vunpack.c.l.b16 %v1447
        %v1583 = vunpack.c.h.b16 %v1447
        %v1584 = vunpack.c.l.b16 %v1448
        %v1585 = vunpack.c.h.b16 %v1448
        %v1586 = vunpack.c.l.b16 %v1449
        %v1587 = vunpack.c.h.b16 %v1449
        %v1588 = vunpack.c.l.b16 %v1450
        %v1589 = vunpack.c.h.b16 %v1450
        %v1590 = vunpack.c.l.b16 %v1451
        %v1591 = vunpack.c.h.b16 %v1451
        %v1592 = vunpack.c.l.b16 %v1452
        %v1593 = vunpack.c.h.b16 %v1452
        %v1594 = vunpack.c.l.b16 %v1453
        %v1595 = vunpack.c.h.b16 %v1453
        %v1596 = vunpack.c.l.b16 %v1454
        %v1597 = vunpack.c.h.b16 %v1454
        %v1598 = vunpack.c.l.b16 %v1455
        %v1599 = vunpack.c.h.b16 %v1455
        %v1600 = vunpack.c.l.b16 %v1456
        %v1601 = vunpack.c.h.b16 %v1456
        %v1602 = vunpack.c.l.b16 %v1457
        %v1603 = vunpack.c.h.b16 %v1457
        %v1604 = vunpack.c.l.b16 %v1458
        %v1605 = vunpack.c.h.b16 %v1458
        %v1606 = vunpack.c.l.b16 %v1459
        %v1607 = vunpack.c.h.b16 %v1459
        %v1608 = vunpack.c.l.b16 %v1460
        %v1609 = vunpack.c.h.b16 %v1460
        %v1610 = vunpack.c.l.b16 %v1461
        %v1611 = vunpack.c.h.b16 %v1461
        %v1612 = vunpack.c.l.b16 %v1462
        %v1613 = vunpack.c.h.b16 %v1462
        %v1614 = vunpack.c.l.b16 %v1463
        %v1615 = vunpack.c.h.b16 %v1463
        %v1616 = vunpack.c.l.b16 %v1464
        %v1617 = vunpack.c.h.b16 %v1464
        %v1618 = vunpack.c.l.b16 %v1465
        %v1619 = vunpack.c.h.b16 %v1465
        %v1620 = vunpack.c.l.b16 %v1466
        %v1621 = vunpack.c.h.b16 %v1466
        %v1622 = vunpack.c.l.b16 %v1467
        %v1623 = vunpack.c.h.b16 %v1467
        %v1624 = vunpack.c.l.b16 %v1468
        %v1625 = vunpack.c.h.b16 %v1468
        %v1626 = vunpack.c.l.b16 %v1469
        %v1627 = vunpack.c.h.b16 %v1469
        %v1628 = vunpack.c.l.b16 %v1470
        %v1629 = vunpack.c.h.b16 %v1470
        %v1630 = vunpack.c.l.b16 %v1471
        %v1631 = vunpack.c.h.b16 %v1471
        %v1632 = vunpack.c.l.b16 %v1472
        %v1633 = vunpack.c.h.b16 %v1472
        %v1634 = vunpack.c.l.b16 %v1473
        %v1635 = vunpack.c.h.b16 %v1473
        %v1636 = vunpack.c.l.b16 %v1474
        %v1637 = vunpack.c.h.b16 %v1474
        %v1638 = vunpack.c.l.b16 %v1475
        %v1639 = vunpack.c.h.b16 %v1475
        %v1640 = vunpack.c.l.b16 %v1476
        %v1641 = vunpack.c.h.b16 %v1476
        %v1642 = vunpack.c.l.b16 %v1477
        %v1643 = vunpack.c.h.b16 %v1477
        %v1644 = vunpack.c.l.b16 %v1478
        %v1645 = vunpack.c.h.b16 %v1478
        %v1646 = vunpack.c.l.b16 %v1479
        %v1647 = vunpack.c.h.b16 %v1479
        %v1648 = vunpack.c.l.b16 %v1480
        %v1649 = vunpack.c.h.b16 %v1480
        %v1650 = vunpack.c.l.b16 %v1481
        %v1651 = vunpack.c.h.b16 %v1481
        %v1652 = vunpack.c.l.b16 %v1482
        %v1653 = vunpack.c.h.b16 %v1482
        %v1654 = vunpack.c.l.b16 %v1483
        %v1655 = vunpack.c.h.b16 %v1483
        %v1656 = vunpack.c.l.b16 %v1484
        %v1657 = vunpack.c.h.b16 %v1484
        %v1658 = vunpack.c.l.b16 %v1485
        %v1659 = vunpack.c.h.b16 %v1485
        %v1660 = vunpack.c.l.b16 %v1486
        %v1661 = vunpack.c.h.b16 %v1486
        %v1662 = vunpack.c.l.b16 %v1487
        %v1663 = vunpack.c.h.b16 %v1487
        %v1664 = vunpack.c.l.b16 %v1488
        %v1665 = vunpack.c.h.b16 %v1488
        %v1666 = vunpack.c.l.b16 %v1489
        %v1667 = vunpack.c.h.b16 %v1489
        %v1668 = vunpack.c.l.b16 %v1490
        %v1669 = vunpack.c.h.b16 %v1490
        %v1670 = vunpack.c.l.b16 %v1491
        %v1671 = vunpack.c.h.b16 %v1491
        %v1672 = vunpack.c.l.b16 %v1492
        %v1673 = vunpack.c.h.b16 %v1492
        %v1674 = vunpack.c.l.b16 %v1493
        %v1675 = vunpack.c.h.b16 %v1493
        %v1676 = vunpack.c.l.b16 %v1494
        %v1677 = vunpack.c.h.b16 %v1494
        %v1678 = vunpack.c.l.b16 %v1495
        %v1679 = vunpack.c.h.b16 %v1495
        %v1680 = vunpack.c.l.b16 %v1496
        %v1681 = vunpack.c.h.b16 %v1496
        %v1682 = vunpack.c.l.b16 %v1497
        %v1683 = vunpack.c.h.b16 %v1497
        %v1684 = vunpack.c.l.b16 %v1498
        %v1685 = vunpack.c.h.b16 %v1498
        %v1686 = vunpack.c.l.b16 %v1499
        %v1687 = vunpack.c.h.b16 %v1499
        %v1688 = vunpack.c.l.b16 %v1500
        %v1689 = vunpack.c.h.b16 %v1500
        %v1690 = vunpack.c.l.b16 %v1501
        %v1691 = vunpack.c.h.b16 %v1501
        %v1692 = vunpack.c.l.b16 %v1502
        %v1693 = vunpack.c.h.b16 %v1502
        %v1694 = vunpack.c.l.b16 %v1503
        %v1695 = vunpack.c.h.b16 %v1503
        %v1696 = vunpack.c.l.b16 %v1504
        %v1697 = vunpack.c.h.b16 %v1504
        %v1698 = vunpack.c.l.b16 %v1505
        %v1699 = vunpack.c.h.b16 %v1505
        %v1700 = vpack.c.b16 %v1576, %v1572
        %v1701 = vpack.c.b16 %v1577, %v1573
        %v1702 = vpack.c.b16 %v1578, %v1574
        %v1703 = vpack.c.b16 %v1579, %v1575
        %v1704 = vpack.c.b16 %v1584, %v1580
        %v1705 = vpack.c.b16 %v1585, %v1581
        %v1706 = vpack.c.b16 %v1586, %v1582
        %v1707 = vpack.c.b16 %v1587, %v1583
        %v1708 = vpack.c.b16 %v1592, %v1588
        %v1709 = vpack.c.b16 %v1593, %v1589
        %v1710 = vpack.c.b16 %v1594, %v1590
        %v1711 = vpack.c.b16 %v1595, %v1591
        %v1712 = vpack.c.b16 %v1600, %v1596
        %v1713 = vpack.c.b16 %v1601, %v1597
        %v1714 = vpack.c.b16 %v1602, %v1598
        %v1715 = vpack.c.b16 %v1603, %v1599
        %v1716 = vpack.c.b16 %v1608, %v1604
        %v1717 = vpack.c.b16 %v1609, %v1605
        %v1718 = vpack.c.b16 %v1610, %v1606
        %v1719 = vpack.c.b16 %v1611, %v1607
        %v1720 = vpack.c.b16 %v1616, %v1612
        %v1721 = vpack.c.b16 %v1617, %v1613
        %v1722 = vpack.c.b16 %v1618, %v1614
        %v1723 = vpack.c.b16 %v1619, %v1615
        %v1724 = vpack.c.b16 %v1624, %v1620
        %v1725 = vpack.c.b16 %v1625, %v1621
        %v1726 = vpack.c.b16 %v1626, %v1622
        %v1727 = vpack.c.b16 %v1627, %v1623
        %v1728 = vpack.c.b16 %v1632, %v1628
        %v1729 = vpack.c.b16 %v1633, %v1629
        %v1730 = vpack.c.b16 %v1634, %v1630
        %v1731 = vpack.c.b16 %v1635, %v1631
        %v1732 = vpack.c.b16 %v1640, %v1636
        %v1733 = vpack.c.b16 %v1641, %v1637
        %v1734 = vpack.c.b16 %v1642, %v1638
        %v1735 = vpack.c.b16 %v1643, %v1639
        %v1736 = vpack.c.b16 %v1648, %v1644
        %v1737 = vpack.c.b16 %v1649, %v1645
        %v1738 = vpack.c.b16 %v1650, %v1646
        %v1739 = vpack.c.b16 %v1651, %v1647
        %v1740 = vpack.c.b16 %v1656, %v1652
        %v1741 = vpack.c.b16 %v1657, %v1653
        %v1742 = vpack.c.b16 %v1658, %v1654
        %v1743 = vpack.c.b16 %v1659, %v1655
        %v1744 = vpack.c.b16 %v1664, %v1660
        %v1745 = vpack.c.b16 %v1665, %v1661
        %v1746 = vpack.c.b16 %v1666, %v1662
        %v1747 = vpack.c.b16 %v1667, %v1663
        %v1748 = vpack.c.b16 %v1672, %v1668
        %v1749 = vpack.c.b16 %v1673, %v1669
        %v1750 = vpack.c.b16 %v1674, %v1670
        %v1751 = vpack.c.b16 %v1675, %v1671
        %v1752 = vpack.c.b16 %v1680, %v1676
        %v1753 = vpack.c.b16 %v1681, %v1677
        %v1754 = vpack.c.b16 %v1682, %v1678
        %v1755 = vpack.c.b16 %v1683, %v1679
        %v1756 = vpack.c.b16 %v1688, %v1684
        %v1757 = vpack.c.b16 %v1689, %v1685
        %v1758 = vpack.c.b16 %v1690, %v1686
        %v1759 = vpack.c.b16 %v1691, %v1687
        %v1760 = vpack.c.b16 %v1696, %v1692
        %v1761 = vpack.c.b16 %v1697, %v1693
        %v1762 = vpack.c.b16 %v1698, %v1694
        %v1763 = vpack.c.b16 %v1699, %v1695
        %1828 = vmatpush.bf16.msra.mxu0 %v1728
        %1829 = vmatpush.bf16.msra.mxu0 %v1724
        %1830 = vmatpush.bf16.msra.mxu0 %v1720
        %1831 = vmatpush.bf16.msra.mxu0 %v1716
        %1832 = vmatpush.bf16.msra.mxu0 %v1712
        %1833 = vmatpush.bf16.msra.mxu0 %v1708
        %1834 = vmatpush.bf16.msra.mxu0 %v1704
        %1835 = vmatpush.bf16.msra.mxu0 %v1700
        %1836 = vmatmul.bf16.gmra.mxu0 %v1506
        %v1837 = vpop.f32.mrf.mxu0
        %v1838 = vadd.f32 0.0, %v1837
        %v1839 = vpop.f32.mrf.mxu0
        %1840 = vdwg.mxu0
        %1841 = vmatpush.bf16.msra.mxu0 %v1760
        %1842 = vmatpush.bf16.msra.mxu0 %v1756
        %1843 = vmatpush.bf16.msra.mxu0 %v1752
        %1844 = vmatpush.bf16.msra.mxu0 %v1748
        %1845 = vmatpush.bf16.msra.mxu0 %v1744
        %1846 = vmatpush.bf16.msra.mxu0 %v1740
        %1847 = vmatpush.bf16.msra.mxu0 %v1736
        %1848 = vmatpush.bf16.msra.mxu0 %v1732
        %1849 = vmatmul.bf16.gmra.mxu0 %v1507
        %v1850 = vpop.f32.mrf.mxu0
        %v1851 = vadd.f32 %v1838, %v1850
        %v1852 = vpop.f32.mrf.mxu0
        %1853 = vdwg.mxu0
        %1854 = vmatpush.bf16.msra.mxu0 %v1729
        %1855 = vmatpush.bf16.msra.mxu0 %v1725
        %1856 = vmatpush.bf16.msra.mxu0 %v1721
        %1857 = vmatpush.bf16.msra.mxu0 %v1717
        %1858 = vmatpush.bf16.msra.mxu0 %v1713
        %1859 = vmatpush.bf16.msra.mxu0 %v1709
        %1860 = vmatpush.bf16.msra.mxu0 %v1705
        %1861 = vmatpush.bf16.msra.mxu0 %v1701
        %1862 = vmatmul.bf16.gmra.mxu0 %v1506
        %v1863 = vpop.f32.mrf.mxu0
        %v1864 = vadd.f32 0.0, %v1863
        %v1865 = vpop.f32.mrf.mxu0
        %1866 = vdwg.mxu0
        %1867 = vmatpush.bf16.msra.mxu0 %v1761
        %1868 = vmatpush.bf16.msra.mxu0 %v1757
        %1869 = vmatpush.bf16.msra.mxu0 %v1753
        %1870 = vmatpush.bf16.msra.mxu0 %v1749
        %1871 = vmatpush.bf16.msra.mxu0 %v1745
        %1872 = vmatpush.bf16.msra.mxu0 %v1741
        %1873 = vmatpush.bf16.msra.mxu0 %v1737
        %1874 = vmatpush.bf16.msra.mxu0 %v1733
        %1875 = vmatmul.bf16.gmra.mxu0 %v1507
        %v1876 = vpop.f32.mrf.mxu0
        %v1877 = vadd.f32 %v1864, %v1876
        %v1878 = vpop.f32.mrf.mxu0
        %1879 = vdwg.mxu0
        %1880 = vmatpush.bf16.msra.mxu0 %v1730
        %1881 = vmatpush.bf16.msra.mxu0 %v1726
        %1882 = vmatpush.bf16.msra.mxu0 %v1722
        %1883 = vmatpush.bf16.msra.mxu0 %v1718
        %1884 = vmatpush.bf16.msra.mxu0 %v1714
        %1885 = vmatpush.bf16.msra.mxu0 %v1710
        %1886 = vmatpush.bf16.msra.mxu0 %v1706
        %1887 = vmatpush.bf16.msra.mxu0 %v1702
        %1888 = vmatmul.bf16.gmra.mxu0 %v1506
        %v1889 = vpop.f32.mrf.mxu0
        %v1890 = vadd.f32 0.0, %v1889
        %v1891 = vpop.f32.mrf.mxu0
        %1892 = vdwg.mxu0
        %1893 = vmatpush.bf16.msra.mxu0 %v1762
        %1894 = vmatpush.bf16.msra.mxu0 %v1758
        %1895 = vmatpush.bf16.msra.mxu0 %v1754
        %1896 = vmatpush.bf16.msra.mxu0 %v1750
        %1897 = vmatpush.bf16.msra.mxu0 %v1746
        %1898 = vmatpush.bf16.msra.mxu0 %v1742
        %1899 = vmatpush.bf16.msra.mxu0 %v1738
        %1900 = vmatpush.bf16.msra.mxu0 %v1734
        %1901 = vmatmul.bf16.gmra.mxu0 %v1507
        %v1902 = vpop.f32.mrf.mxu0
        %v1903 = vadd.f32 %v1890, %v1902
        %v1904 = vpop.f32.mrf.mxu0
        %1905 = vdwg.mxu0
        %1906 = vmatpush.bf16.msra.mxu0 %v1731
        %1907 = vmatpush.bf16.msra.mxu0 %v1727
        %1908 = vmatpush.bf16.msra.mxu0 %v1723
        %1909 = vmatpush.bf16.msra.mxu0 %v1719
        %1910 = vmatpush.bf16.msra.mxu0 %v1715
        %1911 = vmatpush.bf16.msra.mxu0 %v1711
        %1912 = vmatpush.bf16.msra.mxu0 %v1707
        %1913 = vmatpush.bf16.msra.mxu0 %v1703
        %1914 = vmatmul.bf16.gmra.mxu0 %v1506
        %v1915 = vpop.f32.mrf.mxu0
        %v1916 = vadd.f32 0.0, %v1915
        %v1917 = vpop.f32.mrf.mxu0
        %1918 = vdwg.mxu0
        %1919 = vmatpush.bf16.msra.mxu0 %v1763
        %1920 = vmatpush.bf16.msra.mxu0 %v1759
        %1921 = vmatpush.bf16.msra.mxu0 %v1755
        %1922 = vmatpush.bf16.msra.mxu0 %v1751
        %1923 = vmatpush.bf16.msra.mxu0 %v1747
        %1924 = vmatpush.bf16.msra.mxu0 %v1743
        %1925 = vmatpush.bf16.msra.mxu0 %v1739
        %1926 = vmatpush.bf16.msra.mxu0 %v1735
        %1927 = vmatmul.bf16.gmra.mxu0 %v1507
        %v1928 = vpop.f32.mrf.mxu0
        %v1929 = vadd.f32 %v1916, %v1928
        %v1930 = vpop.f32.mrf.mxu0
        %1931 = vdwg.mxu0
        %v1996 = vunpack.c.l.b16 %v1368
        %v1997 = vunpack.c.h.b16 %v1368
        %v1998 = vunpack.c.l.b16 %v1369
        %v1999 = vunpack.c.h.b16 %v1369
        %v2000 = vunpack.c.l.b16 %v1370
        %v2001 = vunpack.c.h.b16 %v1370
        %v2002 = vunpack.c.l.b16 %v1371
        %v2003 = vunpack.c.h.b16 %v1371
        %v2004 = vunpack.c.l.b16 %v1372
        %v2005 = vunpack.c.h.b16 %v1372
        %v2006 = vunpack.c.l.b16 %v1373
        %v2007 = vunpack.c.h.b16 %v1373
        %v2008 = vunpack.c.l.b16 %v1374
        %v2009 = vunpack.c.h.b16 %v1374
        %v2010 = vunpack.c.l.b16 %v1375
        %v2011 = vunpack.c.h.b16 %v1375
        %v2012 = vunpack.c.l.b16 %v1376
        %v2013 = vunpack.c.h.b16 %v1376
        %v2014 = vunpack.c.l.b16 %v1377
        %v2015 = vunpack.c.h.b16 %v1377
        %v2016 = vunpack.c.l.b16 %v1378
        %v2017 = vunpack.c.h.b16 %v1378
        %v2018 = vunpack.c.l.b16 %v1379
        %v2019 = vunpack.c.h.b16 %v1379
        %v2020 = vunpack.c.l.b16 %v1380
        %v2021 = vunpack.c.h.b16 %v1380
        %v2022 = vunpack.c.l.b16 %v1381
        %v2023 = vunpack.c.h.b16 %v1381
        %v2024 = vunpack.c.l.b16 %v1382
        %v2025 = vunpack.c.h.b16 %v1382
        %v2026 = vunpack.c.l.b16 %v1383
        %v2027 = vunpack.c.h.b16 %v1383
        %v2028 = vunpack.c.l.b16 %v1384
        %v2029 = vunpack.c.h.b16 %v1384
        %v2030 = vunpack.c.l.b16 %v1385
        %v2031 = vunpack.c.h.b16 %v1385
        %v2032 = vunpack.c.l.b16 %v1386
        %v2033 = vunpack.c.h.b16 %v1386
        %v2034 = vunpack.c.l.b16 %v1387
        %v2035 = vunpack.c.h.b16 %v1387
        %v2036 = vunpack.c.l.b16 %v1388
        %v2037 = vunpack.c.h.b16 %v1388
        %v2038 = vunpack.c.l.b16 %v1389
        %v2039 = vunpack.c.h.b16 %v1389
        %v2040 = vunpack.c.l.b16 %v1390
        %v2041 = vunpack.c.h.b16 %v1390
        %v2042 = vunpack.c.l.b16 %v1391
        %v2043 = vunpack.c.h.b16 %v1391
        %v2044 = vunpack.c.l.b16 %v1392
        %v2045 = vunpack.c.h.b16 %v1392
        %v2046 = vunpack.c.l.b16 %v1393
        %v2047 = vunpack.c.h.b16 %v1393
        %v2048 = vunpack.c.l.b16 %v1394
        %v2049 = vunpack.c.h.b16 %v1394
        %v2050 = vunpack.c.l.b16 %v1395
        %v2051 = vunpack.c.h.b16 %v1395
        %v2052 = vunpack.c.l.b16 %v1396
        %v2053 = vunpack.c.h.b16 %v1396
        %v2054 = vunpack.c.l.b16 %v1397
        %v2055 = vunpack.c.h.b16 %v1397
        %v2056 = vunpack.c.l.b16 %v1398
        %v2057 = vunpack.c.h.b16 %v1398
        %v2058 = vunpack.c.l.b16 %v1399
        %v2059 = vunpack.c.h.b16 %v1399
        %v2060 = vunpack.c.l.b16 %v1400
        %v2061 = vunpack.c.h.b16 %v1400
        %v2062 = vunpack.c.l.b16 %v1401
        %v2063 = vunpack.c.h.b16 %v1401
        %v2064 = vunpack.c.l.b16 %v1402
        %v2065 = vunpack.c.h.b16 %v1402
        %v2066 = vunpack.c.l.b16 %v1403
        %v2067 = vunpack.c.h.b16 %v1403
        %v2068 = vunpack.c.l.b16 %v1404
        %v2069 = vunpack.c.h.b16 %v1404
        %v2070 = vunpack.c.l.b16 %v1405
        %v2071 = vunpack.c.h.b16 %v1405
        %v2072 = vunpack.c.l.b16 %v1406
        %v2073 = vunpack.c.h.b16 %v1406
        %v2074 = vunpack.c.l.b16 %v1407
        %v2075 = vunpack.c.h.b16 %v1407
        %v2076 = vunpack.c.l.b16 %v1408
        %v2077 = vunpack.c.h.b16 %v1408
        %v2078 = vunpack.c.l.b16 %v1409
        %v2079 = vunpack.c.h.b16 %v1409
        %v2080 = vunpack.c.l.b16 %v1410
        %v2081 = vunpack.c.h.b16 %v1410
        %v2082 = vunpack.c.l.b16 %v1411
        %v2083 = vunpack.c.h.b16 %v1411
        %v2084 = vunpack.c.l.b16 %v1412
        %v2085 = vunpack.c.h.b16 %v1412
        %v2086 = vunpack.c.l.b16 %v1413
        %v2087 = vunpack.c.h.b16 %v1413
        %v2088 = vunpack.c.l.b16 %v1414
        %v2089 = vunpack.c.h.b16 %v1414
        %v2090 = vunpack.c.l.b16 %v1415
        %v2091 = vunpack.c.h.b16 %v1415
        %v2092 = vunpack.c.l.b16 %v1416
        %v2093 = vunpack.c.h.b16 %v1416
        %v2094 = vunpack.c.l.b16 %v1417
        %v2095 = vunpack.c.h.b16 %v1417
        %v2096 = vunpack.c.l.b16 %v1418
        %v2097 = vunpack.c.h.b16 %v1418
        %v2098 = vunpack.c.l.b16 %v1419
        %v2099 = vunpack.c.h.b16 %v1419
        %v2100 = vunpack.c.l.b16 %v1420
        %v2101 = vunpack.c.h.b16 %v1420
        %v2102 = vunpack.c.l.b16 %v1421
        %v2103 = vunpack.c.h.b16 %v1421
        %v2104 = vunpack.c.l.b16 %v1422
        %v2105 = vunpack.c.h.b16 %v1422
        %v2106 = vunpack.c.l.b16 %v1423
        %v2107 = vunpack.c.h.b16 %v1423
        %v2108 = vunpack.c.l.b16 %v1424
        %v2109 = vunpack.c.h.b16 %v1424
        %v2110 = vunpack.c.l.b16 %v1425
        %v2111 = vunpack.c.h.b16 %v1425
        %v2112 = vunpack.c.l.b16 %v1426
        %v2113 = vunpack.c.h.b16 %v1426
        %v2114 = vunpack.c.l.b16 %v1427
        %v2115 = vunpack.c.h.b16 %v1427
        %v2116 = vunpack.c.l.b16 %v1428
        %v2117 = vunpack.c.h.b16 %v1428
        %v2118 = vunpack.c.l.b16 %v1429
        %v2119 = vunpack.c.h.b16 %v1429
        %v2120 = vunpack.c.l.b16 %v1430
        %v2121 = vunpack.c.h.b16 %v1430
        %v2122 = vunpack.c.l.b16 %v1431
        %v2123 = vunpack.c.h.b16 %v1431
        %v2124 = vpack.c.b16 %v2000, %v1996
        %v2125 = vpack.c.b16 %v2001, %v1997
        %v2126 = vpack.c.b16 %v2002, %v1998
        %v2127 = vpack.c.b16 %v2003, %v1999
        %v2128 = vpack.c.b16 %v2008, %v2004
        %v2129 = vpack.c.b16 %v2009, %v2005
        %v2130 = vpack.c.b16 %v2010, %v2006
        %v2131 = vpack.c.b16 %v2011, %v2007
        %v2132 = vpack.c.b16 %v2016, %v2012
        %v2133 = vpack.c.b16 %v2017, %v2013
        %v2134 = vpack.c.b16 %v2018, %v2014
        %v2135 = vpack.c.b16 %v2019, %v2015
        %v2136 = vpack.c.b16 %v2024, %v2020
        %v2137 = vpack.c.b16 %v2025, %v2021
        %v2138 = vpack.c.b16 %v2026, %v2022
        %v2139 = vpack.c.b16 %v2027, %v2023
        %v2140 = vpack.c.b16 %v2032, %v2028
        %v2141 = vpack.c.b16 %v2033, %v2029
        %v2142 = vpack.c.b16 %v2034, %v2030
        %v2143 = vpack.c.b16 %v2035, %v2031
        %v2144 = vpack.c.b16 %v2040, %v2036
        %v2145 = vpack.c.b16 %v2041, %v2037
        %v2146 = vpack.c.b16 %v2042, %v2038
        %v2147 = vpack.c.b16 %v2043, %v2039
        %v2148 = vpack.c.b16 %v2048, %v2044
        %v2149 = vpack.c.b16 %v2049, %v2045
        %v2150 = vpack.c.b16 %v2050, %v2046
        %v2151 = vpack.c.b16 %v2051, %v2047
        %v2152 = vpack.c.b16 %v2056, %v2052
        %v2153 = vpack.c.b16 %v2057, %v2053
        %v2154 = vpack.c.b16 %v2058, %v2054
        %v2155 = vpack.c.b16 %v2059, %v2055
        %v2156 = vpack.c.b16 %v2064, %v2060
        %v2157 = vpack.c.b16 %v2065, %v2061
        %v2158 = vpack.c.b16 %v2066, %v2062
        %v2159 = vpack.c.b16 %v2067, %v2063
        %v2160 = vpack.c.b16 %v2072, %v2068
        %v2161 = vpack.c.b16 %v2073, %v2069
        %v2162 = vpack.c.b16 %v2074, %v2070
        %v2163 = vpack.c.b16 %v2075, %v2071
        %v2164 = vpack.c.b16 %v2080, %v2076
        %v2165 = vpack.c.b16 %v2081, %v2077
        %v2166 = vpack.c.b16 %v2082, %v2078
        %v2167 = vpack.c.b16 %v2083, %v2079
        %v2168 = vpack.c.b16 %v2088, %v2084
        %v2169 = vpack.c.b16 %v2089, %v2085
        %v2170 = vpack.c.b16 %v2090, %v2086
        %v2171 = vpack.c.b16 %v2091, %v2087
        %v2172 = vpack.c.b16 %v2096, %v2092
        %v2173 = vpack.c.b16 %v2097, %v2093
        %v2174 = vpack.c.b16 %v2098, %v2094
        %v2175 = vpack.c.b16 %v2099, %v2095
        %v2176 = vpack.c.b16 %v2104, %v2100
        %v2177 = vpack.c.b16 %v2105, %v2101
        %v2178 = vpack.c.b16 %v2106, %v2102
        %v2179 = vpack.c.b16 %v2107, %v2103
        %v2180 = vpack.c.b16 %v2112, %v2108
        %v2181 = vpack.c.b16 %v2113, %v2109
        %v2182 = vpack.c.b16 %v2114, %v2110
        %v2183 = vpack.c.b16 %v2115, %v2111
        %v2184 = vpack.c.b16 %v2120, %v2116
        %v2185 = vpack.c.b16 %v2121, %v2117
        %v2186 = vpack.c.b16 %v2122, %v2118
        %v2187 = vpack.c.b16 %v2123, %v2119
        %2252 = vmatpush.bf16.msra.mxu0 %v2152
        %2253 = vmatpush.bf16.msra.mxu0 %v2148
        %2254 = vmatpush.bf16.msra.mxu0 %v2144
        %2255 = vmatpush.bf16.msra.mxu0 %v2140
        %2256 = vmatpush.bf16.msra.mxu0 %v2136
        %2257 = vmatpush.bf16.msra.mxu0 %v2132
        %2258 = vmatpush.bf16.msra.mxu0 %v2128
        %2259 = vmatpush.bf16.msra.mxu0 %v2124
        %2260 = vmatmul.bf16.gmra.mxu0 %v1432
        %v2261 = vpop.f32.mrf.mxu0
        %v2262 = vadd.f32 %v1851, %v2261
        %v2263 = vpop.f32.mrf.mxu0
        %2264 = vdwg.mxu0
        %2265 = vmatpush.bf16.msra.mxu0 %v2184
        %2266 = vmatpush.bf16.msra.mxu0 %v2180
        %2267 = vmatpush.bf16.msra.mxu0 %v2176
        %2268 = vmatpush.bf16.msra.mxu0 %v2172
        %2269 = vmatpush.bf16.msra.mxu0 %v2168
        %2270 = vmatpush.bf16.msra.mxu0 %v2164
        %2271 = vmatpush.bf16.msra.mxu0 %v2160
        %2272 = vmatpush.bf16.msra.mxu0 %v2156
        %2273 = vmatmul.bf16.gmra.mxu0 %v1433
        %v2274 = vpop.f32.mrf.mxu0
        %v2275 = vadd.f32 %v2262, %v2274
        %v2276 = vpop.f32.mrf.mxu0
        %2277 = vdwg.mxu0
        %2278 = vmatpush.bf16.msra.mxu0 %v2153
        %2279 = vmatpush.bf16.msra.mxu0 %v2149
        %2280 = vmatpush.bf16.msra.mxu0 %v2145
        %2281 = vmatpush.bf16.msra.mxu0 %v2141
        %2282 = vmatpush.bf16.msra.mxu0 %v2137
        %2283 = vmatpush.bf16.msra.mxu0 %v2133
        %2284 = vmatpush.bf16.msra.mxu0 %v2129
        %2285 = vmatpush.bf16.msra.mxu0 %v2125
        %2286 = vmatmul.bf16.gmra.mxu0 %v1432
        %v2287 = vpop.f32.mrf.mxu0
        %v2288 = vadd.f32 %v1877, %v2287
        %v2289 = vpop.f32.mrf.mxu0
        %2290 = vdwg.mxu0
        %2291 = vmatpush.bf16.msra.mxu0 %v2185
        %2292 = vmatpush.bf16.msra.mxu0 %v2181
        %2293 = vmatpush.bf16.msra.mxu0 %v2177
        %2294 = vmatpush.bf16.msra.mxu0 %v2173
        %2295 = vmatpush.bf16.msra.mxu0 %v2169
        %2296 = vmatpush.bf16.msra.mxu0 %v2165
        %2297 = vmatpush.bf16.msra.mxu0 %v2161
        %2298 = vmatpush.bf16.msra.mxu0 %v2157
        %2299 = vmatmul.bf16.gmra.mxu0 %v1433
        %v2300 = vpop.f32.mrf.mxu0
        %v2301 = vadd.f32 %v2288, %v2300
        %v2302 = vpop.f32.mrf.mxu0
        %2303 = vdwg.mxu0
        %2304 = vmatpush.bf16.msra.mxu0 %v2154
        %2305 = vmatpush.bf16.msra.mxu0 %v2150
        %2306 = vmatpush.bf16.msra.mxu0 %v2146
        %2307 = vmatpush.bf16.msra.mxu0 %v2142
        %2308 = vmatpush.bf16.msra.mxu0 %v2138
        %2309 = vmatpush.bf16.msra.mxu0 %v2134
        %2310 = vmatpush.bf16.msra.mxu0 %v2130
        %2311 = vmatpush.bf16.msra.mxu0 %v2126
        %2312 = vmatmul.bf16.gmra.mxu0 %v1432
        %v2313 = vpop.f32.mrf.mxu0
        %v2314 = vadd.f32 %v1903, %v2313
        %v2315 = vpop.f32.mrf.mxu0
        %2316 = vdwg.mxu0
        %2317 = vmatpush.bf16.msra.mxu0 %v2186
        %2318 = vmatpush.bf16.msra.mxu0 %v2182
        %2319 = vmatpush.bf16.msra.mxu0 %v2178
        %2320 = vmatpush.bf16.msra.mxu0 %v2174
        %2321 = vmatpush.bf16.msra.mxu0 %v2170
        %2322 = vmatpush.bf16.msra.mxu0 %v2166
        %2323 = vmatpush.bf16.msra.mxu0 %v2162
        %2324 = vmatpush.bf16.msra.mxu0 %v2158
        %2325 = vmatmul.bf16.gmra.mxu0 %v1433
        %v2326 = vpop.f32.mrf.mxu0
        %v2327 = vadd.f32 %v2314, %v2326
        %v2328 = vpop.f32.mrf.mxu0
        %2329 = vdwg.mxu0
        %2330 = vmatpush.bf16.msra.mxu0 %v2155
        %2331 = vmatpush.bf16.msra.mxu0 %v2151
        %2332 = vmatpush.bf16.msra.mxu0 %v2147
        %2333 = vmatpush.bf16.msra.mxu0 %v2143
        %2334 = vmatpush.bf16.msra.mxu0 %v2139
        %2335 = vmatpush.bf16.msra.mxu0 %v2135
        %2336 = vmatpush.bf16.msra.mxu0 %v2131
        %2337 = vmatpush.bf16.msra.mxu0 %v2127
        %2338 = vmatmul.bf16.gmra.mxu0 %v1432
        %v2339 = vpop.f32.mrf.mxu0
        %v2340 = vadd.f32 %v1929, %v2339
        %v2341 = vpop.f32.mrf.mxu0
        %2342 = vdwg.mxu0
        %2343 = vmatpush.bf16.msra.mxu0 %v2187
        %2344 = vmatpush.bf16.msra.mxu0 %v2183
        %2345 = vmatpush.bf16.msra.mxu0 %v2179
        %2346 = vmatpush.bf16.msra.mxu0 %v2175
        %2347 = vmatpush.bf16.msra.mxu0 %v2171
        %2348 = vmatpush.bf16.msra.mxu0 %v2167
        %2349 = vmatpush.bf16.msra.mxu0 %v2163
        %2350 = vmatpush.bf16.msra.mxu0 %v2159
        %2351 = vmatmul.bf16.gmra.mxu0 %v1433
        %v2352 = vpop.f32.mrf.mxu0
        %v2353 = vadd.f32 %v2340, %v2352
        %v2354 = vpop.f32.mrf.mxu0
        %2355 = vdwg.mxu0
        %v2356 = vrot.slane %v1349, 2
        %v2357 = vrot.slane %v1350, 2
        %v2360 = vrot.slane %v1355, 1
        %v2361 = vrot.slane %v1356, 1
        %v2364 = vsel %vm1365, %v2356, %v2360
        %v2365 = vsel %vm1365, %v2357, %v2361
        %v2366 = vld [vmem:[%s475 + $0x400] sm:$0xff]
        %v2367 = vld [vmem:[%s475 + $0x408] sm:$0xff]
        %v2368 = vld [vmem:[%s475 + $0x410] sm:$0xff]
        %v2369 = vld [vmem:[%s475 + $0x418] sm:$0xff]
        %v2370 = vld [vmem:[%s475 + $0x420] sm:$0xff]
        %v2371 = vld [vmem:[%s475 + $0x428] sm:$0xff]
        %v2372 = vld [vmem:[%s475 + $0x430] sm:$0xff]
        %v2373 = vld [vmem:[%s475 + $0x438] sm:$0xff]
        %v2374 = vld [vmem:[%s475 + $0x440] sm:$0xff]
        %v2375 = vld [vmem:[%s475 + $0x448] sm:$0xff]
        %v2376 = vld [vmem:[%s475 + $0x450] sm:$0xff]
        %v2377 = vld [vmem:[%s475 + $0x458] sm:$0xff]
        %v2378 = vld [vmem:[%s475 + $0x460] sm:$0xff]
        %v2379 = vld [vmem:[%s475 + $0x468] sm:$0xff]
        %v2380 = vld [vmem:[%s475 + $0x470] sm:$0xff]
        %v2381 = vld [vmem:[%s475 + $0x478] sm:$0xff]
        %v2382 = vld [vmem:[%s475 + $0x480] sm:$0xff]
        %v2383 = vld [vmem:[%s475 + $0x488] sm:$0xff]
        %v2384 = vld [vmem:[%s475 + $0x490] sm:$0xff]
        %v2385 = vld [vmem:[%s475 + $0x498] sm:$0xff]
        %v2386 = vld [vmem:[%s475 + $0x4a0] sm:$0xff]
        %v2387 = vld [vmem:[%s475 + $0x4a8] sm:$0xff]
        %v2388 = vld [vmem:[%s475 + $0x4b0] sm:$0xff]
        %v2389 = vld [vmem:[%s475 + $0x4b8] sm:$0xff]
        %v2390 = vld [vmem:[%s475 + $0x4c0] sm:$0xff]
        %v2391 = vld [vmem:[%s475 + $0x4c8] sm:$0xff]
        %v2392 = vld [vmem:[%s475 + $0x4d0] sm:$0xff]
        %v2393 = vld [vmem:[%s475 + $0x4d8] sm:$0xff]
        %v2394 = vld [vmem:[%s475 + $0x4e0] sm:$0xff]
        %v2395 = vld [vmem:[%s475 + $0x4e8] sm:$0xff]
        %v2396 = vld [vmem:[%s475 + $0x4f0] sm:$0xff]
        %v2397 = vld [vmem:[%s475 + $0x4f8] sm:$0xff]
        %v2398 = vld [vmem:[%s475 + $0x500] sm:$0xff]
        %v2399 = vld [vmem:[%s475 + $0x508] sm:$0xff]
        %v2400 = vld [vmem:[%s475 + $0x510] sm:$0xff]
        %v2401 = vld [vmem:[%s475 + $0x518] sm:$0xff]
        %v2402 = vld [vmem:[%s475 + $0x520] sm:$0xff]
        %v2403 = vld [vmem:[%s475 + $0x528] sm:$0xff]
        %v2404 = vld [vmem:[%s475 + $0x530] sm:$0xff]
        %v2405 = vld [vmem:[%s475 + $0x538] sm:$0xff]
        %v2406 = vld [vmem:[%s475 + $0x540] sm:$0xff]
        %v2407 = vld [vmem:[%s475 + $0x548] sm:$0xff]
        %v2408 = vld [vmem:[%s475 + $0x550] sm:$0xff]
        %v2409 = vld [vmem:[%s475 + $0x558] sm:$0xff]
        %v2410 = vld [vmem:[%s475 + $0x560] sm:$0xff]
        %v2411 = vld [vmem:[%s475 + $0x568] sm:$0xff]
        %v2412 = vld [vmem:[%s475 + $0x570] sm:$0xff]
        %v2413 = vld [vmem:[%s475 + $0x578] sm:$0xff]
        %v2414 = vld [vmem:[%s475 + $0x580] sm:$0xff]
        %v2415 = vld [vmem:[%s475 + $0x588] sm:$0xff]
        %v2416 = vld [vmem:[%s475 + $0x590] sm:$0xff]
        %v2417 = vld [vmem:[%s475 + $0x598] sm:$0xff]
        %v2418 = vld [vmem:[%s475 + $0x5a0] sm:$0xff]
        %v2419 = vld [vmem:[%s475 + $0x5a8] sm:$0xff]
        %v2420 = vld [vmem:[%s475 + $0x5b0] sm:$0xff]
        %v2421 = vld [vmem:[%s475 + $0x5b8] sm:$0xff]
        %v2422 = vld [vmem:[%s475 + $0x5c0] sm:$0xff]
        %v2423 = vld [vmem:[%s475 + $0x5c8] sm:$0xff]
        %v2424 = vld [vmem:[%s475 + $0x5d0] sm:$0xff]
        %v2425 = vld [vmem:[%s475 + $0x5d8] sm:$0xff]
        %v2426 = vld [vmem:[%s475 + $0x5e0] sm:$0xff]
        %v2427 = vld [vmem:[%s475 + $0x5e8] sm:$0xff]
        %v2428 = vld [vmem:[%s475 + $0x5f0] sm:$0xff]
        %v2429 = vld [vmem:[%s475 + $0x5f8] sm:$0xff]
        %v2430 = vpack.c.bf16 %v2364, %v2364
        %v2431 = vpack.c.bf16 %v2365, %v2365
        %v2496 = vunpack.c.l.b16 %v2366
        %v2497 = vunpack.c.h.b16 %v2366
        %v2498 = vunpack.c.l.b16 %v2367
        %v2499 = vunpack.c.h.b16 %v2367
        %v2500 = vunpack.c.l.b16 %v2368
        %v2501 = vunpack.c.h.b16 %v2368
        %v2502 = vunpack.c.l.b16 %v2369
        %v2503 = vunpack.c.h.b16 %v2369
        %v2504 = vunpack.c.l.b16 %v2370
        %v2505 = vunpack.c.h.b16 %v2370
        %v2506 = vunpack.c.l.b16 %v2371
        %v2507 = vunpack.c.h.b16 %v2371
        %v2508 = vunpack.c.l.b16 %v2372
        %v2509 = vunpack.c.h.b16 %v2372
        %v2510 = vunpack.c.l.b16 %v2373
        %v2511 = vunpack.c.h.b16 %v2373
        %v2512 = vunpack.c.l.b16 %v2374
        %v2513 = vunpack.c.h.b16 %v2374
        %v2514 = vunpack.c.l.b16 %v2375
        %v2515 = vunpack.c.h.b16 %v2375
        %v2516 = vunpack.c.l.b16 %v2376
        %v2517 = vunpack.c.h.b16 %v2376
        %v2518 = vunpack.c.l.b16 %v2377
        %v2519 = vunpack.c.h.b16 %v2377
        %v2520 = vunpack.c.l.b16 %v2378
        %v2521 = vunpack.c.h.b16 %v2378
        %v2522 = vunpack.c.l.b16 %v2379
        %v2523 = vunpack.c.h.b16 %v2379
        %v2524 = vunpack.c.l.b16 %v2380
        %v2525 = vunpack.c.h.b16 %v2380
        %v2526 = vunpack.c.l.b16 %v2381
        %v2527 = vunpack.c.h.b16 %v2381
        %v2528 = vunpack.c.l.b16 %v2382
        %v2529 = vunpack.c.h.b16 %v2382
        %v2530 = vunpack.c.l.b16 %v2383
        %v2531 = vunpack.c.h.b16 %v2383
        %v2532 = vunpack.c.l.b16 %v2384
        %v2533 = vunpack.c.h.b16 %v2384
        %v2534 = vunpack.c.l.b16 %v2385
        %v2535 = vunpack.c.h.b16 %v2385
        %v2536 = vunpack.c.l.b16 %v2386
        %v2537 = vunpack.c.h.b16 %v2386
        %v2538 = vunpack.c.l.b16 %v2387
        %v2539 = vunpack.c.h.b16 %v2387
        %v2540 = vunpack.c.l.b16 %v2388
        %v2541 = vunpack.c.h.b16 %v2388
        %v2542 = vunpack.c.l.b16 %v2389
        %v2543 = vunpack.c.h.b16 %v2389
        %v2544 = vunpack.c.l.b16 %v2390
        %v2545 = vunpack.c.h.b16 %v2390
        %v2546 = vunpack.c.l.b16 %v2391
        %v2547 = vunpack.c.h.b16 %v2391
        %v2548 = vunpack.c.l.b16 %v2392
        %v2549 = vunpack.c.h.b16 %v2392
        %v2550 = vunpack.c.l.b16 %v2393
        %v2551 = vunpack.c.h.b16 %v2393
        %v2552 = vunpack.c.l.b16 %v2394
        %v2553 = vunpack.c.h.b16 %v2394
        %v2554 = vunpack.c.l.b16 %v2395
        %v2555 = vunpack.c.h.b16 %v2395
        %v2556 = vunpack.c.l.b16 %v2396
        %v2557 = vunpack.c.h.b16 %v2396
        %v2558 = vunpack.c.l.b16 %v2397
        %v2559 = vunpack.c.h.b16 %v2397
        %v2560 = vunpack.c.l.b16 %v2398
        %v2561 = vunpack.c.h.b16 %v2398
        %v2562 = vunpack.c.l.b16 %v2399
        %v2563 = vunpack.c.h.b16 %v2399
        %v2564 = vunpack.c.l.b16 %v2400
        %v2565 = vunpack.c.h.b16 %v2400
        %v2566 = vunpack.c.l.b16 %v2401
        %v2567 = vunpack.c.h.b16 %v2401
        %v2568 = vunpack.c.l.b16 %v2402
        %v2569 = vunpack.c.h.b16 %v2402
        %v2570 = vunpack.c.l.b16 %v2403
        %v2571 = vunpack.c.h.b16 %v2403
        %v2572 = vunpack.c.l.b16 %v2404
        %v2573 = vunpack.c.h.b16 %v2404
        %v2574 = vunpack.c.l.b16 %v2405
        %v2575 = vunpack.c.h.b16 %v2405
        %v2576 = vunpack.c.l.b16 %v2406
        %v2577 = vunpack.c.h.b16 %v2406
        %v2578 = vunpack.c.l.b16 %v2407
        %v2579 = vunpack.c.h.b16 %v2407
        %v2580 = vunpack.c.l.b16 %v2408
        %v2581 = vunpack.c.h.b16 %v2408
        %v2582 = vunpack.c.l.b16 %v2409
        %v2583 = vunpack.c.h.b16 %v2409
        %v2584 = vunpack.c.l.b16 %v2410
        %v2585 = vunpack.c.h.b16 %v2410
        %v2586 = vunpack.c.l.b16 %v2411
        %v2587 = vunpack.c.h.b16 %v2411
        %v2588 = vunpack.c.l.b16 %v2412
        %v2589 = vunpack.c.h.b16 %v2412
        %v2590 = vunpack.c.l.b16 %v2413
        %v2591 = vunpack.c.h.b16 %v2413
        %v2592 = vunpack.c.l.b16 %v2414
        %v2593 = vunpack.c.h.b16 %v2414
        %v2594 = vunpack.c.l.b16 %v2415
        %v2595 = vunpack.c.h.b16 %v2415
        %v2596 = vunpack.c.l.b16 %v2416
        %v2597 = vunpack.c.h.b16 %v2416
        %v2598 = vunpack.c.l.b16 %v2417
        %v2599 = vunpack.c.h.b16 %v2417
        %v2600 = vunpack.c.l.b16 %v2418
        %v2601 = vunpack.c.h.b16 %v2418
        %v2602 = vunpack.c.l.b16 %v2419
        %v2603 = vunpack.c.h.b16 %v2419
        %v2604 = vunpack.c.l.b16 %v2420
        %v2605 = vunpack.c.h.b16 %v2420
        %v2606 = vunpack.c.l.b16 %v2421
        %v2607 = vunpack.c.h.b16 %v2421
        %v2608 = vunpack.c.l.b16 %v2422
        %v2609 = vunpack.c.h.b16 %v2422
        %v2610 = vunpack.c.l.b16 %v2423
        %v2611 = vunpack.c.h.b16 %v2423
        %v2612 = vunpack.c.l.b16 %v2424
        %v2613 = vunpack.c.h.b16 %v2424
        %v2614 = vunpack.c.l.b16 %v2425
        %v2615 = vunpack.c.h.b16 %v2425
        %v2616 = vunpack.c.l.b16 %v2426
        %v2617 = vunpack.c.h.b16 %v2426
        %v2618 = vunpack.c.l.b16 %v2427
        %v2619 = vunpack.c.h.b16 %v2427
        %v2620 = vunpack.c.l.b16 %v2428
        %v2621 = vunpack.c.h.b16 %v2428
        %v2622 = vunpack.c.l.b16 %v2429
        %v2623 = vunpack.c.h.b16 %v2429
        %v2624 = vpack.c.b16 %v2500, %v2496
        %v2625 = vpack.c.b16 %v2501, %v2497
        %v2626 = vpack.c.b16 %v2502, %v2498
        %v2627 = vpack.c.b16 %v2503, %v2499
        %v2628 = vpack.c.b16 %v2508, %v2504
        %v2629 = vpack.c.b16 %v2509, %v2505
        %v2630 = vpack.c.b16 %v2510, %v2506
        %v2631 = vpack.c.b16 %v2511, %v2507
        %v2632 = vpack.c.b16 %v2516, %v2512
        %v2633 = vpack.c.b16 %v2517, %v2513
        %v2634 = vpack.c.b16 %v2518, %v2514
        %v2635 = vpack.c.b16 %v2519, %v2515
        %v2636 = vpack.c.b16 %v2524, %v2520
        %v2637 = vpack.c.b16 %v2525, %v2521
        %v2638 = vpack.c.b16 %v2526, %v2522
        %v2639 = vpack.c.b16 %v2527, %v2523
        %v2640 = vpack.c.b16 %v2532, %v2528
        %v2641 = vpack.c.b16 %v2533, %v2529
        %v2642 = vpack.c.b16 %v2534, %v2530
        %v2643 = vpack.c.b16 %v2535, %v2531
        %v2644 = vpack.c.b16 %v2540, %v2536
        %v2645 = vpack.c.b16 %v2541, %v2537
        %v2646 = vpack.c.b16 %v2542, %v2538
        %v2647 = vpack.c.b16 %v2543, %v2539
        %v2648 = vpack.c.b16 %v2548, %v2544
        %v2649 = vpack.c.b16 %v2549, %v2545
        %v2650 = vpack.c.b16 %v2550, %v2546
        %v2651 = vpack.c.b16 %v2551, %v2547
        %v2652 = vpack.c.b16 %v2556, %v2552
        %v2653 = vpack.c.b16 %v2557, %v2553
        %v2654 = vpack.c.b16 %v2558, %v2554
        %v2655 = vpack.c.b16 %v2559, %v2555
        %v2656 = vpack.c.b16 %v2564, %v2560
        %v2657 = vpack.c.b16 %v2565, %v2561
        %v2658 = vpack.c.b16 %v2566, %v2562
        %v2659 = vpack.c.b16 %v2567, %v2563
        %v2660 = vpack.c.b16 %v2572, %v2568
        %v2661 = vpack.c.b16 %v2573, %v2569
        %v2662 = vpack.c.b16 %v2574, %v2570
        %v2663 = vpack.c.b16 %v2575, %v2571
        %v2664 = vpack.c.b16 %v2580, %v2576
        %v2665 = vpack.c.b16 %v2581, %v2577
        %v2666 = vpack.c.b16 %v2582, %v2578
        %v2667 = vpack.c.b16 %v2583, %v2579
        %v2668 = vpack.c.b16 %v2588, %v2584
        %v2669 = vpack.c.b16 %v2589, %v2585
        %v2670 = vpack.c.b16 %v2590, %v2586
        %v2671 = vpack.c.b16 %v2591, %v2587
        %v2672 = vpack.c.b16 %v2596, %v2592
        %v2673 = vpack.c.b16 %v2597, %v2593
        %v2674 = vpack.c.b16 %v2598, %v2594
        %v2675 = vpack.c.b16 %v2599, %v2595
        %v2676 = vpack.c.b16 %v2604, %v2600
        %v2677 = vpack.c.b16 %v2605, %v2601
        %v2678 = vpack.c.b16 %v2606, %v2602
        %v2679 = vpack.c.b16 %v2607, %v2603
        %v2680 = vpack.c.b16 %v2612, %v2608
        %v2681 = vpack.c.b16 %v2613, %v2609
        %v2682 = vpack.c.b16 %v2614, %v2610
        %v2683 = vpack.c.b16 %v2615, %v2611
        %v2684 = vpack.c.b16 %v2620, %v2616
        %v2685 = vpack.c.b16 %v2621, %v2617
        %v2686 = vpack.c.b16 %v2622, %v2618
        %v2687 = vpack.c.b16 %v2623, %v2619
        %2752 = vmatpush.bf16.msra.mxu0 %v2652
        %2753 = vmatpush.bf16.msra.mxu0 %v2648
        %2754 = vmatpush.bf16.msra.mxu0 %v2644
        %2755 = vmatpush.bf16.msra.mxu0 %v2640
        %2756 = vmatpush.bf16.msra.mxu0 %v2636
        %2757 = vmatpush.bf16.msra.mxu0 %v2632
        %2758 = vmatpush.bf16.msra.mxu0 %v2628
        %2759 = vmatpush.bf16.msra.mxu0 %v2624
        %2760 = vmatmul.bf16.gmra.mxu0 %v2430
        %v2761 = vpop.f32.mrf.mxu0
        %v2762 = vadd.f32 0.0, %v2761
        %v2763 = vpop.f32.mrf.mxu0
        %2764 = vdwg.mxu0
        %2765 = vmatpush.bf16.msra.mxu0 %v2684
        %2766 = vmatpush.bf16.msra.mxu0 %v2680
        %2767 = vmatpush.bf16.msra.mxu0 %v2676
        %2768 = vmatpush.bf16.msra.mxu0 %v2672
        %2769 = vmatpush.bf16.msra.mxu0 %v2668
        %2770 = vmatpush.bf16.msra.mxu0 %v2664
        %2771 = vmatpush.bf16.msra.mxu0 %v2660
        %2772 = vmatpush.bf16.msra.mxu0 %v2656
        %2773 = vmatmul.bf16.gmra.mxu0 %v2431
        %v2774 = vpop.f32.mrf.mxu0
        %v2775 = vadd.f32 %v2762, %v2774
        %v2776 = vpop.f32.mrf.mxu0
        %2777 = vdwg.mxu0
        %2778 = vmatpush.bf16.msra.mxu0 %v2653
        %2779 = vmatpush.bf16.msra.mxu0 %v2649
        %2780 = vmatpush.bf16.msra.mxu0 %v2645
        %2781 = vmatpush.bf16.msra.mxu0 %v2641
        %2782 = vmatpush.bf16.msra.mxu0 %v2637
        %2783 = vmatpush.bf16.msra.mxu0 %v2633
        %2784 = vmatpush.bf16.msra.mxu0 %v2629
        %2785 = vmatpush.bf16.msra.mxu0 %v2625
        %2786 = vmatmul.bf16.gmra.mxu0 %v2430
        %v2787 = vpop.f32.mrf.mxu0
        %v2788 = vadd.f32 0.0, %v2787
        %v2789 = vpop.f32.mrf.mxu0
        %2790 = vdwg.mxu0
        %2791 = vmatpush.bf16.msra.mxu0 %v2685
        %2792 = vmatpush.bf16.msra.mxu0 %v2681
        %2793 = vmatpush.bf16.msra.mxu0 %v2677
        %2794 = vmatpush.bf16.msra.mxu0 %v2673
        %2795 = vmatpush.bf16.msra.mxu0 %v2669
        %2796 = vmatpush.bf16.msra.mxu0 %v2665
        %2797 = vmatpush.bf16.msra.mxu0 %v2661
        %2798 = vmatpush.bf16.msra.mxu0 %v2657
        %2799 = vmatmul.bf16.gmra.mxu0 %v2431
        %v2800 = vpop.f32.mrf.mxu0
        %v2801 = vadd.f32 %v2788, %v2800
        %v2802 = vpop.f32.mrf.mxu0
        %2803 = vdwg.mxu0
        %2804 = vmatpush.bf16.msra.mxu0 %v2654
        %2805 = vmatpush.bf16.msra.mxu0 %v2650
        %2806 = vmatpush.bf16.msra.mxu0 %v2646
        %2807 = vmatpush.bf16.msra.mxu0 %v2642
        %2808 = vmatpush.bf16.msra.mxu0 %v2638
        %2809 = vmatpush.bf16.msra.mxu0 %v2634
        %2810 = vmatpush.bf16.msra.mxu0 %v2630
        %2811 = vmatpush.bf16.msra.mxu0 %v2626
        %2812 = vmatmul.bf16.gmra.mxu0 %v2430
        %v2813 = vpop.f32.mrf.mxu0
        %v2814 = vadd.f32 0.0, %v2813
        %v2815 = vpop.f32.mrf.mxu0
        %2816 = vdwg.mxu0
        %2817 = vmatpush.bf16.msra.mxu0 %v2686
        %2818 = vmatpush.bf16.msra.mxu0 %v2682
        %2819 = vmatpush.bf16.msra.mxu0 %v2678
        %2820 = vmatpush.bf16.msra.mxu0 %v2674
        %2821 = vmatpush.bf16.msra.mxu0 %v2670
        %2822 = vmatpush.bf16.msra.mxu0 %v2666
        %2823 = vmatpush.bf16.msra.mxu0 %v2662
        %2824 = vmatpush.bf16.msra.mxu0 %v2658
        %2825 = vmatmul.bf16.gmra.mxu0 %v2431
        %v2826 = vpop.f32.mrf.mxu0
        %v2827 = vadd.f32 %v2814, %v2826
        %v2828 = vpop.f32.mrf.mxu0
        %2829 = vdwg.mxu0
        %2830 = vmatpush.bf16.msra.mxu0 %v2655
        %2831 = vmatpush.bf16.msra.mxu0 %v2651
        %2832 = vmatpush.bf16.msra.mxu0 %v2647
        %2833 = vmatpush.bf16.msra.mxu0 %v2643
        %2834 = vmatpush.bf16.msra.mxu0 %v2639
        %2835 = vmatpush.bf16.msra.mxu0 %v2635
        %2836 = vmatpush.bf16.msra.mxu0 %v2631
        %2837 = vmatpush.bf16.msra.mxu0 %v2627
        %2838 = vmatmul.bf16.gmra.mxu0 %v2430
        %v2839 = vpop.f32.mrf.mxu0
        %v2840 = vadd.f32 0.0, %v2839
        %v2841 = vpop.f32.mrf.mxu0
        %2842 = vdwg.mxu0
        %2843 = vmatpush.bf16.msra.mxu0 %v2687
        %2844 = vmatpush.bf16.msra.mxu0 %v2683
        %2845 = vmatpush.bf16.msra.mxu0 %v2679
        %2846 = vmatpush.bf16.msra.mxu0 %v2675
        %2847 = vmatpush.bf16.msra.mxu0 %v2671
        %2848 = vmatpush.bf16.msra.mxu0 %v2667
        %2849 = vmatpush.bf16.msra.mxu0 %v2663
        %2850 = vmatpush.bf16.msra.mxu0 %v2659
        %2851 = vmatmul.bf16.gmra.mxu0 %v2431
        %v2852 = vpop.f32.mrf.mxu0
        %v2853 = vadd.f32 %v2840, %v2852
        %v2854 = vpop.f32.mrf.mxu0
        %2855 = vdwg.mxu0
        %v2856 = vadd.f32 %v2275, %v2775
        %v2857 = vadd.f32 %v2301, %v2801
        %v2858 = vadd.f32 %v2327, %v2827
        %v2859 = vadd.f32 %v2353, %v2853
        %v2860 = vrot.slane %v1349, 3
        %v2861 = vrot.slane %v1350, 3
        %v2864 = vrot.slane %v1355, 2
        %v2865 = vrot.slane %v1356, 2
        %v2868 = vsel %vm1365, %v2860, %v2864
        %v2869 = vsel %vm1365, %v2861, %v2865
        %v2870 = vld [vmem:[%s475 + $0x600] sm:$0xff]
        %v2871 = vld [vmem:[%s475 + $0x608] sm:$0xff]
        %v2872 = vld [vmem:[%s475 + $0x610] sm:$0xff]
        %v2873 = vld [vmem:[%s475 + $0x618] sm:$0xff]
        %v2874 = vld [vmem:[%s475 + $0x620] sm:$0xff]
        %v2875 = vld [vmem:[%s475 + $0x628] sm:$0xff]
        %v2876 = vld [vmem:[%s475 + $0x630] sm:$0xff]
        %v2877 = vld [vmem:[%s475 + $0x638] sm:$0xff]
        %v2878 = vld [vmem:[%s475 + $0x640] sm:$0xff]
        %v2879 = vld [vmem:[%s475 + $0x648] sm:$0xff]
        %v2880 = vld [vmem:[%s475 + $0x650] sm:$0xff]
        %v2881 = vld [vmem:[%s475 + $0x658] sm:$0xff]
        %v2882 = vld [vmem:[%s475 + $0x660] sm:$0xff]
        %v2883 = vld [vmem:[%s475 + $0x668] sm:$0xff]
        %v2884 = vld [vmem:[%s475 + $0x670] sm:$0xff]
        %v2885 = vld [vmem:[%s475 + $0x678] sm:$0xff]
        %v2886 = vld [vmem:[%s475 + $0x680] sm:$0xff]
        %v2887 = vld [vmem:[%s475 + $0x688] sm:$0xff]
        %v2888 = vld [vmem:[%s475 + $0x690] sm:$0xff]
        %v2889 = vld [vmem:[%s475 + $0x698] sm:$0xff]
        %v2890 = vld [vmem:[%s475 + $0x6a0] sm:$0xff]
        %v2891 = vld [vmem:[%s475 + $0x6a8] sm:$0xff]
        %v2892 = vld [vmem:[%s475 + $0x6b0] sm:$0xff]
        %v2893 = vld [vmem:[%s475 + $0x6b8] sm:$0xff]
        %v2894 = vld [vmem:[%s475 + $0x6c0] sm:$0xff]
        %v2895 = vld [vmem:[%s475 + $0x6c8] sm:$0xff]
        %v2896 = vld [vmem:[%s475 + $0x6d0] sm:$0xff]
        %v2897 = vld [vmem:[%s475 + $0x6d8] sm:$0xff]
        %v2898 = vld [vmem:[%s475 + $0x6e0] sm:$0xff]
        %v2899 = vld [vmem:[%s475 + $0x6e8] sm:$0xff]
        %v2900 = vld [vmem:[%s475 + $0x6f0] sm:$0xff]
        %v2901 = vld [vmem:[%s475 + $0x6f8] sm:$0xff]
        %v2902 = vld [vmem:[%s475 + $0x700] sm:$0xff]
        %v2903 = vld [vmem:[%s475 + $0x708] sm:$0xff]
        %v2904 = vld [vmem:[%s475 + $0x710] sm:$0xff]
        %v2905 = vld [vmem:[%s475 + $0x718] sm:$0xff]
        %v2906 = vld [vmem:[%s475 + $0x720] sm:$0xff]
        %v2907 = vld [vmem:[%s475 + $0x728] sm:$0xff]
        %v2908 = vld [vmem:[%s475 + $0x730] sm:$0xff]
        %v2909 = vld [vmem:[%s475 + $0x738] sm:$0xff]
        %v2910 = vld [vmem:[%s475 + $0x740] sm:$0xff]
        %v2911 = vld [vmem:[%s475 + $0x748] sm:$0xff]
        %v2912 = vld [vmem:[%s475 + $0x750] sm:$0xff]
        %v2913 = vld [vmem:[%s475 + $0x758] sm:$0xff]
        %v2914 = vld [vmem:[%s475 + $0x760] sm:$0xff]
        %v2915 = vld [vmem:[%s475 + $0x768] sm:$0xff]
        %v2916 = vld [vmem:[%s475 + $0x770] sm:$0xff]
        %v2917 = vld [vmem:[%s475 + $0x778] sm:$0xff]
        %v2918 = vld [vmem:[%s475 + $0x780] sm:$0xff]
        %v2919 = vld [vmem:[%s475 + $0x788] sm:$0xff]
        %v2920 = vld [vmem:[%s475 + $0x790] sm:$0xff]
        %v2921 = vld [vmem:[%s475 + $0x798] sm:$0xff]
        %v2922 = vld [vmem:[%s475 + $0x7a0] sm:$0xff]
        %v2923 = vld [vmem:[%s475 + $0x7a8] sm:$0xff]
        %v2924 = vld [vmem:[%s475 + $0x7b0] sm:$0xff]
        %v2925 = vld [vmem:[%s475 + $0x7b8] sm:$0xff]
        %v2926 = vld [vmem:[%s475 + $0x7c0] sm:$0xff]
        %v2927 = vld [vmem:[%s475 + $0x7c8] sm:$0xff]
        %v2928 = vld [vmem:[%s475 + $0x7d0] sm:$0xff]
        %v2929 = vld [vmem:[%s475 + $0x7d8] sm:$0xff]
        %v2930 = vld [vmem:[%s475 + $0x7e0] sm:$0xff]
        %v2931 = vld [vmem:[%s475 + $0x7e8] sm:$0xff]
        %v2932 = vld [vmem:[%s475 + $0x7f0] sm:$0xff]
        %v2933 = vld [vmem:[%s475 + $0x7f8] sm:$0xff]
        %v2934 = vpack.c.bf16 %v2868, %v2868
        %v2935 = vpack.c.bf16 %v2869, %v2869
        %v3000 = vunpack.c.l.b16 %v2870
        %v3001 = vunpack.c.h.b16 %v2870
        %v3002 = vunpack.c.l.b16 %v2871
        %v3003 = vunpack.c.h.b16 %v2871
        %v3004 = vunpack.c.l.b16 %v2872
        %v3005 = vunpack.c.h.b16 %v2872
        %v3006 = vunpack.c.l.b16 %v2873
        %v3007 = vunpack.c.h.b16 %v2873
        %v3008 = vunpack.c.l.b16 %v2874
        %v3009 = vunpack.c.h.b16 %v2874
        %v3010 = vunpack.c.l.b16 %v2875
        %v3011 = vunpack.c.h.b16 %v2875
        %v3012 = vunpack.c.l.b16 %v2876
        %v3013 = vunpack.c.h.b16 %v2876
        %v3014 = vunpack.c.l.b16 %v2877
        %v3015 = vunpack.c.h.b16 %v2877
        %v3016 = vunpack.c.l.b16 %v2878
        %v3017 = vunpack.c.h.b16 %v2878
        %v3018 = vunpack.c.l.b16 %v2879
        %v3019 = vunpack.c.h.b16 %v2879
        %v3020 = vunpack.c.l.b16 %v2880
        %v3021 = vunpack.c.h.b16 %v2880
        %v3022 = vunpack.c.l.b16 %v2881
        %v3023 = vunpack.c.h.b16 %v2881
        %v3024 = vunpack.c.l.b16 %v2882
        %v3025 = vunpack.c.h.b16 %v2882
        %v3026 = vunpack.c.l.b16 %v2883
        %v3027 = vunpack.c.h.b16 %v2883
        %v3028 = vunpack.c.l.b16 %v2884
        %v3029 = vunpack.c.h.b16 %v2884
        %v3030 = vunpack.c.l.b16 %v2885
        %v3031 = vunpack.c.h.b16 %v2885
        %v3032 = vunpack.c.l.b16 %v2886
        %v3033 = vunpack.c.h.b16 %v2886
        %v3034 = vunpack.c.l.b16 %v2887
        %v3035 = vunpack.c.h.b16 %v2887
        %v3036 = vunpack.c.l.b16 %v2888
        %v3037 = vunpack.c.h.b16 %v2888
        %v3038 = vunpack.c.l.b16 %v2889
        %v3039 = vunpack.c.h.b16 %v2889
        %v3040 = vunpack.c.l.b16 %v2890
        %v3041 = vunpack.c.h.b16 %v2890
        %v3042 = vunpack.c.l.b16 %v2891
        %v3043 = vunpack.c.h.b16 %v2891
        %v3044 = vunpack.c.l.b16 %v2892
        %v3045 = vunpack.c.h.b16 %v2892
        %v3046 = vunpack.c.l.b16 %v2893
        %v3047 = vunpack.c.h.b16 %v2893
        %v3048 = vunpack.c.l.b16 %v2894
        %v3049 = vunpack.c.h.b16 %v2894
        %v3050 = vunpack.c.l.b16 %v2895
        %v3051 = vunpack.c.h.b16 %v2895
        %v3052 = vunpack.c.l.b16 %v2896
        %v3053 = vunpack.c.h.b16 %v2896
        %v3054 = vunpack.c.l.b16 %v2897
        %v3055 = vunpack.c.h.b16 %v2897
        %v3056 = vunpack.c.l.b16 %v2898
        %v3057 = vunpack.c.h.b16 %v2898
        %v3058 = vunpack.c.l.b16 %v2899
        %v3059 = vunpack.c.h.b16 %v2899
        %v3060 = vunpack.c.l.b16 %v2900
        %v3061 = vunpack.c.h.b16 %v2900
        %v3062 = vunpack.c.l.b16 %v2901
        %v3063 = vunpack.c.h.b16 %v2901
        %v3064 = vunpack.c.l.b16 %v2902
        %v3065 = vunpack.c.h.b16 %v2902
        %v3066 = vunpack.c.l.b16 %v2903
        %v3067 = vunpack.c.h.b16 %v2903
        %v3068 = vunpack.c.l.b16 %v2904
        %v3069 = vunpack.c.h.b16 %v2904
        %v3070 = vunpack.c.l.b16 %v2905
        %v3071 = vunpack.c.h.b16 %v2905
        %v3072 = vunpack.c.l.b16 %v2906
        %v3073 = vunpack.c.h.b16 %v2906
        %v3074 = vunpack.c.l.b16 %v2907
        %v3075 = vunpack.c.h.b16 %v2907
        %v3076 = vunpack.c.l.b16 %v2908
        %v3077 = vunpack.c.h.b16 %v2908
        %v3078 = vunpack.c.l.b16 %v2909
        %v3079 = vunpack.c.h.b16 %v2909
        %v3080 = vunpack.c.l.b16 %v2910
        %v3081 = vunpack.c.h.b16 %v2910
        %v3082 = vunpack.c.l.b16 %v2911
        %v3083 = vunpack.c.h.b16 %v2911
        %v3084 = vunpack.c.l.b16 %v2912
        %v3085 = vunpack.c.h.b16 %v2912
        %v3086 = vunpack.c.l.b16 %v2913
        %v3087 = vunpack.c.h.b16 %v2913
        %v3088 = vunpack.c.l.b16 %v2914
        %v3089 = vunpack.c.h.b16 %v2914
        %v3090 = vunpack.c.l.b16 %v2915
        %v3091 = vunpack.c.h.b16 %v2915
        %v3092 = vunpack.c.l.b16 %v2916
        %v3093 = vunpack.c.h.b16 %v2916
        %v3094 = vunpack.c.l.b16 %v2917
        %v3095 = vunpack.c.h.b16 %v2917
        %v3096 = vunpack.c.l.b16 %v2918
        %v3097 = vunpack.c.h.b16 %v2918
        %v3098 = vunpack.c.l.b16 %v2919
        %v3099 = vunpack.c.h.b16 %v2919
        %v3100 = vunpack.c.l.b16 %v2920
        %v3101 = vunpack.c.h.b16 %v2920
        %v3102 = vunpack.c.l.b16 %v2921
        %v3103 = vunpack.c.h.b16 %v2921
        %v3104 = vunpack.c.l.b16 %v2922
        %v3105 = vunpack.c.h.b16 %v2922
        %v3106 = vunpack.c.l.b16 %v2923
        %v3107 = vunpack.c.h.b16 %v2923
        %v3108 = vunpack.c.l.b16 %v2924
        %v3109 = vunpack.c.h.b16 %v2924
        %v3110 = vunpack.c.l.b16 %v2925
        %v3111 = vunpack.c.h.b16 %v2925
        %v3112 = vunpack.c.l.b16 %v2926
        %v3113 = vunpack.c.h.b16 %v2926
        %v3114 = vunpack.c.l.b16 %v2927
        %v3115 = vunpack.c.h.b16 %v2927
        %v3116 = vunpack.c.l.b16 %v2928
        %v3117 = vunpack.c.h.b16 %v2928
        %v3118 = vunpack.c.l.b16 %v2929
        %v3119 = vunpack.c.h.b16 %v2929
        %v3120 = vunpack.c.l.b16 %v2930
        %v3121 = vunpack.c.h.b16 %v2930
        %v3122 = vunpack.c.l.b16 %v2931
        %v3123 = vunpack.c.h.b16 %v2931
        %v3124 = vunpack.c.l.b16 %v2932
        %v3125 = vunpack.c.h.b16 %v2932
        %v3126 = vunpack.c.l.b16 %v2933
        %v3127 = vunpack.c.h.b16 %v2933
        %v3128 = vpack.c.b16 %v3004, %v3000
        %v3129 = vpack.c.b16 %v3005, %v3001
        %v3130 = vpack.c.b16 %v3006, %v3002
        %v3131 = vpack.c.b16 %v3007, %v3003
        %v3132 = vpack.c.b16 %v3012, %v3008
        %v3133 = vpack.c.b16 %v3013, %v3009
        %v3134 = vpack.c.b16 %v3014, %v3010
        %v3135 = vpack.c.b16 %v3015, %v3011
        %v3136 = vpack.c.b16 %v3020, %v3016
        %v3137 = vpack.c.b16 %v3021, %v3017
        %v3138 = vpack.c.b16 %v3022, %v3018
        %v3139 = vpack.c.b16 %v3023, %v3019
        %v3140 = vpack.c.b16 %v3028, %v3024
        %v3141 = vpack.c.b16 %v3029, %v3025
        %v3142 = vpack.c.b16 %v3030, %v3026
        %v3143 = vpack.c.b16 %v3031, %v3027
        %v3144 = vpack.c.b16 %v3036, %v3032
        %v3145 = vpack.c.b16 %v3037, %v3033
        %v3146 = vpack.c.b16 %v3038, %v3034
        %v3147 = vpack.c.b16 %v3039, %v3035
        %v3148 = vpack.c.b16 %v3044, %v3040
        %v3149 = vpack.c.b16 %v3045, %v3041
        %v3150 = vpack.c.b16 %v3046, %v3042
        %v3151 = vpack.c.b16 %v3047, %v3043
        %v3152 = vpack.c.b16 %v3052, %v3048
        %v3153 = vpack.c.b16 %v3053, %v3049
        %v3154 = vpack.c.b16 %v3054, %v3050
        %v3155 = vpack.c.b16 %v3055, %v3051
        %v3156 = vpack.c.b16 %v3060, %v3056
        %v3157 = vpack.c.b16 %v3061, %v3057
        %v3158 = vpack.c.b16 %v3062, %v3058
        %v3159 = vpack.c.b16 %v3063, %v3059
        %v3160 = vpack.c.b16 %v3068, %v3064
        %v3161 = vpack.c.b16 %v3069, %v3065
        %v3162 = vpack.c.b16 %v3070, %v3066
        %v3163 = vpack.c.b16 %v3071, %v3067
        %v3164 = vpack.c.b16 %v3076, %v3072
        %v3165 = vpack.c.b16 %v3077, %v3073
        %v3166 = vpack.c.b16 %v3078, %v3074
        %v3167 = vpack.c.b16 %v3079, %v3075
        %v3168 = vpack.c.b16 %v3084, %v3080
        %v3169 = vpack.c.b16 %v3085, %v3081
        %v3170 = vpack.c.b16 %v3086, %v3082
        %v3171 = vpack.c.b16 %v3087, %v3083
        %v3172 = vpack.c.b16 %v3092, %v3088
        %v3173 = vpack.c.b16 %v3093, %v3089
        %v3174 = vpack.c.b16 %v3094, %v3090
        %v3175 = vpack.c.b16 %v3095, %v3091
        %v3176 = vpack.c.b16 %v3100, %v3096
        %v3177 = vpack.c.b16 %v3101, %v3097
        %v3178 = vpack.c.b16 %v3102, %v3098
        %v3179 = vpack.c.b16 %v3103, %v3099
        %v3180 = vpack.c.b16 %v3108, %v3104
        %v3181 = vpack.c.b16 %v3109, %v3105
        %v3182 = vpack.c.b16 %v3110, %v3106
        %v3183 = vpack.c.b16 %v3111, %v3107
        %v3184 = vpack.c.b16 %v3116, %v3112
        %v3185 = vpack.c.b16 %v3117, %v3113
        %v3186 = vpack.c.b16 %v3118, %v3114
        %v3187 = vpack.c.b16 %v3119, %v3115
        %v3188 = vpack.c.b16 %v3124, %v3120
        %v3189 = vpack.c.b16 %v3125, %v3121
        %v3190 = vpack.c.b16 %v3126, %v3122
        %v3191 = vpack.c.b16 %v3127, %v3123
        %3256 = vmatpush.bf16.msra.mxu0 %v3156
        %3257 = vmatpush.bf16.msra.mxu0 %v3152
        %3258 = vmatpush.bf16.msra.mxu0 %v3148
        %3259 = vmatpush.bf16.msra.mxu0 %v3144
        %3260 = vmatpush.bf16.msra.mxu0 %v3140
        %3261 = vmatpush.bf16.msra.mxu0 %v3136
        %3262 = vmatpush.bf16.msra.mxu0 %v3132
        %3263 = vmatpush.bf16.msra.mxu0 %v3128
        %3264 = vmatmul.bf16.gmra.mxu0 %v2934
        %v3265 = vpop.f32.mrf.mxu0
        %v3266 = vadd.f32 0.0, %v3265
        %v3267 = vpop.f32.mrf.mxu0
        %3268 = vdwg.mxu0
        %3269 = vmatpush.bf16.msra.mxu0 %v3188
        %3270 = vmatpush.bf16.msra.mxu0 %v3184
        %3271 = vmatpush.bf16.msra.mxu0 %v3180
        %3272 = vmatpush.bf16.msra.mxu0 %v3176
        %3273 = vmatpush.bf16.msra.mxu0 %v3172
        %3274 = vmatpush.bf16.msra.mxu0 %v3168
        %3275 = vmatpush.bf16.msra.mxu0 %v3164
        %3276 = vmatpush.bf16.msra.mxu0 %v3160
        %3277 = vmatmul.bf16.gmra.mxu0 %v2935
        %v3278 = vpop.f32.mrf.mxu0
        %v3279 = vadd.f32 %v3266, %v3278
        %v3280 = vpop.f32.mrf.mxu0
        %3281 = vdwg.mxu0
        %3282 = vmatpush.bf16.msra.mxu0 %v3157
        %3283 = vmatpush.bf16.msra.mxu0 %v3153
        %3284 = vmatpush.bf16.msra.mxu0 %v3149
        %3285 = vmatpush.bf16.msra.mxu0 %v3145
        %3286 = vmatpush.bf16.msra.mxu0 %v3141
        %3287 = vmatpush.bf16.msra.mxu0 %v3137
        %3288 = vmatpush.bf16.msra.mxu0 %v3133
        %3289 = vmatpush.bf16.msra.mxu0 %v3129
        %3290 = vmatmul.bf16.gmra.mxu0 %v2934
        %v3291 = vpop.f32.mrf.mxu0
        %v3292 = vadd.f32 0.0, %v3291
        %v3293 = vpop.f32.mrf.mxu0
        %3294 = vdwg.mxu0
        %3295 = vmatpush.bf16.msra.mxu0 %v3189
        %3296 = vmatpush.bf16.msra.mxu0 %v3185
        %3297 = vmatpush.bf16.msra.mxu0 %v3181
        %3298 = vmatpush.bf16.msra.mxu0 %v3177
        %3299 = vmatpush.bf16.msra.mxu0 %v3173
        %3300 = vmatpush.bf16.msra.mxu0 %v3169
        %3301 = vmatpush.bf16.msra.mxu0 %v3165
        %3302 = vmatpush.bf16.msra.mxu0 %v3161
        %3303 = vmatmul.bf16.gmra.mxu0 %v2935
        %v3304 = vpop.f32.mrf.mxu0
        %v3305 = vadd.f32 %v3292, %v3304
        %v3306 = vpop.f32.mrf.mxu0
        %3307 = vdwg.mxu0
        %3308 = vmatpush.bf16.msra.mxu0 %v3158
        %3309 = vmatpush.bf16.msra.mxu0 %v3154
        %3310 = vmatpush.bf16.msra.mxu0 %v3150
        %3311 = vmatpush.bf16.msra.mxu0 %v3146
        %3312 = vmatpush.bf16.msra.mxu0 %v3142
        %3313 = vmatpush.bf16.msra.mxu0 %v3138
        %3314 = vmatpush.bf16.msra.mxu0 %v3134
        %3315 = vmatpush.bf16.msra.mxu0 %v3130
        %3316 = vmatmul.bf16.gmra.mxu0 %v2934
        %v3317 = vpop.f32.mrf.mxu0
        %v3318 = vadd.f32 0.0, %v3317
        %v3319 = vpop.f32.mrf.mxu0
        %3320 = vdwg.mxu0
        %3321 = vmatpush.bf16.msra.mxu0 %v3190
        %3322 = vmatpush.bf16.msra.mxu0 %v3186
        %3323 = vmatpush.bf16.msra.mxu0 %v3182
        %3324 = vmatpush.bf16.msra.mxu0 %v3178
        %3325 = vmatpush.bf16.msra.mxu0 %v3174
        %3326 = vmatpush.bf16.msra.mxu0 %v3170
        %3327 = vmatpush.bf16.msra.mxu0 %v3166
        %3328 = vmatpush.bf16.msra.mxu0 %v3162
        %3329 = vmatmul.bf16.gmra.mxu0 %v2935
        %v3330 = vpop.f32.mrf.mxu0
        %v3331 = vadd.f32 %v3318, %v3330
        %v3332 = vpop.f32.mrf.mxu0
        %3333 = vdwg.mxu0
        %3334 = vmatpush.bf16.msra.mxu0 %v3159
        %3335 = vmatpush.bf16.msra.mxu0 %v3155
        %3336 = vmatpush.bf16.msra.mxu0 %v3151
        %3337 = vmatpush.bf16.msra.mxu0 %v3147
        %3338 = vmatpush.bf16.msra.mxu0 %v3143
        %3339 = vmatpush.bf16.msra.mxu0 %v3139
        %3340 = vmatpush.bf16.msra.mxu0 %v3135
        %3341 = vmatpush.bf16.msra.mxu0 %v3131
        %3342 = vmatmul.bf16.gmra.mxu0 %v2934
        %v3343 = vpop.f32.mrf.mxu0
        %v3344 = vadd.f32 0.0, %v3343
        %v3345 = vpop.f32.mrf.mxu0
        %3346 = vdwg.mxu0
        %3347 = vmatpush.bf16.msra.mxu0 %v3191
        %3348 = vmatpush.bf16.msra.mxu0 %v3187
        %3349 = vmatpush.bf16.msra.mxu0 %v3183
        %3350 = vmatpush.bf16.msra.mxu0 %v3179
        %3351 = vmatpush.bf16.msra.mxu0 %v3175
        %3352 = vmatpush.bf16.msra.mxu0 %v3171
        %3353 = vmatpush.bf16.msra.mxu0 %v3167
        %3354 = vmatpush.bf16.msra.mxu0 %v3163
        %3355 = vmatmul.bf16.gmra.mxu0 %v2935
        %v3356 = vpop.f32.mrf.mxu0
        %v3357 = vadd.f32 %v3344, %v3356
        %v3358 = vpop.f32.mrf.mxu0
        %3359 = vdwg.mxu0
        %v3360 = vadd.f32 %v2856, %v3279
        %v3361 = vadd.f32 %v2857, %v3305
        %v3362 = vadd.f32 %v2858, %v3331
        %v3363 = vadd.f32 %v2859, %v3357
        %v3364 = vrot.slane %v1349, 4
        %v3365 = vrot.slane %v1350, 4
        %v3368 = vrot.slane %v1355, 3
        %v3369 = vrot.slane %v1356, 3
        %v3372 = vsel %vm1365, %v3364, %v3368
        %v3373 = vsel %vm1365, %v3365, %v3369
        %v3374 = vld [vmem:[%s475 + $0x800] sm:$0xff]
        %v3375 = vld [vmem:[%s475 + $0x808] sm:$0xff]
        %v3376 = vld [vmem:[%s475 + $0x810] sm:$0xff]
        %v3377 = vld [vmem:[%s475 + $0x818] sm:$0xff]
        %v3378 = vld [vmem:[%s475 + $0x820] sm:$0xff]
        %v3379 = vld [vmem:[%s475 + $0x828] sm:$0xff]
        %v3380 = vld [vmem:[%s475 + $0x830] sm:$0xff]
        %v3381 = vld [vmem:[%s475 + $0x838] sm:$0xff]
        %v3382 = vld [vmem:[%s475 + $0x840] sm:$0xff]
        %v3383 = vld [vmem:[%s475 + $0x848] sm:$0xff]
        %v3384 = vld [vmem:[%s475 + $0x850] sm:$0xff]
        %v3385 = vld [vmem:[%s475 + $0x858] sm:$0xff]
        %v3386 = vld [vmem:[%s475 + $0x860] sm:$0xff]
        %v3387 = vld [vmem:[%s475 + $0x868] sm:$0xff]
        %v3388 = vld [vmem:[%s475 + $0x870] sm:$0xff]
        %v3389 = vld [vmem:[%s475 + $0x878] sm:$0xff]
        %v3390 = vld [vmem:[%s475 + $0x880] sm:$0xff]
        %v3391 = vld [vmem:[%s475 + $0x888] sm:$0xff]
        %v3392 = vld [vmem:[%s475 + $0x890] sm:$0xff]
        %v3393 = vld [vmem:[%s475 + $0x898] sm:$0xff]
        %v3394 = vld [vmem:[%s475 + $0x8a0] sm:$0xff]
        %v3395 = vld [vmem:[%s475 + $0x8a8] sm:$0xff]
        %v3396 = vld [vmem:[%s475 + $0x8b0] sm:$0xff]
        %v3397 = vld [vmem:[%s475 + $0x8b8] sm:$0xff]
        %v3398 = vld [vmem:[%s475 + $0x8c0] sm:$0xff]
        %v3399 = vld [vmem:[%s475 + $0x8c8] sm:$0xff]
        %v3400 = vld [vmem:[%s475 + $0x8d0] sm:$0xff]
        %v3401 = vld [vmem:[%s475 + $0x8d8] sm:$0xff]
        %v3402 = vld [vmem:[%s475 + $0x8e0] sm:$0xff]
        %v3403 = vld [vmem:[%s475 + $0x8e8] sm:$0xff]
        %v3404 = vld [vmem:[%s475 + $0x8f0] sm:$0xff]
        %v3405 = vld [vmem:[%s475 + $0x8f8] sm:$0xff]
        %v3406 = vld [vmem:[%s475 + $0x900] sm:$0xff]
        %v3407 = vld [vmem:[%s475 + $0x908] sm:$0xff]
        %v3408 = vld [vmem:[%s475 + $0x910] sm:$0xff]
        %v3409 = vld [vmem:[%s475 + $0x918] sm:$0xff]
        %v3410 = vld [vmem:[%s475 + $0x920] sm:$0xff]
        %v3411 = vld [vmem:[%s475 + $0x928] sm:$0xff]
        %v3412 = vld [vmem:[%s475 + $0x930] sm:$0xff]
        %v3413 = vld [vmem:[%s475 + $0x938] sm:$0xff]
        %v3414 = vld [vmem:[%s475 + $0x940] sm:$0xff]
        %v3415 = vld [vmem:[%s475 + $0x948] sm:$0xff]
        %v3416 = vld [vmem:[%s475 + $0x950] sm:$0xff]
        %v3417 = vld [vmem:[%s475 + $0x958] sm:$0xff]
        %v3418 = vld [vmem:[%s475 + $0x960] sm:$0xff]
        %v3419 = vld [vmem:[%s475 + $0x968] sm:$0xff]
        %v3420 = vld [vmem:[%s475 + $0x970] sm:$0xff]
        %v3421 = vld [vmem:[%s475 + $0x978] sm:$0xff]
        %v3422 = vld [vmem:[%s475 + $0x980] sm:$0xff]
        %v3423 = vld [vmem:[%s475 + $0x988] sm:$0xff]
        %v3424 = vld [vmem:[%s475 + $0x990] sm:$0xff]
        %v3425 = vld [vmem:[%s475 + $0x998] sm:$0xff]
        %v3426 = vld [vmem:[%s475 + $0x9a0] sm:$0xff]
        %v3427 = vld [vmem:[%s475 + $0x9a8] sm:$0xff]
        %v3428 = vld [vmem:[%s475 + $0x9b0] sm:$0xff]
        %v3429 = vld [vmem:[%s475 + $0x9b8] sm:$0xff]
        %v3430 = vld [vmem:[%s475 + $0x9c0] sm:$0xff]
        %v3431 = vld [vmem:[%s475 + $0x9c8] sm:$0xff]
        %v3432 = vld [vmem:[%s475 + $0x9d0] sm:$0xff]
        %v3433 = vld [vmem:[%s475 + $0x9d8] sm:$0xff]
        %v3434 = vld [vmem:[%s475 + $0x9e0] sm:$0xff]
        %v3435 = vld [vmem:[%s475 + $0x9e8] sm:$0xff]
        %v3436 = vld [vmem:[%s475 + $0x9f0] sm:$0xff]
        %v3437 = vld [vmem:[%s475 + $0x9f8] sm:$0xff]
        %v3438 = vpack.c.bf16 %v3372, %v3372
        %v3439 = vpack.c.bf16 %v3373, %v3373
        %v3504 = vunpack.c.l.b16 %v3374
        %v3505 = vunpack.c.h.b16 %v3374
        %v3506 = vunpack.c.l.b16 %v3375
        %v3507 = vunpack.c.h.b16 %v3375
        %v3508 = vunpack.c.l.b16 %v3376
        %v3509 = vunpack.c.h.b16 %v3376
        %v3510 = vunpack.c.l.b16 %v3377
        %v3511 = vunpack.c.h.b16 %v3377
        %v3512 = vunpack.c.l.b16 %v3378
        %v3513 = vunpack.c.h.b16 %v3378
        %v3514 = vunpack.c.l.b16 %v3379
        %v3515 = vunpack.c.h.b16 %v3379
        %v3516 = vunpack.c.l.b16 %v3380
        %v3517 = vunpack.c.h.b16 %v3380
        %v3518 = vunpack.c.l.b16 %v3381
        %v3519 = vunpack.c.h.b16 %v3381
        %v3520 = vunpack.c.l.b16 %v3382
        %v3521 = vunpack.c.h.b16 %v3382
        %v3522 = vunpack.c.l.b16 %v3383
        %v3523 = vunpack.c.h.b16 %v3383
        %v3524 = vunpack.c.l.b16 %v3384
        %v3525 = vunpack.c.h.b16 %v3384
        %v3526 = vunpack.c.l.b16 %v3385
        %v3527 = vunpack.c.h.b16 %v3385
        %v3528 = vunpack.c.l.b16 %v3386
        %v3529 = vunpack.c.h.b16 %v3386
        %v3530 = vunpack.c.l.b16 %v3387
        %v3531 = vunpack.c.h.b16 %v3387
        %v3532 = vunpack.c.l.b16 %v3388
        %v3533 = vunpack.c.h.b16 %v3388
        %v3534 = vunpack.c.l.b16 %v3389
        %v3535 = vunpack.c.h.b16 %v3389
        %v3536 = vunpack.c.l.b16 %v3390
        %v3537 = vunpack.c.h.b16 %v3390
        %v3538 = vunpack.c.l.b16 %v3391
        %v3539 = vunpack.c.h.b16 %v3391
        %v3540 = vunpack.c.l.b16 %v3392
        %v3541 = vunpack.c.h.b16 %v3392
        %v3542 = vunpack.c.l.b16 %v3393
        %v3543 = vunpack.c.h.b16 %v3393
        %v3544 = vunpack.c.l.b16 %v3394
        %v3545 = vunpack.c.h.b16 %v3394
        %v3546 = vunpack.c.l.b16 %v3395
        %v3547 = vunpack.c.h.b16 %v3395
        %v3548 = vunpack.c.l.b16 %v3396
        %v3549 = vunpack.c.h.b16 %v3396
        %v3550 = vunpack.c.l.b16 %v3397
        %v3551 = vunpack.c.h.b16 %v3397
        %v3552 = vunpack.c.l.b16 %v3398
        %v3553 = vunpack.c.h.b16 %v3398
        %v3554 = vunpack.c.l.b16 %v3399
        %v3555 = vunpack.c.h.b16 %v3399
        %v3556 = vunpack.c.l.b16 %v3400
        %v3557 = vunpack.c.h.b16 %v3400
        %v3558 = vunpack.c.l.b16 %v3401
        %v3559 = vunpack.c.h.b16 %v3401
        %v3560 = vunpack.c.l.b16 %v3402
        %v3561 = vunpack.c.h.b16 %v3402
        %v3562 = vunpack.c.l.b16 %v3403
        %v3563 = vunpack.c.h.b16 %v3403
        %v3564 = vunpack.c.l.b16 %v3404
        %v3565 = vunpack.c.h.b16 %v3404
        %v3566 = vunpack.c.l.b16 %v3405
        %v3567 = vunpack.c.h.b16 %v3405
        %v3568 = vunpack.c.l.b16 %v3406
        %v3569 = vunpack.c.h.b16 %v3406
        %v3570 = vunpack.c.l.b16 %v3407
        %v3571 = vunpack.c.h.b16 %v3407
        %v3572 = vunpack.c.l.b16 %v3408
        %v3573 = vunpack.c.h.b16 %v3408
        %v3574 = vunpack.c.l.b16 %v3409
        %v3575 = vunpack.c.h.b16 %v3409
        %v3576 = vunpack.c.l.b16 %v3410
        %v3577 = vunpack.c.h.b16 %v3410
        %v3578 = vunpack.c.l.b16 %v3411
        %v3579 = vunpack.c.h.b16 %v3411
        %v3580 = vunpack.c.l.b16 %v3412
        %v3581 = vunpack.c.h.b16 %v3412
        %v3582 = vunpack.c.l.b16 %v3413
        %v3583 = vunpack.c.h.b16 %v3413
        %v3584 = vunpack.c.l.b16 %v3414
        %v3585 = vunpack.c.h.b16 %v3414
        %v3586 = vunpack.c.l.b16 %v3415
        %v3587 = vunpack.c.h.b16 %v3415
        %v3588 = vunpack.c.l.b16 %v3416
        %v3589 = vunpack.c.h.b16 %v3416
        %v3590 = vunpack.c.l.b16 %v3417
        %v3591 = vunpack.c.h.b16 %v3417
        %v3592 = vunpack.c.l.b16 %v3418
        %v3593 = vunpack.c.h.b16 %v3418
        %v3594 = vunpack.c.l.b16 %v3419
        %v3595 = vunpack.c.h.b16 %v3419
        %v3596 = vunpack.c.l.b16 %v3420
        %v3597 = vunpack.c.h.b16 %v3420
        %v3598 = vunpack.c.l.b16 %v3421
        %v3599 = vunpack.c.h.b16 %v3421
        %v3600 = vunpack.c.l.b16 %v3422
        %v3601 = vunpack.c.h.b16 %v3422
        %v3602 = vunpack.c.l.b16 %v3423
        %v3603 = vunpack.c.h.b16 %v3423
        %v3604 = vunpack.c.l.b16 %v3424
        %v3605 = vunpack.c.h.b16 %v3424
        %v3606 = vunpack.c.l.b16 %v3425
        %v3607 = vunpack.c.h.b16 %v3425
        %v3608 = vunpack.c.l.b16 %v3426
        %v3609 = vunpack.c.h.b16 %v3426
        %v3610 = vunpack.c.l.b16 %v3427
        %v3611 = vunpack.c.h.b16 %v3427
        %v3612 = vunpack.c.l.b16 %v3428
        %v3613 = vunpack.c.h.b16 %v3428
        %v3614 = vunpack.c.l.b16 %v3429
        %v3615 = vunpack.c.h.b16 %v3429
        %v3616 = vunpack.c.l.b16 %v3430
        %v3617 = vunpack.c.h.b16 %v3430
        %v3618 = vunpack.c.l.b16 %v3431
        %v3619 = vunpack.c.h.b16 %v3431
        %v3620 = vunpack.c.l.b16 %v3432
        %v3621 = vunpack.c.h.b16 %v3432
        %v3622 = vunpack.c.l.b16 %v3433
        %v3623 = vunpack.c.h.b16 %v3433
        %v3624 = vunpack.c.l.b16 %v3434
        %v3625 = vunpack.c.h.b16 %v3434
        %v3626 = vunpack.c.l.b16 %v3435
        %v3627 = vunpack.c.h.b16 %v3435
        %v3628 = vunpack.c.l.b16 %v3436
        %v3629 = vunpack.c.h.b16 %v3436
        %v3630 = vunpack.c.l.b16 %v3437
        %v3631 = vunpack.c.h.b16 %v3437
        %v3632 = vpack.c.b16 %v3508, %v3504
        %v3633 = vpack.c.b16 %v3509, %v3505
        %v3634 = vpack.c.b16 %v3510, %v3506
        %v3635 = vpack.c.b16 %v3511, %v3507
        %v3636 = vpack.c.b16 %v3516, %v3512
        %v3637 = vpack.c.b16 %v3517, %v3513
        %v3638 = vpack.c.b16 %v3518, %v3514
        %v3639 = vpack.c.b16 %v3519, %v3515
        %v3640 = vpack.c.b16 %v3524, %v3520
        %v3641 = vpack.c.b16 %v3525, %v3521
        %v3642 = vpack.c.b16 %v3526, %v3522
        %v3643 = vpack.c.b16 %v3527, %v3523
        %v3644 = vpack.c.b16 %v3532, %v3528
        %v3645 = vpack.c.b16 %v3533, %v3529
        %v3646 = vpack.c.b16 %v3534, %v3530
        %v3647 = vpack.c.b16 %v3535, %v3531
        %v3648 = vpack.c.b16 %v3540, %v3536
        %v3649 = vpack.c.b16 %v3541, %v3537
        %v3650 = vpack.c.b16 %v3542, %v3538
        %v3651 = vpack.c.b16 %v3543, %v3539
        %v3652 = vpack.c.b16 %v3548, %v3544
        %v3653 = vpack.c.b16 %v3549, %v3545
        %v3654 = vpack.c.b16 %v3550, %v3546
        %v3655 = vpack.c.b16 %v3551, %v3547
        %v3656 = vpack.c.b16 %v3556, %v3552
        %v3657 = vpack.c.b16 %v3557, %v3553
        %v3658 = vpack.c.b16 %v3558, %v3554
        %v3659 = vpack.c.b16 %v3559, %v3555
        %v3660 = vpack.c.b16 %v3564, %v3560
        %v3661 = vpack.c.b16 %v3565, %v3561
        %v3662 = vpack.c.b16 %v3566, %v3562
        %v3663 = vpack.c.b16 %v3567, %v3563
        %v3664 = vpack.c.b16 %v3572, %v3568
        %v3665 = vpack.c.b16 %v3573, %v3569
        %v3666 = vpack.c.b16 %v3574, %v3570
        %v3667 = vpack.c.b16 %v3575, %v3571
        %v3668 = vpack.c.b16 %v3580, %v3576
        %v3669 = vpack.c.b16 %v3581, %v3577
        %v3670 = vpack.c.b16 %v3582, %v3578
        %v3671 = vpack.c.b16 %v3583, %v3579
        %v3672 = vpack.c.b16 %v3588, %v3584
        %v3673 = vpack.c.b16 %v3589, %v3585
        %v3674 = vpack.c.b16 %v3590, %v3586
        %v3675 = vpack.c.b16 %v3591, %v3587
        %v3676 = vpack.c.b16 %v3596, %v3592
        %v3677 = vpack.c.b16 %v3597, %v3593
        %v3678 = vpack.c.b16 %v3598, %v3594
        %v3679 = vpack.c.b16 %v3599, %v3595
        %v3680 = vpack.c.b16 %v3604, %v3600
        %v3681 = vpack.c.b16 %v3605, %v3601
        %v3682 = vpack.c.b16 %v3606, %v3602
        %v3683 = vpack.c.b16 %v3607, %v3603
        %v3684 = vpack.c.b16 %v3612, %v3608
        %v3685 = vpack.c.b16 %v3613, %v3609
        %v3686 = vpack.c.b16 %v3614, %v3610
        %v3687 = vpack.c.b16 %v3615, %v3611
        %v3688 = vpack.c.b16 %v3620, %v3616
        %v3689 = vpack.c.b16 %v3621, %v3617
        %v3690 = vpack.c.b16 %v3622, %v3618
        %v3691 = vpack.c.b16 %v3623, %v3619
        %v3692 = vpack.c.b16 %v3628, %v3624
        %v3693 = vpack.c.b16 %v3629, %v3625
        %v3694 = vpack.c.b16 %v3630, %v3626
        %v3695 = vpack.c.b16 %v3631, %v3627
        %3760 = vmatpush.bf16.msra.mxu0 %v3660
        %3761 = vmatpush.bf16.msra.mxu0 %v3656
        %3762 = vmatpush.bf16.msra.mxu0 %v3652
        %3763 = vmatpush.bf16.msra.mxu0 %v3648
        %3764 = vmatpush.bf16.msra.mxu0 %v3644
        %3765 = vmatpush.bf16.msra.mxu0 %v3640
        %3766 = vmatpush.bf16.msra.mxu0 %v3636
        %3767 = vmatpush.bf16.msra.mxu0 %v3632
        %3768 = vmatmul.bf16.gmra.mxu0 %v3438
        %v3769 = vpop.f32.mrf.mxu0
        %v3770 = vadd.f32 0.0, %v3769
        %v3771 = vpop.f32.mrf.mxu0
        %3772 = vdwg.mxu0
        %3773 = vmatpush.bf16.msra.mxu0 %v3692
        %3774 = vmatpush.bf16.msra.mxu0 %v3688
        %3775 = vmatpush.bf16.msra.mxu0 %v3684
        %3776 = vmatpush.bf16.msra.mxu0 %v3680
        %3777 = vmatpush.bf16.msra.mxu0 %v3676
        %3778 = vmatpush.bf16.msra.mxu0 %v3672
        %3779 = vmatpush.bf16.msra.mxu0 %v3668
        %3780 = vmatpush.bf16.msra.mxu0 %v3664
        %3781 = vmatmul.bf16.gmra.mxu0 %v3439
        %v3782 = vpop.f32.mrf.mxu0
        %v3783 = vadd.f32 %v3770, %v3782
        %v3784 = vpop.f32.mrf.mxu0
        %3785 = vdwg.mxu0
        %3786 = vmatpush.bf16.msra.mxu0 %v3661
        %3787 = vmatpush.bf16.msra.mxu0 %v3657
        %3788 = vmatpush.bf16.msra.mxu0 %v3653
        %3789 = vmatpush.bf16.msra.mxu0 %v3649
        %3790 = vmatpush.bf16.msra.mxu0 %v3645
        %3791 = vmatpush.bf16.msra.mxu0 %v3641
        %3792 = vmatpush.bf16.msra.mxu0 %v3637
        %3793 = vmatpush.bf16.msra.mxu0 %v3633
        %3794 = vmatmul.bf16.gmra.mxu0 %v3438
        %v3795 = vpop.f32.mrf.mxu0
        %v3796 = vadd.f32 0.0, %v3795
        %v3797 = vpop.f32.mrf.mxu0
        %3798 = vdwg.mxu0
        %3799 = vmatpush.bf16.msra.mxu0 %v3693
        %3800 = vmatpush.bf16.msra.mxu0 %v3689
        %3801 = vmatpush.bf16.msra.mxu0 %v3685
        %3802 = vmatpush.bf16.msra.mxu0 %v3681
        %3803 = vmatpush.bf16.msra.mxu0 %v3677
        %3804 = vmatpush.bf16.msra.mxu0 %v3673
        %3805 = vmatpush.bf16.msra.mxu0 %v3669
        %3806 = vmatpush.bf16.msra.mxu0 %v3665
        %3807 = vmatmul.bf16.gmra.mxu0 %v3439
        %v3808 = vpop.f32.mrf.mxu0
        %v3809 = vadd.f32 %v3796, %v3808
        %v3810 = vpop.f32.mrf.mxu0
        %3811 = vdwg.mxu0
        %3812 = vmatpush.bf16.msra.mxu0 %v3662
        %3813 = vmatpush.bf16.msra.mxu0 %v3658
        %3814 = vmatpush.bf16.msra.mxu0 %v3654
        %3815 = vmatpush.bf16.msra.mxu0 %v3650
        %3816 = vmatpush.bf16.msra.mxu0 %v3646
        %3817 = vmatpush.bf16.msra.mxu0 %v3642
        %3818 = vmatpush.bf16.msra.mxu0 %v3638
        %3819 = vmatpush.bf16.msra.mxu0 %v3634
        %3820 = vmatmul.bf16.gmra.mxu0 %v3438
        %v3821 = vpop.f32.mrf.mxu0
        %v3822 = vadd.f32 0.0, %v3821
        %v3823 = vpop.f32.mrf.mxu0
        %3824 = vdwg.mxu0
        %3825 = vmatpush.bf16.msra.mxu0 %v3694
        %3826 = vmatpush.bf16.msra.mxu0 %v3690
        %3827 = vmatpush.bf16.msra.mxu0 %v3686
        %3828 = vmatpush.bf16.msra.mxu0 %v3682
        %3829 = vmatpush.bf16.msra.mxu0 %v3678
        %3830 = vmatpush.bf16.msra.mxu0 %v3674
        %3831 = vmatpush.bf16.msra.mxu0 %v3670
        %3832 = vmatpush.bf16.msra.mxu0 %v3666
        %3833 = vmatmul.bf16.gmra.mxu0 %v3439
        %v3834 = vpop.f32.mrf.mxu0
        %v3835 = vadd.f32 %v3822, %v3834
        %v3836 = vpop.f32.mrf.mxu0
        %3837 = vdwg.mxu0
        %3838 = vmatpush.bf16.msra.mxu0 %v3663
        %3839 = vmatpush.bf16.msra.mxu0 %v3659
        %3840 = vmatpush.bf16.msra.mxu0 %v3655
        %3841 = vmatpush.bf16.msra.mxu0 %v3651
        %3842 = vmatpush.bf16.msra.mxu0 %v3647
        %3843 = vmatpush.bf16.msra.mxu0 %v3643
        %3844 = vmatpush.bf16.msra.mxu0 %v3639
        %3845 = vmatpush.bf16.msra.mxu0 %v3635
        %3846 = vmatmul.bf16.gmra.mxu0 %v3438
        %v3847 = vpop.f32.mrf.mxu0
        %v3848 = vadd.f32 0.0, %v3847
        %v3849 = vpop.f32.mrf.mxu0
        %3850 = vdwg.mxu0
        %3851 = vmatpush.bf16.msra.mxu0 %v3695
        %3852 = vmatpush.bf16.msra.mxu0 %v3691
        %3853 = vmatpush.bf16.msra.mxu0 %v3687
        %3854 = vmatpush.bf16.msra.mxu0 %v3683
        %3855 = vmatpush.bf16.msra.mxu0 %v3679
        %3856 = vmatpush.bf16.msra.mxu0 %v3675
        %3857 = vmatpush.bf16.msra.mxu0 %v3671
        %3858 = vmatpush.bf16.msra.mxu0 %v3667
        %3859 = vmatmul.bf16.gmra.mxu0 %v3439
        %v3860 = vpop.f32.mrf.mxu0
        %v3861 = vadd.f32 %v3848, %v3860
        %v3862 = vpop.f32.mrf.mxu0
        %3863 = vdwg.mxu0
        %v3864 = vadd.f32 %v3360, %v3783
        %v3865 = vadd.f32 %v3361, %v3809
        %v3866 = vadd.f32 %v3362, %v3835
        %v3867 = vadd.f32 %v3363, %v3861
        %v3868 = vrot.slane %v1349, 5
        %v3869 = vrot.slane %v1350, 5
        %v3872 = vrot.slane %v1355, 4
        %v3873 = vrot.slane %v1356, 4
        %v3876 = vsel %vm1365, %v3868, %v3872
        %v3877 = vsel %vm1365, %v3869, %v3873
        %v3878 = vld [vmem:[%s475 + $0xa00] sm:$0xff]
        %v3879 = vld [vmem:[%s475 + $0xa08] sm:$0xff]
        %v3880 = vld [vmem:[%s475 + $0xa10] sm:$0xff]
        %v3881 = vld [vmem:[%s475 + $0xa18] sm:$0xff]
        %v3882 = vld [vmem:[%s475 + $0xa20] sm:$0xff]
        %v3883 = vld [vmem:[%s475 + $0xa28] sm:$0xff]
        %v3884 = vld [vmem:[%s475 + $0xa30] sm:$0xff]
        %v3885 = vld [vmem:[%s475 + $0xa38] sm:$0xff]
        %v3886 = vld [vmem:[%s475 + $0xa40] sm:$0xff]
        %v3887 = vld [vmem:[%s475 + $0xa48] sm:$0xff]
        %v3888 = vld [vmem:[%s475 + $0xa50] sm:$0xff]
        %v3889 = vld [vmem:[%s475 + $0xa58] sm:$0xff]
        %v3890 = vld [vmem:[%s475 + $0xa60] sm:$0xff]
        %v3891 = vld [vmem:[%s475 + $0xa68] sm:$0xff]
        %v3892 = vld [vmem:[%s475 + $0xa70] sm:$0xff]
        %v3893 = vld [vmem:[%s475 + $0xa78] sm:$0xff]
        %v3894 = vld [vmem:[%s475 + $0xa80] sm:$0xff]
        %v3895 = vld [vmem:[%s475 + $0xa88] sm:$0xff]
        %v3896 = vld [vmem:[%s475 + $0xa90] sm:$0xff]
        %v3897 = vld [vmem:[%s475 + $0xa98] sm:$0xff]
        %v3898 = vld [vmem:[%s475 + $0xaa0] sm:$0xff]
        %v3899 = vld [vmem:[%s475 + $0xaa8] sm:$0xff]
        %v3900 = vld [vmem:[%s475 + $0xab0] sm:$0xff]
        %v3901 = vld [vmem:[%s475 + $0xab8] sm:$0xff]
        %v3902 = vld [vmem:[%s475 + $0xac0] sm:$0xff]
        %v3903 = vld [vmem:[%s475 + $0xac8] sm:$0xff]
        %v3904 = vld [vmem:[%s475 + $0xad0] sm:$0xff]
        %v3905 = vld [vmem:[%s475 + $0xad8] sm:$0xff]
        %v3906 = vld [vmem:[%s475 + $0xae0] sm:$0xff]
        %v3907 = vld [vmem:[%s475 + $0xae8] sm:$0xff]
        %v3908 = vld [vmem:[%s475 + $0xaf0] sm:$0xff]
        %v3909 = vld [vmem:[%s475 + $0xaf8] sm:$0xff]
        %v3910 = vld [vmem:[%s475 + $0xb00] sm:$0xff]
        %v3911 = vld [vmem:[%s475 + $0xb08] sm:$0xff]
        %v3912 = vld [vmem:[%s475 + $0xb10] sm:$0xff]
        %v3913 = vld [vmem:[%s475 + $0xb18] sm:$0xff]
        %v3914 = vld [vmem:[%s475 + $0xb20] sm:$0xff]
        %v3915 = vld [vmem:[%s475 + $0xb28] sm:$0xff]
        %v3916 = vld [vmem:[%s475 + $0xb30] sm:$0xff]
        %v3917 = vld [vmem:[%s475 + $0xb38] sm:$0xff]
        %v3918 = vld [vmem:[%s475 + $0xb40] sm:$0xff]
        %v3919 = vld [vmem:[%s475 + $0xb48] sm:$0xff]
        %v3920 = vld [vmem:[%s475 + $0xb50] sm:$0xff]
        %v3921 = vld [vmem:[%s475 + $0xb58] sm:$0xff]
        %v3922 = vld [vmem:[%s475 + $0xb60] sm:$0xff]
        %v3923 = vld [vmem:[%s475 + $0xb68] sm:$0xff]
        %v3924 = vld [vmem:[%s475 + $0xb70] sm:$0xff]
        %v3925 = vld [vmem:[%s475 + $0xb78] sm:$0xff]
        %v3926 = vld [vmem:[%s475 + $0xb80] sm:$0xff]
        %v3927 = vld [vmem:[%s475 + $0xb88] sm:$0xff]
        %v3928 = vld [vmem:[%s475 + $0xb90] sm:$0xff]
        %v3929 = vld [vmem:[%s475 + $0xb98] sm:$0xff]
        %v3930 = vld [vmem:[%s475 + $0xba0] sm:$0xff]
        %v3931 = vld [vmem:[%s475 + $0xba8] sm:$0xff]
        %v3932 = vld [vmem:[%s475 + $0xbb0] sm:$0xff]
        %v3933 = vld [vmem:[%s475 + $0xbb8] sm:$0xff]
        %v3934 = vld [vmem:[%s475 + $0xbc0] sm:$0xff]
        %v3935 = vld [vmem:[%s475 + $0xbc8] sm:$0xff]
        %v3936 = vld [vmem:[%s475 + $0xbd0] sm:$0xff]
        %v3937 = vld [vmem:[%s475 + $0xbd8] sm:$0xff]
        %v3938 = vld [vmem:[%s475 + $0xbe0] sm:$0xff]
        %v3939 = vld [vmem:[%s475 + $0xbe8] sm:$0xff]
        %v3940 = vld [vmem:[%s475 + $0xbf0] sm:$0xff]
        %v3941 = vld [vmem:[%s475 + $0xbf8] sm:$0xff]
        %v3942 = vpack.c.bf16 %v3876, %v3876
        %v3943 = vpack.c.bf16 %v3877, %v3877
        %v4008 = vunpack.c.l.b16 %v3878
        %v4009 = vunpack.c.h.b16 %v3878
        %v4010 = vunpack.c.l.b16 %v3879
        %v4011 = vunpack.c.h.b16 %v3879
        %v4012 = vunpack.c.l.b16 %v3880
        %v4013 = vunpack.c.h.b16 %v3880
        %v4014 = vunpack.c.l.b16 %v3881
        %v4015 = vunpack.c.h.b16 %v3881
        %v4016 = vunpack.c.l.b16 %v3882
        %v4017 = vunpack.c.h.b16 %v3882
        %v4018 = vunpack.c.l.b16 %v3883
        %v4019 = vunpack.c.h.b16 %v3883
        %v4020 = vunpack.c.l.b16 %v3884
        %v4021 = vunpack.c.h.b16 %v3884
        %v4022 = vunpack.c.l.b16 %v3885
        %v4023 = vunpack.c.h.b16 %v3885
        %v4024 = vunpack.c.l.b16 %v3886
        %v4025 = vunpack.c.h.b16 %v3886
        %v4026 = vunpack.c.l.b16 %v3887
        %v4027 = vunpack.c.h.b16 %v3887
        %v4028 = vunpack.c.l.b16 %v3888
        %v4029 = vunpack.c.h.b16 %v3888
        %v4030 = vunpack.c.l.b16 %v3889
        %v4031 = vunpack.c.h.b16 %v3889
        %v4032 = vunpack.c.l.b16 %v3890
        %v4033 = vunpack.c.h.b16 %v3890
        %v4034 = vunpack.c.l.b16 %v3891
        %v4035 = vunpack.c.h.b16 %v3891
        %v4036 = vunpack.c.l.b16 %v3892
        %v4037 = vunpack.c.h.b16 %v3892
        %v4038 = vunpack.c.l.b16 %v3893
        %v4039 = vunpack.c.h.b16 %v3893
        %v4040 = vunpack.c.l.b16 %v3894
        %v4041 = vunpack.c.h.b16 %v3894
        %v4042 = vunpack.c.l.b16 %v3895
        %v4043 = vunpack.c.h.b16 %v3895
        %v4044 = vunpack.c.l.b16 %v3896
        %v4045 = vunpack.c.h.b16 %v3896
        %v4046 = vunpack.c.l.b16 %v3897
        %v4047 = vunpack.c.h.b16 %v3897
        %v4048 = vunpack.c.l.b16 %v3898
        %v4049 = vunpack.c.h.b16 %v3898
        %v4050 = vunpack.c.l.b16 %v3899
        %v4051 = vunpack.c.h.b16 %v3899
        %v4052 = vunpack.c.l.b16 %v3900
        %v4053 = vunpack.c.h.b16 %v3900
        %v4054 = vunpack.c.l.b16 %v3901
        %v4055 = vunpack.c.h.b16 %v3901
        %v4056 = vunpack.c.l.b16 %v3902
        %v4057 = vunpack.c.h.b16 %v3902
        %v4058 = vunpack.c.l.b16 %v3903
        %v4059 = vunpack.c.h.b16 %v3903
        %v4060 = vunpack.c.l.b16 %v3904
        %v4061 = vunpack.c.h.b16 %v3904
        %v4062 = vunpack.c.l.b16 %v3905
        %v4063 = vunpack.c.h.b16 %v3905
        %v4064 = vunpack.c.l.b16 %v3906
        %v4065 = vunpack.c.h.b16 %v3906
        %v4066 = vunpack.c.l.b16 %v3907
        %v4067 = vunpack.c.h.b16 %v3907
        %v4068 = vunpack.c.l.b16 %v3908
        %v4069 = vunpack.c.h.b16 %v3908
        %v4070 = vunpack.c.l.b16 %v3909
        %v4071 = vunpack.c.h.b16 %v3909
        %v4072 = vunpack.c.l.b16 %v3910
        %v4073 = vunpack.c.h.b16 %v3910
        %v4074 = vunpack.c.l.b16 %v3911
        %v4075 = vunpack.c.h.b16 %v3911
        %v4076 = vunpack.c.l.b16 %v3912
        %v4077 = vunpack.c.h.b16 %v3912
        %v4078 = vunpack.c.l.b16 %v3913
        %v4079 = vunpack.c.h.b16 %v3913
        %v4080 = vunpack.c.l.b16 %v3914
        %v4081 = vunpack.c.h.b16 %v3914
        %v4082 = vunpack.c.l.b16 %v3915
        %v4083 = vunpack.c.h.b16 %v3915
        %v4084 = vunpack.c.l.b16 %v3916
        %v4085 = vunpack.c.h.b16 %v3916
        %v4086 = vunpack.c.l.b16 %v3917
        %v4087 = vunpack.c.h.b16 %v3917
        %v4088 = vunpack.c.l.b16 %v3918
        %v4089 = vunpack.c.h.b16 %v3918
        %v4090 = vunpack.c.l.b16 %v3919
        %v4091 = vunpack.c.h.b16 %v3919
        %v4092 = vunpack.c.l.b16 %v3920
        %v4093 = vunpack.c.h.b16 %v3920
        %v4094 = vunpack.c.l.b16 %v3921
        %v4095 = vunpack.c.h.b16 %v3921
        %v4096 = vunpack.c.l.b16 %v3922
        %v4097 = vunpack.c.h.b16 %v3922
        %v4098 = vunpack.c.l.b16 %v3923
        %v4099 = vunpack.c.h.b16 %v3923
        %v4100 = vunpack.c.l.b16 %v3924
        %v4101 = vunpack.c.h.b16 %v3924
        %v4102 = vunpack.c.l.b16 %v3925
        %v4103 = vunpack.c.h.b16 %v3925
        %v4104 = vunpack.c.l.b16 %v3926
        %v4105 = vunpack.c.h.b16 %v3926
        %v4106 = vunpack.c.l.b16 %v3927
        %v4107 = vunpack.c.h.b16 %v3927
        %v4108 = vunpack.c.l.b16 %v3928
        %v4109 = vunpack.c.h.b16 %v3928
        %v4110 = vunpack.c.l.b16 %v3929
        %v4111 = vunpack.c.h.b16 %v3929
        %v4112 = vunpack.c.l.b16 %v3930
        %v4113 = vunpack.c.h.b16 %v3930
        %v4114 = vunpack.c.l.b16 %v3931
        %v4115 = vunpack.c.h.b16 %v3931
        %v4116 = vunpack.c.l.b16 %v3932
        %v4117 = vunpack.c.h.b16 %v3932
        %v4118 = vunpack.c.l.b16 %v3933
        %v4119 = vunpack.c.h.b16 %v3933
        %v4120 = vunpack.c.l.b16 %v3934
        %v4121 = vunpack.c.h.b16 %v3934
        %v4122 = vunpack.c.l.b16 %v3935
        %v4123 = vunpack.c.h.b16 %v3935
        %v4124 = vunpack.c.l.b16 %v3936
        %v4125 = vunpack.c.h.b16 %v3936
        %v4126 = vunpack.c.l.b16 %v3937
        %v4127 = vunpack.c.h.b16 %v3937
        %v4128 = vunpack.c.l.b16 %v3938
        %v4129 = vunpack.c.h.b16 %v3938
        %v4130 = vunpack.c.l.b16 %v3939
        %v4131 = vunpack.c.h.b16 %v3939
        %v4132 = vunpack.c.l.b16 %v3940
        %v4133 = vunpack.c.h.b16 %v3940
        %v4134 = vunpack.c.l.b16 %v3941
        %v4135 = vunpack.c.h.b16 %v3941
        %v4136 = vpack.c.b16 %v4012, %v4008
        %v4137 = vpack.c.b16 %v4013, %v4009
        %v4138 = vpack.c.b16 %v4014, %v4010
        %v4139 = vpack.c.b16 %v4015, %v4011
        %v4140 = vpack.c.b16 %v4020, %v4016
        %v4141 = vpack.c.b16 %v4021, %v4017
        %v4142 = vpack.c.b16 %v4022, %v4018
        %v4143 = vpack.c.b16 %v4023, %v4019
        %v4144 = vpack.c.b16 %v4028, %v4024
        %v4145 = vpack.c.b16 %v4029, %v4025
        %v4146 = vpack.c.b16 %v4030, %v4026
        %v4147 = vpack.c.b16 %v4031, %v4027
        %v4148 = vpack.c.b16 %v4036, %v4032
        %v4149 = vpack.c.b16 %v4037, %v4033
        %v4150 = vpack.c.b16 %v4038, %v4034
        %v4151 = vpack.c.b16 %v4039, %v4035
        %v4152 = vpack.c.b16 %v4044, %v4040
        %v4153 = vpack.c.b16 %v4045, %v4041
        %v4154 = vpack.c.b16 %v4046, %v4042
        %v4155 = vpack.c.b16 %v4047, %v4043
        %v4156 = vpack.c.b16 %v4052, %v4048
        %v4157 = vpack.c.b16 %v4053, %v4049
        %v4158 = vpack.c.b16 %v4054, %v4050
        %v4159 = vpack.c.b16 %v4055, %v4051
        %v4160 = vpack.c.b16 %v4060, %v4056
        %v4161 = vpack.c.b16 %v4061, %v4057
        %v4162 = vpack.c.b16 %v4062, %v4058
        %v4163 = vpack.c.b16 %v4063, %v4059
        %v4164 = vpack.c.b16 %v4068, %v4064
        %v4165 = vpack.c.b16 %v4069, %v4065
        %v4166 = vpack.c.b16 %v4070, %v4066
        %v4167 = vpack.c.b16 %v4071, %v4067
        %v4168 = vpack.c.b16 %v4076, %v4072
        %v4169 = vpack.c.b16 %v4077, %v4073
        %v4170 = vpack.c.b16 %v4078, %v4074
        %v4171 = vpack.c.b16 %v4079, %v4075
        %v4172 = vpack.c.b16 %v4084, %v4080
        %v4173 = vpack.c.b16 %v4085, %v4081
        %v4174 = vpack.c.b16 %v4086, %v4082
        %v4175 = vpack.c.b16 %v4087, %v4083
        %v4176 = vpack.c.b16 %v4092, %v4088
        %v4177 = vpack.c.b16 %v4093, %v4089
        %v4178 = vpack.c.b16 %v4094, %v4090
        %v4179 = vpack.c.b16 %v4095, %v4091
        %v4180 = vpack.c.b16 %v4100, %v4096
        %v4181 = vpack.c.b16 %v4101, %v4097
        %v4182 = vpack.c.b16 %v4102, %v4098
        %v4183 = vpack.c.b16 %v4103, %v4099
        %v4184 = vpack.c.b16 %v4108, %v4104
        %v4185 = vpack.c.b16 %v4109, %v4105
        %v4186 = vpack.c.b16 %v4110, %v4106
        %v4187 = vpack.c.b16 %v4111, %v4107
        %v4188 = vpack.c.b16 %v4116, %v4112
        %v4189 = vpack.c.b16 %v4117, %v4113
        %v4190 = vpack.c.b16 %v4118, %v4114
        %v4191 = vpack.c.b16 %v4119, %v4115
        %v4192 = vpack.c.b16 %v4124, %v4120
        %v4193 = vpack.c.b16 %v4125, %v4121
        %v4194 = vpack.c.b16 %v4126, %v4122
        %v4195 = vpack.c.b16 %v4127, %v4123
        %v4196 = vpack.c.b16 %v4132, %v4128
        %v4197 = vpack.c.b16 %v4133, %v4129
        %v4198 = vpack.c.b16 %v4134, %v4130
        %v4199 = vpack.c.b16 %v4135, %v4131
        %4264 = vmatpush.bf16.msra.mxu0 %v4164
        %4265 = vmatpush.bf16.msra.mxu0 %v4160
        %4266 = vmatpush.bf16.msra.mxu0 %v4156
        %4267 = vmatpush.bf16.msra.mxu0 %v4152
        %4268 = vmatpush.bf16.msra.mxu0 %v4148
        %4269 = vmatpush.bf16.msra.mxu0 %v4144
        %4270 = vmatpush.bf16.msra.mxu0 %v4140
        %4271 = vmatpush.bf16.msra.mxu0 %v4136
        %4272 = vmatmul.bf16.gmra.mxu0 %v3942
        %v4273 = vpop.f32.mrf.mxu0
        %v4274 = vadd.f32 0.0, %v4273
        %v4275 = vpop.f32.mrf.mxu0
        %4276 = vdwg.mxu0
        %4277 = vmatpush.bf16.msra.mxu0 %v4196
        %4278 = vmatpush.bf16.msra.mxu0 %v4192
        %4279 = vmatpush.bf16.msra.mxu0 %v4188
        %4280 = vmatpush.bf16.msra.mxu0 %v4184
        %4281 = vmatpush.bf16.msra.mxu0 %v4180
        %4282 = vmatpush.bf16.msra.mxu0 %v4176
        %4283 = vmatpush.bf16.msra.mxu0 %v4172
        %4284 = vmatpush.bf16.msra.mxu0 %v4168
        %4285 = vmatmul.bf16.gmra.mxu0 %v3943
        %v4286 = vpop.f32.mrf.mxu0
        %v4287 = vadd.f32 %v4274, %v4286
        %v4288 = vpop.f32.mrf.mxu0
        %4289 = vdwg.mxu0
        %4290 = vmatpush.bf16.msra.mxu0 %v4165
        %4291 = vmatpush.bf16.msra.mxu0 %v4161
        %4292 = vmatpush.bf16.msra.mxu0 %v4157
        %4293 = vmatpush.bf16.msra.mxu0 %v4153
        %4294 = vmatpush.bf16.msra.mxu0 %v4149
        %4295 = vmatpush.bf16.msra.mxu0 %v4145
        %4296 = vmatpush.bf16.msra.mxu0 %v4141
        %4297 = vmatpush.bf16.msra.mxu0 %v4137
        %4298 = vmatmul.bf16.gmra.mxu0 %v3942
        %v4299 = vpop.f32.mrf.mxu0
        %v4300 = vadd.f32 0.0, %v4299
        %v4301 = vpop.f32.mrf.mxu0
        %4302 = vdwg.mxu0
        %4303 = vmatpush.bf16.msra.mxu0 %v4197
        %4304 = vmatpush.bf16.msra.mxu0 %v4193
        %4305 = vmatpush.bf16.msra.mxu0 %v4189
        %4306 = vmatpush.bf16.msra.mxu0 %v4185
        %4307 = vmatpush.bf16.msra.mxu0 %v4181
        %4308 = vmatpush.bf16.msra.mxu0 %v4177
        %4309 = vmatpush.bf16.msra.mxu0 %v4173
        %4310 = vmatpush.bf16.msra.mxu0 %v4169
        %4311 = vmatmul.bf16.gmra.mxu0 %v3943
        %v4312 = vpop.f32.mrf.mxu0
        %v4313 = vadd.f32 %v4300, %v4312
        %v4314 = vpop.f32.mrf.mxu0
        %4315 = vdwg.mxu0
        %4316 = vmatpush.bf16.msra.mxu0 %v4166
        %4317 = vmatpush.bf16.msra.mxu0 %v4162
        %4318 = vmatpush.bf16.msra.mxu0 %v4158
        %4319 = vmatpush.bf16.msra.mxu0 %v4154
        %4320 = vmatpush.bf16.msra.mxu0 %v4150
        %4321 = vmatpush.bf16.msra.mxu0 %v4146
        %4322 = vmatpush.bf16.msra.mxu0 %v4142
        %4323 = vmatpush.bf16.msra.mxu0 %v4138
        %4324 = vmatmul.bf16.gmra.mxu0 %v3942
        %v4325 = vpop.f32.mrf.mxu0
        %v4326 = vadd.f32 0.0, %v4325
        %v4327 = vpop.f32.mrf.mxu0
        %4328 = vdwg.mxu0
        %4329 = vmatpush.bf16.msra.mxu0 %v4198
        %4330 = vmatpush.bf16.msra.mxu0 %v4194
        %4331 = vmatpush.bf16.msra.mxu0 %v4190
        %4332 = vmatpush.bf16.msra.mxu0 %v4186
        %4333 = vmatpush.bf16.msra.mxu0 %v4182
        %4334 = vmatpush.bf16.msra.mxu0 %v4178
        %4335 = vmatpush.bf16.msra.mxu0 %v4174
        %4336 = vmatpush.bf16.msra.mxu0 %v4170
        %4337 = vmatmul.bf16.gmra.mxu0 %v3943
        %v4338 = vpop.f32.mrf.mxu0
        %v4339 = vadd.f32 %v4326, %v4338
        %v4340 = vpop.f32.mrf.mxu0
        %4341 = vdwg.mxu0
        %4342 = vmatpush.bf16.msra.mxu0 %v4167
        %4343 = vmatpush.bf16.msra.mxu0 %v4163
        %4344 = vmatpush.bf16.msra.mxu0 %v4159
        %4345 = vmatpush.bf16.msra.mxu0 %v4155
        %4346 = vmatpush.bf16.msra.mxu0 %v4151
        %4347 = vmatpush.bf16.msra.mxu0 %v4147
        %4348 = vmatpush.bf16.msra.mxu0 %v4143
        %4349 = vmatpush.bf16.msra.mxu0 %v4139
        %4350 = vmatmul.bf16.gmra.mxu0 %v3942
        %v4351 = vpop.f32.mrf.mxu0
        %v4352 = vadd.f32 0.0, %v4351
        %v4353 = vpop.f32.mrf.mxu0
        %4354 = vdwg.mxu0
        %4355 = vmatpush.bf16.msra.mxu0 %v4199
        %4356 = vmatpush.bf16.msra.mxu0 %v4195
        %4357 = vmatpush.bf16.msra.mxu0 %v4191
        %4358 = vmatpush.bf16.msra.mxu0 %v4187
        %4359 = vmatpush.bf16.msra.mxu0 %v4183
        %4360 = vmatpush.bf16.msra.mxu0 %v4179
        %4361 = vmatpush.bf16.msra.mxu0 %v4175
        %4362 = vmatpush.bf16.msra.mxu0 %v4171
        %4363 = vmatmul.bf16.gmra.mxu0 %v3943
        %v4364 = vpop.f32.mrf.mxu0
        %v4365 = vadd.f32 %v4352, %v4364
        %v4366 = vpop.f32.mrf.mxu0
        %4367 = vdwg.mxu0
        %v4368 = vadd.f32 %v3864, %v4287
        %v4369 = vadd.f32 %v3865, %v4313
        %v4370 = vadd.f32 %v3866, %v4339
        %v4371 = vadd.f32 %v3867, %v4365
        %v4372 = vrot.slane %v1349, 6
        %v4373 = vrot.slane %v1350, 6
        %v4376 = vrot.slane %v1355, 5
        %v4377 = vrot.slane %v1356, 5
        %v4380 = vsel %vm1365, %v4372, %v4376
        %v4381 = vsel %vm1365, %v4373, %v4377
        %v4382 = vld [vmem:[%s475 + $0xc00] sm:$0xff]
        %v4383 = vld [vmem:[%s475 + $0xc08] sm:$0xff]
        %v4384 = vld [vmem:[%s475 + $0xc10] sm:$0xff]
        %v4385 = vld [vmem:[%s475 + $0xc18] sm:$0xff]
        %v4386 = vld [vmem:[%s475 + $0xc20] sm:$0xff]
        %v4387 = vld [vmem:[%s475 + $0xc28] sm:$0xff]
        %v4388 = vld [vmem:[%s475 + $0xc30] sm:$0xff]
        %v4389 = vld [vmem:[%s475 + $0xc38] sm:$0xff]
        %v4390 = vld [vmem:[%s475 + $0xc40] sm:$0xff]
        %v4391 = vld [vmem:[%s475 + $0xc48] sm:$0xff]
        %v4392 = vld [vmem:[%s475 + $0xc50] sm:$0xff]
        %v4393 = vld [vmem:[%s475 + $0xc58] sm:$0xff]
        %v4394 = vld [vmem:[%s475 + $0xc60] sm:$0xff]
        %v4395 = vld [vmem:[%s475 + $0xc68] sm:$0xff]
        %v4396 = vld [vmem:[%s475 + $0xc70] sm:$0xff]
        %v4397 = vld [vmem:[%s475 + $0xc78] sm:$0xff]
        %v4398 = vld [vmem:[%s475 + $0xc80] sm:$0xff]
        %v4399 = vld [vmem:[%s475 + $0xc88] sm:$0xff]
        %v4400 = vld [vmem:[%s475 + $0xc90] sm:$0xff]
        %v4401 = vld [vmem:[%s475 + $0xc98] sm:$0xff]
        %v4402 = vld [vmem:[%s475 + $0xca0] sm:$0xff]
        %v4403 = vld [vmem:[%s475 + $0xca8] sm:$0xff]
        %v4404 = vld [vmem:[%s475 + $0xcb0] sm:$0xff]
        %v4405 = vld [vmem:[%s475 + $0xcb8] sm:$0xff]
        %v4406 = vld [vmem:[%s475 + $0xcc0] sm:$0xff]
        %v4407 = vld [vmem:[%s475 + $0xcc8] sm:$0xff]
        %v4408 = vld [vmem:[%s475 + $0xcd0] sm:$0xff]
        %v4409 = vld [vmem:[%s475 + $0xcd8] sm:$0xff]
        %v4410 = vld [vmem:[%s475 + $0xce0] sm:$0xff]
        %v4411 = vld [vmem:[%s475 + $0xce8] sm:$0xff]
        %v4412 = vld [vmem:[%s475 + $0xcf0] sm:$0xff]
        %v4413 = vld [vmem:[%s475 + $0xcf8] sm:$0xff]
        %v4414 = vld [vmem:[%s475 + $0xd00] sm:$0xff]
        %v4415 = vld [vmem:[%s475 + $0xd08] sm:$0xff]
        %v4416 = vld [vmem:[%s475 + $0xd10] sm:$0xff]
        %v4417 = vld [vmem:[%s475 + $0xd18] sm:$0xff]
        %v4418 = vld [vmem:[%s475 + $0xd20] sm:$0xff]
        %v4419 = vld [vmem:[%s475 + $0xd28] sm:$0xff]
        %v4420 = vld [vmem:[%s475 + $0xd30] sm:$0xff]
        %v4421 = vld [vmem:[%s475 + $0xd38] sm:$0xff]
        %v4422 = vld [vmem:[%s475 + $0xd40] sm:$0xff]
        %v4423 = vld [vmem:[%s475 + $0xd48] sm:$0xff]
        %v4424 = vld [vmem:[%s475 + $0xd50] sm:$0xff]
        %v4425 = vld [vmem:[%s475 + $0xd58] sm:$0xff]
        %v4426 = vld [vmem:[%s475 + $0xd60] sm:$0xff]
        %v4427 = vld [vmem:[%s475 + $0xd68] sm:$0xff]
        %v4428 = vld [vmem:[%s475 + $0xd70] sm:$0xff]
        %v4429 = vld [vmem:[%s475 + $0xd78] sm:$0xff]
        %v4430 = vld [vmem:[%s475 + $0xd80] sm:$0xff]
        %v4431 = vld [vmem:[%s475 + $0xd88] sm:$0xff]
        %v4432 = vld [vmem:[%s475 + $0xd90] sm:$0xff]
        %v4433 = vld [vmem:[%s475 + $0xd98] sm:$0xff]
        %v4434 = vld [vmem:[%s475 + $0xda0] sm:$0xff]
        %v4435 = vld [vmem:[%s475 + $0xda8] sm:$0xff]
        %v4436 = vld [vmem:[%s475 + $0xdb0] sm:$0xff]
        %v4437 = vld [vmem:[%s475 + $0xdb8] sm:$0xff]
        %v4438 = vld [vmem:[%s475 + $0xdc0] sm:$0xff]
        %v4439 = vld [vmem:[%s475 + $0xdc8] sm:$0xff]
        %v4440 = vld [vmem:[%s475 + $0xdd0] sm:$0xff]
        %v4441 = vld [vmem:[%s475 + $0xdd8] sm:$0xff]
        %v4442 = vld [vmem:[%s475 + $0xde0] sm:$0xff]
        %v4443 = vld [vmem:[%s475 + $0xde8] sm:$0xff]
        %v4444 = vld [vmem:[%s475 + $0xdf0] sm:$0xff]
        %v4445 = vld [vmem:[%s475 + $0xdf8] sm:$0xff]
        %v4446 = vpack.c.bf16 %v4380, %v4380
        %v4447 = vpack.c.bf16 %v4381, %v4381
        %v4512 = vunpack.c.l.b16 %v4382
        %v4513 = vunpack.c.h.b16 %v4382
        %v4514 = vunpack.c.l.b16 %v4383
        %v4515 = vunpack.c.h.b16 %v4383
        %v4516 = vunpack.c.l.b16 %v4384
        %v4517 = vunpack.c.h.b16 %v4384
        %v4518 = vunpack.c.l.b16 %v4385
        %v4519 = vunpack.c.h.b16 %v4385
        %v4520 = vunpack.c.l.b16 %v4386
        %v4521 = vunpack.c.h.b16 %v4386
        %v4522 = vunpack.c.l.b16 %v4387
        %v4523 = vunpack.c.h.b16 %v4387
        %v4524 = vunpack.c.l.b16 %v4388
        %v4525 = vunpack.c.h.b16 %v4388
        %v4526 = vunpack.c.l.b16 %v4389
        %v4527 = vunpack.c.h.b16 %v4389
        %v4528 = vunpack.c.l.b16 %v4390
        %v4529 = vunpack.c.h.b16 %v4390
        %v4530 = vunpack.c.l.b16 %v4391
        %v4531 = vunpack.c.h.b16 %v4391
        %v4532 = vunpack.c.l.b16 %v4392
        %v4533 = vunpack.c.h.b16 %v4392
        %v4534 = vunpack.c.l.b16 %v4393
        %v4535 = vunpack.c.h.b16 %v4393
        %v4536 = vunpack.c.l.b16 %v4394
        %v4537 = vunpack.c.h.b16 %v4394
        %v4538 = vunpack.c.l.b16 %v4395
        %v4539 = vunpack.c.h.b16 %v4395
        %v4540 = vunpack.c.l.b16 %v4396
        %v4541 = vunpack.c.h.b16 %v4396
        %v4542 = vunpack.c.l.b16 %v4397
        %v4543 = vunpack.c.h.b16 %v4397
        %v4544 = vunpack.c.l.b16 %v4398
        %v4545 = vunpack.c.h.b16 %v4398
        %v4546 = vunpack.c.l.b16 %v4399
        %v4547 = vunpack.c.h.b16 %v4399
        %v4548 = vunpack.c.l.b16 %v4400
        %v4549 = vunpack.c.h.b16 %v4400
        %v4550 = vunpack.c.l.b16 %v4401
        %v4551 = vunpack.c.h.b16 %v4401
        %v4552 = vunpack.c.l.b16 %v4402
        %v4553 = vunpack.c.h.b16 %v4402
        %v4554 = vunpack.c.l.b16 %v4403
        %v4555 = vunpack.c.h.b16 %v4403
        %v4556 = vunpack.c.l.b16 %v4404
        %v4557 = vunpack.c.h.b16 %v4404
        %v4558 = vunpack.c.l.b16 %v4405
        %v4559 = vunpack.c.h.b16 %v4405
        %v4560 = vunpack.c.l.b16 %v4406
        %v4561 = vunpack.c.h.b16 %v4406
        %v4562 = vunpack.c.l.b16 %v4407
        %v4563 = vunpack.c.h.b16 %v4407
        %v4564 = vunpack.c.l.b16 %v4408
        %v4565 = vunpack.c.h.b16 %v4408
        %v4566 = vunpack.c.l.b16 %v4409
        %v4567 = vunpack.c.h.b16 %v4409
        %v4568 = vunpack.c.l.b16 %v4410
        %v4569 = vunpack.c.h.b16 %v4410
        %v4570 = vunpack.c.l.b16 %v4411
        %v4571 = vunpack.c.h.b16 %v4411
        %v4572 = vunpack.c.l.b16 %v4412
        %v4573 = vunpack.c.h.b16 %v4412
        %v4574 = vunpack.c.l.b16 %v4413
        %v4575 = vunpack.c.h.b16 %v4413
        %v4576 = vunpack.c.l.b16 %v4414
        %v4577 = vunpack.c.h.b16 %v4414
        %v4578 = vunpack.c.l.b16 %v4415
        %v4579 = vunpack.c.h.b16 %v4415
        %v4580 = vunpack.c.l.b16 %v4416
        %v4581 = vunpack.c.h.b16 %v4416
        %v4582 = vunpack.c.l.b16 %v4417
        %v4583 = vunpack.c.h.b16 %v4417
        %v4584 = vunpack.c.l.b16 %v4418
        %v4585 = vunpack.c.h.b16 %v4418
        %v4586 = vunpack.c.l.b16 %v4419
        %v4587 = vunpack.c.h.b16 %v4419
        %v4588 = vunpack.c.l.b16 %v4420
        %v4589 = vunpack.c.h.b16 %v4420
        %v4590 = vunpack.c.l.b16 %v4421
        %v4591 = vunpack.c.h.b16 %v4421
        %v4592 = vunpack.c.l.b16 %v4422
        %v4593 = vunpack.c.h.b16 %v4422
        %v4594 = vunpack.c.l.b16 %v4423
        %v4595 = vunpack.c.h.b16 %v4423
        %v4596 = vunpack.c.l.b16 %v4424
        %v4597 = vunpack.c.h.b16 %v4424
        %v4598 = vunpack.c.l.b16 %v4425
        %v4599 = vunpack.c.h.b16 %v4425
        %v4600 = vunpack.c.l.b16 %v4426
        %v4601 = vunpack.c.h.b16 %v4426
        %v4602 = vunpack.c.l.b16 %v4427
        %v4603 = vunpack.c.h.b16 %v4427
        %v4604 = vunpack.c.l.b16 %v4428
        %v4605 = vunpack.c.h.b16 %v4428
        %v4606 = vunpack.c.l.b16 %v4429
        %v4607 = vunpack.c.h.b16 %v4429
        %v4608 = vunpack.c.l.b16 %v4430
        %v4609 = vunpack.c.h.b16 %v4430
        %v4610 = vunpack.c.l.b16 %v4431
        %v4611 = vunpack.c.h.b16 %v4431
        %v4612 = vunpack.c.l.b16 %v4432
        %v4613 = vunpack.c.h.b16 %v4432
        %v4614 = vunpack.c.l.b16 %v4433
        %v4615 = vunpack.c.h.b16 %v4433
        %v4616 = vunpack.c.l.b16 %v4434
        %v4617 = vunpack.c.h.b16 %v4434
        %v4618 = vunpack.c.l.b16 %v4435
        %v4619 = vunpack.c.h.b16 %v4435
        %v4620 = vunpack.c.l.b16 %v4436
        %v4621 = vunpack.c.h.b16 %v4436
        %v4622 = vunpack.c.l.b16 %v4437
        %v4623 = vunpack.c.h.b16 %v4437
        %v4624 = vunpack.c.l.b16 %v4438
        %v4625 = vunpack.c.h.b16 %v4438
        %v4626 = vunpack.c.l.b16 %v4439
        %v4627 = vunpack.c.h.b16 %v4439
        %v4628 = vunpack.c.l.b16 %v4440
        %v4629 = vunpack.c.h.b16 %v4440
        %v4630 = vunpack.c.l.b16 %v4441
        %v4631 = vunpack.c.h.b16 %v4441
        %v4632 = vunpack.c.l.b16 %v4442
        %v4633 = vunpack.c.h.b16 %v4442
        %v4634 = vunpack.c.l.b16 %v4443
        %v4635 = vunpack.c.h.b16 %v4443
        %v4636 = vunpack.c.l.b16 %v4444
        %v4637 = vunpack.c.h.b16 %v4444
        %v4638 = vunpack.c.l.b16 %v4445
        %v4639 = vunpack.c.h.b16 %v4445
        %v4640 = vpack.c.b16 %v4516, %v4512
        %v4641 = vpack.c.b16 %v4517, %v4513
        %v4642 = vpack.c.b16 %v4518, %v4514
        %v4643 = vpack.c.b16 %v4519, %v4515
        %v4644 = vpack.c.b16 %v4524, %v4520
        %v4645 = vpack.c.b16 %v4525, %v4521
        %v4646 = vpack.c.b16 %v4526, %v4522
        %v4647 = vpack.c.b16 %v4527, %v4523
        %v4648 = vpack.c.b16 %v4532, %v4528
        %v4649 = vpack.c.b16 %v4533, %v4529
        %v4650 = vpack.c.b16 %v4534, %v4530
        %v4651 = vpack.c.b16 %v4535, %v4531
        %v4652 = vpack.c.b16 %v4540, %v4536
        %v4653 = vpack.c.b16 %v4541, %v4537
        %v4654 = vpack.c.b16 %v4542, %v4538
        %v4655 = vpack.c.b16 %v4543, %v4539
        %v4656 = vpack.c.b16 %v4548, %v4544
        %v4657 = vpack.c.b16 %v4549, %v4545
        %v4658 = vpack.c.b16 %v4550, %v4546
        %v4659 = vpack.c.b16 %v4551, %v4547
        %v4660 = vpack.c.b16 %v4556, %v4552
        %v4661 = vpack.c.b16 %v4557, %v4553
        %v4662 = vpack.c.b16 %v4558, %v4554
        %v4663 = vpack.c.b16 %v4559, %v4555
        %v4664 = vpack.c.b16 %v4564, %v4560
        %v4665 = vpack.c.b16 %v4565, %v4561
        %v4666 = vpack.c.b16 %v4566, %v4562
        %v4667 = vpack.c.b16 %v4567, %v4563
        %v4668 = vpack.c.b16 %v4572, %v4568
        %v4669 = vpack.c.b16 %v4573, %v4569
        %v4670 = vpack.c.b16 %v4574, %v4570
        %v4671 = vpack.c.b16 %v4575, %v4571
        %v4672 = vpack.c.b16 %v4580, %v4576
        %v4673 = vpack.c.b16 %v4581, %v4577
        %v4674 = vpack.c.b16 %v4582, %v4578
        %v4675 = vpack.c.b16 %v4583, %v4579
        %v4676 = vpack.c.b16 %v4588, %v4584
        %v4677 = vpack.c.b16 %v4589, %v4585
        %v4678 = vpack.c.b16 %v4590, %v4586
        %v4679 = vpack.c.b16 %v4591, %v4587
        %v4680 = vpack.c.b16 %v4596, %v4592
        %v4681 = vpack.c.b16 %v4597, %v4593
        %v4682 = vpack.c.b16 %v4598, %v4594
        %v4683 = vpack.c.b16 %v4599, %v4595
        %v4684 = vpack.c.b16 %v4604, %v4600
        %v4685 = vpack.c.b16 %v4605, %v4601
        %v4686 = vpack.c.b16 %v4606, %v4602
        %v4687 = vpack.c.b16 %v4607, %v4603
        %v4688 = vpack.c.b16 %v4612, %v4608
        %v4689 = vpack.c.b16 %v4613, %v4609
        %v4690 = vpack.c.b16 %v4614, %v4610
        %v4691 = vpack.c.b16 %v4615, %v4611
        %v4692 = vpack.c.b16 %v4620, %v4616
        %v4693 = vpack.c.b16 %v4621, %v4617
        %v4694 = vpack.c.b16 %v4622, %v4618
        %v4695 = vpack.c.b16 %v4623, %v4619
        %v4696 = vpack.c.b16 %v4628, %v4624
        %v4697 = vpack.c.b16 %v4629, %v4625
        %v4698 = vpack.c.b16 %v4630, %v4626
        %v4699 = vpack.c.b16 %v4631, %v4627
        %v4700 = vpack.c.b16 %v4636, %v4632
        %v4701 = vpack.c.b16 %v4637, %v4633
        %v4702 = vpack.c.b16 %v4638, %v4634
        %v4703 = vpack.c.b16 %v4639, %v4635
        %4768 = vmatpush.bf16.msra.mxu0 %v4668
        %4769 = vmatpush.bf16.msra.mxu0 %v4664
        %4770 = vmatpush.bf16.msra.mxu0 %v4660
        %4771 = vmatpush.bf16.msra.mxu0 %v4656
        %4772 = vmatpush.bf16.msra.mxu0 %v4652
        %4773 = vmatpush.bf16.msra.mxu0 %v4648
        %4774 = vmatpush.bf16.msra.mxu0 %v4644
        %4775 = vmatpush.bf16.msra.mxu0 %v4640
        %4776 = vmatmul.bf16.gmra.mxu0 %v4446
        %v4777 = vpop.f32.mrf.mxu0
        %v4778 = vadd.f32 0.0, %v4777
        %v4779 = vpop.f32.mrf.mxu0
        %4780 = vdwg.mxu0
        %4781 = vmatpush.bf16.msra.mxu0 %v4700
        %4782 = vmatpush.bf16.msra.mxu0 %v4696
        %4783 = vmatpush.bf16.msra.mxu0 %v4692
        %4784 = vmatpush.bf16.msra.mxu0 %v4688
        %4785 = vmatpush.bf16.msra.mxu0 %v4684
        %4786 = vmatpush.bf16.msra.mxu0 %v4680
        %4787 = vmatpush.bf16.msra.mxu0 %v4676
        %4788 = vmatpush.bf16.msra.mxu0 %v4672
        %4789 = vmatmul.bf16.gmra.mxu0 %v4447
        %v4790 = vpop.f32.mrf.mxu0
        %v4791 = vadd.f32 %v4778, %v4790
        %v4792 = vpop.f32.mrf.mxu0
        %4793 = vdwg.mxu0
        %4794 = vmatpush.bf16.msra.mxu0 %v4669
        %4795 = vmatpush.bf16.msra.mxu0 %v4665
        %4796 = vmatpush.bf16.msra.mxu0 %v4661
        %4797 = vmatpush.bf16.msra.mxu0 %v4657
        %4798 = vmatpush.bf16.msra.mxu0 %v4653
        %4799 = vmatpush.bf16.msra.mxu0 %v4649
        %4800 = vmatpush.bf16.msra.mxu0 %v4645
        %4801 = vmatpush.bf16.msra.mxu0 %v4641
        %4802 = vmatmul.bf16.gmra.mxu0 %v4446
        %v4803 = vpop.f32.mrf.mxu0
        %v4804 = vadd.f32 0.0, %v4803
        %v4805 = vpop.f32.mrf.mxu0
        %4806 = vdwg.mxu0
        %4807 = vmatpush.bf16.msra.mxu0 %v4701
        %4808 = vmatpush.bf16.msra.mxu0 %v4697
        %4809 = vmatpush.bf16.msra.mxu0 %v4693
        %4810 = vmatpush.bf16.msra.mxu0 %v4689
        %4811 = vmatpush.bf16.msra.mxu0 %v4685
        %4812 = vmatpush.bf16.msra.mxu0 %v4681
        %4813 = vmatpush.bf16.msra.mxu0 %v4677
        %4814 = vmatpush.bf16.msra.mxu0 %v4673
        %4815 = vmatmul.bf16.gmra.mxu0 %v4447
        %v4816 = vpop.f32.mrf.mxu0
        %v4817 = vadd.f32 %v4804, %v4816
        %v4818 = vpop.f32.mrf.mxu0
        %4819 = vdwg.mxu0
        %4820 = vmatpush.bf16.msra.mxu0 %v4670
        %4821 = vmatpush.bf16.msra.mxu0 %v4666
        %4822 = vmatpush.bf16.msra.mxu0 %v4662
        %4823 = vmatpush.bf16.msra.mxu0 %v4658
        %4824 = vmatpush.bf16.msra.mxu0 %v4654
        %4825 = vmatpush.bf16.msra.mxu0 %v4650
        %4826 = vmatpush.bf16.msra.mxu0 %v4646
        %4827 = vmatpush.bf16.msra.mxu0 %v4642
        %4828 = vmatmul.bf16.gmra.mxu0 %v4446
        %v4829 = vpop.f32.mrf.mxu0
        %v4830 = vadd.f32 0.0, %v4829
        %v4831 = vpop.f32.mrf.mxu0
        %4832 = vdwg.mxu0
        %4833 = vmatpush.bf16.msra.mxu0 %v4702
        %4834 = vmatpush.bf16.msra.mxu0 %v4698
        %4835 = vmatpush.bf16.msra.mxu0 %v4694
        %4836 = vmatpush.bf16.msra.mxu0 %v4690
        %4837 = vmatpush.bf16.msra.mxu0 %v4686
        %4838 = vmatpush.bf16.msra.mxu0 %v4682
        %4839 = vmatpush.bf16.msra.mxu0 %v4678
        %4840 = vmatpush.bf16.msra.mxu0 %v4674
        %4841 = vmatmul.bf16.gmra.mxu0 %v4447
        %v4842 = vpop.f32.mrf.mxu0
        %v4843 = vadd.f32 %v4830, %v4842
        %v4844 = vpop.f32.mrf.mxu0
        %4845 = vdwg.mxu0
        %4846 = vmatpush.bf16.msra.mxu0 %v4671
        %4847 = vmatpush.bf16.msra.mxu0 %v4667
        %4848 = vmatpush.bf16.msra.mxu0 %v4663
        %4849 = vmatpush.bf16.msra.mxu0 %v4659
        %4850 = vmatpush.bf16.msra.mxu0 %v4655
        %4851 = vmatpush.bf16.msra.mxu0 %v4651
        %4852 = vmatpush.bf16.msra.mxu0 %v4647
        %4853 = vmatpush.bf16.msra.mxu0 %v4643
        %4854 = vmatmul.bf16.gmra.mxu0 %v4446
        %v4855 = vpop.f32.mrf.mxu0
        %v4856 = vadd.f32 0.0, %v4855
        %v4857 = vpop.f32.mrf.mxu0
        %4858 = vdwg.mxu0
        %4859 = vmatpush.bf16.msra.mxu0 %v4703
        %4860 = vmatpush.bf16.msra.mxu0 %v4699
        %4861 = vmatpush.bf16.msra.mxu0 %v4695
        %4862 = vmatpush.bf16.msra.mxu0 %v4691
        %4863 = vmatpush.bf16.msra.mxu0 %v4687
        %4864 = vmatpush.bf16.msra.mxu0 %v4683
        %4865 = vmatpush.bf16.msra.mxu0 %v4679
        %4866 = vmatpush.bf16.msra.mxu0 %v4675
        %4867 = vmatmul.bf16.gmra.mxu0 %v4447
        %v4868 = vpop.f32.mrf.mxu0
        %v4869 = vadd.f32 %v4856, %v4868
        %v4870 = vpop.f32.mrf.mxu0
        %4871 = vdwg.mxu0
        %v4872 = vadd.f32 %v4368, %v4791
        %v4873 = vadd.f32 %v4369, %v4817
        %v4874 = vadd.f32 %v4370, %v4843
        %v4875 = vadd.f32 %v4371, %v4869
        %v4876 = vrot.slane %v1349, 7
        %v4877 = vrot.slane %v1350, 7
        %v4880 = vrot.slane %v1355, 6
        %v4881 = vrot.slane %v1356, 6
        %v4884 = vsel %vm1365, %v4876, %v4880
        %v4885 = vsel %vm1365, %v4877, %v4881
        %v4886 = vld [vmem:[%s475 + $0xe00] sm:$0xff]
        %v4887 = vld [vmem:[%s475 + $0xe08] sm:$0xff]
        %v4888 = vld [vmem:[%s475 + $0xe10] sm:$0xff]
        %v4889 = vld [vmem:[%s475 + $0xe18] sm:$0xff]
        %v4890 = vld [vmem:[%s475 + $0xe20] sm:$0xff]
        %v4891 = vld [vmem:[%s475 + $0xe28] sm:$0xff]
        %v4892 = vld [vmem:[%s475 + $0xe30] sm:$0xff]
        %v4893 = vld [vmem:[%s475 + $0xe38] sm:$0xff]
        %v4894 = vld [vmem:[%s475 + $0xe40] sm:$0xff]
        %v4895 = vld [vmem:[%s475 + $0xe48] sm:$0xff]
        %v4896 = vld [vmem:[%s475 + $0xe50] sm:$0xff]
        %v4897 = vld [vmem:[%s475 + $0xe58] sm:$0xff]
        %v4898 = vld [vmem:[%s475 + $0xe60] sm:$0xff]
        %v4899 = vld [vmem:[%s475 + $0xe68] sm:$0xff]
        %v4900 = vld [vmem:[%s475 + $0xe70] sm:$0xff]
        %v4901 = vld [vmem:[%s475 + $0xe78] sm:$0xff]
        %v4902 = vld [vmem:[%s475 + $0xe80] sm:$0xff]
        %v4903 = vld [vmem:[%s475 + $0xe88] sm:$0xff]
        %v4904 = vld [vmem:[%s475 + $0xe90] sm:$0xff]
        %v4905 = vld [vmem:[%s475 + $0xe98] sm:$0xff]
        %v4906 = vld [vmem:[%s475 + $0xea0] sm:$0xff]
        %v4907 = vld [vmem:[%s475 + $0xea8] sm:$0xff]
        %v4908 = vld [vmem:[%s475 + $0xeb0] sm:$0xff]
        %v4909 = vld [vmem:[%s475 + $0xeb8] sm:$0xff]
        %v4910 = vld [vmem:[%s475 + $0xec0] sm:$0xff]
        %v4911 = vld [vmem:[%s475 + $0xec8] sm:$0xff]
        %v4912 = vld [vmem:[%s475 + $0xed0] sm:$0xff]
        %v4913 = vld [vmem:[%s475 + $0xed8] sm:$0xff]
        %v4914 = vld [vmem:[%s475 + $0xee0] sm:$0xff]
        %v4915 = vld [vmem:[%s475 + $0xee8] sm:$0xff]
        %v4916 = vld [vmem:[%s475 + $0xef0] sm:$0xff]
        %v4917 = vld [vmem:[%s475 + $0xef8] sm:$0xff]
        %v4918 = vld [vmem:[%s475 + $0xf00] sm:$0xff]
        %v4919 = vld [vmem:[%s475 + $0xf08] sm:$0xff]
        %v4920 = vld [vmem:[%s475 + $0xf10] sm:$0xff]
        %v4921 = vld [vmem:[%s475 + $0xf18] sm:$0xff]
        %v4922 = vld [vmem:[%s475 + $0xf20] sm:$0xff]
        %v4923 = vld [vmem:[%s475 + $0xf28] sm:$0xff]
        %v4924 = vld [vmem:[%s475 + $0xf30] sm:$0xff]
        %v4925 = vld [vmem:[%s475 + $0xf38] sm:$0xff]
        %v4926 = vld [vmem:[%s475 + $0xf40] sm:$0xff]
        %v4927 = vld [vmem:[%s475 + $0xf48] sm:$0xff]
        %v4928 = vld [vmem:[%s475 + $0xf50] sm:$0xff]
        %v4929 = vld [vmem:[%s475 + $0xf58] sm:$0xff]
        %v4930 = vld [vmem:[%s475 + $0xf60] sm:$0xff]
        %v4931 = vld [vmem:[%s475 + $0xf68] sm:$0xff]
        %v4932 = vld [vmem:[%s475 + $0xf70] sm:$0xff]
        %v4933 = vld [vmem:[%s475 + $0xf78] sm:$0xff]
        %v4934 = vld [vmem:[%s475 + $0xf80] sm:$0xff]
        %v4935 = vld [vmem:[%s475 + $0xf88] sm:$0xff]
        %v4936 = vld [vmem:[%s475 + $0xf90] sm:$0xff]
        %v4937 = vld [vmem:[%s475 + $0xf98] sm:$0xff]
        %v4938 = vld [vmem:[%s475 + $0xfa0] sm:$0xff]
        %v4939 = vld [vmem:[%s475 + $0xfa8] sm:$0xff]
        %v4940 = vld [vmem:[%s475 + $0xfb0] sm:$0xff]
        %v4941 = vld [vmem:[%s475 + $0xfb8] sm:$0xff]
        %v4942 = vld [vmem:[%s475 + $0xfc0] sm:$0xff]
        %v4943 = vld [vmem:[%s475 + $0xfc8] sm:$0xff]
        %v4944 = vld [vmem:[%s475 + $0xfd0] sm:$0xff]
        %v4945 = vld [vmem:[%s475 + $0xfd8] sm:$0xff]
        %v4946 = vld [vmem:[%s475 + $0xfe0] sm:$0xff]
        %v4947 = vld [vmem:[%s475 + $0xfe8] sm:$0xff]
        %v4948 = vld [vmem:[%s475 + $0xff0] sm:$0xff]
        %v4949 = vld [vmem:[%s475 + $0xff8] sm:$0xff]
        %v4950 = vpack.c.bf16 %v4884, %v4884
        %v4951 = vpack.c.bf16 %v4885, %v4885
        %v5016 = vunpack.c.l.b16 %v4886
        %v5017 = vunpack.c.h.b16 %v4886
        %v5018 = vunpack.c.l.b16 %v4887
        %v5019 = vunpack.c.h.b16 %v4887
        %v5020 = vunpack.c.l.b16 %v4888
        %v5021 = vunpack.c.h.b16 %v4888
        %v5022 = vunpack.c.l.b16 %v4889
        %v5023 = vunpack.c.h.b16 %v4889
        %v5024 = vunpack.c.l.b16 %v4890
        %v5025 = vunpack.c.h.b16 %v4890
        %v5026 = vunpack.c.l.b16 %v4891
        %v5027 = vunpack.c.h.b16 %v4891
        %v5028 = vunpack.c.l.b16 %v4892
        %v5029 = vunpack.c.h.b16 %v4892
        %v5030 = vunpack.c.l.b16 %v4893
        %v5031 = vunpack.c.h.b16 %v4893
        %v5032 = vunpack.c.l.b16 %v4894
        %v5033 = vunpack.c.h.b16 %v4894
        %v5034 = vunpack.c.l.b16 %v4895
        %v5035 = vunpack.c.h.b16 %v4895
        %v5036 = vunpack.c.l.b16 %v4896
        %v5037 = vunpack.c.h.b16 %v4896
        %v5038 = vunpack.c.l.b16 %v4897
        %v5039 = vunpack.c.h.b16 %v4897
        %v5040 = vunpack.c.l.b16 %v4898
        %v5041 = vunpack.c.h.b16 %v4898
        %v5042 = vunpack.c.l.b16 %v4899
        %v5043 = vunpack.c.h.b16 %v4899
        %v5044 = vunpack.c.l.b16 %v4900
        %v5045 = vunpack.c.h.b16 %v4900
        %v5046 = vunpack.c.l.b16 %v4901
        %v5047 = vunpack.c.h.b16 %v4901
        %v5048 = vunpack.c.l.b16 %v4902
        %v5049 = vunpack.c.h.b16 %v4902
        %v5050 = vunpack.c.l.b16 %v4903
        %v5051 = vunpack.c.h.b16 %v4903
        %v5052 = vunpack.c.l.b16 %v4904
        %v5053 = vunpack.c.h.b16 %v4904
        %v5054 = vunpack.c.l.b16 %v4905
        %v5055 = vunpack.c.h.b16 %v4905
        %v5056 = vunpack.c.l.b16 %v4906
        %v5057 = vunpack.c.h.b16 %v4906
        %v5058 = vunpack.c.l.b16 %v4907
        %v5059 = vunpack.c.h.b16 %v4907
        %v5060 = vunpack.c.l.b16 %v4908
        %v5061 = vunpack.c.h.b16 %v4908
        %v5062 = vunpack.c.l.b16 %v4909
        %v5063 = vunpack.c.h.b16 %v4909
        %v5064 = vunpack.c.l.b16 %v4910
        %v5065 = vunpack.c.h.b16 %v4910
        %v5066 = vunpack.c.l.b16 %v4911
        %v5067 = vunpack.c.h.b16 %v4911
        %v5068 = vunpack.c.l.b16 %v4912
        %v5069 = vunpack.c.h.b16 %v4912
        %v5070 = vunpack.c.l.b16 %v4913
        %v5071 = vunpack.c.h.b16 %v4913
        %v5072 = vunpack.c.l.b16 %v4914
        %v5073 = vunpack.c.h.b16 %v4914
        %v5074 = vunpack.c.l.b16 %v4915
        %v5075 = vunpack.c.h.b16 %v4915
        %v5076 = vunpack.c.l.b16 %v4916
        %v5077 = vunpack.c.h.b16 %v4916
        %v5078 = vunpack.c.l.b16 %v4917
        %v5079 = vunpack.c.h.b16 %v4917
        %v5080 = vunpack.c.l.b16 %v4918
        %v5081 = vunpack.c.h.b16 %v4918
        %v5082 = vunpack.c.l.b16 %v4919
        %v5083 = vunpack.c.h.b16 %v4919
        %v5084 = vunpack.c.l.b16 %v4920
        %v5085 = vunpack.c.h.b16 %v4920
        %v5086 = vunpack.c.l.b16 %v4921
        %v5087 = vunpack.c.h.b16 %v4921
        %v5088 = vunpack.c.l.b16 %v4922
        %v5089 = vunpack.c.h.b16 %v4922
        %v5090 = vunpack.c.l.b16 %v4923
        %v5091 = vunpack.c.h.b16 %v4923
        %v5092 = vunpack.c.l.b16 %v4924
        %v5093 = vunpack.c.h.b16 %v4924
        %v5094 = vunpack.c.l.b16 %v4925
        %v5095 = vunpack.c.h.b16 %v4925
        %v5096 = vunpack.c.l.b16 %v4926
        %v5097 = vunpack.c.h.b16 %v4926
        %v5098 = vunpack.c.l.b16 %v4927
        %v5099 = vunpack.c.h.b16 %v4927
        %v5100 = vunpack.c.l.b16 %v4928
        %v5101 = vunpack.c.h.b16 %v4928
        %v5102 = vunpack.c.l.b16 %v4929
        %v5103 = vunpack.c.h.b16 %v4929
        %v5104 = vunpack.c.l.b16 %v4930
        %v5105 = vunpack.c.h.b16 %v4930
        %v5106 = vunpack.c.l.b16 %v4931
        %v5107 = vunpack.c.h.b16 %v4931
        %v5108 = vunpack.c.l.b16 %v4932
        %v5109 = vunpack.c.h.b16 %v4932
        %v5110 = vunpack.c.l.b16 %v4933
        %v5111 = vunpack.c.h.b16 %v4933
        %v5112 = vunpack.c.l.b16 %v4934
        %v5113 = vunpack.c.h.b16 %v4934
        %v5114 = vunpack.c.l.b16 %v4935
        %v5115 = vunpack.c.h.b16 %v4935
        %v5116 = vunpack.c.l.b16 %v4936
        %v5117 = vunpack.c.h.b16 %v4936
        %v5118 = vunpack.c.l.b16 %v4937
        %v5119 = vunpack.c.h.b16 %v4937
        %v5120 = vunpack.c.l.b16 %v4938
        %v5121 = vunpack.c.h.b16 %v4938
        %v5122 = vunpack.c.l.b16 %v4939
        %v5123 = vunpack.c.h.b16 %v4939
        %v5124 = vunpack.c.l.b16 %v4940
        %v5125 = vunpack.c.h.b16 %v4940
        %v5126 = vunpack.c.l.b16 %v4941
        %v5127 = vunpack.c.h.b16 %v4941
        %v5128 = vunpack.c.l.b16 %v4942
        %v5129 = vunpack.c.h.b16 %v4942
        %v5130 = vunpack.c.l.b16 %v4943
        %v5131 = vunpack.c.h.b16 %v4943
        %v5132 = vunpack.c.l.b16 %v4944
        %v5133 = vunpack.c.h.b16 %v4944
        %v5134 = vunpack.c.l.b16 %v4945
        %v5135 = vunpack.c.h.b16 %v4945
        %v5136 = vunpack.c.l.b16 %v4946
        %v5137 = vunpack.c.h.b16 %v4946
        %v5138 = vunpack.c.l.b16 %v4947
        %v5139 = vunpack.c.h.b16 %v4947
        %v5140 = vunpack.c.l.b16 %v4948
        %v5141 = vunpack.c.h.b16 %v4948
        %v5142 = vunpack.c.l.b16 %v4949
        %v5143 = vunpack.c.h.b16 %v4949
        %v5144 = vpack.c.b16 %v5020, %v5016
        %v5145 = vpack.c.b16 %v5021, %v5017
        %v5146 = vpack.c.b16 %v5022, %v5018
        %v5147 = vpack.c.b16 %v5023, %v5019
        %v5148 = vpack.c.b16 %v5028, %v5024
        %v5149 = vpack.c.b16 %v5029, %v5025
        %v5150 = vpack.c.b16 %v5030, %v5026
        %v5151 = vpack.c.b16 %v5031, %v5027
        %v5152 = vpack.c.b16 %v5036, %v5032
        %v5153 = vpack.c.b16 %v5037, %v5033
        %v5154 = vpack.c.b16 %v5038, %v5034
        %v5155 = vpack.c.b16 %v5039, %v5035
        %v5156 = vpack.c.b16 %v5044, %v5040
        %v5157 = vpack.c.b16 %v5045, %v5041
        %v5158 = vpack.c.b16 %v5046, %v5042
        %v5159 = vpack.c.b16 %v5047, %v5043
        %v5160 = vpack.c.b16 %v5052, %v5048
        %v5161 = vpack.c.b16 %v5053, %v5049
        %v5162 = vpack.c.b16 %v5054, %v5050
        %v5163 = vpack.c.b16 %v5055, %v5051
        %v5164 = vpack.c.b16 %v5060, %v5056
        %v5165 = vpack.c.b16 %v5061, %v5057
        %v5166 = vpack.c.b16 %v5062, %v5058
        %v5167 = vpack.c.b16 %v5063, %v5059
        %v5168 = vpack.c.b16 %v5068, %v5064
        %v5169 = vpack.c.b16 %v5069, %v5065
        %v5170 = vpack.c.b16 %v5070, %v5066
        %v5171 = vpack.c.b16 %v5071, %v5067
        %v5172 = vpack.c.b16 %v5076, %v5072
        %v5173 = vpack.c.b16 %v5077, %v5073
        %v5174 = vpack.c.b16 %v5078, %v5074
        %v5175 = vpack.c.b16 %v5079, %v5075
        %v5176 = vpack.c.b16 %v5084, %v5080
        %v5177 = vpack.c.b16 %v5085, %v5081
        %v5178 = vpack.c.b16 %v5086, %v5082
        %v5179 = vpack.c.b16 %v5087, %v5083
        %v5180 = vpack.c.b16 %v5092, %v5088
        %v5181 = vpack.c.b16 %v5093, %v5089
        %v5182 = vpack.c.b16 %v5094, %v5090
        %v5183 = vpack.c.b16 %v5095, %v5091
        %v5184 = vpack.c.b16 %v5100, %v5096
        %v5185 = vpack.c.b16 %v5101, %v5097
        %v5186 = vpack.c.b16 %v5102, %v5098
        %v5187 = vpack.c.b16 %v5103, %v5099
        %v5188 = vpack.c.b16 %v5108, %v5104
        %v5189 = vpack.c.b16 %v5109, %v5105
        %v5190 = vpack.c.b16 %v5110, %v5106
        %v5191 = vpack.c.b16 %v5111, %v5107
        %v5192 = vpack.c.b16 %v5116, %v5112
        %v5193 = vpack.c.b16 %v5117, %v5113
        %v5194 = vpack.c.b16 %v5118, %v5114
        %v5195 = vpack.c.b16 %v5119, %v5115
        %v5196 = vpack.c.b16 %v5124, %v5120
        %v5197 = vpack.c.b16 %v5125, %v5121
        %v5198 = vpack.c.b16 %v5126, %v5122
        %v5199 = vpack.c.b16 %v5127, %v5123
        %v5200 = vpack.c.b16 %v5132, %v5128
        %v5201 = vpack.c.b16 %v5133, %v5129
        %v5202 = vpack.c.b16 %v5134, %v5130
        %v5203 = vpack.c.b16 %v5135, %v5131
        %v5204 = vpack.c.b16 %v5140, %v5136
        %v5205 = vpack.c.b16 %v5141, %v5137
        %v5206 = vpack.c.b16 %v5142, %v5138
        %v5207 = vpack.c.b16 %v5143, %v5139
        %5272 = vmatpush.bf16.msra.mxu0 %v5172
        %5273 = vmatpush.bf16.msra.mxu0 %v5168
        %5274 = vmatpush.bf16.msra.mxu0 %v5164
        %5275 = vmatpush.bf16.msra.mxu0 %v5160
        %5276 = vmatpush.bf16.msra.mxu0 %v5156
        %5277 = vmatpush.bf16.msra.mxu0 %v5152
        %5278 = vmatpush.bf16.msra.mxu0 %v5148
        %5279 = vmatpush.bf16.msra.mxu0 %v5144
        %5280 = vmatmul.bf16.gmra.mxu0 %v4950
        %v5281 = vpop.f32.mrf.mxu0
        %v5282 = vadd.f32 0.0, %v5281
        %v5283 = vpop.f32.mrf.mxu0
        %5284 = vdwg.mxu0
        %5285 = vmatpush.bf16.msra.mxu0 %v5204
        %5286 = vmatpush.bf16.msra.mxu0 %v5200
        %5287 = vmatpush.bf16.msra.mxu0 %v5196
        %5288 = vmatpush.bf16.msra.mxu0 %v5192
        %5289 = vmatpush.bf16.msra.mxu0 %v5188
        %5290 = vmatpush.bf16.msra.mxu0 %v5184
        %5291 = vmatpush.bf16.msra.mxu0 %v5180
        %5292 = vmatpush.bf16.msra.mxu0 %v5176
        %5293 = vmatmul.bf16.gmra.mxu0 %v4951
        %v5294 = vpop.f32.mrf.mxu0
        %v5295 = vadd.f32 %v5282, %v5294
        %v5296 = vpop.f32.mrf.mxu0
        %5297 = vdwg.mxu0
        %5298 = vmatpush.bf16.msra.mxu0 %v5173
        %5299 = vmatpush.bf16.msra.mxu0 %v5169
        %5300 = vmatpush.bf16.msra.mxu0 %v5165
        %5301 = vmatpush.bf16.msra.mxu0 %v5161
        %5302 = vmatpush.bf16.msra.mxu0 %v5157
        %5303 = vmatpush.bf16.msra.mxu0 %v5153
        %5304 = vmatpush.bf16.msra.mxu0 %v5149
        %5305 = vmatpush.bf16.msra.mxu0 %v5145
        %5306 = vmatmul.bf16.gmra.mxu0 %v4950
        %v5307 = vpop.f32.mrf.mxu0
        %v5308 = vadd.f32 0.0, %v5307
        %v5309 = vpop.f32.mrf.mxu0
        %5310 = vdwg.mxu0
        %5311 = vmatpush.bf16.msra.mxu0 %v5205
        %5312 = vmatpush.bf16.msra.mxu0 %v5201
        %5313 = vmatpush.bf16.msra.mxu0 %v5197
        %5314 = vmatpush.bf16.msra.mxu0 %v5193
        %5315 = vmatpush.bf16.msra.mxu0 %v5189
        %5316 = vmatpush.bf16.msra.mxu0 %v5185
        %5317 = vmatpush.bf16.msra.mxu0 %v5181
        %5318 = vmatpush.bf16.msra.mxu0 %v5177
        %5319 = vmatmul.bf16.gmra.mxu0 %v4951
        %v5320 = vpop.f32.mrf.mxu0
        %v5321 = vadd.f32 %v5308, %v5320
        %v5322 = vpop.f32.mrf.mxu0
        %5323 = vdwg.mxu0
        %5324 = vmatpush.bf16.msra.mxu0 %v5174
        %5325 = vmatpush.bf16.msra.mxu0 %v5170
        %5326 = vmatpush.bf16.msra.mxu0 %v5166
        %5327 = vmatpush.bf16.msra.mxu0 %v5162
        %5328 = vmatpush.bf16.msra.mxu0 %v5158
        %5329 = vmatpush.bf16.msra.mxu0 %v5154
        %5330 = vmatpush.bf16.msra.mxu0 %v5150
        %5331 = vmatpush.bf16.msra.mxu0 %v5146
        %5332 = vmatmul.bf16.gmra.mxu0 %v4950
        %v5333 = vpop.f32.mrf.mxu0
        %v5334 = vadd.f32 0.0, %v5333
        %v5335 = vpop.f32.mrf.mxu0
        %5336 = vdwg.mxu0
        %5337 = vmatpush.bf16.msra.mxu0 %v5206
        %5338 = vmatpush.bf16.msra.mxu0 %v5202
        %5339 = vmatpush.bf16.msra.mxu0 %v5198
        %5340 = vmatpush.bf16.msra.mxu0 %v5194
        %5341 = vmatpush.bf16.msra.mxu0 %v5190
        %5342 = vmatpush.bf16.msra.mxu0 %v5186
        %5343 = vmatpush.bf16.msra.mxu0 %v5182
        %5344 = vmatpush.bf16.msra.mxu0 %v5178
        %5345 = vmatmul.bf16.gmra.mxu0 %v4951
        %v5346 = vpop.f32.mrf.mxu0
        %v5347 = vadd.f32 %v5334, %v5346
        %v5348 = vpop.f32.mrf.mxu0
        %5349 = vdwg.mxu0
        %5350 = vmatpush.bf16.msra.mxu0 %v5175
        %5351 = vmatpush.bf16.msra.mxu0 %v5171
        %5352 = vmatpush.bf16.msra.mxu0 %v5167
        %5353 = vmatpush.bf16.msra.mxu0 %v5163
        %5354 = vmatpush.bf16.msra.mxu0 %v5159
        %5355 = vmatpush.bf16.msra.mxu0 %v5155
        %5356 = vmatpush.bf16.msra.mxu0 %v5151
        %5357 = vmatpush.bf16.msra.mxu0 %v5147
        %5358 = vmatmul.bf16.gmra.mxu0 %v4950
        %v5359 = vpop.f32.mrf.mxu0
        %v5360 = vadd.f32 0.0, %v5359
        %v5361 = vpop.f32.mrf.mxu0
        %5362 = vdwg.mxu0
        %5363 = vmatpush.bf16.msra.mxu0 %v5207
        %5364 = vmatpush.bf16.msra.mxu0 %v5203
        %5365 = vmatpush.bf16.msra.mxu0 %v5199
        %5366 = vmatpush.bf16.msra.mxu0 %v5195
        %5367 = vmatpush.bf16.msra.mxu0 %v5191
        %5368 = vmatpush.bf16.msra.mxu0 %v5187
        %5369 = vmatpush.bf16.msra.mxu0 %v5183
        %5370 = vmatpush.bf16.msra.mxu0 %v5179
        %5371 = vmatmul.bf16.gmra.mxu0 %v4951
        %v5372 = vpop.f32.mrf.mxu0
        %v5373 = vadd.f32 %v5360, %v5372
        %v5374 = vpop.f32.mrf.mxu0
        %5375 = vdwg.mxu0
        %v5376 = vadd.f32 %v4872, %v5295
        %v5377 = vadd.f32 %v4873, %v5321
        %v5378 = vadd.f32 %v4874, %v5347
        %v5379 = vadd.f32 %v4875, %v5373
        %v5382 = vrot.slane %v1357, 7
        %v5383 = vrot.slane %v1358, 7
        %v5386 = vsel %vm1365, %v1351, %v5382
        %v5387 = vsel %vm1365, %v1352, %v5383
        %v5388 = vld [vmem:[%s475 + $0x1000] sm:$0xff]
        %v5389 = vld [vmem:[%s475 + $0x1008] sm:$0xff]
        %v5390 = vld [vmem:[%s475 + $0x1010] sm:$0xff]
        %v5391 = vld [vmem:[%s475 + $0x1018] sm:$0xff]
        %v5392 = vld [vmem:[%s475 + $0x1020] sm:$0xff]
        %v5393 = vld [vmem:[%s475 + $0x1028] sm:$0xff]
        %v5394 = vld [vmem:[%s475 + $0x1030] sm:$0xff]
        %v5395 = vld [vmem:[%s475 + $0x1038] sm:$0xff]
        %v5396 = vld [vmem:[%s475 + $0x1040] sm:$0xff]
        %v5397 = vld [vmem:[%s475 + $0x1048] sm:$0xff]
        %v5398 = vld [vmem:[%s475 + $0x1050] sm:$0xff]
        %v5399 = vld [vmem:[%s475 + $0x1058] sm:$0xff]
        %v5400 = vld [vmem:[%s475 + $0x1060] sm:$0xff]
        %v5401 = vld [vmem:[%s475 + $0x1068] sm:$0xff]
        %v5402 = vld [vmem:[%s475 + $0x1070] sm:$0xff]
        %v5403 = vld [vmem:[%s475 + $0x1078] sm:$0xff]
        %v5404 = vld [vmem:[%s475 + $0x1080] sm:$0xff]
        %v5405 = vld [vmem:[%s475 + $0x1088] sm:$0xff]
        %v5406 = vld [vmem:[%s475 + $0x1090] sm:$0xff]
        %v5407 = vld [vmem:[%s475 + $0x1098] sm:$0xff]
        %v5408 = vld [vmem:[%s475 + $0x10a0] sm:$0xff]
        %v5409 = vld [vmem:[%s475 + $0x10a8] sm:$0xff]
        %v5410 = vld [vmem:[%s475 + $0x10b0] sm:$0xff]
        %v5411 = vld [vmem:[%s475 + $0x10b8] sm:$0xff]
        %v5412 = vld [vmem:[%s475 + $0x10c0] sm:$0xff]
        %v5413 = vld [vmem:[%s475 + $0x10c8] sm:$0xff]
        %v5414 = vld [vmem:[%s475 + $0x10d0] sm:$0xff]
        %v5415 = vld [vmem:[%s475 + $0x10d8] sm:$0xff]
        %v5416 = vld [vmem:[%s475 + $0x10e0] sm:$0xff]
        %v5417 = vld [vmem:[%s475 + $0x10e8] sm:$0xff]
        %v5418 = vld [vmem:[%s475 + $0x10f0] sm:$0xff]
        %v5419 = vld [vmem:[%s475 + $0x10f8] sm:$0xff]
        %v5420 = vld [vmem:[%s475 + $0x1100] sm:$0xff]
        %v5421 = vld [vmem:[%s475 + $0x1108] sm:$0xff]
        %v5422 = vld [vmem:[%s475 + $0x1110] sm:$0xff]
        %v5423 = vld [vmem:[%s475 + $0x1118] sm:$0xff]
        %v5424 = vld [vmem:[%s475 + $0x1120] sm:$0xff]
        %v5425 = vld [vmem:[%s475 + $0x1128] sm:$0xff]
        %v5426 = vld [vmem:[%s475 + $0x1130] sm:$0xff]
        %v5427 = vld [vmem:[%s475 + $0x1138] sm:$0xff]
        %v5428 = vld [vmem:[%s475 + $0x1140] sm:$0xff]
        %v5429 = vld [vmem:[%s475 + $0x1148] sm:$0xff]
        %v5430 = vld [vmem:[%s475 + $0x1150] sm:$0xff]
        %v5431 = vld [vmem:[%s475 + $0x1158] sm:$0xff]
        %v5432 = vld [vmem:[%s475 + $0x1160] sm:$0xff]
        %v5433 = vld [vmem:[%s475 + $0x1168] sm:$0xff]
        %v5434 = vld [vmem:[%s475 + $0x1170] sm:$0xff]
        %v5435 = vld [vmem:[%s475 + $0x1178] sm:$0xff]
        %v5436 = vld [vmem:[%s475 + $0x1180] sm:$0xff]
        %v5437 = vld [vmem:[%s475 + $0x1188] sm:$0xff]
        %v5438 = vld [vmem:[%s475 + $0x1190] sm:$0xff]
        %v5439 = vld [vmem:[%s475 + $0x1198] sm:$0xff]
        %v5440 = vld [vmem:[%s475 + $0x11a0] sm:$0xff]
        %v5441 = vld [vmem:[%s475 + $0x11a8] sm:$0xff]
        %v5442 = vld [vmem:[%s475 + $0x11b0] sm:$0xff]
        %v5443 = vld [vmem:[%s475 + $0x11b8] sm:$0xff]
        %v5444 = vld [vmem:[%s475 + $0x11c0] sm:$0xff]
        %v5445 = vld [vmem:[%s475 + $0x11c8] sm:$0xff]
        %v5446 = vld [vmem:[%s475 + $0x11d0] sm:$0xff]
        %v5447 = vld [vmem:[%s475 + $0x11d8] sm:$0xff]
        %v5448 = vld [vmem:[%s475 + $0x11e0] sm:$0xff]
        %v5449 = vld [vmem:[%s475 + $0x11e8] sm:$0xff]
        %v5450 = vld [vmem:[%s475 + $0x11f0] sm:$0xff]
        %v5451 = vld [vmem:[%s475 + $0x11f8] sm:$0xff]
        %v5452 = vpack.c.bf16 %v5386, %v5386
        %v5453 = vpack.c.bf16 %v5387, %v5387
        %v5518 = vunpack.c.l.b16 %v5388
        %v5519 = vunpack.c.h.b16 %v5388
        %v5520 = vunpack.c.l.b16 %v5389
        %v5521 = vunpack.c.h.b16 %v5389
        %v5522 = vunpack.c.l.b16 %v5390
        %v5523 = vunpack.c.h.b16 %v5390
        %v5524 = vunpack.c.l.b16 %v5391
        %v5525 = vunpack.c.h.b16 %v5391
        %v5526 = vunpack.c.l.b16 %v5392
        %v5527 = vunpack.c.h.b16 %v5392
        %v5528 = vunpack.c.l.b16 %v5393
        %v5529 = vunpack.c.h.b16 %v5393
        %v5530 = vunpack.c.l.b16 %v5394
        %v5531 = vunpack.c.h.b16 %v5394
        %v5532 = vunpack.c.l.b16 %v5395
        %v5533 = vunpack.c.h.b16 %v5395
        %v5534 = vunpack.c.l.b16 %v5396
        %v5535 = vunpack.c.h.b16 %v5396
        %v5536 = vunpack.c.l.b16 %v5397
        %v5537 = vunpack.c.h.b16 %v5397
        %v5538 = vunpack.c.l.b16 %v5398
        %v5539 = vunpack.c.h.b16 %v5398
        %v5540 = vunpack.c.l.b16 %v5399
        %v5541 = vunpack.c.h.b16 %v5399
        %v5542 = vunpack.c.l.b16 %v5400
        %v5543 = vunpack.c.h.b16 %v5400
        %v5544 = vunpack.c.l.b16 %v5401
        %v5545 = vunpack.c.h.b16 %v5401
        %v5546 = vunpack.c.l.b16 %v5402
        %v5547 = vunpack.c.h.b16 %v5402
        %v5548 = vunpack.c.l.b16 %v5403
        %v5549 = vunpack.c.h.b16 %v5403
        %v5550 = vunpack.c.l.b16 %v5404
        %v5551 = vunpack.c.h.b16 %v5404
        %v5552 = vunpack.c.l.b16 %v5405
        %v5553 = vunpack.c.h.b16 %v5405
        %v5554 = vunpack.c.l.b16 %v5406
        %v5555 = vunpack.c.h.b16 %v5406
        %v5556 = vunpack.c.l.b16 %v5407
        %v5557 = vunpack.c.h.b16 %v5407
        %v5558 = vunpack.c.l.b16 %v5408
        %v5559 = vunpack.c.h.b16 %v5408
        %v5560 = vunpack.c.l.b16 %v5409
        %v5561 = vunpack.c.h.b16 %v5409
        %v5562 = vunpack.c.l.b16 %v5410
        %v5563 = vunpack.c.h.b16 %v5410
        %v5564 = vunpack.c.l.b16 %v5411
        %v5565 = vunpack.c.h.b16 %v5411
        %v5566 = vunpack.c.l.b16 %v5412
        %v5567 = vunpack.c.h.b16 %v5412
        %v5568 = vunpack.c.l.b16 %v5413
        %v5569 = vunpack.c.h.b16 %v5413
        %v5570 = vunpack.c.l.b16 %v5414
        %v5571 = vunpack.c.h.b16 %v5414
        %v5572 = vunpack.c.l.b16 %v5415
        %v5573 = vunpack.c.h.b16 %v5415
        %v5574 = vunpack.c.l.b16 %v5416
        %v5575 = vunpack.c.h.b16 %v5416
        %v5576 = vunpack.c.l.b16 %v5417
        %v5577 = vunpack.c.h.b16 %v5417
        %v5578 = vunpack.c.l.b16 %v5418
        %v5579 = vunpack.c.h.b16 %v5418
        %v5580 = vunpack.c.l.b16 %v5419
        %v5581 = vunpack.c.h.b16 %v5419
        %v5582 = vunpack.c.l.b16 %v5420
        %v5583 = vunpack.c.h.b16 %v5420
        %v5584 = vunpack.c.l.b16 %v5421
        %v5585 = vunpack.c.h.b16 %v5421
        %v5586 = vunpack.c.l.b16 %v5422
        %v5587 = vunpack.c.h.b16 %v5422
        %v5588 = vunpack.c.l.b16 %v5423
        %v5589 = vunpack.c.h.b16 %v5423
        %v5590 = vunpack.c.l.b16 %v5424
        %v5591 = vunpack.c.h.b16 %v5424
        %v5592 = vunpack.c.l.b16 %v5425
        %v5593 = vunpack.c.h.b16 %v5425
        %v5594 = vunpack.c.l.b16 %v5426
        %v5595 = vunpack.c.h.b16 %v5426
        %v5596 = vunpack.c.l.b16 %v5427
        %v5597 = vunpack.c.h.b16 %v5427
        %v5598 = vunpack.c.l.b16 %v5428
        %v5599 = vunpack.c.h.b16 %v5428
        %v5600 = vunpack.c.l.b16 %v5429
        %v5601 = vunpack.c.h.b16 %v5429
        %v5602 = vunpack.c.l.b16 %v5430
        %v5603 = vunpack.c.h.b16 %v5430
        %v5604 = vunpack.c.l.b16 %v5431
        %v5605 = vunpack.c.h.b16 %v5431
        %v5606 = vunpack.c.l.b16 %v5432
        %v5607 = vunpack.c.h.b16 %v5432
        %v5608 = vunpack.c.l.b16 %v5433
        %v5609 = vunpack.c.h.b16 %v5433
        %v5610 = vunpack.c.l.b16 %v5434
        %v5611 = vunpack.c.h.b16 %v5434
        %v5612 = vunpack.c.l.b16 %v5435
        %v5613 = vunpack.c.h.b16 %v5435
        %v5614 = vunpack.c.l.b16 %v5436
        %v5615 = vunpack.c.h.b16 %v5436
        %v5616 = vunpack.c.l.b16 %v5437
        %v5617 = vunpack.c.h.b16 %v5437
        %v5618 = vunpack.c.l.b16 %v5438
        %v5619 = vunpack.c.h.b16 %v5438
        %v5620 = vunpack.c.l.b16 %v5439
        %v5621 = vunpack.c.h.b16 %v5439
        %v5622 = vunpack.c.l.b16 %v5440
        %v5623 = vunpack.c.h.b16 %v5440
        %v5624 = vunpack.c.l.b16 %v5441
        %v5625 = vunpack.c.h.b16 %v5441
        %v5626 = vunpack.c.l.b16 %v5442
        %v5627 = vunpack.c.h.b16 %v5442
        %v5628 = vunpack.c.l.b16 %v5443
        %v5629 = vunpack.c.h.b16 %v5443
        %v5630 = vunpack.c.l.b16 %v5444
        %v5631 = vunpack.c.h.b16 %v5444
        %v5632 = vunpack.c.l.b16 %v5445
        %v5633 = vunpack.c.h.b16 %v5445
        %v5634 = vunpack.c.l.b16 %v5446
        %v5635 = vunpack.c.h.b16 %v5446
        %v5636 = vunpack.c.l.b16 %v5447
        %v5637 = vunpack.c.h.b16 %v5447
        %v5638 = vunpack.c.l.b16 %v5448
        %v5639 = vunpack.c.h.b16 %v5448
        %v5640 = vunpack.c.l.b16 %v5449
        %v5641 = vunpack.c.h.b16 %v5449
        %v5642 = vunpack.c.l.b16 %v5450
        %v5643 = vunpack.c.h.b16 %v5450
        %v5644 = vunpack.c.l.b16 %v5451
        %v5645 = vunpack.c.h.b16 %v5451
        %v5646 = vpack.c.b16 %v5522, %v5518
        %v5647 = vpack.c.b16 %v5523, %v5519
        %v5648 = vpack.c.b16 %v5524, %v5520
        %v5649 = vpack.c.b16 %v5525, %v5521
        %v5650 = vpack.c.b16 %v5530, %v5526
        %v5651 = vpack.c.b16 %v5531, %v5527
        %v5652 = vpack.c.b16 %v5532, %v5528
        %v5653 = vpack.c.b16 %v5533, %v5529
        %v5654 = vpack.c.b16 %v5538, %v5534
        %v5655 = vpack.c.b16 %v5539, %v5535
        %v5656 = vpack.c.b16 %v5540, %v5536
        %v5657 = vpack.c.b16 %v5541, %v5537
        %v5658 = vpack.c.b16 %v5546, %v5542
        %v5659 = vpack.c.b16 %v5547, %v5543
        %v5660 = vpack.c.b16 %v5548, %v5544
        %v5661 = vpack.c.b16 %v5549, %v5545
        %v5662 = vpack.c.b16 %v5554, %v5550
        %v5663 = vpack.c.b16 %v5555, %v5551
        %v5664 = vpack.c.b16 %v5556, %v5552
        %v5665 = vpack.c.b16 %v5557, %v5553
        %v5666 = vpack.c.b16 %v5562, %v5558
        %v5667 = vpack.c.b16 %v5563, %v5559
        %v5668 = vpack.c.b16 %v5564, %v5560
        %v5669 = vpack.c.b16 %v5565, %v5561
        %v5670 = vpack.c.b16 %v5570, %v5566
        %v5671 = vpack.c.b16 %v5571, %v5567
        %v5672 = vpack.c.b16 %v5572, %v5568
        %v5673 = vpack.c.b16 %v5573, %v5569
        %v5674 = vpack.c.b16 %v5578, %v5574
        %v5675 = vpack.c.b16 %v5579, %v5575
        %v5676 = vpack.c.b16 %v5580, %v5576
        %v5677 = vpack.c.b16 %v5581, %v5577
        %v5678 = vpack.c.b16 %v5586, %v5582
        %v5679 = vpack.c.b16 %v5587, %v5583
        %v5680 = vpack.c.b16 %v5588, %v5584
        %v5681 = vpack.c.b16 %v5589, %v5585
        %v5682 = vpack.c.b16 %v5594, %v5590
        %v5683 = vpack.c.b16 %v5595, %v5591
        %v5684 = vpack.c.b16 %v5596, %v5592
        %v5685 = vpack.c.b16 %v5597, %v5593
        %v5686 = vpack.c.b16 %v5602, %v5598
        %v5687 = vpack.c.b16 %v5603, %v5599
        %v5688 = vpack.c.b16 %v5604, %v5600
        %v5689 = vpack.c.b16 %v5605, %v5601
        %v5690 = vpack.c.b16 %v5610, %v5606
        %v5691 = vpack.c.b16 %v5611, %v5607
        %v5692 = vpack.c.b16 %v5612, %v5608
        %v5693 = vpack.c.b16 %v5613, %v5609
        %v5694 = vpack.c.b16 %v5618, %v5614
        %v5695 = vpack.c.b16 %v5619, %v5615
        %v5696 = vpack.c.b16 %v5620, %v5616
        %v5697 = vpack.c.b16 %v5621, %v5617
        %v5698 = vpack.c.b16 %v5626, %v5622
        %v5699 = vpack.c.b16 %v5627, %v5623
        %v5700 = vpack.c.b16 %v5628, %v5624
        %v5701 = vpack.c.b16 %v5629, %v5625
        %v5702 = vpack.c.b16 %v5634, %v5630
        %v5703 = vpack.c.b16 %v5635, %v5631
        %v5704 = vpack.c.b16 %v5636, %v5632
        %v5705 = vpack.c.b16 %v5637, %v5633
        %v5706 = vpack.c.b16 %v5642, %v5638
        %v5707 = vpack.c.b16 %v5643, %v5639
        %v5708 = vpack.c.b16 %v5644, %v5640
        %v5709 = vpack.c.b16 %v5645, %v5641
        %5774 = vmatpush.bf16.msra.mxu0 %v5674
        %5775 = vmatpush.bf16.msra.mxu0 %v5670
        %5776 = vmatpush.bf16.msra.mxu0 %v5666
        %5777 = vmatpush.bf16.msra.mxu0 %v5662
        %5778 = vmatpush.bf16.msra.mxu0 %v5658
        %5779 = vmatpush.bf16.msra.mxu0 %v5654
        %5780 = vmatpush.bf16.msra.mxu0 %v5650
        %5781 = vmatpush.bf16.msra.mxu0 %v5646
        %5782 = vmatmul.bf16.gmra.mxu0 %v5452
        %v5783 = vpop.f32.mrf.mxu0
        %v5784 = vadd.f32 0.0, %v5783
        %v5785 = vpop.f32.mrf.mxu0
        %5786 = vdwg.mxu0
        %5787 = vmatpush.bf16.msra.mxu0 %v5706
        %5788 = vmatpush.bf16.msra.mxu0 %v5702
        %5789 = vmatpush.bf16.msra.mxu0 %v5698
        %5790 = vmatpush.bf16.msra.mxu0 %v5694
        %5791 = vmatpush.bf16.msra.mxu0 %v5690
        %5792 = vmatpush.bf16.msra.mxu0 %v5686
        %5793 = vmatpush.bf16.msra.mxu0 %v5682
        %5794 = vmatpush.bf16.msra.mxu0 %v5678
        %5795 = vmatmul.bf16.gmra.mxu0 %v5453
        %v5796 = vpop.f32.mrf.mxu0
        %v5797 = vadd.f32 %v5784, %v5796
        %v5798 = vpop.f32.mrf.mxu0
        %5799 = vdwg.mxu0
        %5800 = vmatpush.bf16.msra.mxu0 %v5675
        %5801 = vmatpush.bf16.msra.mxu0 %v5671
        %5802 = vmatpush.bf16.msra.mxu0 %v5667
        %5803 = vmatpush.bf16.msra.mxu0 %v5663
        %5804 = vmatpush.bf16.msra.mxu0 %v5659
        %5805 = vmatpush.bf16.msra.mxu0 %v5655
        %5806 = vmatpush.bf16.msra.mxu0 %v5651
        %5807 = vmatpush.bf16.msra.mxu0 %v5647
        %5808 = vmatmul.bf16.gmra.mxu0 %v5452
        %v5809 = vpop.f32.mrf.mxu0
        %v5810 = vadd.f32 0.0, %v5809
        %v5811 = vpop.f32.mrf.mxu0
        %5812 = vdwg.mxu0
        %5813 = vmatpush.bf16.msra.mxu0 %v5707
        %5814 = vmatpush.bf16.msra.mxu0 %v5703
        %5815 = vmatpush.bf16.msra.mxu0 %v5699
        %5816 = vmatpush.bf16.msra.mxu0 %v5695
        %5817 = vmatpush.bf16.msra.mxu0 %v5691
        %5818 = vmatpush.bf16.msra.mxu0 %v5687
        %5819 = vmatpush.bf16.msra.mxu0 %v5683
        %5820 = vmatpush.bf16.msra.mxu0 %v5679
        %5821 = vmatmul.bf16.gmra.mxu0 %v5453
        %v5822 = vpop.f32.mrf.mxu0
        %v5823 = vadd.f32 %v5810, %v5822
        %v5824 = vpop.f32.mrf.mxu0
        %5825 = vdwg.mxu0
        %5826 = vmatpush.bf16.msra.mxu0 %v5676
        %5827 = vmatpush.bf16.msra.mxu0 %v5672
        %5828 = vmatpush.bf16.msra.mxu0 %v5668
        %5829 = vmatpush.bf16.msra.mxu0 %v5664
        %5830 = vmatpush.bf16.msra.mxu0 %v5660
        %5831 = vmatpush.bf16.msra.mxu0 %v5656
        %5832 = vmatpush.bf16.msra.mxu0 %v5652
        %5833 = vmatpush.bf16.msra.mxu0 %v5648
        %5834 = vmatmul.bf16.gmra.mxu0 %v5452
        %v5835 = vpop.f32.mrf.mxu0
        %v5836 = vadd.f32 0.0, %v5835
        %v5837 = vpop.f32.mrf.mxu0
        %5838 = vdwg.mxu0
        %5839 = vmatpush.bf16.msra.mxu0 %v5708
        %5840 = vmatpush.bf16.msra.mxu0 %v5704
        %5841 = vmatpush.bf16.msra.mxu0 %v5700
        %5842 = vmatpush.bf16.msra.mxu0 %v5696
        %5843 = vmatpush.bf16.msra.mxu0 %v5692
        %5844 = vmatpush.bf16.msra.mxu0 %v5688
        %5845 = vmatpush.bf16.msra.mxu0 %v5684
        %5846 = vmatpush.bf16.msra.mxu0 %v5680
        %5847 = vmatmul.bf16.gmra.mxu0 %v5453
        %v5848 = vpop.f32.mrf.mxu0
        %v5849 = vadd.f32 %v5836, %v5848
        %v5850 = vpop.f32.mrf.mxu0
        %5851 = vdwg.mxu0
        %5852 = vmatpush.bf16.msra.mxu0 %v5677
        %5853 = vmatpush.bf16.msra.mxu0 %v5673
        %5854 = vmatpush.bf16.msra.mxu0 %v5669
        %5855 = vmatpush.bf16.msra.mxu0 %v5665
        %5856 = vmatpush.bf16.msra.mxu0 %v5661
        %5857 = vmatpush.bf16.msra.mxu0 %v5657
        %5858 = vmatpush.bf16.msra.mxu0 %v5653
        %5859 = vmatpush.bf16.msra.mxu0 %v5649
        %5860 = vmatmul.bf16.gmra.mxu0 %v5452
        %v5861 = vpop.f32.mrf.mxu0
        %v5862 = vadd.f32 0.0, %v5861
        %v5863 = vpop.f32.mrf.mxu0
        %5864 = vdwg.mxu0
        %5865 = vmatpush.bf16.msra.mxu0 %v5709
        %5866 = vmatpush.bf16.msra.mxu0 %v5705
        %5867 = vmatpush.bf16.msra.mxu0 %v5701
        %5868 = vmatpush.bf16.msra.mxu0 %v5697
        %5869 = vmatpush.bf16.msra.mxu0 %v5693
        %5870 = vmatpush.bf16.msra.mxu0 %v5689
        %5871 = vmatpush.bf16.msra.mxu0 %v5685
        %5872 = vmatpush.bf16.msra.mxu0 %v5681
        %5873 = vmatmul.bf16.gmra.mxu0 %v5453
        %v5874 = vpop.f32.mrf.mxu0
        %v5875 = vadd.f32 %v5862, %v5874
        %v5876 = vpop.f32.mrf.mxu0
        %5877 = vdwg.mxu0
        %v5878 = vadd.f32 %v5376, %v5797
        %v5879 = vadd.f32 %v5377, %v5823
        %v5880 = vadd.f32 %v5378, %v5849
        %v5881 = vadd.f32 %v5379, %v5875
        %v5884 = vrot.slane %v1351, 1
        %v5885 = vrot.slane %v1352, 1
        %v5888 = vsel %vm1365, %v5884, %v1357
        %v5889 = vsel %vm1365, %v5885, %v1358
        %v5890 = vld [vmem:[%s475 + $0x1200] sm:$0xff]
        %v5891 = vld [vmem:[%s475 + $0x1208] sm:$0xff]
        %v5892 = vld [vmem:[%s475 + $0x1210] sm:$0xff]
        %v5893 = vld [vmem:[%s475 + $0x1218] sm:$0xff]
        %v5894 = vld [vmem:[%s475 + $0x1220] sm:$0xff]
        %v5895 = vld [vmem:[%s475 + $0x1228] sm:$0xff]
        %v5896 = vld [vmem:[%s475 + $0x1230] sm:$0xff]
        %v5897 = vld [vmem:[%s475 + $0x1238] sm:$0xff]
        %v5898 = vld [vmem:[%s475 + $0x1240] sm:$0xff]
        %v5899 = vld [vmem:[%s475 + $0x1248] sm:$0xff]
        %v5900 = vld [vmem:[%s475 + $0x1250] sm:$0xff]
        %v5901 = vld [vmem:[%s475 + $0x1258] sm:$0xff]
        %v5902 = vld [vmem:[%s475 + $0x1260] sm:$0xff]
        %v5903 = vld [vmem:[%s475 + $0x1268] sm:$0xff]
        %v5904 = vld [vmem:[%s475 + $0x1270] sm:$0xff]
        %v5905 = vld [vmem:[%s475 + $0x1278] sm:$0xff]
        %v5906 = vld [vmem:[%s475 + $0x1280] sm:$0xff]
        %v5907 = vld [vmem:[%s475 + $0x1288] sm:$0xff]
        %v5908 = vld [vmem:[%s475 + $0x1290] sm:$0xff]
        %v5909 = vld [vmem:[%s475 + $0x1298] sm:$0xff]
        %v5910 = vld [vmem:[%s475 + $0x12a0] sm:$0xff]
        %v5911 = vld [vmem:[%s475 + $0x12a8] sm:$0xff]
        %v5912 = vld [vmem:[%s475 + $0x12b0] sm:$0xff]
        %v5913 = vld [vmem:[%s475 + $0x12b8] sm:$0xff]
        %v5914 = vld [vmem:[%s475 + $0x12c0] sm:$0xff]
        %v5915 = vld [vmem:[%s475 + $0x12c8] sm:$0xff]
        %v5916 = vld [vmem:[%s475 + $0x12d0] sm:$0xff]
        %v5917 = vld [vmem:[%s475 + $0x12d8] sm:$0xff]
        %v5918 = vld [vmem:[%s475 + $0x12e0] sm:$0xff]
        %v5919 = vld [vmem:[%s475 + $0x12e8] sm:$0xff]
        %v5920 = vld [vmem:[%s475 + $0x12f0] sm:$0xff]
        %v5921 = vld [vmem:[%s475 + $0x12f8] sm:$0xff]
        %v5922 = vld [vmem:[%s475 + $0x1300] sm:$0xff]
        %v5923 = vld [vmem:[%s475 + $0x1308] sm:$0xff]
        %v5924 = vld [vmem:[%s475 + $0x1310] sm:$0xff]
        %v5925 = vld [vmem:[%s475 + $0x1318] sm:$0xff]
        %v5926 = vld [vmem:[%s475 + $0x1320] sm:$0xff]
        %v5927 = vld [vmem:[%s475 + $0x1328] sm:$0xff]
        %v5928 = vld [vmem:[%s475 + $0x1330] sm:$0xff]
        %v5929 = vld [vmem:[%s475 + $0x1338] sm:$0xff]
        %v5930 = vld [vmem:[%s475 + $0x1340] sm:$0xff]
        %v5931 = vld [vmem:[%s475 + $0x1348] sm:$0xff]
        %v5932 = vld [vmem:[%s475 + $0x1350] sm:$0xff]
        %v5933 = vld [vmem:[%s475 + $0x1358] sm:$0xff]
        %v5934 = vld [vmem:[%s475 + $0x1360] sm:$0xff]
        %v5935 = vld [vmem:[%s475 + $0x1368] sm:$0xff]
        %v5936 = vld [vmem:[%s475 + $0x1370] sm:$0xff]
        %v5937 = vld [vmem:[%s475 + $0x1378] sm:$0xff]
        %v5938 = vld [vmem:[%s475 + $0x1380] sm:$0xff]
        %v5939 = vld [vmem:[%s475 + $0x1388] sm:$0xff]
        %v5940 = vld [vmem:[%s475 + $0x1390] sm:$0xff]
        %v5941 = vld [vmem:[%s475 + $0x1398] sm:$0xff]
        %v5942 = vld [vmem:[%s475 + $0x13a0] sm:$0xff]
        %v5943 = vld [vmem:[%s475 + $0x13a8] sm:$0xff]
        %v5944 = vld [vmem:[%s475 + $0x13b0] sm:$0xff]
        %v5945 = vld [vmem:[%s475 + $0x13b8] sm:$0xff]
        %v5946 = vld [vmem:[%s475 + $0x13c0] sm:$0xff]
        %v5947 = vld [vmem:[%s475 + $0x13c8] sm:$0xff]
        %v5948 = vld [vmem:[%s475 + $0x13d0] sm:$0xff]
        %v5949 = vld [vmem:[%s475 + $0x13d8] sm:$0xff]
        %v5950 = vld [vmem:[%s475 + $0x13e0] sm:$0xff]
        %v5951 = vld [vmem:[%s475 + $0x13e8] sm:$0xff]
        %v5952 = vld [vmem:[%s475 + $0x13f0] sm:$0xff]
        %v5953 = vld [vmem:[%s475 + $0x13f8] sm:$0xff]
        %v5954 = vpack.c.bf16 %v5888, %v5888
        %v5955 = vpack.c.bf16 %v5889, %v5889
        %v6020 = vunpack.c.l.b16 %v5890
        %v6021 = vunpack.c.h.b16 %v5890
        %v6022 = vunpack.c.l.b16 %v5891
        %v6023 = vunpack.c.h.b16 %v5891
        %v6024 = vunpack.c.l.b16 %v5892
        %v6025 = vunpack.c.h.b16 %v5892
        %v6026 = vunpack.c.l.b16 %v5893
        %v6027 = vunpack.c.h.b16 %v5893
        %v6028 = vunpack.c.l.b16 %v5894
        %v6029 = vunpack.c.h.b16 %v5894
        %v6030 = vunpack.c.l.b16 %v5895
        %v6031 = vunpack.c.h.b16 %v5895
        %v6032 = vunpack.c.l.b16 %v5896
        %v6033 = vunpack.c.h.b16 %v5896
        %v6034 = vunpack.c.l.b16 %v5897
        %v6035 = vunpack.c.h.b16 %v5897
        %v6036 = vunpack.c.l.b16 %v5898
        %v6037 = vunpack.c.h.b16 %v5898
        %v6038 = vunpack.c.l.b16 %v5899
        %v6039 = vunpack.c.h.b16 %v5899
        %v6040 = vunpack.c.l.b16 %v5900
        %v6041 = vunpack.c.h.b16 %v5900
        %v6042 = vunpack.c.l.b16 %v5901
        %v6043 = vunpack.c.h.b16 %v5901
        %v6044 = vunpack.c.l.b16 %v5902
        %v6045 = vunpack.c.h.b16 %v5902
        %v6046 = vunpack.c.l.b16 %v5903
        %v6047 = vunpack.c.h.b16 %v5903
        %v6048 = vunpack.c.l.b16 %v5904
        %v6049 = vunpack.c.h.b16 %v5904
        %v6050 = vunpack.c.l.b16 %v5905
        %v6051 = vunpack.c.h.b16 %v5905
        %v6052 = vunpack.c.l.b16 %v5906
        %v6053 = vunpack.c.h.b16 %v5906
        %v6054 = vunpack.c.l.b16 %v5907
        %v6055 = vunpack.c.h.b16 %v5907
        %v6056 = vunpack.c.l.b16 %v5908
        %v6057 = vunpack.c.h.b16 %v5908
        %v6058 = vunpack.c.l.b16 %v5909
        %v6059 = vunpack.c.h.b16 %v5909
        %v6060 = vunpack.c.l.b16 %v5910
        %v6061 = vunpack.c.h.b16 %v5910
        %v6062 = vunpack.c.l.b16 %v5911
        %v6063 = vunpack.c.h.b16 %v5911
        %v6064 = vunpack.c.l.b16 %v5912
        %v6065 = vunpack.c.h.b16 %v5912
        %v6066 = vunpack.c.l.b16 %v5913
        %v6067 = vunpack.c.h.b16 %v5913
        %v6068 = vunpack.c.l.b16 %v5914
        %v6069 = vunpack.c.h.b16 %v5914
        %v6070 = vunpack.c.l.b16 %v5915
        %v6071 = vunpack.c.h.b16 %v5915
        %v6072 = vunpack.c.l.b16 %v5916
        %v6073 = vunpack.c.h.b16 %v5916
        %v6074 = vunpack.c.l.b16 %v5917
        %v6075 = vunpack.c.h.b16 %v5917
        %v6076 = vunpack.c.l.b16 %v5918
        %v6077 = vunpack.c.h.b16 %v5918
        %v6078 = vunpack.c.l.b16 %v5919
        %v6079 = vunpack.c.h.b16 %v5919
        %v6080 = vunpack.c.l.b16 %v5920
        %v6081 = vunpack.c.h.b16 %v5920
        %v6082 = vunpack.c.l.b16 %v5921
        %v6083 = vunpack.c.h.b16 %v5921
        %v6084 = vunpack.c.l.b16 %v5922
        %v6085 = vunpack.c.h.b16 %v5922
        %v6086 = vunpack.c.l.b16 %v5923
        %v6087 = vunpack.c.h.b16 %v5923
        %v6088 = vunpack.c.l.b16 %v5924
        %v6089 = vunpack.c.h.b16 %v5924
        %v6090 = vunpack.c.l.b16 %v5925
        %v6091 = vunpack.c.h.b16 %v5925
        %v6092 = vunpack.c.l.b16 %v5926
        %v6093 = vunpack.c.h.b16 %v5926
        %v6094 = vunpack.c.l.b16 %v5927
        %v6095 = vunpack.c.h.b16 %v5927
        %v6096 = vunpack.c.l.b16 %v5928
        %v6097 = vunpack.c.h.b16 %v5928
        %v6098 = vunpack.c.l.b16 %v5929
        %v6099 = vunpack.c.h.b16 %v5929
        %v6100 = vunpack.c.l.b16 %v5930
        %v6101 = vunpack.c.h.b16 %v5930
        %v6102 = vunpack.c.l.b16 %v5931
        %v6103 = vunpack.c.h.b16 %v5931
        %v6104 = vunpack.c.l.b16 %v5932
        %v6105 = vunpack.c.h.b16 %v5932
        %v6106 = vunpack.c.l.b16 %v5933
        %v6107 = vunpack.c.h.b16 %v5933
        %v6108 = vunpack.c.l.b16 %v5934
        %v6109 = vunpack.c.h.b16 %v5934
        %v6110 = vunpack.c.l.b16 %v5935
        %v6111 = vunpack.c.h.b16 %v5935
        %v6112 = vunpack.c.l.b16 %v5936
        %v6113 = vunpack.c.h.b16 %v5936
        %v6114 = vunpack.c.l.b16 %v5937
        %v6115 = vunpack.c.h.b16 %v5937
        %v6116 = vunpack.c.l.b16 %v5938
        %v6117 = vunpack.c.h.b16 %v5938
        %v6118 = vunpack.c.l.b16 %v5939
        %v6119 = vunpack.c.h.b16 %v5939
        %v6120 = vunpack.c.l.b16 %v5940
        %v6121 = vunpack.c.h.b16 %v5940
        %v6122 = vunpack.c.l.b16 %v5941
        %v6123 = vunpack.c.h.b16 %v5941
        %v6124 = vunpack.c.l.b16 %v5942
        %v6125 = vunpack.c.h.b16 %v5942
        %v6126 = vunpack.c.l.b16 %v5943
        %v6127 = vunpack.c.h.b16 %v5943
        %v6128 = vunpack.c.l.b16 %v5944
        %v6129 = vunpack.c.h.b16 %v5944
        %v6130 = vunpack.c.l.b16 %v5945
        %v6131 = vunpack.c.h.b16 %v5945
        %v6132 = vunpack.c.l.b16 %v5946
        %v6133 = vunpack.c.h.b16 %v5946
        %v6134 = vunpack.c.l.b16 %v5947
        %v6135 = vunpack.c.h.b16 %v5947
        %v6136 = vunpack.c.l.b16 %v5948
        %v6137 = vunpack.c.h.b16 %v5948
        %v6138 = vunpack.c.l.b16 %v5949
        %v6139 = vunpack.c.h.b16 %v5949
        %v6140 = vunpack.c.l.b16 %v5950
        %v6141 = vunpack.c.h.b16 %v5950
        %v6142 = vunpack.c.l.b16 %v5951
        %v6143 = vunpack.c.h.b16 %v5951
        %v6144 = vunpack.c.l.b16 %v5952
        %v6145 = vunpack.c.h.b16 %v5952
        %v6146 = vunpack.c.l.b16 %v5953
        %v6147 = vunpack.c.h.b16 %v5953
        %v6148 = vpack.c.b16 %v6024, %v6020
        %v6149 = vpack.c.b16 %v6025, %v6021
        %v6150 = vpack.c.b16 %v6026, %v6022
        %v6151 = vpack.c.b16 %v6027, %v6023
        %v6152 = vpack.c.b16 %v6032, %v6028
        %v6153 = vpack.c.b16 %v6033, %v6029
        %v6154 = vpack.c.b16 %v6034, %v6030
        %v6155 = vpack.c.b16 %v6035, %v6031
        %v6156 = vpack.c.b16 %v6040, %v6036
        %v6157 = vpack.c.b16 %v6041, %v6037
        %v6158 = vpack.c.b16 %v6042, %v6038
        %v6159 = vpack.c.b16 %v6043, %v6039
        %v6160 = vpack.c.b16 %v6048, %v6044
        %v6161 = vpack.c.b16 %v6049, %v6045
        %v6162 = vpack.c.b16 %v6050, %v6046
        %v6163 = vpack.c.b16 %v6051, %v6047
        %v6164 = vpack.c.b16 %v6056, %v6052
        %v6165 = vpack.c.b16 %v6057, %v6053
        %v6166 = vpack.c.b16 %v6058, %v6054
        %v6167 = vpack.c.b16 %v6059, %v6055
        %v6168 = vpack.c.b16 %v6064, %v6060
        %v6169 = vpack.c.b16 %v6065, %v6061
        %v6170 = vpack.c.b16 %v6066, %v6062
        %v6171 = vpack.c.b16 %v6067, %v6063
        %v6172 = vpack.c.b16 %v6072, %v6068
        %v6173 = vpack.c.b16 %v6073, %v6069
        %v6174 = vpack.c.b16 %v6074, %v6070
        %v6175 = vpack.c.b16 %v6075, %v6071
        %v6176 = vpack.c.b16 %v6080, %v6076
        %v6177 = vpack.c.b16 %v6081, %v6077
        %v6178 = vpack.c.b16 %v6082, %v6078
        %v6179 = vpack.c.b16 %v6083, %v6079
        %v6180 = vpack.c.b16 %v6088, %v6084
        %v6181 = vpack.c.b16 %v6089, %v6085
        %v6182 = vpack.c.b16 %v6090, %v6086
        %v6183 = vpack.c.b16 %v6091, %v6087
        %v6184 = vpack.c.b16 %v6096, %v6092
        %v6185 = vpack.c.b16 %v6097, %v6093
        %v6186 = vpack.c.b16 %v6098, %v6094
        %v6187 = vpack.c.b16 %v6099, %v6095
        %v6188 = vpack.c.b16 %v6104, %v6100
        %v6189 = vpack.c.b16 %v6105, %v6101
        %v6190 = vpack.c.b16 %v6106, %v6102
        %v6191 = vpack.c.b16 %v6107, %v6103
        %v6192 = vpack.c.b16 %v6112, %v6108
        %v6193 = vpack.c.b16 %v6113, %v6109
        %v6194 = vpack.c.b16 %v6114, %v6110
        %v6195 = vpack.c.b16 %v6115, %v6111
        %v6196 = vpack.c.b16 %v6120, %v6116
        %v6197 = vpack.c.b16 %v6121, %v6117
        %v6198 = vpack.c.b16 %v6122, %v6118
        %v6199 = vpack.c.b16 %v6123, %v6119
        %v6200 = vpack.c.b16 %v6128, %v6124
        %v6201 = vpack.c.b16 %v6129, %v6125
        %v6202 = vpack.c.b16 %v6130, %v6126
        %v6203 = vpack.c.b16 %v6131, %v6127
        %v6204 = vpack.c.b16 %v6136, %v6132
        %v6205 = vpack.c.b16 %v6137, %v6133
        %v6206 = vpack.c.b16 %v6138, %v6134
        %v6207 = vpack.c.b16 %v6139, %v6135
        %v6208 = vpack.c.b16 %v6144, %v6140
        %v6209 = vpack.c.b16 %v6145, %v6141
        %v6210 = vpack.c.b16 %v6146, %v6142
        %v6211 = vpack.c.b16 %v6147, %v6143
        %6276 = vmatpush.bf16.msra.mxu0 %v6176
        %6277 = vmatpush.bf16.msra.mxu0 %v6172
        %6278 = vmatpush.bf16.msra.mxu0 %v6168
        %6279 = vmatpush.bf16.msra.mxu0 %v6164
        %6280 = vmatpush.bf16.msra.mxu0 %v6160
        %6281 = vmatpush.bf16.msra.mxu0 %v6156
        %6282 = vmatpush.bf16.msra.mxu0 %v6152
        %6283 = vmatpush.bf16.msra.mxu0 %v6148
        %6284 = vmatmul.bf16.gmra.mxu0 %v5954
        %v6285 = vpop.f32.mrf.mxu0
        %v6286 = vadd.f32 0.0, %v6285
        %v6287 = vpop.f32.mrf.mxu0
        %6288 = vdwg.mxu0
        %6289 = vmatpush.bf16.msra.mxu0 %v6208
        %6290 = vmatpush.bf16.msra.mxu0 %v6204
        %6291 = vmatpush.bf16.msra.mxu0 %v6200
        %6292 = vmatpush.bf16.msra.mxu0 %v6196
        %6293 = vmatpush.bf16.msra.mxu0 %v6192
        %6294 = vmatpush.bf16.msra.mxu0 %v6188
        %6295 = vmatpush.bf16.msra.mxu0 %v6184
        %6296 = vmatpush.bf16.msra.mxu0 %v6180
        %6297 = vmatmul.bf16.gmra.mxu0 %v5955
        %v6298 = vpop.f32.mrf.mxu0
        %v6299 = vadd.f32 %v6286, %v6298
        %v6300 = vpop.f32.mrf.mxu0
        %6301 = vdwg.mxu0
        %6302 = vmatpush.bf16.msra.mxu0 %v6177
        %6303 = vmatpush.bf16.msra.mxu0 %v6173
        %6304 = vmatpush.bf16.msra.mxu0 %v6169
        %6305 = vmatpush.bf16.msra.mxu0 %v6165
        %6306 = vmatpush.bf16.msra.mxu0 %v6161
        %6307 = vmatpush.bf16.msra.mxu0 %v6157
        %6308 = vmatpush.bf16.msra.mxu0 %v6153
        %6309 = vmatpush.bf16.msra.mxu0 %v6149
        %6310 = vmatmul.bf16.gmra.mxu0 %v5954
        %v6311 = vpop.f32.mrf.mxu0
        %v6312 = vadd.f32 0.0, %v6311
        %v6313 = vpop.f32.mrf.mxu0
        %6314 = vdwg.mxu0
        %6315 = vmatpush.bf16.msra.mxu0 %v6209
        %6316 = vmatpush.bf16.msra.mxu0 %v6205
        %6317 = vmatpush.bf16.msra.mxu0 %v6201
        %6318 = vmatpush.bf16.msra.mxu0 %v6197
        %6319 = vmatpush.bf16.msra.mxu0 %v6193
        %6320 = vmatpush.bf16.msra.mxu0 %v6189
        %6321 = vmatpush.bf16.msra.mxu0 %v6185
        %6322 = vmatpush.bf16.msra.mxu0 %v6181
        %6323 = vmatmul.bf16.gmra.mxu0 %v5955
        %v6324 = vpop.f32.mrf.mxu0
        %v6325 = vadd.f32 %v6312, %v6324
        %v6326 = vpop.f32.mrf.mxu0
        %6327 = vdwg.mxu0
        %6328 = vmatpush.bf16.msra.mxu0 %v6178
        %6329 = vmatpush.bf16.msra.mxu0 %v6174
        %6330 = vmatpush.bf16.msra.mxu0 %v6170
        %6331 = vmatpush.bf16.msra.mxu0 %v6166
        %6332 = vmatpush.bf16.msra.mxu0 %v6162
        %6333 = vmatpush.bf16.msra.mxu0 %v6158
        %6334 = vmatpush.bf16.msra.mxu0 %v6154
        %6335 = vmatpush.bf16.msra.mxu0 %v6150
        %6336 = vmatmul.bf16.gmra.mxu0 %v5954
        %v6337 = vpop.f32.mrf.mxu0
        %v6338 = vadd.f32 0.0, %v6337
        %v6339 = vpop.f32.mrf.mxu0
        %6340 = vdwg.mxu0
        %6341 = vmatpush.bf16.msra.mxu0 %v6210
        %6342 = vmatpush.bf16.msra.mxu0 %v6206
        %6343 = vmatpush.bf16.msra.mxu0 %v6202
        %6344 = vmatpush.bf16.msra.mxu0 %v6198
        %6345 = vmatpush.bf16.msra.mxu0 %v6194
        %6346 = vmatpush.bf16.msra.mxu0 %v6190
        %6347 = vmatpush.bf16.msra.mxu0 %v6186
        %6348 = vmatpush.bf16.msra.mxu0 %v6182
        %6349 = vmatmul.bf16.gmra.mxu0 %v5955
        %v6350 = vpop.f32.mrf.mxu0
        %v6351 = vadd.f32 %v6338, %v6350
        %v6352 = vpop.f32.mrf.mxu0
        %6353 = vdwg.mxu0
        %6354 = vmatpush.bf16.msra.mxu0 %v6179
        %6355 = vmatpush.bf16.msra.mxu0 %v6175
        %6356 = vmatpush.bf16.msra.mxu0 %v6171
        %6357 = vmatpush.bf16.msra.mxu0 %v6167
        %6358 = vmatpush.bf16.msra.mxu0 %v6163
        %6359 = vmatpush.bf16.msra.mxu0 %v6159
        %6360 = vmatpush.bf16.msra.mxu0 %v6155
        %6361 = vmatpush.bf16.msra.mxu0 %v6151
        %6362 = vmatmul.bf16.gmra.mxu0 %v5954
        %v6363 = vpop.f32.mrf.mxu0
        %v6364 = vadd.f32 0.0, %v6363
        %v6365 = vpop.f32.mrf.mxu0
        %6366 = vdwg.mxu0
        %6367 = vmatpush.bf16.msra.mxu0 %v6211
        %6368 = vmatpush.bf16.msra.mxu0 %v6207
        %6369 = vmatpush.bf16.msra.mxu0 %v6203
        %6370 = vmatpush.bf16.msra.mxu0 %v6199
        %6371 = vmatpush.bf16.msra.mxu0 %v6195
        %6372 = vmatpush.bf16.msra.mxu0 %v6191
        %6373 = vmatpush.bf16.msra.mxu0 %v6187
        %6374 = vmatpush.bf16.msra.mxu0 %v6183
        %6375 = vmatmul.bf16.gmra.mxu0 %v5955
        %v6376 = vpop.f32.mrf.mxu0
        %v6377 = vadd.f32 %v6364, %v6376
        %v6378 = vpop.f32.mrf.mxu0
        %6379 = vdwg.mxu0
        %v6380 = vadd.f32 %v5878, %v6299
        %v6381 = vadd.f32 %v5879, %v6325
        %v6382 = vadd.f32 %v5880, %v6351
        %v6383 = vadd.f32 %v5881, %v6377
        %v6384 = vrot.slane %v1351, 2
        %v6385 = vrot.slane %v1352, 2
        %v6388 = vrot.slane %v1357, 1
        %v6389 = vrot.slane %v1358, 1
        %v6392 = vsel %vm1365, %v6384, %v6388
        %v6393 = vsel %vm1365, %v6385, %v6389
        %v6394 = vld [vmem:[%s475 + $0x1400] sm:$0xff]
        %v6395 = vld [vmem:[%s475 + $0x1408] sm:$0xff]
        %v6396 = vld [vmem:[%s475 + $0x1410] sm:$0xff]
        %v6397 = vld [vmem:[%s475 + $0x1418] sm:$0xff]
        %v6398 = vld [vmem:[%s475 + $0x1420] sm:$0xff]
        %v6399 = vld [vmem:[%s475 + $0x1428] sm:$0xff]
        %v6400 = vld [vmem:[%s475 + $0x1430] sm:$0xff]
        %v6401 = vld [vmem:[%s475 + $0x1438] sm:$0xff]
        %v6402 = vld [vmem:[%s475 + $0x1440] sm:$0xff]
        %v6403 = vld [vmem:[%s475 + $0x1448] sm:$0xff]
        %v6404 = vld [vmem:[%s475 + $0x1450] sm:$0xff]
        %v6405 = vld [vmem:[%s475 + $0x1458] sm:$0xff]
        %v6406 = vld [vmem:[%s475 + $0x1460] sm:$0xff]
        %v6407 = vld [vmem:[%s475 + $0x1468] sm:$0xff]
        %v6408 = vld [vmem:[%s475 + $0x1470] sm:$0xff]
        %v6409 = vld [vmem:[%s475 + $0x1478] sm:$0xff]
        %v6410 = vld [vmem:[%s475 + $0x1480] sm:$0xff]
        %v6411 = vld [vmem:[%s475 + $0x1488] sm:$0xff]
        %v6412 = vld [vmem:[%s475 + $0x1490] sm:$0xff]
        %v6413 = vld [vmem:[%s475 + $0x1498] sm:$0xff]
        %v6414 = vld [vmem:[%s475 + $0x14a0] sm:$0xff]
        %v6415 = vld [vmem:[%s475 + $0x14a8] sm:$0xff]
        %v6416 = vld [vmem:[%s475 + $0x14b0] sm:$0xff]
        %v6417 = vld [vmem:[%s475 + $0x14b8] sm:$0xff]
        %v6418 = vld [vmem:[%s475 + $0x14c0] sm:$0xff]
        %v6419 = vld [vmem:[%s475 + $0x14c8] sm:$0xff]
        %v6420 = vld [vmem:[%s475 + $0x14d0] sm:$0xff]
        %v6421 = vld [vmem:[%s475 + $0x14d8] sm:$0xff]
        %v6422 = vld [vmem:[%s475 + $0x14e0] sm:$0xff]
        %v6423 = vld [vmem:[%s475 + $0x14e8] sm:$0xff]
        %v6424 = vld [vmem:[%s475 + $0x14f0] sm:$0xff]
        %v6425 = vld [vmem:[%s475 + $0x14f8] sm:$0xff]
        %v6426 = vld [vmem:[%s475 + $0x1500] sm:$0xff]
        %v6427 = vld [vmem:[%s475 + $0x1508] sm:$0xff]
        %v6428 = vld [vmem:[%s475 + $0x1510] sm:$0xff]
        %v6429 = vld [vmem:[%s475 + $0x1518] sm:$0xff]
        %v6430 = vld [vmem:[%s475 + $0x1520] sm:$0xff]
        %v6431 = vld [vmem:[%s475 + $0x1528] sm:$0xff]
        %v6432 = vld [vmem:[%s475 + $0x1530] sm:$0xff]
        %v6433 = vld [vmem:[%s475 + $0x1538] sm:$0xff]
        %v6434 = vld [vmem:[%s475 + $0x1540] sm:$0xff]
        %v6435 = vld [vmem:[%s475 + $0x1548] sm:$0xff]
        %v6436 = vld [vmem:[%s475 + $0x1550] sm:$0xff]
        %v6437 = vld [vmem:[%s475 + $0x1558] sm:$0xff]
        %v6438 = vld [vmem:[%s475 + $0x1560] sm:$0xff]
        %v6439 = vld [vmem:[%s475 + $0x1568] sm:$0xff]
        %v6440 = vld [vmem:[%s475 + $0x1570] sm:$0xff]
        %v6441 = vld [vmem:[%s475 + $0x1578] sm:$0xff]
        %v6442 = vld [vmem:[%s475 + $0x1580] sm:$0xff]
        %v6443 = vld [vmem:[%s475 + $0x1588] sm:$0xff]
        %v6444 = vld [vmem:[%s475 + $0x1590] sm:$0xff]
        %v6445 = vld [vmem:[%s475 + $0x1598] sm:$0xff]
        %v6446 = vld [vmem:[%s475 + $0x15a0] sm:$0xff]
        %v6447 = vld [vmem:[%s475 + $0x15a8] sm:$0xff]
        %v6448 = vld [vmem:[%s475 + $0x15b0] sm:$0xff]
        %v6449 = vld [vmem:[%s475 + $0x15b8] sm:$0xff]
        %v6450 = vld [vmem:[%s475 + $0x15c0] sm:$0xff]
        %v6451 = vld [vmem:[%s475 + $0x15c8] sm:$0xff]
        %v6452 = vld [vmem:[%s475 + $0x15d0] sm:$0xff]
        %v6453 = vld [vmem:[%s475 + $0x15d8] sm:$0xff]
        %v6454 = vld [vmem:[%s475 + $0x15e0] sm:$0xff]
        %v6455 = vld [vmem:[%s475 + $0x15e8] sm:$0xff]
        %v6456 = vld [vmem:[%s475 + $0x15f0] sm:$0xff]
        %v6457 = vld [vmem:[%s475 + $0x15f8] sm:$0xff]
        %v6458 = vpack.c.bf16 %v6392, %v6392
        %v6459 = vpack.c.bf16 %v6393, %v6393
        %v6524 = vunpack.c.l.b16 %v6394
        %v6525 = vunpack.c.h.b16 %v6394
        %v6526 = vunpack.c.l.b16 %v6395
        %v6527 = vunpack.c.h.b16 %v6395
        %v6528 = vunpack.c.l.b16 %v6396
        %v6529 = vunpack.c.h.b16 %v6396
        %v6530 = vunpack.c.l.b16 %v6397
        %v6531 = vunpack.c.h.b16 %v6397
        %v6532 = vunpack.c.l.b16 %v6398
        %v6533 = vunpack.c.h.b16 %v6398
        %v6534 = vunpack.c.l.b16 %v6399
        %v6535 = vunpack.c.h.b16 %v6399
        %v6536 = vunpack.c.l.b16 %v6400
        %v6537 = vunpack.c.h.b16 %v6400
        %v6538 = vunpack.c.l.b16 %v6401
        %v6539 = vunpack.c.h.b16 %v6401
        %v6540 = vunpack.c.l.b16 %v6402
        %v6541 = vunpack.c.h.b16 %v6402
        %v6542 = vunpack.c.l.b16 %v6403
        %v6543 = vunpack.c.h.b16 %v6403
        %v6544 = vunpack.c.l.b16 %v6404
        %v6545 = vunpack.c.h.b16 %v6404
        %v6546 = vunpack.c.l.b16 %v6405
        %v6547 = vunpack.c.h.b16 %v6405
        %v6548 = vunpack.c.l.b16 %v6406
        %v6549 = vunpack.c.h.b16 %v6406
        %v6550 = vunpack.c.l.b16 %v6407
        %v6551 = vunpack.c.h.b16 %v6407
        %v6552 = vunpack.c.l.b16 %v6408
        %v6553 = vunpack.c.h.b16 %v6408
        %v6554 = vunpack.c.l.b16 %v6409
        %v6555 = vunpack.c.h.b16 %v6409
        %v6556 = vunpack.c.l.b16 %v6410
        %v6557 = vunpack.c.h.b16 %v6410
        %v6558 = vunpack.c.l.b16 %v6411
        %v6559 = vunpack.c.h.b16 %v6411
        %v6560 = vunpack.c.l.b16 %v6412
        %v6561 = vunpack.c.h.b16 %v6412
        %v6562 = vunpack.c.l.b16 %v6413
        %v6563 = vunpack.c.h.b16 %v6413
        %v6564 = vunpack.c.l.b16 %v6414
        %v6565 = vunpack.c.h.b16 %v6414
        %v6566 = vunpack.c.l.b16 %v6415
        %v6567 = vunpack.c.h.b16 %v6415
        %v6568 = vunpack.c.l.b16 %v6416
        %v6569 = vunpack.c.h.b16 %v6416
        %v6570 = vunpack.c.l.b16 %v6417
        %v6571 = vunpack.c.h.b16 %v6417
        %v6572 = vunpack.c.l.b16 %v6418
        %v6573 = vunpack.c.h.b16 %v6418
        %v6574 = vunpack.c.l.b16 %v6419
        %v6575 = vunpack.c.h.b16 %v6419
        %v6576 = vunpack.c.l.b16 %v6420
        %v6577 = vunpack.c.h.b16 %v6420
        %v6578 = vunpack.c.l.b16 %v6421
        %v6579 = vunpack.c.h.b16 %v6421
        %v6580 = vunpack.c.l.b16 %v6422
        %v6581 = vunpack.c.h.b16 %v6422
        %v6582 = vunpack.c.l.b16 %v6423
        %v6583 = vunpack.c.h.b16 %v6423
        %v6584 = vunpack.c.l.b16 %v6424
        %v6585 = vunpack.c.h.b16 %v6424
        %v6586 = vunpack.c.l.b16 %v6425
        %v6587 = vunpack.c.h.b16 %v6425
        %v6588 = vunpack.c.l.b16 %v6426
        %v6589 = vunpack.c.h.b16 %v6426
        %v6590 = vunpack.c.l.b16 %v6427
        %v6591 = vunpack.c.h.b16 %v6427
        %v6592 = vunpack.c.l.b16 %v6428
        %v6593 = vunpack.c.h.b16 %v6428
        %v6594 = vunpack.c.l.b16 %v6429
        %v6595 = vunpack.c.h.b16 %v6429
        %v6596 = vunpack.c.l.b16 %v6430
        %v6597 = vunpack.c.h.b16 %v6430
        %v6598 = vunpack.c.l.b16 %v6431
        %v6599 = vunpack.c.h.b16 %v6431
        %v6600 = vunpack.c.l.b16 %v6432
        %v6601 = vunpack.c.h.b16 %v6432
        %v6602 = vunpack.c.l.b16 %v6433
        %v6603 = vunpack.c.h.b16 %v6433
        %v6604 = vunpack.c.l.b16 %v6434
        %v6605 = vunpack.c.h.b16 %v6434
        %v6606 = vunpack.c.l.b16 %v6435
        %v6607 = vunpack.c.h.b16 %v6435
        %v6608 = vunpack.c.l.b16 %v6436
        %v6609 = vunpack.c.h.b16 %v6436
        %v6610 = vunpack.c.l.b16 %v6437
        %v6611 = vunpack.c.h.b16 %v6437
        %v6612 = vunpack.c.l.b16 %v6438
        %v6613 = vunpack.c.h.b16 %v6438
        %v6614 = vunpack.c.l.b16 %v6439
        %v6615 = vunpack.c.h.b16 %v6439
        %v6616 = vunpack.c.l.b16 %v6440
        %v6617 = vunpack.c.h.b16 %v6440
        %v6618 = vunpack.c.l.b16 %v6441
        %v6619 = vunpack.c.h.b16 %v6441
        %v6620 = vunpack.c.l.b16 %v6442
        %v6621 = vunpack.c.h.b16 %v6442
        %v6622 = vunpack.c.l.b16 %v6443
        %v6623 = vunpack.c.h.b16 %v6443
        %v6624 = vunpack.c.l.b16 %v6444
        %v6625 = vunpack.c.h.b16 %v6444
        %v6626 = vunpack.c.l.b16 %v6445
        %v6627 = vunpack.c.h.b16 %v6445
        %v6628 = vunpack.c.l.b16 %v6446
        %v6629 = vunpack.c.h.b16 %v6446
        %v6630 = vunpack.c.l.b16 %v6447
        %v6631 = vunpack.c.h.b16 %v6447
        %v6632 = vunpack.c.l.b16 %v6448
        %v6633 = vunpack.c.h.b16 %v6448
        %v6634 = vunpack.c.l.b16 %v6449
        %v6635 = vunpack.c.h.b16 %v6449
        %v6636 = vunpack.c.l.b16 %v6450
        %v6637 = vunpack.c.h.b16 %v6450
        %v6638 = vunpack.c.l.b16 %v6451
        %v6639 = vunpack.c.h.b16 %v6451
        %v6640 = vunpack.c.l.b16 %v6452
        %v6641 = vunpack.c.h.b16 %v6452
        %v6642 = vunpack.c.l.b16 %v6453
        %v6643 = vunpack.c.h.b16 %v6453
        %v6644 = vunpack.c.l.b16 %v6454
        %v6645 = vunpack.c.h.b16 %v6454
        %v6646 = vunpack.c.l.b16 %v6455
        %v6647 = vunpack.c.h.b16 %v6455
        %v6648 = vunpack.c.l.b16 %v6456
        %v6649 = vunpack.c.h.b16 %v6456
        %v6650 = vunpack.c.l.b16 %v6457
        %v6651 = vunpack.c.h.b16 %v6457
        %v6652 = vpack.c.b16 %v6528, %v6524
        %v6653 = vpack.c.b16 %v6529, %v6525
        %v6654 = vpack.c.b16 %v6530, %v6526
        %v6655 = vpack.c.b16 %v6531, %v6527
        %v6656 = vpack.c.b16 %v6536, %v6532
        %v6657 = vpack.c.b16 %v6537, %v6533
        %v6658 = vpack.c.b16 %v6538, %v6534
        %v6659 = vpack.c.b16 %v6539, %v6535
        %v6660 = vpack.c.b16 %v6544, %v6540
        %v6661 = vpack.c.b16 %v6545, %v6541
        %v6662 = vpack.c.b16 %v6546, %v6542
        %v6663 = vpack.c.b16 %v6547, %v6543
        %v6664 = vpack.c.b16 %v6552, %v6548
        %v6665 = vpack.c.b16 %v6553, %v6549
        %v6666 = vpack.c.b16 %v6554, %v6550
        %v6667 = vpack.c.b16 %v6555, %v6551
        %v6668 = vpack.c.b16 %v6560, %v6556
        %v6669 = vpack.c.b16 %v6561, %v6557
        %v6670 = vpack.c.b16 %v6562, %v6558
        %v6671 = vpack.c.b16 %v6563, %v6559
        %v6672 = vpack.c.b16 %v6568, %v6564
        %v6673 = vpack.c.b16 %v6569, %v6565
        %v6674 = vpack.c.b16 %v6570, %v6566
        %v6675 = vpack.c.b16 %v6571, %v6567
        %v6676 = vpack.c.b16 %v6576, %v6572
        %v6677 = vpack.c.b16 %v6577, %v6573
        %v6678 = vpack.c.b16 %v6578, %v6574
        %v6679 = vpack.c.b16 %v6579, %v6575
        %v6680 = vpack.c.b16 %v6584, %v6580
        %v6681 = vpack.c.b16 %v6585, %v6581
        %v6682 = vpack.c.b16 %v6586, %v6582
        %v6683 = vpack.c.b16 %v6587, %v6583
        %v6684 = vpack.c.b16 %v6592, %v6588
        %v6685 = vpack.c.b16 %v6593, %v6589
        %v6686 = vpack.c.b16 %v6594, %v6590
        %v6687 = vpack.c.b16 %v6595, %v6591
        %v6688 = vpack.c.b16 %v6600, %v6596
        %v6689 = vpack.c.b16 %v6601, %v6597
        %v6690 = vpack.c.b16 %v6602, %v6598
        %v6691 = vpack.c.b16 %v6603, %v6599
        %v6692 = vpack.c.b16 %v6608, %v6604
        %v6693 = vpack.c.b16 %v6609, %v6605
        %v6694 = vpack.c.b16 %v6610, %v6606
        %v6695 = vpack.c.b16 %v6611, %v6607
        %v6696 = vpack.c.b16 %v6616, %v6612
        %v6697 = vpack.c.b16 %v6617, %v6613
        %v6698 = vpack.c.b16 %v6618, %v6614
        %v6699 = vpack.c.b16 %v6619, %v6615
        %v6700 = vpack.c.b16 %v6624, %v6620
        %v6701 = vpack.c.b16 %v6625, %v6621
        %v6702 = vpack.c.b16 %v6626, %v6622
        %v6703 = vpack.c.b16 %v6627, %v6623
        %v6704 = vpack.c.b16 %v6632, %v6628
        %v6705 = vpack.c.b16 %v6633, %v6629
        %v6706 = vpack.c.b16 %v6634, %v6630
        %v6707 = vpack.c.b16 %v6635, %v6631
        %v6708 = vpack.c.b16 %v6640, %v6636
        %v6709 = vpack.c.b16 %v6641, %v6637
        %v6710 = vpack.c.b16 %v6642, %v6638
        %v6711 = vpack.c.b16 %v6643, %v6639
        %v6712 = vpack.c.b16 %v6648, %v6644
        %v6713 = vpack.c.b16 %v6649, %v6645
        %v6714 = vpack.c.b16 %v6650, %v6646
        %v6715 = vpack.c.b16 %v6651, %v6647
        %6780 = vmatpush.bf16.msra.mxu0 %v6680
        %6781 = vmatpush.bf16.msra.mxu0 %v6676
        %6782 = vmatpush.bf16.msra.mxu0 %v6672
        %6783 = vmatpush.bf16.msra.mxu0 %v6668
        %6784 = vmatpush.bf16.msra.mxu0 %v6664
        %6785 = vmatpush.bf16.msra.mxu0 %v6660
        %6786 = vmatpush.bf16.msra.mxu0 %v6656
        %6787 = vmatpush.bf16.msra.mxu0 %v6652
        %6788 = vmatmul.bf16.gmra.mxu0 %v6458
        %v6789 = vpop.f32.mrf.mxu0
        %v6790 = vadd.f32 0.0, %v6789
        %v6791 = vpop.f32.mrf.mxu0
        %6792 = vdwg.mxu0
        %6793 = vmatpush.bf16.msra.mxu0 %v6712
        %6794 = vmatpush.bf16.msra.mxu0 %v6708
        %6795 = vmatpush.bf16.msra.mxu0 %v6704
        %6796 = vmatpush.bf16.msra.mxu0 %v6700
        %6797 = vmatpush.bf16.msra.mxu0 %v6696
        %6798 = vmatpush.bf16.msra.mxu0 %v6692
        %6799 = vmatpush.bf16.msra.mxu0 %v6688
        %6800 = vmatpush.bf16.msra.mxu0 %v6684
        %6801 = vmatmul.bf16.gmra.mxu0 %v6459
        %v6802 = vpop.f32.mrf.mxu0
        %v6803 = vadd.f32 %v6790, %v6802
        %v6804 = vpop.f32.mrf.mxu0
        %6805 = vdwg.mxu0
        %6806 = vmatpush.bf16.msra.mxu0 %v6681
        %6807 = vmatpush.bf16.msra.mxu0 %v6677
        %6808 = vmatpush.bf16.msra.mxu0 %v6673
        %6809 = vmatpush.bf16.msra.mxu0 %v6669
        %6810 = vmatpush.bf16.msra.mxu0 %v6665
        %6811 = vmatpush.bf16.msra.mxu0 %v6661
        %6812 = vmatpush.bf16.msra.mxu0 %v6657
        %6813 = vmatpush.bf16.msra.mxu0 %v6653
        %6814 = vmatmul.bf16.gmra.mxu0 %v6458
        %v6815 = vpop.f32.mrf.mxu0
        %v6816 = vadd.f32 0.0, %v6815
        %v6817 = vpop.f32.mrf.mxu0
        %6818 = vdwg.mxu0
        %6819 = vmatpush.bf16.msra.mxu0 %v6713
        %6820 = vmatpush.bf16.msra.mxu0 %v6709
        %6821 = vmatpush.bf16.msra.mxu0 %v6705
        %6822 = vmatpush.bf16.msra.mxu0 %v6701
        %6823 = vmatpush.bf16.msra.mxu0 %v6697
        %6824 = vmatpush.bf16.msra.mxu0 %v6693
        %6825 = vmatpush.bf16.msra.mxu0 %v6689
        %6826 = vmatpush.bf16.msra.mxu0 %v6685
        %6827 = vmatmul.bf16.gmra.mxu0 %v6459
        %v6828 = vpop.f32.mrf.mxu0
        %v6829 = vadd.f32 %v6816, %v6828
        %v6830 = vpop.f32.mrf.mxu0
        %6831 = vdwg.mxu0
        %6832 = vmatpush.bf16.msra.mxu0 %v6682
        %6833 = vmatpush.bf16.msra.mxu0 %v6678
        %6834 = vmatpush.bf16.msra.mxu0 %v6674
        %6835 = vmatpush.bf16.msra.mxu0 %v6670
        %6836 = vmatpush.bf16.msra.mxu0 %v6666
        %6837 = vmatpush.bf16.msra.mxu0 %v6662
        %6838 = vmatpush.bf16.msra.mxu0 %v6658
        %6839 = vmatpush.bf16.msra.mxu0 %v6654
        %6840 = vmatmul.bf16.gmra.mxu0 %v6458
        %v6841 = vpop.f32.mrf.mxu0
        %v6842 = vadd.f32 0.0, %v6841
        %v6843 = vpop.f32.mrf.mxu0
        %6844 = vdwg.mxu0
        %6845 = vmatpush.bf16.msra.mxu0 %v6714
        %6846 = vmatpush.bf16.msra.mxu0 %v6710
        %6847 = vmatpush.bf16.msra.mxu0 %v6706
        %6848 = vmatpush.bf16.msra.mxu0 %v6702
        %6849 = vmatpush.bf16.msra.mxu0 %v6698
        %6850 = vmatpush.bf16.msra.mxu0 %v6694
        %6851 = vmatpush.bf16.msra.mxu0 %v6690
        %6852 = vmatpush.bf16.msra.mxu0 %v6686
        %6853 = vmatmul.bf16.gmra.mxu0 %v6459
        %v6854 = vpop.f32.mrf.mxu0
        %v6855 = vadd.f32 %v6842, %v6854
        %v6856 = vpop.f32.mrf.mxu0
        %6857 = vdwg.mxu0
        %6858 = vmatpush.bf16.msra.mxu0 %v6683
        %6859 = vmatpush.bf16.msra.mxu0 %v6679
        %6860 = vmatpush.bf16.msra.mxu0 %v6675
        %6861 = vmatpush.bf16.msra.mxu0 %v6671
        %6862 = vmatpush.bf16.msra.mxu0 %v6667
        %6863 = vmatpush.bf16.msra.mxu0 %v6663
        %6864 = vmatpush.bf16.msra.mxu0 %v6659
        %6865 = vmatpush.bf16.msra.mxu0 %v6655
        %6866 = vmatmul.bf16.gmra.mxu0 %v6458
        %v6867 = vpop.f32.mrf.mxu0
        %v6868 = vadd.f32 0.0, %v6867
        %v6869 = vpop.f32.mrf.mxu0
        %6870 = vdwg.mxu0
        %6871 = vmatpush.bf16.msra.mxu0 %v6715
        %6872 = vmatpush.bf16.msra.mxu0 %v6711
        %6873 = vmatpush.bf16.msra.mxu0 %v6707
        %6874 = vmatpush.bf16.msra.mxu0 %v6703
        %6875 = vmatpush.bf16.msra.mxu0 %v6699
        %6876 = vmatpush.bf16.msra.mxu0 %v6695
        %6877 = vmatpush.bf16.msra.mxu0 %v6691
        %6878 = vmatpush.bf16.msra.mxu0 %v6687
        %6879 = vmatmul.bf16.gmra.mxu0 %v6459
        %v6880 = vpop.f32.mrf.mxu0
        %v6881 = vadd.f32 %v6868, %v6880
        %v6882 = vpop.f32.mrf.mxu0
        %6883 = vdwg.mxu0
        %v6884 = vadd.f32 %v6380, %v6803
        %v6885 = vadd.f32 %v6381, %v6829
        %v6886 = vadd.f32 %v6382, %v6855
        %v6887 = vadd.f32 %v6383, %v6881
        %v6888 = vrot.slane %v1351, 3
        %v6889 = vrot.slane %v1352, 3
        %v6892 = vrot.slane %v1357, 2
        %v6893 = vrot.slane %v1358, 2
        %v6896 = vsel %vm1365, %v6888, %v6892
        %v6897 = vsel %vm1365, %v6889, %v6893
        %v6898 = vld [vmem:[%s475 + $0x1600] sm:$0xff]
        %v6899 = vld [vmem:[%s475 + $0x1608] sm:$0xff]
        %v6900 = vld [vmem:[%s475 + $0x1610] sm:$0xff]
        %v6901 = vld [vmem:[%s475 + $0x1618] sm:$0xff]
        %v6902 = vld [vmem:[%s475 + $0x1620] sm:$0xff]
        %v6903 = vld [vmem:[%s475 + $0x1628] sm:$0xff]
        %v6904 = vld [vmem:[%s475 + $0x1630] sm:$0xff]
        %v6905 = vld [vmem:[%s475 + $0x1638] sm:$0xff]
        %v6906 = vld [vmem:[%s475 + $0x1640] sm:$0xff]
        %v6907 = vld [vmem:[%s475 + $0x1648] sm:$0xff]
        %v6908 = vld [vmem:[%s475 + $0x1650] sm:$0xff]
        %v6909 = vld [vmem:[%s475 + $0x1658] sm:$0xff]
        %v6910 = vld [vmem:[%s475 + $0x1660] sm:$0xff]
        %v6911 = vld [vmem:[%s475 + $0x1668] sm:$0xff]
        %v6912 = vld [vmem:[%s475 + $0x1670] sm:$0xff]
        %v6913 = vld [vmem:[%s475 + $0x1678] sm:$0xff]
        %v6914 = vld [vmem:[%s475 + $0x1680] sm:$0xff]
        %v6915 = vld [vmem:[%s475 + $0x1688] sm:$0xff]
        %v6916 = vld [vmem:[%s475 + $0x1690] sm:$0xff]
        %v6917 = vld [vmem:[%s475 + $0x1698] sm:$0xff]
        %v6918 = vld [vmem:[%s475 + $0x16a0] sm:$0xff]
        %v6919 = vld [vmem:[%s475 + $0x16a8] sm:$0xff]
        %v6920 = vld [vmem:[%s475 + $0x16b0] sm:$0xff]
        %v6921 = vld [vmem:[%s475 + $0x16b8] sm:$0xff]
        %v6922 = vld [vmem:[%s475 + $0x16c0] sm:$0xff]
        %v6923 = vld [vmem:[%s475 + $0x16c8] sm:$0xff]
        %v6924 = vld [vmem:[%s475 + $0x16d0] sm:$0xff]
        %v6925 = vld [vmem:[%s475 + $0x16d8] sm:$0xff]
        %v6926 = vld [vmem:[%s475 + $0x16e0] sm:$0xff]
        %v6927 = vld [vmem:[%s475 + $0x16e8] sm:$0xff]
        %v6928 = vld [vmem:[%s475 + $0x16f0] sm:$0xff]
        %v6929 = vld [vmem:[%s475 + $0x16f8] sm:$0xff]
        %v6930 = vld [vmem:[%s475 + $0x1700] sm:$0xff]
        %v6931 = vld [vmem:[%s475 + $0x1708] sm:$0xff]
        %v6932 = vld [vmem:[%s475 + $0x1710] sm:$0xff]
        %v6933 = vld [vmem:[%s475 + $0x1718] sm:$0xff]
        %v6934 = vld [vmem:[%s475 + $0x1720] sm:$0xff]
        %v6935 = vld [vmem:[%s475 + $0x1728] sm:$0xff]
        %v6936 = vld [vmem:[%s475 + $0x1730] sm:$0xff]
        %v6937 = vld [vmem:[%s475 + $0x1738] sm:$0xff]
        %v6938 = vld [vmem:[%s475 + $0x1740] sm:$0xff]
        %v6939 = vld [vmem:[%s475 + $0x1748] sm:$0xff]
        %v6940 = vld [vmem:[%s475 + $0x1750] sm:$0xff]
        %v6941 = vld [vmem:[%s475 + $0x1758] sm:$0xff]
        %v6942 = vld [vmem:[%s475 + $0x1760] sm:$0xff]
        %v6943 = vld [vmem:[%s475 + $0x1768] sm:$0xff]
        %v6944 = vld [vmem:[%s475 + $0x1770] sm:$0xff]
        %v6945 = vld [vmem:[%s475 + $0x1778] sm:$0xff]
        %v6946 = vld [vmem:[%s475 + $0x1780] sm:$0xff]
        %v6947 = vld [vmem:[%s475 + $0x1788] sm:$0xff]
        %v6948 = vld [vmem:[%s475 + $0x1790] sm:$0xff]
        %v6949 = vld [vmem:[%s475 + $0x1798] sm:$0xff]
        %v6950 = vld [vmem:[%s475 + $0x17a0] sm:$0xff]
        %v6951 = vld [vmem:[%s475 + $0x17a8] sm:$0xff]
        %v6952 = vld [vmem:[%s475 + $0x17b0] sm:$0xff]
        %v6953 = vld [vmem:[%s475 + $0x17b8] sm:$0xff]
        %v6954 = vld [vmem:[%s475 + $0x17c0] sm:$0xff]
        %v6955 = vld [vmem:[%s475 + $0x17c8] sm:$0xff]
        %v6956 = vld [vmem:[%s475 + $0x17d0] sm:$0xff]
        %v6957 = vld [vmem:[%s475 + $0x17d8] sm:$0xff]
        %v6958 = vld [vmem:[%s475 + $0x17e0] sm:$0xff]
        %v6959 = vld [vmem:[%s475 + $0x17e8] sm:$0xff]
        %v6960 = vld [vmem:[%s475 + $0x17f0] sm:$0xff]
        %v6961 = vld [vmem:[%s475 + $0x17f8] sm:$0xff]
        %v6962 = vpack.c.bf16 %v6896, %v6896
        %v6963 = vpack.c.bf16 %v6897, %v6897
        %v7028 = vunpack.c.l.b16 %v6898
        %v7029 = vunpack.c.h.b16 %v6898
        %v7030 = vunpack.c.l.b16 %v6899
        %v7031 = vunpack.c.h.b16 %v6899
        %v7032 = vunpack.c.l.b16 %v6900
        %v7033 = vunpack.c.h.b16 %v6900
        %v7034 = vunpack.c.l.b16 %v6901
        %v7035 = vunpack.c.h.b16 %v6901
        %v7036 = vunpack.c.l.b16 %v6902
        %v7037 = vunpack.c.h.b16 %v6902
        %v7038 = vunpack.c.l.b16 %v6903
        %v7039 = vunpack.c.h.b16 %v6903
        %v7040 = vunpack.c.l.b16 %v6904
        %v7041 = vunpack.c.h.b16 %v6904
        %v7042 = vunpack.c.l.b16 %v6905
        %v7043 = vunpack.c.h.b16 %v6905
        %v7044 = vunpack.c.l.b16 %v6906
        %v7045 = vunpack.c.h.b16 %v6906
        %v7046 = vunpack.c.l.b16 %v6907
        %v7047 = vunpack.c.h.b16 %v6907
        %v7048 = vunpack.c.l.b16 %v6908
        %v7049 = vunpack.c.h.b16 %v6908
        %v7050 = vunpack.c.l.b16 %v6909
        %v7051 = vunpack.c.h.b16 %v6909
        %v7052 = vunpack.c.l.b16 %v6910
        %v7053 = vunpack.c.h.b16 %v6910
        %v7054 = vunpack.c.l.b16 %v6911
        %v7055 = vunpack.c.h.b16 %v6911
        %v7056 = vunpack.c.l.b16 %v6912
        %v7057 = vunpack.c.h.b16 %v6912
        %v7058 = vunpack.c.l.b16 %v6913
        %v7059 = vunpack.c.h.b16 %v6913
        %v7060 = vunpack.c.l.b16 %v6914
        %v7061 = vunpack.c.h.b16 %v6914
        %v7062 = vunpack.c.l.b16 %v6915
        %v7063 = vunpack.c.h.b16 %v6915
        %v7064 = vunpack.c.l.b16 %v6916
        %v7065 = vunpack.c.h.b16 %v6916
        %v7066 = vunpack.c.l.b16 %v6917
        %v7067 = vunpack.c.h.b16 %v6917
        %v7068 = vunpack.c.l.b16 %v6918
        %v7069 = vunpack.c.h.b16 %v6918
        %v7070 = vunpack.c.l.b16 %v6919
        %v7071 = vunpack.c.h.b16 %v6919
        %v7072 = vunpack.c.l.b16 %v6920
        %v7073 = vunpack.c.h.b16 %v6920
        %v7074 = vunpack.c.l.b16 %v6921
        %v7075 = vunpack.c.h.b16 %v6921
        %v7076 = vunpack.c.l.b16 %v6922
        %v7077 = vunpack.c.h.b16 %v6922
        %v7078 = vunpack.c.l.b16 %v6923
        %v7079 = vunpack.c.h.b16 %v6923
        %v7080 = vunpack.c.l.b16 %v6924
        %v7081 = vunpack.c.h.b16 %v6924
        %v7082 = vunpack.c.l.b16 %v6925
        %v7083 = vunpack.c.h.b16 %v6925
        %v7084 = vunpack.c.l.b16 %v6926
        %v7085 = vunpack.c.h.b16 %v6926
        %v7086 = vunpack.c.l.b16 %v6927
        %v7087 = vunpack.c.h.b16 %v6927
        %v7088 = vunpack.c.l.b16 %v6928
        %v7089 = vunpack.c.h.b16 %v6928
        %v7090 = vunpack.c.l.b16 %v6929
        %v7091 = vunpack.c.h.b16 %v6929
        %v7092 = vunpack.c.l.b16 %v6930
        %v7093 = vunpack.c.h.b16 %v6930
        %v7094 = vunpack.c.l.b16 %v6931
        %v7095 = vunpack.c.h.b16 %v6931
        %v7096 = vunpack.c.l.b16 %v6932
        %v7097 = vunpack.c.h.b16 %v6932
        %v7098 = vunpack.c.l.b16 %v6933
        %v7099 = vunpack.c.h.b16 %v6933
        %v7100 = vunpack.c.l.b16 %v6934
        %v7101 = vunpack.c.h.b16 %v6934
        %v7102 = vunpack.c.l.b16 %v6935
        %v7103 = vunpack.c.h.b16 %v6935
        %v7104 = vunpack.c.l.b16 %v6936
        %v7105 = vunpack.c.h.b16 %v6936
        %v7106 = vunpack.c.l.b16 %v6937
        %v7107 = vunpack.c.h.b16 %v6937
        %v7108 = vunpack.c.l.b16 %v6938
        %v7109 = vunpack.c.h.b16 %v6938
        %v7110 = vunpack.c.l.b16 %v6939
        %v7111 = vunpack.c.h.b16 %v6939
        %v7112 = vunpack.c.l.b16 %v6940
        %v7113 = vunpack.c.h.b16 %v6940
        %v7114 = vunpack.c.l.b16 %v6941
        %v7115 = vunpack.c.h.b16 %v6941
        %v7116 = vunpack.c.l.b16 %v6942
        %v7117 = vunpack.c.h.b16 %v6942
        %v7118 = vunpack.c.l.b16 %v6943
        %v7119 = vunpack.c.h.b16 %v6943
        %v7120 = vunpack.c.l.b16 %v6944
        %v7121 = vunpack.c.h.b16 %v6944
        %v7122 = vunpack.c.l.b16 %v6945
        %v7123 = vunpack.c.h.b16 %v6945
        %v7124 = vunpack.c.l.b16 %v6946
        %v7125 = vunpack.c.h.b16 %v6946
        %v7126 = vunpack.c.l.b16 %v6947
        %v7127 = vunpack.c.h.b16 %v6947
        %v7128 = vunpack.c.l.b16 %v6948
        %v7129 = vunpack.c.h.b16 %v6948
        %v7130 = vunpack.c.l.b16 %v6949
        %v7131 = vunpack.c.h.b16 %v6949
        %v7132 = vunpack.c.l.b16 %v6950
        %v7133 = vunpack.c.h.b16 %v6950
        %v7134 = vunpack.c.l.b16 %v6951
        %v7135 = vunpack.c.h.b16 %v6951
        %v7136 = vunpack.c.l.b16 %v6952
        %v7137 = vunpack.c.h.b16 %v6952
        %v7138 = vunpack.c.l.b16 %v6953
        %v7139 = vunpack.c.h.b16 %v6953
        %v7140 = vunpack.c.l.b16 %v6954
        %v7141 = vunpack.c.h.b16 %v6954
        %v7142 = vunpack.c.l.b16 %v6955
        %v7143 = vunpack.c.h.b16 %v6955
        %v7144 = vunpack.c.l.b16 %v6956
        %v7145 = vunpack.c.h.b16 %v6956
        %v7146 = vunpack.c.l.b16 %v6957
        %v7147 = vunpack.c.h.b16 %v6957
        %v7148 = vunpack.c.l.b16 %v6958
        %v7149 = vunpack.c.h.b16 %v6958
        %v7150 = vunpack.c.l.b16 %v6959
        %v7151 = vunpack.c.h.b16 %v6959
        %v7152 = vunpack.c.l.b16 %v6960
        %v7153 = vunpack.c.h.b16 %v6960
        %v7154 = vunpack.c.l.b16 %v6961
        %v7155 = vunpack.c.h.b16 %v6961
        %v7156 = vpack.c.b16 %v7032, %v7028
        %v7157 = vpack.c.b16 %v7033, %v7029
        %v7158 = vpack.c.b16 %v7034, %v7030
        %v7159 = vpack.c.b16 %v7035, %v7031
        %v7160 = vpack.c.b16 %v7040, %v7036
        %v7161 = vpack.c.b16 %v7041, %v7037
        %v7162 = vpack.c.b16 %v7042, %v7038
        %v7163 = vpack.c.b16 %v7043, %v7039
        %v7164 = vpack.c.b16 %v7048, %v7044
        %v7165 = vpack.c.b16 %v7049, %v7045
        %v7166 = vpack.c.b16 %v7050, %v7046
        %v7167 = vpack.c.b16 %v7051, %v7047
        %v7168 = vpack.c.b16 %v7056, %v7052
        %v7169 = vpack.c.b16 %v7057, %v7053
        %v7170 = vpack.c.b16 %v7058, %v7054
        %v7171 = vpack.c.b16 %v7059, %v7055
        %v7172 = vpack.c.b16 %v7064, %v7060
        %v7173 = vpack.c.b16 %v7065, %v7061
        %v7174 = vpack.c.b16 %v7066, %v7062
        %v7175 = vpack.c.b16 %v7067, %v7063
        %v7176 = vpack.c.b16 %v7072, %v7068
        %v7177 = vpack.c.b16 %v7073, %v7069
        %v7178 = vpack.c.b16 %v7074, %v7070
        %v7179 = vpack.c.b16 %v7075, %v7071
        %v7180 = vpack.c.b16 %v7080, %v7076
        %v7181 = vpack.c.b16 %v7081, %v7077
        %v7182 = vpack.c.b16 %v7082, %v7078
        %v7183 = vpack.c.b16 %v7083, %v7079
        %v7184 = vpack.c.b16 %v7088, %v7084
        %v7185 = vpack.c.b16 %v7089, %v7085
        %v7186 = vpack.c.b16 %v7090, %v7086
        %v7187 = vpack.c.b16 %v7091, %v7087
        %v7188 = vpack.c.b16 %v7096, %v7092
        %v7189 = vpack.c.b16 %v7097, %v7093
        %v7190 = vpack.c.b16 %v7098, %v7094
        %v7191 = vpack.c.b16 %v7099, %v7095
        %v7192 = vpack.c.b16 %v7104, %v7100
        %v7193 = vpack.c.b16 %v7105, %v7101
        %v7194 = vpack.c.b16 %v7106, %v7102
        %v7195 = vpack.c.b16 %v7107, %v7103
        %v7196 = vpack.c.b16 %v7112, %v7108
        %v7197 = vpack.c.b16 %v7113, %v7109
        %v7198 = vpack.c.b16 %v7114, %v7110
        %v7199 = vpack.c.b16 %v7115, %v7111
        %v7200 = vpack.c.b16 %v7120, %v7116
        %v7201 = vpack.c.b16 %v7121, %v7117
        %v7202 = vpack.c.b16 %v7122, %v7118
        %v7203 = vpack.c.b16 %v7123, %v7119
        %v7204 = vpack.c.b16 %v7128, %v7124
        %v7205 = vpack.c.b16 %v7129, %v7125
        %v7206 = vpack.c.b16 %v7130, %v7126
        %v7207 = vpack.c.b16 %v7131, %v7127
        %v7208 = vpack.c.b16 %v7136, %v7132
        %v7209 = vpack.c.b16 %v7137, %v7133
        %v7210 = vpack.c.b16 %v7138, %v7134
        %v7211 = vpack.c.b16 %v7139, %v7135
        %v7212 = vpack.c.b16 %v7144, %v7140
        %v7213 = vpack.c.b16 %v7145, %v7141
        %v7214 = vpack.c.b16 %v7146, %v7142
        %v7215 = vpack.c.b16 %v7147, %v7143
        %v7216 = vpack.c.b16 %v7152, %v7148
        %v7217 = vpack.c.b16 %v7153, %v7149
        %v7218 = vpack.c.b16 %v7154, %v7150
        %v7219 = vpack.c.b16 %v7155, %v7151
        %7284 = vmatpush.bf16.msra.mxu0 %v7184
        %7285 = vmatpush.bf16.msra.mxu0 %v7180
        %7286 = vmatpush.bf16.msra.mxu0 %v7176
        %7287 = vmatpush.bf16.msra.mxu0 %v7172
        %7288 = vmatpush.bf16.msra.mxu0 %v7168
        %7289 = vmatpush.bf16.msra.mxu0 %v7164
        %7290 = vmatpush.bf16.msra.mxu0 %v7160
        %7291 = vmatpush.bf16.msra.mxu0 %v7156
        %7292 = vmatmul.bf16.gmra.mxu0 %v6962
        %v7293 = vpop.f32.mrf.mxu0
        %v7294 = vadd.f32 0.0, %v7293
        %v7295 = vpop.f32.mrf.mxu0
        %7296 = vdwg.mxu0
        %7297 = vmatpush.bf16.msra.mxu0 %v7216
        %7298 = vmatpush.bf16.msra.mxu0 %v7212
        %7299 = vmatpush.bf16.msra.mxu0 %v7208
        %7300 = vmatpush.bf16.msra.mxu0 %v7204
        %7301 = vmatpush.bf16.msra.mxu0 %v7200
        %7302 = vmatpush.bf16.msra.mxu0 %v7196
        %7303 = vmatpush.bf16.msra.mxu0 %v7192
        %7304 = vmatpush.bf16.msra.mxu0 %v7188
        %7305 = vmatmul.bf16.gmra.mxu0 %v6963
        %v7306 = vpop.f32.mrf.mxu0
        %v7307 = vadd.f32 %v7294, %v7306
        %v7308 = vpop.f32.mrf.mxu0
        %7309 = vdwg.mxu0
        %7310 = vmatpush.bf16.msra.mxu0 %v7185
        %7311 = vmatpush.bf16.msra.mxu0 %v7181
        %7312 = vmatpush.bf16.msra.mxu0 %v7177
        %7313 = vmatpush.bf16.msra.mxu0 %v7173
        %7314 = vmatpush.bf16.msra.mxu0 %v7169
        %7315 = vmatpush.bf16.msra.mxu0 %v7165
        %7316 = vmatpush.bf16.msra.mxu0 %v7161
        %7317 = vmatpush.bf16.msra.mxu0 %v7157
        %7318 = vmatmul.bf16.gmra.mxu0 %v6962
        %v7319 = vpop.f32.mrf.mxu0
        %v7320 = vadd.f32 0.0, %v7319
        %v7321 = vpop.f32.mrf.mxu0
        %7322 = vdwg.mxu0
        %7323 = vmatpush.bf16.msra.mxu0 %v7217
        %7324 = vmatpush.bf16.msra.mxu0 %v7213
        %7325 = vmatpush.bf16.msra.mxu0 %v7209
        %7326 = vmatpush.bf16.msra.mxu0 %v7205
        %7327 = vmatpush.bf16.msra.mxu0 %v7201
        %7328 = vmatpush.bf16.msra.mxu0 %v7197
        %7329 = vmatpush.bf16.msra.mxu0 %v7193
        %7330 = vmatpush.bf16.msra.mxu0 %v7189
        %7331 = vmatmul.bf16.gmra.mxu0 %v6963
        %v7332 = vpop.f32.mrf.mxu0
        %v7333 = vadd.f32 %v7320, %v7332
        %v7334 = vpop.f32.mrf.mxu0
        %7335 = vdwg.mxu0
        %7336 = vmatpush.bf16.msra.mxu0 %v7186
        %7337 = vmatpush.bf16.msra.mxu0 %v7182
        %7338 = vmatpush.bf16.msra.mxu0 %v7178
        %7339 = vmatpush.bf16.msra.mxu0 %v7174
        %7340 = vmatpush.bf16.msra.mxu0 %v7170
        %7341 = vmatpush.bf16.msra.mxu0 %v7166
        %7342 = vmatpush.bf16.msra.mxu0 %v7162
        %7343 = vmatpush.bf16.msra.mxu0 %v7158
        %7344 = vmatmul.bf16.gmra.mxu0 %v6962
        %v7345 = vpop.f32.mrf.mxu0
        %v7346 = vadd.f32 0.0, %v7345
        %v7347 = vpop.f32.mrf.mxu0
        %7348 = vdwg.mxu0
        %7349 = vmatpush.bf16.msra.mxu0 %v7218
        %7350 = vmatpush.bf16.msra.mxu0 %v7214
        %7351 = vmatpush.bf16.msra.mxu0 %v7210
        %7352 = vmatpush.bf16.msra.mxu0 %v7206
        %7353 = vmatpush.bf16.msra.mxu0 %v7202
        %7354 = vmatpush.bf16.msra.mxu0 %v7198
        %7355 = vmatpush.bf16.msra.mxu0 %v7194
        %7356 = vmatpush.bf16.msra.mxu0 %v7190
        %7357 = vmatmul.bf16.gmra.mxu0 %v6963
        %v7358 = vpop.f32.mrf.mxu0
        %v7359 = vadd.f32 %v7346, %v7358
        %v7360 = vpop.f32.mrf.mxu0
        %7361 = vdwg.mxu0
        %7362 = vmatpush.bf16.msra.mxu0 %v7187
        %7363 = vmatpush.bf16.msra.mxu0 %v7183
        %7364 = vmatpush.bf16.msra.mxu0 %v7179
        %7365 = vmatpush.bf16.msra.mxu0 %v7175
        %7366 = vmatpush.bf16.msra.mxu0 %v7171
        %7367 = vmatpush.bf16.msra.mxu0 %v7167
        %7368 = vmatpush.bf16.msra.mxu0 %v7163
        %7369 = vmatpush.bf16.msra.mxu0 %v7159
        %7370 = vmatmul.bf16.gmra.mxu0 %v6962
        %v7371 = vpop.f32.mrf.mxu0
        %v7372 = vadd.f32 0.0, %v7371
        %v7373 = vpop.f32.mrf.mxu0
        %7374 = vdwg.mxu0
        %7375 = vmatpush.bf16.msra.mxu0 %v7219
        %7376 = vmatpush.bf16.msra.mxu0 %v7215
        %7377 = vmatpush.bf16.msra.mxu0 %v7211
        %7378 = vmatpush.bf16.msra.mxu0 %v7207
        %7379 = vmatpush.bf16.msra.mxu0 %v7203
        %7380 = vmatpush.bf16.msra.mxu0 %v7199
        %7381 = vmatpush.bf16.msra.mxu0 %v7195
        %7382 = vmatpush.bf16.msra.mxu0 %v7191
        %7383 = vmatmul.bf16.gmra.mxu0 %v6963
        %v7384 = vpop.f32.mrf.mxu0
        %v7385 = vadd.f32 %v7372, %v7384
        %v7386 = vpop.f32.mrf.mxu0
        %7387 = vdwg.mxu0
        %v7388 = vadd.f32 %v6884, %v7307
        %v7389 = vadd.f32 %v6885, %v7333
        %v7390 = vadd.f32 %v6886, %v7359
        %v7391 = vadd.f32 %v6887, %v7385
        %v7392 = vrot.slane %v1351, 4
        %v7393 = vrot.slane %v1352, 4
        %v7396 = vrot.slane %v1357, 3
        %v7397 = vrot.slane %v1358, 3
        %v7400 = vsel %vm1365, %v7392, %v7396
        %v7401 = vsel %vm1365, %v7393, %v7397
        %v7402 = vld [vmem:[%s475 + $0x1800] sm:$0xff]
        %v7403 = vld [vmem:[%s475 + $0x1808] sm:$0xff]
        %v7404 = vld [vmem:[%s475 + $0x1810] sm:$0xff]
        %v7405 = vld [vmem:[%s475 + $0x1818] sm:$0xff]
        %v7406 = vld [vmem:[%s475 + $0x1820] sm:$0xff]
        %v7407 = vld [vmem:[%s475 + $0x1828] sm:$0xff]
        %v7408 = vld [vmem:[%s475 + $0x1830] sm:$0xff]
        %v7409 = vld [vmem:[%s475 + $0x1838] sm:$0xff]
        %v7410 = vld [vmem:[%s475 + $0x1840] sm:$0xff]
        %v7411 = vld [vmem:[%s475 + $0x1848] sm:$0xff]
        %v7412 = vld [vmem:[%s475 + $0x1850] sm:$0xff]
        %v7413 = vld [vmem:[%s475 + $0x1858] sm:$0xff]
        %v7414 = vld [vmem:[%s475 + $0x1860] sm:$0xff]
        %v7415 = vld [vmem:[%s475 + $0x1868] sm:$0xff]
        %v7416 = vld [vmem:[%s475 + $0x1870] sm:$0xff]
        %v7417 = vld [vmem:[%s475 + $0x1878] sm:$0xff]
        %v7418 = vld [vmem:[%s475 + $0x1880] sm:$0xff]
        %v7419 = vld [vmem:[%s475 + $0x1888] sm:$0xff]
        %v7420 = vld [vmem:[%s475 + $0x1890] sm:$0xff]
        %v7421 = vld [vmem:[%s475 + $0x1898] sm:$0xff]
        %v7422 = vld [vmem:[%s475 + $0x18a0] sm:$0xff]
        %v7423 = vld [vmem:[%s475 + $0x18a8] sm:$0xff]
        %v7424 = vld [vmem:[%s475 + $0x18b0] sm:$0xff]
        %v7425 = vld [vmem:[%s475 + $0x18b8] sm:$0xff]
        %v7426 = vld [vmem:[%s475 + $0x18c0] sm:$0xff]
        %v7427 = vld [vmem:[%s475 + $0x18c8] sm:$0xff]
        %v7428 = vld [vmem:[%s475 + $0x18d0] sm:$0xff]
        %v7429 = vld [vmem:[%s475 + $0x18d8] sm:$0xff]
        %v7430 = vld [vmem:[%s475 + $0x18e0] sm:$0xff]
        %v7431 = vld [vmem:[%s475 + $0x18e8] sm:$0xff]
        %v7432 = vld [vmem:[%s475 + $0x18f0] sm:$0xff]
        %v7433 = vld [vmem:[%s475 + $0x18f8] sm:$0xff]
        %v7434 = vld [vmem:[%s475 + $0x1900] sm:$0xff]
        %v7435 = vld [vmem:[%s475 + $0x1908] sm:$0xff]
        %v7436 = vld [vmem:[%s475 + $0x1910] sm:$0xff]
        %v7437 = vld [vmem:[%s475 + $0x1918] sm:$0xff]
        %v7438 = vld [vmem:[%s475 + $0x1920] sm:$0xff]
        %v7439 = vld [vmem:[%s475 + $0x1928] sm:$0xff]
        %v7440 = vld [vmem:[%s475 + $0x1930] sm:$0xff]
        %v7441 = vld [vmem:[%s475 + $0x1938] sm:$0xff]
        %v7442 = vld [vmem:[%s475 + $0x1940] sm:$0xff]
        %v7443 = vld [vmem:[%s475 + $0x1948] sm:$0xff]
        %v7444 = vld [vmem:[%s475 + $0x1950] sm:$0xff]
        %v7445 = vld [vmem:[%s475 + $0x1958] sm:$0xff]
        %v7446 = vld [vmem:[%s475 + $0x1960] sm:$0xff]
        %v7447 = vld [vmem:[%s475 + $0x1968] sm:$0xff]
        %v7448 = vld [vmem:[%s475 + $0x1970] sm:$0xff]
        %v7449 = vld [vmem:[%s475 + $0x1978] sm:$0xff]
        %v7450 = vld [vmem:[%s475 + $0x1980] sm:$0xff]
        %v7451 = vld [vmem:[%s475 + $0x1988] sm:$0xff]
        %v7452 = vld [vmem:[%s475 + $0x1990] sm:$0xff]
        %v7453 = vld [vmem:[%s475 + $0x1998] sm:$0xff]
        %v7454 = vld [vmem:[%s475 + $0x19a0] sm:$0xff]
        %v7455 = vld [vmem:[%s475 + $0x19a8] sm:$0xff]
        %v7456 = vld [vmem:[%s475 + $0x19b0] sm:$0xff]
        %v7457 = vld [vmem:[%s475 + $0x19b8] sm:$0xff]
        %v7458 = vld [vmem:[%s475 + $0x19c0] sm:$0xff]
        %v7459 = vld [vmem:[%s475 + $0x19c8] sm:$0xff]
        %v7460 = vld [vmem:[%s475 + $0x19d0] sm:$0xff]
        %v7461 = vld [vmem:[%s475 + $0x19d8] sm:$0xff]
        %v7462 = vld [vmem:[%s475 + $0x19e0] sm:$0xff]
        %v7463 = vld [vmem:[%s475 + $0x19e8] sm:$0xff]
        %v7464 = vld [vmem:[%s475 + $0x19f0] sm:$0xff]
        %v7465 = vld [vmem:[%s475 + $0x19f8] sm:$0xff]
        %v7466 = vpack.c.bf16 %v7400, %v7400
        %v7467 = vpack.c.bf16 %v7401, %v7401
        %v7532 = vunpack.c.l.b16 %v7402
        %v7533 = vunpack.c.h.b16 %v7402
        %v7534 = vunpack.c.l.b16 %v7403
        %v7535 = vunpack.c.h.b16 %v7403
        %v7536 = vunpack.c.l.b16 %v7404
        %v7537 = vunpack.c.h.b16 %v7404
        %v7538 = vunpack.c.l.b16 %v7405
        %v7539 = vunpack.c.h.b16 %v7405
        %v7540 = vunpack.c.l.b16 %v7406
        %v7541 = vunpack.c.h.b16 %v7406
        %v7542 = vunpack.c.l.b16 %v7407
        %v7543 = vunpack.c.h.b16 %v7407
        %v7544 = vunpack.c.l.b16 %v7408
        %v7545 = vunpack.c.h.b16 %v7408
        %v7546 = vunpack.c.l.b16 %v7409
        %v7547 = vunpack.c.h.b16 %v7409
        %v7548 = vunpack.c.l.b16 %v7410
        %v7549 = vunpack.c.h.b16 %v7410
        %v7550 = vunpack.c.l.b16 %v7411
        %v7551 = vunpack.c.h.b16 %v7411
        %v7552 = vunpack.c.l.b16 %v7412
        %v7553 = vunpack.c.h.b16 %v7412
        %v7554 = vunpack.c.l.b16 %v7413
        %v7555 = vunpack.c.h.b16 %v7413
        %v7556 = vunpack.c.l.b16 %v7414
        %v7557 = vunpack.c.h.b16 %v7414
        %v7558 = vunpack.c.l.b16 %v7415
        %v7559 = vunpack.c.h.b16 %v7415
        %v7560 = vunpack.c.l.b16 %v7416
        %v7561 = vunpack.c.h.b16 %v7416
        %v7562 = vunpack.c.l.b16 %v7417
        %v7563 = vunpack.c.h.b16 %v7417
        %v7564 = vunpack.c.l.b16 %v7418
        %v7565 = vunpack.c.h.b16 %v7418
        %v7566 = vunpack.c.l.b16 %v7419
        %v7567 = vunpack.c.h.b16 %v7419
        %v7568 = vunpack.c.l.b16 %v7420
        %v7569 = vunpack.c.h.b16 %v7420
        %v7570 = vunpack.c.l.b16 %v7421
        %v7571 = vunpack.c.h.b16 %v7421
        %v7572 = vunpack.c.l.b16 %v7422
        %v7573 = vunpack.c.h.b16 %v7422
        %v7574 = vunpack.c.l.b16 %v7423
        %v7575 = vunpack.c.h.b16 %v7423
        %v7576 = vunpack.c.l.b16 %v7424
        %v7577 = vunpack.c.h.b16 %v7424
        %v7578 = vunpack.c.l.b16 %v7425
        %v7579 = vunpack.c.h.b16 %v7425
        %v7580 = vunpack.c.l.b16 %v7426
        %v7581 = vunpack.c.h.b16 %v7426
        %v7582 = vunpack.c.l.b16 %v7427
        %v7583 = vunpack.c.h.b16 %v7427
        %v7584 = vunpack.c.l.b16 %v7428
        %v7585 = vunpack.c.h.b16 %v7428
        %v7586 = vunpack.c.l.b16 %v7429
        %v7587 = vunpack.c.h.b16 %v7429
        %v7588 = vunpack.c.l.b16 %v7430
        %v7589 = vunpack.c.h.b16 %v7430
        %v7590 = vunpack.c.l.b16 %v7431
        %v7591 = vunpack.c.h.b16 %v7431
        %v7592 = vunpack.c.l.b16 %v7432
        %v7593 = vunpack.c.h.b16 %v7432
        %v7594 = vunpack.c.l.b16 %v7433
        %v7595 = vunpack.c.h.b16 %v7433
        %v7596 = vunpack.c.l.b16 %v7434
        %v7597 = vunpack.c.h.b16 %v7434
        %v7598 = vunpack.c.l.b16 %v7435
        %v7599 = vunpack.c.h.b16 %v7435
        %v7600 = vunpack.c.l.b16 %v7436
        %v7601 = vunpack.c.h.b16 %v7436
        %v7602 = vunpack.c.l.b16 %v7437
        %v7603 = vunpack.c.h.b16 %v7437
        %v7604 = vunpack.c.l.b16 %v7438
        %v7605 = vunpack.c.h.b16 %v7438
        %v7606 = vunpack.c.l.b16 %v7439
        %v7607 = vunpack.c.h.b16 %v7439
        %v7608 = vunpack.c.l.b16 %v7440
        %v7609 = vunpack.c.h.b16 %v7440
        %v7610 = vunpack.c.l.b16 %v7441
        %v7611 = vunpack.c.h.b16 %v7441
        %v7612 = vunpack.c.l.b16 %v7442
        %v7613 = vunpack.c.h.b16 %v7442
        %v7614 = vunpack.c.l.b16 %v7443
        %v7615 = vunpack.c.h.b16 %v7443
        %v7616 = vunpack.c.l.b16 %v7444
        %v7617 = vunpack.c.h.b16 %v7444
        %v7618 = vunpack.c.l.b16 %v7445
        %v7619 = vunpack.c.h.b16 %v7445
        %v7620 = vunpack.c.l.b16 %v7446
        %v7621 = vunpack.c.h.b16 %v7446
        %v7622 = vunpack.c.l.b16 %v7447
        %v7623 = vunpack.c.h.b16 %v7447
        %v7624 = vunpack.c.l.b16 %v7448
        %v7625 = vunpack.c.h.b16 %v7448
        %v7626 = vunpack.c.l.b16 %v7449
        %v7627 = vunpack.c.h.b16 %v7449
        %v7628 = vunpack.c.l.b16 %v7450
        %v7629 = vunpack.c.h.b16 %v7450
        %v7630 = vunpack.c.l.b16 %v7451
        %v7631 = vunpack.c.h.b16 %v7451
        %v7632 = vunpack.c.l.b16 %v7452
        %v7633 = vunpack.c.h.b16 %v7452
        %v7634 = vunpack.c.l.b16 %v7453
        %v7635 = vunpack.c.h.b16 %v7453
        %v7636 = vunpack.c.l.b16 %v7454
        %v7637 = vunpack.c.h.b16 %v7454
        %v7638 = vunpack.c.l.b16 %v7455
        %v7639 = vunpack.c.h.b16 %v7455
        %v7640 = vunpack.c.l.b16 %v7456
        %v7641 = vunpack.c.h.b16 %v7456
        %v7642 = vunpack.c.l.b16 %v7457
        %v7643 = vunpack.c.h.b16 %v7457
        %v7644 = vunpack.c.l.b16 %v7458
        %v7645 = vunpack.c.h.b16 %v7458
        %v7646 = vunpack.c.l.b16 %v7459
        %v7647 = vunpack.c.h.b16 %v7459
        %v7648 = vunpack.c.l.b16 %v7460
        %v7649 = vunpack.c.h.b16 %v7460
        %v7650 = vunpack.c.l.b16 %v7461
        %v7651 = vunpack.c.h.b16 %v7461
        %v7652 = vunpack.c.l.b16 %v7462
        %v7653 = vunpack.c.h.b16 %v7462
        %v7654 = vunpack.c.l.b16 %v7463
        %v7655 = vunpack.c.h.b16 %v7463
        %v7656 = vunpack.c.l.b16 %v7464
        %v7657 = vunpack.c.h.b16 %v7464
        %v7658 = vunpack.c.l.b16 %v7465
        %v7659 = vunpack.c.h.b16 %v7465
        %v7660 = vpack.c.b16 %v7536, %v7532
        %v7661 = vpack.c.b16 %v7537, %v7533
        %v7662 = vpack.c.b16 %v7538, %v7534
        %v7663 = vpack.c.b16 %v7539, %v7535
        %v7664 = vpack.c.b16 %v7544, %v7540
        %v7665 = vpack.c.b16 %v7545, %v7541
        %v7666 = vpack.c.b16 %v7546, %v7542
        %v7667 = vpack.c.b16 %v7547, %v7543
        %v7668 = vpack.c.b16 %v7552, %v7548
        %v7669 = vpack.c.b16 %v7553, %v7549
        %v7670 = vpack.c.b16 %v7554, %v7550
        %v7671 = vpack.c.b16 %v7555, %v7551
        %v7672 = vpack.c.b16 %v7560, %v7556
        %v7673 = vpack.c.b16 %v7561, %v7557
        %v7674 = vpack.c.b16 %v7562, %v7558
        %v7675 = vpack.c.b16 %v7563, %v7559
        %v7676 = vpack.c.b16 %v7568, %v7564
        %v7677 = vpack.c.b16 %v7569, %v7565
        %v7678 = vpack.c.b16 %v7570, %v7566
        %v7679 = vpack.c.b16 %v7571, %v7567
        %v7680 = vpack.c.b16 %v7576, %v7572
        %v7681 = vpack.c.b16 %v7577, %v7573
        %v7682 = vpack.c.b16 %v7578, %v7574
        %v7683 = vpack.c.b16 %v7579, %v7575
        %v7684 = vpack.c.b16 %v7584, %v7580
        %v7685 = vpack.c.b16 %v7585, %v7581
        %v7686 = vpack.c.b16 %v7586, %v7582
        %v7687 = vpack.c.b16 %v7587, %v7583
        %v7688 = vpack.c.b16 %v7592, %v7588
        %v7689 = vpack.c.b16 %v7593, %v7589
        %v7690 = vpack.c.b16 %v7594, %v7590
        %v7691 = vpack.c.b16 %v7595, %v7591
        %v7692 = vpack.c.b16 %v7600, %v7596
        %v7693 = vpack.c.b16 %v7601, %v7597
        %v7694 = vpack.c.b16 %v7602, %v7598
        %v7695 = vpack.c.b16 %v7603, %v7599
        %v7696 = vpack.c.b16 %v7608, %v7604
        %v7697 = vpack.c.b16 %v7609, %v7605
        %v7698 = vpack.c.b16 %v7610, %v7606
        %v7699 = vpack.c.b16 %v7611, %v7607
        %v7700 = vpack.c.b16 %v7616, %v7612
        %v7701 = vpack.c.b16 %v7617, %v7613
        %v7702 = vpack.c.b16 %v7618, %v7614
        %v7703 = vpack.c.b16 %v7619, %v7615
        %v7704 = vpack.c.b16 %v7624, %v7620
        %v7705 = vpack.c.b16 %v7625, %v7621
        %v7706 = vpack.c.b16 %v7626, %v7622
        %v7707 = vpack.c.b16 %v7627, %v7623
        %v7708 = vpack.c.b16 %v7632, %v7628
        %v7709 = vpack.c.b16 %v7633, %v7629
        %v7710 = vpack.c.b16 %v7634, %v7630
        %v7711 = vpack.c.b16 %v7635, %v7631
        %v7712 = vpack.c.b16 %v7640, %v7636
        %v7713 = vpack.c.b16 %v7641, %v7637
        %v7714 = vpack.c.b16 %v7642, %v7638
        %v7715 = vpack.c.b16 %v7643, %v7639
        %v7716 = vpack.c.b16 %v7648, %v7644
        %v7717 = vpack.c.b16 %v7649, %v7645
        %v7718 = vpack.c.b16 %v7650, %v7646
        %v7719 = vpack.c.b16 %v7651, %v7647
        %v7720 = vpack.c.b16 %v7656, %v7652
        %v7721 = vpack.c.b16 %v7657, %v7653
        %v7722 = vpack.c.b16 %v7658, %v7654
        %v7723 = vpack.c.b16 %v7659, %v7655
        %7788 = vmatpush.bf16.msra.mxu0 %v7688
        %7789 = vmatpush.bf16.msra.mxu0 %v7684
        %7790 = vmatpush.bf16.msra.mxu0 %v7680
        %7791 = vmatpush.bf16.msra.mxu0 %v7676
        %7792 = vmatpush.bf16.msra.mxu0 %v7672
        %7793 = vmatpush.bf16.msra.mxu0 %v7668
        %7794 = vmatpush.bf16.msra.mxu0 %v7664
        %7795 = vmatpush.bf16.msra.mxu0 %v7660
        %7796 = vmatmul.bf16.gmra.mxu0 %v7466
        %v7797 = vpop.f32.mrf.mxu0
        %v7798 = vadd.f32 0.0, %v7797
        %v7799 = vpop.f32.mrf.mxu0
        %7800 = vdwg.mxu0
        %7801 = vmatpush.bf16.msra.mxu0 %v7720
        %7802 = vmatpush.bf16.msra.mxu0 %v7716
        %7803 = vmatpush.bf16.msra.mxu0 %v7712
        %7804 = vmatpush.bf16.msra.mxu0 %v7708
        %7805 = vmatpush.bf16.msra.mxu0 %v7704
        %7806 = vmatpush.bf16.msra.mxu0 %v7700
        %7807 = vmatpush.bf16.msra.mxu0 %v7696
        %7808 = vmatpush.bf16.msra.mxu0 %v7692
        %7809 = vmatmul.bf16.gmra.mxu0 %v7467
        %v7810 = vpop.f32.mrf.mxu0
        %v7811 = vadd.f32 %v7798, %v7810
        %v7812 = vpop.f32.mrf.mxu0
        %7813 = vdwg.mxu0
        %7814 = vmatpush.bf16.msra.mxu0 %v7689
        %7815 = vmatpush.bf16.msra.mxu0 %v7685
        %7816 = vmatpush.bf16.msra.mxu0 %v7681
        %7817 = vmatpush.bf16.msra.mxu0 %v7677
        %7818 = vmatpush.bf16.msra.mxu0 %v7673
        %7819 = vmatpush.bf16.msra.mxu0 %v7669
        %7820 = vmatpush.bf16.msra.mxu0 %v7665
        %7821 = vmatpush.bf16.msra.mxu0 %v7661
        %7822 = vmatmul.bf16.gmra.mxu0 %v7466
        %v7823 = vpop.f32.mrf.mxu0
        %v7824 = vadd.f32 0.0, %v7823
        %v7825 = vpop.f32.mrf.mxu0
        %7826 = vdwg.mxu0
        %7827 = vmatpush.bf16.msra.mxu0 %v7721
        %7828 = vmatpush.bf16.msra.mxu0 %v7717
        %7829 = vmatpush.bf16.msra.mxu0 %v7713
        %7830 = vmatpush.bf16.msra.mxu0 %v7709
        %7831 = vmatpush.bf16.msra.mxu0 %v7705
        %7832 = vmatpush.bf16.msra.mxu0 %v7701
        %7833 = vmatpush.bf16.msra.mxu0 %v7697
        %7834 = vmatpush.bf16.msra.mxu0 %v7693
        %7835 = vmatmul.bf16.gmra.mxu0 %v7467
        %v7836 = vpop.f32.mrf.mxu0
        %v7837 = vadd.f32 %v7824, %v7836
        %v7838 = vpop.f32.mrf.mxu0
        %7839 = vdwg.mxu0
        %7840 = vmatpush.bf16.msra.mxu0 %v7690
        %7841 = vmatpush.bf16.msra.mxu0 %v7686
        %7842 = vmatpush.bf16.msra.mxu0 %v7682
        %7843 = vmatpush.bf16.msra.mxu0 %v7678
        %7844 = vmatpush.bf16.msra.mxu0 %v7674
        %7845 = vmatpush.bf16.msra.mxu0 %v7670
        %7846 = vmatpush.bf16.msra.mxu0 %v7666
        %7847 = vmatpush.bf16.msra.mxu0 %v7662
        %7848 = vmatmul.bf16.gmra.mxu0 %v7466
        %v7849 = vpop.f32.mrf.mxu0
        %v7850 = vadd.f32 0.0, %v7849
        %v7851 = vpop.f32.mrf.mxu0
        %7852 = vdwg.mxu0
        %7853 = vmatpush.bf16.msra.mxu0 %v7722
        %7854 = vmatpush.bf16.msra.mxu0 %v7718
        %7855 = vmatpush.bf16.msra.mxu0 %v7714
        %7856 = vmatpush.bf16.msra.mxu0 %v7710
        %7857 = vmatpush.bf16.msra.mxu0 %v7706
        %7858 = vmatpush.bf16.msra.mxu0 %v7702
        %7859 = vmatpush.bf16.msra.mxu0 %v7698
        %7860 = vmatpush.bf16.msra.mxu0 %v7694
        %7861 = vmatmul.bf16.gmra.mxu0 %v7467
        %v7862 = vpop.f32.mrf.mxu0
        %v7863 = vadd.f32 %v7850, %v7862
        %v7864 = vpop.f32.mrf.mxu0
        %7865 = vdwg.mxu0
        %7866 = vmatpush.bf16.msra.mxu0 %v7691
        %7867 = vmatpush.bf16.msra.mxu0 %v7687
        %7868 = vmatpush.bf16.msra.mxu0 %v7683
        %7869 = vmatpush.bf16.msra.mxu0 %v7679
        %7870 = vmatpush.bf16.msra.mxu0 %v7675
        %7871 = vmatpush.bf16.msra.mxu0 %v7671
        %7872 = vmatpush.bf16.msra.mxu0 %v7667
        %7873 = vmatpush.bf16.msra.mxu0 %v7663
        %7874 = vmatmul.bf16.gmra.mxu0 %v7466
        %v7875 = vpop.f32.mrf.mxu0
        %v7876 = vadd.f32 0.0, %v7875
        %v7877 = vpop.f32.mrf.mxu0
        %7878 = vdwg.mxu0
        %7879 = vmatpush.bf16.msra.mxu0 %v7723
        %7880 = vmatpush.bf16.msra.mxu0 %v7719
        %7881 = vmatpush.bf16.msra.mxu0 %v7715
        %7882 = vmatpush.bf16.msra.mxu0 %v7711
        %7883 = vmatpush.bf16.msra.mxu0 %v7707
        %7884 = vmatpush.bf16.msra.mxu0 %v7703
        %7885 = vmatpush.bf16.msra.mxu0 %v7699
        %7886 = vmatpush.bf16.msra.mxu0 %v7695
        %7887 = vmatmul.bf16.gmra.mxu0 %v7467
        %v7888 = vpop.f32.mrf.mxu0
        %v7889 = vadd.f32 %v7876, %v7888
        %v7890 = vpop.f32.mrf.mxu0
        %7891 = vdwg.mxu0
        %v7892 = vadd.f32 %v7388, %v7811
        %v7893 = vadd.f32 %v7389, %v7837
        %v7894 = vadd.f32 %v7390, %v7863
        %v7895 = vadd.f32 %v7391, %v7889
        %v7896 = vrot.slane %v1351, 5
        %v7897 = vrot.slane %v1352, 5
        %v7900 = vrot.slane %v1357, 4
        %v7901 = vrot.slane %v1358, 4
        %v7904 = vsel %vm1365, %v7896, %v7900
        %v7905 = vsel %vm1365, %v7897, %v7901
        %v7906 = vld [vmem:[%s475 + $0x1a00] sm:$0xff]
        %v7907 = vld [vmem:[%s475 + $0x1a08] sm:$0xff]
        %v7908 = vld [vmem:[%s475 + $0x1a10] sm:$0xff]
        %v7909 = vld [vmem:[%s475 + $0x1a18] sm:$0xff]
        %v7910 = vld [vmem:[%s475 + $0x1a20] sm:$0xff]
        %v7911 = vld [vmem:[%s475 + $0x1a28] sm:$0xff]
        %v7912 = vld [vmem:[%s475 + $0x1a30] sm:$0xff]
        %v7913 = vld [vmem:[%s475 + $0x1a38] sm:$0xff]
        %v7914 = vld [vmem:[%s475 + $0x1a40] sm:$0xff]
        %v7915 = vld [vmem:[%s475 + $0x1a48] sm:$0xff]
        %v7916 = vld [vmem:[%s475 + $0x1a50] sm:$0xff]
        %v7917 = vld [vmem:[%s475 + $0x1a58] sm:$0xff]
        %v7918 = vld [vmem:[%s475 + $0x1a60] sm:$0xff]
        %v7919 = vld [vmem:[%s475 + $0x1a68] sm:$0xff]
        %v7920 = vld [vmem:[%s475 + $0x1a70] sm:$0xff]
        %v7921 = vld [vmem:[%s475 + $0x1a78] sm:$0xff]
        %v7922 = vld [vmem:[%s475 + $0x1a80] sm:$0xff]
        %v7923 = vld [vmem:[%s475 + $0x1a88] sm:$0xff]
        %v7924 = vld [vmem:[%s475 + $0x1a90] sm:$0xff]
        %v7925 = vld [vmem:[%s475 + $0x1a98] sm:$0xff]
        %v7926 = vld [vmem:[%s475 + $0x1aa0] sm:$0xff]
        %v7927 = vld [vmem:[%s475 + $0x1aa8] sm:$0xff]
        %v7928 = vld [vmem:[%s475 + $0x1ab0] sm:$0xff]
        %v7929 = vld [vmem:[%s475 + $0x1ab8] sm:$0xff]
        %v7930 = vld [vmem:[%s475 + $0x1ac0] sm:$0xff]
        %v7931 = vld [vmem:[%s475 + $0x1ac8] sm:$0xff]
        %v7932 = vld [vmem:[%s475 + $0x1ad0] sm:$0xff]
        %v7933 = vld [vmem:[%s475 + $0x1ad8] sm:$0xff]
        %v7934 = vld [vmem:[%s475 + $0x1ae0] sm:$0xff]
        %v7935 = vld [vmem:[%s475 + $0x1ae8] sm:$0xff]
        %v7936 = vld [vmem:[%s475 + $0x1af0] sm:$0xff]
        %v7937 = vld [vmem:[%s475 + $0x1af8] sm:$0xff]
        %v7938 = vld [vmem:[%s475 + $0x1b00] sm:$0xff]
        %v7939 = vld [vmem:[%s475 + $0x1b08] sm:$0xff]
        %v7940 = vld [vmem:[%s475 + $0x1b10] sm:$0xff]
        %v7941 = vld [vmem:[%s475 + $0x1b18] sm:$0xff]
        %v7942 = vld [vmem:[%s475 + $0x1b20] sm:$0xff]
        %v7943 = vld [vmem:[%s475 + $0x1b28] sm:$0xff]
        %v7944 = vld [vmem:[%s475 + $0x1b30] sm:$0xff]
        %v7945 = vld [vmem:[%s475 + $0x1b38] sm:$0xff]
        %v7946 = vld [vmem:[%s475 + $0x1b40] sm:$0xff]
        %v7947 = vld [vmem:[%s475 + $0x1b48] sm:$0xff]
        %v7948 = vld [vmem:[%s475 + $0x1b50] sm:$0xff]
        %v7949 = vld [vmem:[%s475 + $0x1b58] sm:$0xff]
        %v7950 = vld [vmem:[%s475 + $0x1b60] sm:$0xff]
        %v7951 = vld [vmem:[%s475 + $0x1b68] sm:$0xff]
        %v7952 = vld [vmem:[%s475 + $0x1b70] sm:$0xff]
        %v7953 = vld [vmem:[%s475 + $0x1b78] sm:$0xff]
        %v7954 = vld [vmem:[%s475 + $0x1b80] sm:$0xff]
        %v7955 = vld [vmem:[%s475 + $0x1b88] sm:$0xff]
        %v7956 = vld [vmem:[%s475 + $0x1b90] sm:$0xff]
        %v7957 = vld [vmem:[%s475 + $0x1b98] sm:$0xff]
        %v7958 = vld [vmem:[%s475 + $0x1ba0] sm:$0xff]
        %v7959 = vld [vmem:[%s475 + $0x1ba8] sm:$0xff]
        %v7960 = vld [vmem:[%s475 + $0x1bb0] sm:$0xff]
        %v7961 = vld [vmem:[%s475 + $0x1bb8] sm:$0xff]
        %v7962 = vld [vmem:[%s475 + $0x1bc0] sm:$0xff]
        %v7963 = vld [vmem:[%s475 + $0x1bc8] sm:$0xff]
        %v7964 = vld [vmem:[%s475 + $0x1bd0] sm:$0xff]
        %v7965 = vld [vmem:[%s475 + $0x1bd8] sm:$0xff]
        %v7966 = vld [vmem:[%s475 + $0x1be0] sm:$0xff]
        %v7967 = vld [vmem:[%s475 + $0x1be8] sm:$0xff]
        %v7968 = vld [vmem:[%s475 + $0x1bf0] sm:$0xff]
        %v7969 = vld [vmem:[%s475 + $0x1bf8] sm:$0xff]
        %v7970 = vpack.c.bf16 %v7904, %v7904
        %v7971 = vpack.c.bf16 %v7905, %v7905
        %v8036 = vunpack.c.l.b16 %v7906
        %v8037 = vunpack.c.h.b16 %v7906
        %v8038 = vunpack.c.l.b16 %v7907
        %v8039 = vunpack.c.h.b16 %v7907
        %v8040 = vunpack.c.l.b16 %v7908
        %v8041 = vunpack.c.h.b16 %v7908
        %v8042 = vunpack.c.l.b16 %v7909
        %v8043 = vunpack.c.h.b16 %v7909
        %v8044 = vunpack.c.l.b16 %v7910
        %v8045 = vunpack.c.h.b16 %v7910
        %v8046 = vunpack.c.l.b16 %v7911
        %v8047 = vunpack.c.h.b16 %v7911
        %v8048 = vunpack.c.l.b16 %v7912
        %v8049 = vunpack.c.h.b16 %v7912
        %v8050 = vunpack.c.l.b16 %v7913
        %v8051 = vunpack.c.h.b16 %v7913
        %v8052 = vunpack.c.l.b16 %v7914
        %v8053 = vunpack.c.h.b16 %v7914
        %v8054 = vunpack.c.l.b16 %v7915
        %v8055 = vunpack.c.h.b16 %v7915
        %v8056 = vunpack.c.l.b16 %v7916
        %v8057 = vunpack.c.h.b16 %v7916
        %v8058 = vunpack.c.l.b16 %v7917
        %v8059 = vunpack.c.h.b16 %v7917
        %v8060 = vunpack.c.l.b16 %v7918
        %v8061 = vunpack.c.h.b16 %v7918
        %v8062 = vunpack.c.l.b16 %v7919
        %v8063 = vunpack.c.h.b16 %v7919
        %v8064 = vunpack.c.l.b16 %v7920
        %v8065 = vunpack.c.h.b16 %v7920
        %v8066 = vunpack.c.l.b16 %v7921
        %v8067 = vunpack.c.h.b16 %v7921
        %v8068 = vunpack.c.l.b16 %v7922
        %v8069 = vunpack.c.h.b16 %v7922
        %v8070 = vunpack.c.l.b16 %v7923
        %v8071 = vunpack.c.h.b16 %v7923
        %v8072 = vunpack.c.l.b16 %v7924
        %v8073 = vunpack.c.h.b16 %v7924
        %v8074 = vunpack.c.l.b16 %v7925
        %v8075 = vunpack.c.h.b16 %v7925
        %v8076 = vunpack.c.l.b16 %v7926
        %v8077 = vunpack.c.h.b16 %v7926
        %v8078 = vunpack.c.l.b16 %v7927
        %v8079 = vunpack.c.h.b16 %v7927
        %v8080 = vunpack.c.l.b16 %v7928
        %v8081 = vunpack.c.h.b16 %v7928
        %v8082 = vunpack.c.l.b16 %v7929
        %v8083 = vunpack.c.h.b16 %v7929
        %v8084 = vunpack.c.l.b16 %v7930
        %v8085 = vunpack.c.h.b16 %v7930
        %v8086 = vunpack.c.l.b16 %v7931
        %v8087 = vunpack.c.h.b16 %v7931
        %v8088 = vunpack.c.l.b16 %v7932
        %v8089 = vunpack.c.h.b16 %v7932
        %v8090 = vunpack.c.l.b16 %v7933
        %v8091 = vunpack.c.h.b16 %v7933
        %v8092 = vunpack.c.l.b16 %v7934
        %v8093 = vunpack.c.h.b16 %v7934
        %v8094 = vunpack.c.l.b16 %v7935
        %v8095 = vunpack.c.h.b16 %v7935
        %v8096 = vunpack.c.l.b16 %v7936
        %v8097 = vunpack.c.h.b16 %v7936
        %v8098 = vunpack.c.l.b16 %v7937
        %v8099 = vunpack.c.h.b16 %v7937
        %v8100 = vunpack.c.l.b16 %v7938
        %v8101 = vunpack.c.h.b16 %v7938
        %v8102 = vunpack.c.l.b16 %v7939
        %v8103 = vunpack.c.h.b16 %v7939
        %v8104 = vunpack.c.l.b16 %v7940
        %v8105 = vunpack.c.h.b16 %v7940
        %v8106 = vunpack.c.l.b16 %v7941
        %v8107 = vunpack.c.h.b16 %v7941
        %v8108 = vunpack.c.l.b16 %v7942
        %v8109 = vunpack.c.h.b16 %v7942
        %v8110 = vunpack.c.l.b16 %v7943
        %v8111 = vunpack.c.h.b16 %v7943
        %v8112 = vunpack.c.l.b16 %v7944
        %v8113 = vunpack.c.h.b16 %v7944
        %v8114 = vunpack.c.l.b16 %v7945
        %v8115 = vunpack.c.h.b16 %v7945
        %v8116 = vunpack.c.l.b16 %v7946
        %v8117 = vunpack.c.h.b16 %v7946
        %v8118 = vunpack.c.l.b16 %v7947
        %v8119 = vunpack.c.h.b16 %v7947
        %v8120 = vunpack.c.l.b16 %v7948
        %v8121 = vunpack.c.h.b16 %v7948
        %v8122 = vunpack.c.l.b16 %v7949
        %v8123 = vunpack.c.h.b16 %v7949
        %v8124 = vunpack.c.l.b16 %v7950
        %v8125 = vunpack.c.h.b16 %v7950
        %v8126 = vunpack.c.l.b16 %v7951
        %v8127 = vunpack.c.h.b16 %v7951
        %v8128 = vunpack.c.l.b16 %v7952
        %v8129 = vunpack.c.h.b16 %v7952
        %v8130 = vunpack.c.l.b16 %v7953
        %v8131 = vunpack.c.h.b16 %v7953
        %v8132 = vunpack.c.l.b16 %v7954
        %v8133 = vunpack.c.h.b16 %v7954
        %v8134 = vunpack.c.l.b16 %v7955
        %v8135 = vunpack.c.h.b16 %v7955
        %v8136 = vunpack.c.l.b16 %v7956
        %v8137 = vunpack.c.h.b16 %v7956
        %v8138 = vunpack.c.l.b16 %v7957
        %v8139 = vunpack.c.h.b16 %v7957
        %v8140 = vunpack.c.l.b16 %v7958
        %v8141 = vunpack.c.h.b16 %v7958
        %v8142 = vunpack.c.l.b16 %v7959
        %v8143 = vunpack.c.h.b16 %v7959
        %v8144 = vunpack.c.l.b16 %v7960
        %v8145 = vunpack.c.h.b16 %v7960
        %v8146 = vunpack.c.l.b16 %v7961
        %v8147 = vunpack.c.h.b16 %v7961
        %v8148 = vunpack.c.l.b16 %v7962
        %v8149 = vunpack.c.h.b16 %v7962
        %v8150 = vunpack.c.l.b16 %v7963
        %v8151 = vunpack.c.h.b16 %v7963
        %v8152 = vunpack.c.l.b16 %v7964
        %v8153 = vunpack.c.h.b16 %v7964
        %v8154 = vunpack.c.l.b16 %v7965
        %v8155 = vunpack.c.h.b16 %v7965
        %v8156 = vunpack.c.l.b16 %v7966
        %v8157 = vunpack.c.h.b16 %v7966
        %v8158 = vunpack.c.l.b16 %v7967
        %v8159 = vunpack.c.h.b16 %v7967
        %v8160 = vunpack.c.l.b16 %v7968
        %v8161 = vunpack.c.h.b16 %v7968
        %v8162 = vunpack.c.l.b16 %v7969
        %v8163 = vunpack.c.h.b16 %v7969
        %v8164 = vpack.c.b16 %v8040, %v8036
        %v8165 = vpack.c.b16 %v8041, %v8037
        %v8166 = vpack.c.b16 %v8042, %v8038
        %v8167 = vpack.c.b16 %v8043, %v8039
        %v8168 = vpack.c.b16 %v8048, %v8044
        %v8169 = vpack.c.b16 %v8049, %v8045
        %v8170 = vpack.c.b16 %v8050, %v8046
        %v8171 = vpack.c.b16 %v8051, %v8047
        %v8172 = vpack.c.b16 %v8056, %v8052
        %v8173 = vpack.c.b16 %v8057, %v8053
        %v8174 = vpack.c.b16 %v8058, %v8054
        %v8175 = vpack.c.b16 %v8059, %v8055
        %v8176 = vpack.c.b16 %v8064, %v8060
        %v8177 = vpack.c.b16 %v8065, %v8061
        %v8178 = vpack.c.b16 %v8066, %v8062
        %v8179 = vpack.c.b16 %v8067, %v8063
        %v8180 = vpack.c.b16 %v8072, %v8068
        %v8181 = vpack.c.b16 %v8073, %v8069
        %v8182 = vpack.c.b16 %v8074, %v8070
        %v8183 = vpack.c.b16 %v8075, %v8071
        %v8184 = vpack.c.b16 %v8080, %v8076
        %v8185 = vpack.c.b16 %v8081, %v8077
        %v8186 = vpack.c.b16 %v8082, %v8078
        %v8187 = vpack.c.b16 %v8083, %v8079
        %v8188 = vpack.c.b16 %v8088, %v8084
        %v8189 = vpack.c.b16 %v8089, %v8085
        %v8190 = vpack.c.b16 %v8090, %v8086
        %v8191 = vpack.c.b16 %v8091, %v8087
        %v8192 = vpack.c.b16 %v8096, %v8092
        %v8193 = vpack.c.b16 %v8097, %v8093
        %v8194 = vpack.c.b16 %v8098, %v8094
        %v8195 = vpack.c.b16 %v8099, %v8095
        %v8196 = vpack.c.b16 %v8104, %v8100
        %v8197 = vpack.c.b16 %v8105, %v8101
        %v8198 = vpack.c.b16 %v8106, %v8102
        %v8199 = vpack.c.b16 %v8107, %v8103
        %v8200 = vpack.c.b16 %v8112, %v8108
        %v8201 = vpack.c.b16 %v8113, %v8109
        %v8202 = vpack.c.b16 %v8114, %v8110
        %v8203 = vpack.c.b16 %v8115, %v8111
        %v8204 = vpack.c.b16 %v8120, %v8116
        %v8205 = vpack.c.b16 %v8121, %v8117
        %v8206 = vpack.c.b16 %v8122, %v8118
        %v8207 = vpack.c.b16 %v8123, %v8119
        %v8208 = vpack.c.b16 %v8128, %v8124
        %v8209 = vpack.c.b16 %v8129, %v8125
        %v8210 = vpack.c.b16 %v8130, %v8126
        %v8211 = vpack.c.b16 %v8131, %v8127
        %v8212 = vpack.c.b16 %v8136, %v8132
        %v8213 = vpack.c.b16 %v8137, %v8133
        %v8214 = vpack.c.b16 %v8138, %v8134
        %v8215 = vpack.c.b16 %v8139, %v8135
        %v8216 = vpack.c.b16 %v8144, %v8140
        %v8217 = vpack.c.b16 %v8145, %v8141
        %v8218 = vpack.c.b16 %v8146, %v8142
        %v8219 = vpack.c.b16 %v8147, %v8143
        %v8220 = vpack.c.b16 %v8152, %v8148
        %v8221 = vpack.c.b16 %v8153, %v8149
        %v8222 = vpack.c.b16 %v8154, %v8150
        %v8223 = vpack.c.b16 %v8155, %v8151
        %v8224 = vpack.c.b16 %v8160, %v8156
        %v8225 = vpack.c.b16 %v8161, %v8157
        %v8226 = vpack.c.b16 %v8162, %v8158
        %v8227 = vpack.c.b16 %v8163, %v8159
        %8292 = vmatpush.bf16.msra.mxu0 %v8192
        %8293 = vmatpush.bf16.msra.mxu0 %v8188
        %8294 = vmatpush.bf16.msra.mxu0 %v8184
        %8295 = vmatpush.bf16.msra.mxu0 %v8180
        %8296 = vmatpush.bf16.msra.mxu0 %v8176
        %8297 = vmatpush.bf16.msra.mxu0 %v8172
        %8298 = vmatpush.bf16.msra.mxu0 %v8168
        %8299 = vmatpush.bf16.msra.mxu0 %v8164
        %8300 = vmatmul.bf16.gmra.mxu0 %v7970
        %v8301 = vpop.f32.mrf.mxu0
        %v8302 = vadd.f32 0.0, %v8301
        %v8303 = vpop.f32.mrf.mxu0
        %8304 = vdwg.mxu0
        %8305 = vmatpush.bf16.msra.mxu0 %v8224
        %8306 = vmatpush.bf16.msra.mxu0 %v8220
        %8307 = vmatpush.bf16.msra.mxu0 %v8216
        %8308 = vmatpush.bf16.msra.mxu0 %v8212
        %8309 = vmatpush.bf16.msra.mxu0 %v8208
        %8310 = vmatpush.bf16.msra.mxu0 %v8204
        %8311 = vmatpush.bf16.msra.mxu0 %v8200
        %8312 = vmatpush.bf16.msra.mxu0 %v8196
        %8313 = vmatmul.bf16.gmra.mxu0 %v7971
        %v8314 = vpop.f32.mrf.mxu0
        %v8315 = vadd.f32 %v8302, %v8314
        %v8316 = vpop.f32.mrf.mxu0
        %8317 = vdwg.mxu0
        %8318 = vmatpush.bf16.msra.mxu0 %v8193
        %8319 = vmatpush.bf16.msra.mxu0 %v8189
        %8320 = vmatpush.bf16.msra.mxu0 %v8185
        %8321 = vmatpush.bf16.msra.mxu0 %v8181
        %8322 = vmatpush.bf16.msra.mxu0 %v8177
        %8323 = vmatpush.bf16.msra.mxu0 %v8173
        %8324 = vmatpush.bf16.msra.mxu0 %v8169
        %8325 = vmatpush.bf16.msra.mxu0 %v8165
        %8326 = vmatmul.bf16.gmra.mxu0 %v7970
        %v8327 = vpop.f32.mrf.mxu0
        %v8328 = vadd.f32 0.0, %v8327
        %v8329 = vpop.f32.mrf.mxu0
        %8330 = vdwg.mxu0
        %8331 = vmatpush.bf16.msra.mxu0 %v8225
        %8332 = vmatpush.bf16.msra.mxu0 %v8221
        %8333 = vmatpush.bf16.msra.mxu0 %v8217
        %8334 = vmatpush.bf16.msra.mxu0 %v8213
        %8335 = vmatpush.bf16.msra.mxu0 %v8209
        %8336 = vmatpush.bf16.msra.mxu0 %v8205
        %8337 = vmatpush.bf16.msra.mxu0 %v8201
        %8338 = vmatpush.bf16.msra.mxu0 %v8197
        %8339 = vmatmul.bf16.gmra.mxu0 %v7971
        %v8340 = vpop.f32.mrf.mxu0
        %v8341 = vadd.f32 %v8328, %v8340
        %v8342 = vpop.f32.mrf.mxu0
        %8343 = vdwg.mxu0
        %8344 = vmatpush.bf16.msra.mxu0 %v8194
        %8345 = vmatpush.bf16.msra.mxu0 %v8190
        %8346 = vmatpush.bf16.msra.mxu0 %v8186
        %8347 = vmatpush.bf16.msra.mxu0 %v8182
        %8348 = vmatpush.bf16.msra.mxu0 %v8178
        %8349 = vmatpush.bf16.msra.mxu0 %v8174
        %8350 = vmatpush.bf16.msra.mxu0 %v8170
        %8351 = vmatpush.bf16.msra.mxu0 %v8166
        %8352 = vmatmul.bf16.gmra.mxu0 %v7970
        %v8353 = vpop.f32.mrf.mxu0
        %v8354 = vadd.f32 0.0, %v8353
        %v8355 = vpop.f32.mrf.mxu0
        %8356 = vdwg.mxu0
        %8357 = vmatpush.bf16.msra.mxu0 %v8226
        %8358 = vmatpush.bf16.msra.mxu0 %v8222
        %8359 = vmatpush.bf16.msra.mxu0 %v8218
        %8360 = vmatpush.bf16.msra.mxu0 %v8214
        %8361 = vmatpush.bf16.msra.mxu0 %v8210
        %8362 = vmatpush.bf16.msra.mxu0 %v8206
        %8363 = vmatpush.bf16.msra.mxu0 %v8202
        %8364 = vmatpush.bf16.msra.mxu0 %v8198
        %8365 = vmatmul.bf16.gmra.mxu0 %v7971
        %v8366 = vpop.f32.mrf.mxu0
        %v8367 = vadd.f32 %v8354, %v8366
        %v8368 = vpop.f32.mrf.mxu0
        %8369 = vdwg.mxu0
        %8370 = vmatpush.bf16.msra.mxu0 %v8195
        %8371 = vmatpush.bf16.msra.mxu0 %v8191
        %8372 = vmatpush.bf16.msra.mxu0 %v8187
        %8373 = vmatpush.bf16.msra.mxu0 %v8183
        %8374 = vmatpush.bf16.msra.mxu0 %v8179
        %8375 = vmatpush.bf16.msra.mxu0 %v8175
        %8376 = vmatpush.bf16.msra.mxu0 %v8171
        %8377 = vmatpush.bf16.msra.mxu0 %v8167
        %8378 = vmatmul.bf16.gmra.mxu0 %v7970
        %v8379 = vpop.f32.mrf.mxu0
        %v8380 = vadd.f32 0.0, %v8379
        %v8381 = vpop.f32.mrf.mxu0
        %8382 = vdwg.mxu0
        %8383 = vmatpush.bf16.msra.mxu0 %v8227
        %8384 = vmatpush.bf16.msra.mxu0 %v8223
        %8385 = vmatpush.bf16.msra.mxu0 %v8219
        %8386 = vmatpush.bf16.msra.mxu0 %v8215
        %8387 = vmatpush.bf16.msra.mxu0 %v8211
        %8388 = vmatpush.bf16.msra.mxu0 %v8207
        %8389 = vmatpush.bf16.msra.mxu0 %v8203
        %8390 = vmatpush.bf16.msra.mxu0 %v8199
        %8391 = vmatmul.bf16.gmra.mxu0 %v7971
        %v8392 = vpop.f32.mrf.mxu0
        %v8393 = vadd.f32 %v8380, %v8392
        %v8394 = vpop.f32.mrf.mxu0
        %8395 = vdwg.mxu0
        %v8396 = vadd.f32 %v7892, %v8315
        %v8397 = vadd.f32 %v7893, %v8341
        %v8398 = vadd.f32 %v7894, %v8367
        %v8399 = vadd.f32 %v7895, %v8393
        %v8400 = vrot.slane %v1351, 6
        %v8401 = vrot.slane %v1352, 6
        %v8404 = vrot.slane %v1357, 5
        %v8405 = vrot.slane %v1358, 5
        %v8408 = vsel %vm1365, %v8400, %v8404
        %v8409 = vsel %vm1365, %v8401, %v8405
        %v8410 = vld [vmem:[%s475 + $0x1c00] sm:$0xff]
        %v8411 = vld [vmem:[%s475 + $0x1c08] sm:$0xff]
        %v8412 = vld [vmem:[%s475 + $0x1c10] sm:$0xff]
        %v8413 = vld [vmem:[%s475 + $0x1c18] sm:$0xff]
        %v8414 = vld [vmem:[%s475 + $0x1c20] sm:$0xff]
        %v8415 = vld [vmem:[%s475 + $0x1c28] sm:$0xff]
        %v8416 = vld [vmem:[%s475 + $0x1c30] sm:$0xff]
        %v8417 = vld [vmem:[%s475 + $0x1c38] sm:$0xff]
        %v8418 = vld [vmem:[%s475 + $0x1c40] sm:$0xff]
        %v8419 = vld [vmem:[%s475 + $0x1c48] sm:$0xff]
        %v8420 = vld [vmem:[%s475 + $0x1c50] sm:$0xff]
        %v8421 = vld [vmem:[%s475 + $0x1c58] sm:$0xff]
        %v8422 = vld [vmem:[%s475 + $0x1c60] sm:$0xff]
        %v8423 = vld [vmem:[%s475 + $0x1c68] sm:$0xff]
        %v8424 = vld [vmem:[%s475 + $0x1c70] sm:$0xff]
        %v8425 = vld [vmem:[%s475 + $0x1c78] sm:$0xff]
        %v8426 = vld [vmem:[%s475 + $0x1c80] sm:$0xff]
        %v8427 = vld [vmem:[%s475 + $0x1c88] sm:$0xff]
        %v8428 = vld [vmem:[%s475 + $0x1c90] sm:$0xff]
        %v8429 = vld [vmem:[%s475 + $0x1c98] sm:$0xff]
        %v8430 = vld [vmem:[%s475 + $0x1ca0] sm:$0xff]
        %v8431 = vld [vmem:[%s475 + $0x1ca8] sm:$0xff]
        %v8432 = vld [vmem:[%s475 + $0x1cb0] sm:$0xff]
        %v8433 = vld [vmem:[%s475 + $0x1cb8] sm:$0xff]
        %v8434 = vld [vmem:[%s475 + $0x1cc0] sm:$0xff]
        %v8435 = vld [vmem:[%s475 + $0x1cc8] sm:$0xff]
        %v8436 = vld [vmem:[%s475 + $0x1cd0] sm:$0xff]
        %v8437 = vld [vmem:[%s475 + $0x1cd8] sm:$0xff]
        %v8438 = vld [vmem:[%s475 + $0x1ce0] sm:$0xff]
        %v8439 = vld [vmem:[%s475 + $0x1ce8] sm:$0xff]
        %v8440 = vld [vmem:[%s475 + $0x1cf0] sm:$0xff]
        %v8441 = vld [vmem:[%s475 + $0x1cf8] sm:$0xff]
        %v8442 = vld [vmem:[%s475 + $0x1d00] sm:$0xff]
        %v8443 = vld [vmem:[%s475 + $0x1d08] sm:$0xff]
        %v8444 = vld [vmem:[%s475 + $0x1d10] sm:$0xff]
        %v8445 = vld [vmem:[%s475 + $0x1d18] sm:$0xff]
        %v8446 = vld [vmem:[%s475 + $0x1d20] sm:$0xff]
        %v8447 = vld [vmem:[%s475 + $0x1d28] sm:$0xff]
        %v8448 = vld [vmem:[%s475 + $0x1d30] sm:$0xff]
        %v8449 = vld [vmem:[%s475 + $0x1d38] sm:$0xff]
        %v8450 = vld [vmem:[%s475 + $0x1d40] sm:$0xff]
        %v8451 = vld [vmem:[%s475 + $0x1d48] sm:$0xff]
        %v8452 = vld [vmem:[%s475 + $0x1d50] sm:$0xff]
        %v8453 = vld [vmem:[%s475 + $0x1d58] sm:$0xff]
        %v8454 = vld [vmem:[%s475 + $0x1d60] sm:$0xff]
        %v8455 = vld [vmem:[%s475 + $0x1d68] sm:$0xff]
        %v8456 = vld [vmem:[%s475 + $0x1d70] sm:$0xff]
        %v8457 = vld [vmem:[%s475 + $0x1d78] sm:$0xff]
        %v8458 = vld [vmem:[%s475 + $0x1d80] sm:$0xff]
        %v8459 = vld [vmem:[%s475 + $0x1d88] sm:$0xff]
        %v8460 = vld [vmem:[%s475 + $0x1d90] sm:$0xff]
        %v8461 = vld [vmem:[%s475 + $0x1d98] sm:$0xff]
        %v8462 = vld [vmem:[%s475 + $0x1da0] sm:$0xff]
        %v8463 = vld [vmem:[%s475 + $0x1da8] sm:$0xff]
        %v8464 = vld [vmem:[%s475 + $0x1db0] sm:$0xff]
        %v8465 = vld [vmem:[%s475 + $0x1db8] sm:$0xff]
        %v8466 = vld [vmem:[%s475 + $0x1dc0] sm:$0xff]
        %v8467 = vld [vmem:[%s475 + $0x1dc8] sm:$0xff]
        %v8468 = vld [vmem:[%s475 + $0x1dd0] sm:$0xff]
        %v8469 = vld [vmem:[%s475 + $0x1dd8] sm:$0xff]
        %v8470 = vld [vmem:[%s475 + $0x1de0] sm:$0xff]
        %v8471 = vld [vmem:[%s475 + $0x1de8] sm:$0xff]
        %v8472 = vld [vmem:[%s475 + $0x1df0] sm:$0xff]
        %v8473 = vld [vmem:[%s475 + $0x1df8] sm:$0xff]
        %v8474 = vpack.c.bf16 %v8408, %v8408
        %v8475 = vpack.c.bf16 %v8409, %v8409
        %v8540 = vunpack.c.l.b16 %v8410
        %v8541 = vunpack.c.h.b16 %v8410
        %v8542 = vunpack.c.l.b16 %v8411
        %v8543 = vunpack.c.h.b16 %v8411
        %v8544 = vunpack.c.l.b16 %v8412
        %v8545 = vunpack.c.h.b16 %v8412
        %v8546 = vunpack.c.l.b16 %v8413
        %v8547 = vunpack.c.h.b16 %v8413
        %v8548 = vunpack.c.l.b16 %v8414
        %v8549 = vunpack.c.h.b16 %v8414
        %v8550 = vunpack.c.l.b16 %v8415
        %v8551 = vunpack.c.h.b16 %v8415
        %v8552 = vunpack.c.l.b16 %v8416
        %v8553 = vunpack.c.h.b16 %v8416
        %v8554 = vunpack.c.l.b16 %v8417
        %v8555 = vunpack.c.h.b16 %v8417
        %v8556 = vunpack.c.l.b16 %v8418
        %v8557 = vunpack.c.h.b16 %v8418
        %v8558 = vunpack.c.l.b16 %v8419
        %v8559 = vunpack.c.h.b16 %v8419
        %v8560 = vunpack.c.l.b16 %v8420
        %v8561 = vunpack.c.h.b16 %v8420
        %v8562 = vunpack.c.l.b16 %v8421
        %v8563 = vunpack.c.h.b16 %v8421
        %v8564 = vunpack.c.l.b16 %v8422
        %v8565 = vunpack.c.h.b16 %v8422
        %v8566 = vunpack.c.l.b16 %v8423
        %v8567 = vunpack.c.h.b16 %v8423
        %v8568 = vunpack.c.l.b16 %v8424
        %v8569 = vunpack.c.h.b16 %v8424
        %v8570 = vunpack.c.l.b16 %v8425
        %v8571 = vunpack.c.h.b16 %v8425
        %v8572 = vunpack.c.l.b16 %v8426
        %v8573 = vunpack.c.h.b16 %v8426
        %v8574 = vunpack.c.l.b16 %v8427
        %v8575 = vunpack.c.h.b16 %v8427
        %v8576 = vunpack.c.l.b16 %v8428
        %v8577 = vunpack.c.h.b16 %v8428
        %v8578 = vunpack.c.l.b16 %v8429
        %v8579 = vunpack.c.h.b16 %v8429
        %v8580 = vunpack.c.l.b16 %v8430
        %v8581 = vunpack.c.h.b16 %v8430
        %v8582 = vunpack.c.l.b16 %v8431
        %v8583 = vunpack.c.h.b16 %v8431
        %v8584 = vunpack.c.l.b16 %v8432
        %v8585 = vunpack.c.h.b16 %v8432
        %v8586 = vunpack.c.l.b16 %v8433
        %v8587 = vunpack.c.h.b16 %v8433
        %v8588 = vunpack.c.l.b16 %v8434
        %v8589 = vunpack.c.h.b16 %v8434
        %v8590 = vunpack.c.l.b16 %v8435
        %v8591 = vunpack.c.h.b16 %v8435
        %v8592 = vunpack.c.l.b16 %v8436
        %v8593 = vunpack.c.h.b16 %v8436
        %v8594 = vunpack.c.l.b16 %v8437
        %v8595 = vunpack.c.h.b16 %v8437
        %v8596 = vunpack.c.l.b16 %v8438
        %v8597 = vunpack.c.h.b16 %v8438
        %v8598 = vunpack.c.l.b16 %v8439
        %v8599 = vunpack.c.h.b16 %v8439
        %v8600 = vunpack.c.l.b16 %v8440
        %v8601 = vunpack.c.h.b16 %v8440
        %v8602 = vunpack.c.l.b16 %v8441
        %v8603 = vunpack.c.h.b16 %v8441
        %v8604 = vunpack.c.l.b16 %v8442
        %v8605 = vunpack.c.h.b16 %v8442
        %v8606 = vunpack.c.l.b16 %v8443
        %v8607 = vunpack.c.h.b16 %v8443
        %v8608 = vunpack.c.l.b16 %v8444
        %v8609 = vunpack.c.h.b16 %v8444
        %v8610 = vunpack.c.l.b16 %v8445
        %v8611 = vunpack.c.h.b16 %v8445
        %v8612 = vunpack.c.l.b16 %v8446
        %v8613 = vunpack.c.h.b16 %v8446
        %v8614 = vunpack.c.l.b16 %v8447
        %v8615 = vunpack.c.h.b16 %v8447
        %v8616 = vunpack.c.l.b16 %v8448
        %v8617 = vunpack.c.h.b16 %v8448
        %v8618 = vunpack.c.l.b16 %v8449
        %v8619 = vunpack.c.h.b16 %v8449
        %v8620 = vunpack.c.l.b16 %v8450
        %v8621 = vunpack.c.h.b16 %v8450
        %v8622 = vunpack.c.l.b16 %v8451
        %v8623 = vunpack.c.h.b16 %v8451
        %v8624 = vunpack.c.l.b16 %v8452
        %v8625 = vunpack.c.h.b16 %v8452
        %v8626 = vunpack.c.l.b16 %v8453
        %v8627 = vunpack.c.h.b16 %v8453
        %v8628 = vunpack.c.l.b16 %v8454
        %v8629 = vunpack.c.h.b16 %v8454
        %v8630 = vunpack.c.l.b16 %v8455
        %v8631 = vunpack.c.h.b16 %v8455
        %v8632 = vunpack.c.l.b16 %v8456
        %v8633 = vunpack.c.h.b16 %v8456
        %v8634 = vunpack.c.l.b16 %v8457
        %v8635 = vunpack.c.h.b16 %v8457
        %v8636 = vunpack.c.l.b16 %v8458
        %v8637 = vunpack.c.h.b16 %v8458
        %v8638 = vunpack.c.l.b16 %v8459
        %v8639 = vunpack.c.h.b16 %v8459
        %v8640 = vunpack.c.l.b16 %v8460
        %v8641 = vunpack.c.h.b16 %v8460
        %v8642 = vunpack.c.l.b16 %v8461
        %v8643 = vunpack.c.h.b16 %v8461
        %v8644 = vunpack.c.l.b16 %v8462
        %v8645 = vunpack.c.h.b16 %v8462
        %v8646 = vunpack.c.l.b16 %v8463
        %v8647 = vunpack.c.h.b16 %v8463
        %v8648 = vunpack.c.l.b16 %v8464
        %v8649 = vunpack.c.h.b16 %v8464
        %v8650 = vunpack.c.l.b16 %v8465
        %v8651 = vunpack.c.h.b16 %v8465
        %v8652 = vunpack.c.l.b16 %v8466
        %v8653 = vunpack.c.h.b16 %v8466
        %v8654 = vunpack.c.l.b16 %v8467
        %v8655 = vunpack.c.h.b16 %v8467
        %v8656 = vunpack.c.l.b16 %v8468
        %v8657 = vunpack.c.h.b16 %v8468
        %v8658 = vunpack.c.l.b16 %v8469
        %v8659 = vunpack.c.h.b16 %v8469
        %v8660 = vunpack.c.l.b16 %v8470
        %v8661 = vunpack.c.h.b16 %v8470
        %v8662 = vunpack.c.l.b16 %v8471
        %v8663 = vunpack.c.h.b16 %v8471
        %v8664 = vunpack.c.l.b16 %v8472
        %v8665 = vunpack.c.h.b16 %v8472
        %v8666 = vunpack.c.l.b16 %v8473
        %v8667 = vunpack.c.h.b16 %v8473
        %v8668 = vpack.c.b16 %v8544, %v8540
        %v8669 = vpack.c.b16 %v8545, %v8541
        %v8670 = vpack.c.b16 %v8546, %v8542
        %v8671 = vpack.c.b16 %v8547, %v8543
        %v8672 = vpack.c.b16 %v8552, %v8548
        %v8673 = vpack.c.b16 %v8553, %v8549
        %v8674 = vpack.c.b16 %v8554, %v8550
        %v8675 = vpack.c.b16 %v8555, %v8551
        %v8676 = vpack.c.b16 %v8560, %v8556
        %v8677 = vpack.c.b16 %v8561, %v8557
        %v8678 = vpack.c.b16 %v8562, %v8558
        %v8679 = vpack.c.b16 %v8563, %v8559
        %v8680 = vpack.c.b16 %v8568, %v8564
        %v8681 = vpack.c.b16 %v8569, %v8565
        %v8682 = vpack.c.b16 %v8570, %v8566
        %v8683 = vpack.c.b16 %v8571, %v8567
        %v8684 = vpack.c.b16 %v8576, %v8572
        %v8685 = vpack.c.b16 %v8577, %v8573
        %v8686 = vpack.c.b16 %v8578, %v8574
        %v8687 = vpack.c.b16 %v8579, %v8575
        %v8688 = vpack.c.b16 %v8584, %v8580
        %v8689 = vpack.c.b16 %v8585, %v8581
        %v8690 = vpack.c.b16 %v8586, %v8582
        %v8691 = vpack.c.b16 %v8587, %v8583
        %v8692 = vpack.c.b16 %v8592, %v8588
        %v8693 = vpack.c.b16 %v8593, %v8589
        %v8694 = vpack.c.b16 %v8594, %v8590
        %v8695 = vpack.c.b16 %v8595, %v8591
        %v8696 = vpack.c.b16 %v8600, %v8596
        %v8697 = vpack.c.b16 %v8601, %v8597
        %v8698 = vpack.c.b16 %v8602, %v8598
        %v8699 = vpack.c.b16 %v8603, %v8599
        %v8700 = vpack.c.b16 %v8608, %v8604
        %v8701 = vpack.c.b16 %v8609, %v8605
        %v8702 = vpack.c.b16 %v8610, %v8606
        %v8703 = vpack.c.b16 %v8611, %v8607
        %v8704 = vpack.c.b16 %v8616, %v8612
        %v8705 = vpack.c.b16 %v8617, %v8613
        %v8706 = vpack.c.b16 %v8618, %v8614
        %v8707 = vpack.c.b16 %v8619, %v8615
        %v8708 = vpack.c.b16 %v8624, %v8620
        %v8709 = vpack.c.b16 %v8625, %v8621
        %v8710 = vpack.c.b16 %v8626, %v8622
        %v8711 = vpack.c.b16 %v8627, %v8623
        %v8712 = vpack.c.b16 %v8632, %v8628
        %v8713 = vpack.c.b16 %v8633, %v8629
        %v8714 = vpack.c.b16 %v8634, %v8630
        %v8715 = vpack.c.b16 %v8635, %v8631
        %v8716 = vpack.c.b16 %v8640, %v8636
        %v8717 = vpack.c.b16 %v8641, %v8637
        %v8718 = vpack.c.b16 %v8642, %v8638
        %v8719 = vpack.c.b16 %v8643, %v8639
        %v8720 = vpack.c.b16 %v8648, %v8644
        %v8721 = vpack.c.b16 %v8649, %v8645
        %v8722 = vpack.c.b16 %v8650, %v8646
        %v8723 = vpack.c.b16 %v8651, %v8647
        %v8724 = vpack.c.b16 %v8656, %v8652
        %v8725 = vpack.c.b16 %v8657, %v8653
        %v8726 = vpack.c.b16 %v8658, %v8654
        %v8727 = vpack.c.b16 %v8659, %v8655
        %v8728 = vpack.c.b16 %v8664, %v8660
        %v8729 = vpack.c.b16 %v8665, %v8661
        %v8730 = vpack.c.b16 %v8666, %v8662
        %v8731 = vpack.c.b16 %v8667, %v8663
        %8796 = vmatpush.bf16.msra.mxu0 %v8696
        %8797 = vmatpush.bf16.msra.mxu0 %v8692
        %8798 = vmatpush.bf16.msra.mxu0 %v8688
        %8799 = vmatpush.bf16.msra.mxu0 %v8684
        %8800 = vmatpush.bf16.msra.mxu0 %v8680
        %8801 = vmatpush.bf16.msra.mxu0 %v8676
        %8802 = vmatpush.bf16.msra.mxu0 %v8672
        %8803 = vmatpush.bf16.msra.mxu0 %v8668
        %8804 = vmatmul.bf16.gmra.mxu0 %v8474
        %v8805 = vpop.f32.mrf.mxu0
        %v8806 = vadd.f32 0.0, %v8805
        %v8807 = vpop.f32.mrf.mxu0
        %8808 = vdwg.mxu0
        %8809 = vmatpush.bf16.msra.mxu0 %v8728
        %8810 = vmatpush.bf16.msra.mxu0 %v8724
        %8811 = vmatpush.bf16.msra.mxu0 %v8720
        %8812 = vmatpush.bf16.msra.mxu0 %v8716
        %8813 = vmatpush.bf16.msra.mxu0 %v8712
        %8814 = vmatpush.bf16.msra.mxu0 %v8708
        %8815 = vmatpush.bf16.msra.mxu0 %v8704
        %8816 = vmatpush.bf16.msra.mxu0 %v8700
        %8817 = vmatmul.bf16.gmra.mxu0 %v8475
        %v8818 = vpop.f32.mrf.mxu0
        %v8819 = vadd.f32 %v8806, %v8818
        %v8820 = vpop.f32.mrf.mxu0
        %8821 = vdwg.mxu0
        %8822 = vmatpush.bf16.msra.mxu0 %v8697
        %8823 = vmatpush.bf16.msra.mxu0 %v8693
        %8824 = vmatpush.bf16.msra.mxu0 %v8689
        %8825 = vmatpush.bf16.msra.mxu0 %v8685
        %8826 = vmatpush.bf16.msra.mxu0 %v8681
        %8827 = vmatpush.bf16.msra.mxu0 %v8677
        %8828 = vmatpush.bf16.msra.mxu0 %v8673
        %8829 = vmatpush.bf16.msra.mxu0 %v8669
        %8830 = vmatmul.bf16.gmra.mxu0 %v8474
        %v8831 = vpop.f32.mrf.mxu0
        %v8832 = vadd.f32 0.0, %v8831
        %v8833 = vpop.f32.mrf.mxu0
        %8834 = vdwg.mxu0
        %8835 = vmatpush.bf16.msra.mxu0 %v8729
        %8836 = vmatpush.bf16.msra.mxu0 %v8725
        %8837 = vmatpush.bf16.msra.mxu0 %v8721
        %8838 = vmatpush.bf16.msra.mxu0 %v8717
        %8839 = vmatpush.bf16.msra.mxu0 %v8713
        %8840 = vmatpush.bf16.msra.mxu0 %v8709
        %8841 = vmatpush.bf16.msra.mxu0 %v8705
        %8842 = vmatpush.bf16.msra.mxu0 %v8701
        %8843 = vmatmul.bf16.gmra.mxu0 %v8475
        %v8844 = vpop.f32.mrf.mxu0
        %v8845 = vadd.f32 %v8832, %v8844
        %v8846 = vpop.f32.mrf.mxu0
        %8847 = vdwg.mxu0
        %8848 = vmatpush.bf16.msra.mxu0 %v8698
        %8849 = vmatpush.bf16.msra.mxu0 %v8694
        %8850 = vmatpush.bf16.msra.mxu0 %v8690
        %8851 = vmatpush.bf16.msra.mxu0 %v8686
        %8852 = vmatpush.bf16.msra.mxu0 %v8682
        %8853 = vmatpush.bf16.msra.mxu0 %v8678
        %8854 = vmatpush.bf16.msra.mxu0 %v8674
        %8855 = vmatpush.bf16.msra.mxu0 %v8670
        %8856 = vmatmul.bf16.gmra.mxu0 %v8474
        %v8857 = vpop.f32.mrf.mxu0
        %v8858 = vadd.f32 0.0, %v8857
        %v8859 = vpop.f32.mrf.mxu0
        %8860 = vdwg.mxu0
        %8861 = vmatpush.bf16.msra.mxu0 %v8730
        %8862 = vmatpush.bf16.msra.mxu0 %v8726
        %8863 = vmatpush.bf16.msra.mxu0 %v8722
        %8864 = vmatpush.bf16.msra.mxu0 %v8718
        %8865 = vmatpush.bf16.msra.mxu0 %v8714
        %8866 = vmatpush.bf16.msra.mxu0 %v8710
        %8867 = vmatpush.bf16.msra.mxu0 %v8706
        %8868 = vmatpush.bf16.msra.mxu0 %v8702
        %8869 = vmatmul.bf16.gmra.mxu0 %v8475
        %v8870 = vpop.f32.mrf.mxu0
        %v8871 = vadd.f32 %v8858, %v8870
        %v8872 = vpop.f32.mrf.mxu0
        %8873 = vdwg.mxu0
        %8874 = vmatpush.bf16.msra.mxu0 %v8699
        %8875 = vmatpush.bf16.msra.mxu0 %v8695
        %8876 = vmatpush.bf16.msra.mxu0 %v8691
        %8877 = vmatpush.bf16.msra.mxu0 %v8687
        %8878 = vmatpush.bf16.msra.mxu0 %v8683
        %8879 = vmatpush.bf16.msra.mxu0 %v8679
        %8880 = vmatpush.bf16.msra.mxu0 %v8675
        %8881 = vmatpush.bf16.msra.mxu0 %v8671
        %8882 = vmatmul.bf16.gmra.mxu0 %v8474
        %v8883 = vpop.f32.mrf.mxu0
        %v8884 = vadd.f32 0.0, %v8883
        %v8885 = vpop.f32.mrf.mxu0
        %8886 = vdwg.mxu0
        %8887 = vmatpush.bf16.msra.mxu0 %v8731
        %8888 = vmatpush.bf16.msra.mxu0 %v8727
        %8889 = vmatpush.bf16.msra.mxu0 %v8723
        %8890 = vmatpush.bf16.msra.mxu0 %v8719
        %8891 = vmatpush.bf16.msra.mxu0 %v8715
        %8892 = vmatpush.bf16.msra.mxu0 %v8711
        %8893 = vmatpush.bf16.msra.mxu0 %v8707
        %8894 = vmatpush.bf16.msra.mxu0 %v8703
        %8895 = vmatmul.bf16.gmra.mxu0 %v8475
        %v8896 = vpop.f32.mrf.mxu0
        %v8897 = vadd.f32 %v8884, %v8896
        %v8898 = vpop.f32.mrf.mxu0
        %8899 = vdwg.mxu0
        %v8900 = vadd.f32 %v8396, %v8819
        %v8901 = vadd.f32 %v8397, %v8845
        %v8902 = vadd.f32 %v8398, %v8871
        %v8903 = vadd.f32 %v8399, %v8897
        %v8904 = vrot.slane %v1351, 7
        %v8905 = vrot.slane %v1352, 7
        %v8908 = vrot.slane %v1357, 6
        %v8909 = vrot.slane %v1358, 6
        %v8912 = vsel %vm1365, %v8904, %v8908
        %v8913 = vsel %vm1365, %v8905, %v8909
        %v8914 = vld [vmem:[%s475 + $0x1e00] sm:$0xff]
        %v8915 = vld [vmem:[%s475 + $0x1e08] sm:$0xff]
        %v8916 = vld [vmem:[%s475 + $0x1e10] sm:$0xff]
        %v8917 = vld [vmem:[%s475 + $0x1e18] sm:$0xff]
        %v8918 = vld [vmem:[%s475 + $0x1e20] sm:$0xff]
        %v8919 = vld [vmem:[%s475 + $0x1e28] sm:$0xff]
        %v8920 = vld [vmem:[%s475 + $0x1e30] sm:$0xff]
        %v8921 = vld [vmem:[%s475 + $0x1e38] sm:$0xff]
        %v8922 = vld [vmem:[%s475 + $0x1e40] sm:$0xff]
        %v8923 = vld [vmem:[%s475 + $0x1e48] sm:$0xff]
        %v8924 = vld [vmem:[%s475 + $0x1e50] sm:$0xff]
        %v8925 = vld [vmem:[%s475 + $0x1e58] sm:$0xff]
        %v8926 = vld [vmem:[%s475 + $0x1e60] sm:$0xff]
        %v8927 = vld [vmem:[%s475 + $0x1e68] sm:$0xff]
        %v8928 = vld [vmem:[%s475 + $0x1e70] sm:$0xff]
        %v8929 = vld [vmem:[%s475 + $0x1e78] sm:$0xff]
        %v8930 = vld [vmem:[%s475 + $0x1e80] sm:$0xff]
        %v8931 = vld [vmem:[%s475 + $0x1e88] sm:$0xff]
        %v8932 = vld [vmem:[%s475 + $0x1e90] sm:$0xff]
        %v8933 = vld [vmem:[%s475 + $0x1e98] sm:$0xff]
        %v8934 = vld [vmem:[%s475 + $0x1ea0] sm:$0xff]
        %v8935 = vld [vmem:[%s475 + $0x1ea8] sm:$0xff]
        %v8936 = vld [vmem:[%s475 + $0x1eb0] sm:$0xff]
        %v8937 = vld [vmem:[%s475 + $0x1eb8] sm:$0xff]
        %v8938 = vld [vmem:[%s475 + $0x1ec0] sm:$0xff]
        %v8939 = vld [vmem:[%s475 + $0x1ec8] sm:$0xff]
        %v8940 = vld [vmem:[%s475 + $0x1ed0] sm:$0xff]
        %v8941 = vld [vmem:[%s475 + $0x1ed8] sm:$0xff]
        %v8942 = vld [vmem:[%s475 + $0x1ee0] sm:$0xff]
        %v8943 = vld [vmem:[%s475 + $0x1ee8] sm:$0xff]
        %v8944 = vld [vmem:[%s475 + $0x1ef0] sm:$0xff]
        %v8945 = vld [vmem:[%s475 + $0x1ef8] sm:$0xff]
        %v8946 = vld [vmem:[%s475 + $0x1f00] sm:$0xff]
        %v8947 = vld [vmem:[%s475 + $0x1f08] sm:$0xff]
        %v8948 = vld [vmem:[%s475 + $0x1f10] sm:$0xff]
        %v8949 = vld [vmem:[%s475 + $0x1f18] sm:$0xff]
        %v8950 = vld [vmem:[%s475 + $0x1f20] sm:$0xff]
        %v8951 = vld [vmem:[%s475 + $0x1f28] sm:$0xff]
        %v8952 = vld [vmem:[%s475 + $0x1f30] sm:$0xff]
        %v8953 = vld [vmem:[%s475 + $0x1f38] sm:$0xff]
        %v8954 = vld [vmem:[%s475 + $0x1f40] sm:$0xff]
        %v8955 = vld [vmem:[%s475 + $0x1f48] sm:$0xff]
        %v8956 = vld [vmem:[%s475 + $0x1f50] sm:$0xff]
        %v8957 = vld [vmem:[%s475 + $0x1f58] sm:$0xff]
        %v8958 = vld [vmem:[%s475 + $0x1f60] sm:$0xff]
        %v8959 = vld [vmem:[%s475 + $0x1f68] sm:$0xff]
        %v8960 = vld [vmem:[%s475 + $0x1f70] sm:$0xff]
        %v8961 = vld [vmem:[%s475 + $0x1f78] sm:$0xff]
        %v8962 = vld [vmem:[%s475 + $0x1f80] sm:$0xff]
        %v8963 = vld [vmem:[%s475 + $0x1f88] sm:$0xff]
        %v8964 = vld [vmem:[%s475 + $0x1f90] sm:$0xff]
        %v8965 = vld [vmem:[%s475 + $0x1f98] sm:$0xff]
        %v8966 = vld [vmem:[%s475 + $0x1fa0] sm:$0xff]
        %v8967 = vld [vmem:[%s475 + $0x1fa8] sm:$0xff]
        %v8968 = vld [vmem:[%s475 + $0x1fb0] sm:$0xff]
        %v8969 = vld [vmem:[%s475 + $0x1fb8] sm:$0xff]
        %v8970 = vld [vmem:[%s475 + $0x1fc0] sm:$0xff]
        %v8971 = vld [vmem:[%s475 + $0x1fc8] sm:$0xff]
        %v8972 = vld [vmem:[%s475 + $0x1fd0] sm:$0xff]
        %v8973 = vld [vmem:[%s475 + $0x1fd8] sm:$0xff]
        %v8974 = vld [vmem:[%s475 + $0x1fe0] sm:$0xff]
        %v8975 = vld [vmem:[%s475 + $0x1fe8] sm:$0xff]
        %v8976 = vld [vmem:[%s475 + $0x1ff0] sm:$0xff]
        %v8977 = vld [vmem:[%s475 + $0x1ff8] sm:$0xff]
        %v8978 = vpack.c.bf16 %v8912, %v8912
        %v8979 = vpack.c.bf16 %v8913, %v8913
        %v9044 = vunpack.c.l.b16 %v8914
        %v9045 = vunpack.c.h.b16 %v8914
        %v9046 = vunpack.c.l.b16 %v8915
        %v9047 = vunpack.c.h.b16 %v8915
        %v9048 = vunpack.c.l.b16 %v8916
        %v9049 = vunpack.c.h.b16 %v8916
        %v9050 = vunpack.c.l.b16 %v8917
        %v9051 = vunpack.c.h.b16 %v8917
        %v9052 = vunpack.c.l.b16 %v8918
        %v9053 = vunpack.c.h.b16 %v8918
        %v9054 = vunpack.c.l.b16 %v8919
        %v9055 = vunpack.c.h.b16 %v8919
        %v9056 = vunpack.c.l.b16 %v8920
        %v9057 = vunpack.c.h.b16 %v8920
        %v9058 = vunpack.c.l.b16 %v8921
        %v9059 = vunpack.c.h.b16 %v8921
        %v9060 = vunpack.c.l.b16 %v8922
        %v9061 = vunpack.c.h.b16 %v8922
        %v9062 = vunpack.c.l.b16 %v8923
        %v9063 = vunpack.c.h.b16 %v8923
        %v9064 = vunpack.c.l.b16 %v8924
        %v9065 = vunpack.c.h.b16 %v8924
        %v9066 = vunpack.c.l.b16 %v8925
        %v9067 = vunpack.c.h.b16 %v8925
        %v9068 = vunpack.c.l.b16 %v8926
        %v9069 = vunpack.c.h.b16 %v8926
        %v9070 = vunpack.c.l.b16 %v8927
        %v9071 = vunpack.c.h.b16 %v8927
        %v9072 = vunpack.c.l.b16 %v8928
        %v9073 = vunpack.c.h.b16 %v8928
        %v9074 = vunpack.c.l.b16 %v8929
        %v9075 = vunpack.c.h.b16 %v8929
        %v9076 = vunpack.c.l.b16 %v8930
        %v9077 = vunpack.c.h.b16 %v8930
        %v9078 = vunpack.c.l.b16 %v8931
        %v9079 = vunpack.c.h.b16 %v8931
        %v9080 = vunpack.c.l.b16 %v8932
        %v9081 = vunpack.c.h.b16 %v8932
        %v9082 = vunpack.c.l.b16 %v8933
        %v9083 = vunpack.c.h.b16 %v8933
        %v9084 = vunpack.c.l.b16 %v8934
        %v9085 = vunpack.c.h.b16 %v8934
        %v9086 = vunpack.c.l.b16 %v8935
        %v9087 = vunpack.c.h.b16 %v8935
        %v9088 = vunpack.c.l.b16 %v8936
        %v9089 = vunpack.c.h.b16 %v8936
        %v9090 = vunpack.c.l.b16 %v8937
        %v9091 = vunpack.c.h.b16 %v8937
        %v9092 = vunpack.c.l.b16 %v8938
        %v9093 = vunpack.c.h.b16 %v8938
        %v9094 = vunpack.c.l.b16 %v8939
        %v9095 = vunpack.c.h.b16 %v8939
        %v9096 = vunpack.c.l.b16 %v8940
        %v9097 = vunpack.c.h.b16 %v8940
        %v9098 = vunpack.c.l.b16 %v8941
        %v9099 = vunpack.c.h.b16 %v8941
        %v9100 = vunpack.c.l.b16 %v8942
        %v9101 = vunpack.c.h.b16 %v8942
        %v9102 = vunpack.c.l.b16 %v8943
        %v9103 = vunpack.c.h.b16 %v8943
        %v9104 = vunpack.c.l.b16 %v8944
        %v9105 = vunpack.c.h.b16 %v8944
        %v9106 = vunpack.c.l.b16 %v8945
        %v9107 = vunpack.c.h.b16 %v8945
        %v9108 = vunpack.c.l.b16 %v8946
        %v9109 = vunpack.c.h.b16 %v8946
        %v9110 = vunpack.c.l.b16 %v8947
        %v9111 = vunpack.c.h.b16 %v8947
        %v9112 = vunpack.c.l.b16 %v8948
        %v9113 = vunpack.c.h.b16 %v8948
        %v9114 = vunpack.c.l.b16 %v8949
        %v9115 = vunpack.c.h.b16 %v8949
        %v9116 = vunpack.c.l.b16 %v8950
        %v9117 = vunpack.c.h.b16 %v8950
        %v9118 = vunpack.c.l.b16 %v8951
        %v9119 = vunpack.c.h.b16 %v8951
        %v9120 = vunpack.c.l.b16 %v8952
        %v9121 = vunpack.c.h.b16 %v8952
        %v9122 = vunpack.c.l.b16 %v8953
        %v9123 = vunpack.c.h.b16 %v8953
        %v9124 = vunpack.c.l.b16 %v8954
        %v9125 = vunpack.c.h.b16 %v8954
        %v9126 = vunpack.c.l.b16 %v8955
        %v9127 = vunpack.c.h.b16 %v8955
        %v9128 = vunpack.c.l.b16 %v8956
        %v9129 = vunpack.c.h.b16 %v8956
        %v9130 = vunpack.c.l.b16 %v8957
        %v9131 = vunpack.c.h.b16 %v8957
        %v9132 = vunpack.c.l.b16 %v8958
        %v9133 = vunpack.c.h.b16 %v8958
        %v9134 = vunpack.c.l.b16 %v8959
        %v9135 = vunpack.c.h.b16 %v8959
        %v9136 = vunpack.c.l.b16 %v8960
        %v9137 = vunpack.c.h.b16 %v8960
        %v9138 = vunpack.c.l.b16 %v8961
        %v9139 = vunpack.c.h.b16 %v8961
        %v9140 = vunpack.c.l.b16 %v8962
        %v9141 = vunpack.c.h.b16 %v8962
        %v9142 = vunpack.c.l.b16 %v8963
        %v9143 = vunpack.c.h.b16 %v8963
        %v9144 = vunpack.c.l.b16 %v8964
        %v9145 = vunpack.c.h.b16 %v8964
        %v9146 = vunpack.c.l.b16 %v8965
        %v9147 = vunpack.c.h.b16 %v8965
        %v9148 = vunpack.c.l.b16 %v8966
        %v9149 = vunpack.c.h.b16 %v8966
        %v9150 = vunpack.c.l.b16 %v8967
        %v9151 = vunpack.c.h.b16 %v8967
        %v9152 = vunpack.c.l.b16 %v8968
        %v9153 = vunpack.c.h.b16 %v8968
        %v9154 = vunpack.c.l.b16 %v8969
        %v9155 = vunpack.c.h.b16 %v8969
        %v9156 = vunpack.c.l.b16 %v8970
        %v9157 = vunpack.c.h.b16 %v8970
        %v9158 = vunpack.c.l.b16 %v8971
        %v9159 = vunpack.c.h.b16 %v8971
        %v9160 = vunpack.c.l.b16 %v8972
        %v9161 = vunpack.c.h.b16 %v8972
        %v9162 = vunpack.c.l.b16 %v8973
        %v9163 = vunpack.c.h.b16 %v8973
        %v9164 = vunpack.c.l.b16 %v8974
        %v9165 = vunpack.c.h.b16 %v8974
        %v9166 = vunpack.c.l.b16 %v8975
        %v9167 = vunpack.c.h.b16 %v8975
        %v9168 = vunpack.c.l.b16 %v8976
        %v9169 = vunpack.c.h.b16 %v8976
        %v9170 = vunpack.c.l.b16 %v8977
        %v9171 = vunpack.c.h.b16 %v8977
        %v9172 = vpack.c.b16 %v9048, %v9044
        %v9173 = vpack.c.b16 %v9049, %v9045
        %v9174 = vpack.c.b16 %v9050, %v9046
        %v9175 = vpack.c.b16 %v9051, %v9047
        %v9176 = vpack.c.b16 %v9056, %v9052
        %v9177 = vpack.c.b16 %v9057, %v9053
        %v9178 = vpack.c.b16 %v9058, %v9054
        %v9179 = vpack.c.b16 %v9059, %v9055
        %v9180 = vpack.c.b16 %v9064, %v9060
        %v9181 = vpack.c.b16 %v9065, %v9061
        %v9182 = vpack.c.b16 %v9066, %v9062
        %v9183 = vpack.c.b16 %v9067, %v9063
        %v9184 = vpack.c.b16 %v9072, %v9068
        %v9185 = vpack.c.b16 %v9073, %v9069
        %v9186 = vpack.c.b16 %v9074, %v9070
        %v9187 = vpack.c.b16 %v9075, %v9071
        %v9188 = vpack.c.b16 %v9080, %v9076
        %v9189 = vpack.c.b16 %v9081, %v9077
        %v9190 = vpack.c.b16 %v9082, %v9078
        %v9191 = vpack.c.b16 %v9083, %v9079
        %v9192 = vpack.c.b16 %v9088, %v9084
        %v9193 = vpack.c.b16 %v9089, %v9085
        %v9194 = vpack.c.b16 %v9090, %v9086
        %v9195 = vpack.c.b16 %v9091, %v9087
        %v9196 = vpack.c.b16 %v9096, %v9092
        %v9197 = vpack.c.b16 %v9097, %v9093
        %v9198 = vpack.c.b16 %v9098, %v9094
        %v9199 = vpack.c.b16 %v9099, %v9095
        %v9200 = vpack.c.b16 %v9104, %v9100
        %v9201 = vpack.c.b16 %v9105, %v9101
        %v9202 = vpack.c.b16 %v9106, %v9102
        %v9203 = vpack.c.b16 %v9107, %v9103
        %v9204 = vpack.c.b16 %v9112, %v9108
        %v9205 = vpack.c.b16 %v9113, %v9109
        %v9206 = vpack.c.b16 %v9114, %v9110
        %v9207 = vpack.c.b16 %v9115, %v9111
        %v9208 = vpack.c.b16 %v9120, %v9116
        %v9209 = vpack.c.b16 %v9121, %v9117
        %v9210 = vpack.c.b16 %v9122, %v9118
        %v9211 = vpack.c.b16 %v9123, %v9119
        %v9212 = vpack.c.b16 %v9128, %v9124
        %v9213 = vpack.c.b16 %v9129, %v9125
        %v9214 = vpack.c.b16 %v9130, %v9126
        %v9215 = vpack.c.b16 %v9131, %v9127
        %v9216 = vpack.c.b16 %v9136, %v9132
        %v9217 = vpack.c.b16 %v9137, %v9133
        %v9218 = vpack.c.b16 %v9138, %v9134
        %v9219 = vpack.c.b16 %v9139, %v9135
        %v9220 = vpack.c.b16 %v9144, %v9140
        %v9221 = vpack.c.b16 %v9145, %v9141
        %v9222 = vpack.c.b16 %v9146, %v9142
        %v9223 = vpack.c.b16 %v9147, %v9143
        %v9224 = vpack.c.b16 %v9152, %v9148
        %v9225 = vpack.c.b16 %v9153, %v9149
        %v9226 = vpack.c.b16 %v9154, %v9150
        %v9227 = vpack.c.b16 %v9155, %v9151
        %v9228 = vpack.c.b16 %v9160, %v9156
        %v9229 = vpack.c.b16 %v9161, %v9157
        %v9230 = vpack.c.b16 %v9162, %v9158
        %v9231 = vpack.c.b16 %v9163, %v9159
        %v9232 = vpack.c.b16 %v9168, %v9164
        %v9233 = vpack.c.b16 %v9169, %v9165
        %v9234 = vpack.c.b16 %v9170, %v9166
        %v9235 = vpack.c.b16 %v9171, %v9167
        %9300 = vmatpush.bf16.msra.mxu0 %v9200
        %9301 = vmatpush.bf16.msra.mxu0 %v9196
        %9302 = vmatpush.bf16.msra.mxu0 %v9192
        %9303 = vmatpush.bf16.msra.mxu0 %v9188
        %9304 = vmatpush.bf16.msra.mxu0 %v9184
        %9305 = vmatpush.bf16.msra.mxu0 %v9180
        %9306 = vmatpush.bf16.msra.mxu0 %v9176
        %9307 = vmatpush.bf16.msra.mxu0 %v9172
        %9308 = vmatmul.bf16.gmra.mxu0 %v8978
        %v9309 = vpop.f32.mrf.mxu0
        %v9310 = vadd.f32 0.0, %v9309
        %v9311 = vpop.f32.mrf.mxu0
        %9312 = vdwg.mxu0
        %9313 = vmatpush.bf16.msra.mxu0 %v9232
        %9314 = vmatpush.bf16.msra.mxu0 %v9228
        %9315 = vmatpush.bf16.msra.mxu0 %v9224
        %9316 = vmatpush.bf16.msra.mxu0 %v9220
        %9317 = vmatpush.bf16.msra.mxu0 %v9216
        %9318 = vmatpush.bf16.msra.mxu0 %v9212
        %9319 = vmatpush.bf16.msra.mxu0 %v9208
        %9320 = vmatpush.bf16.msra.mxu0 %v9204
        %9321 = vmatmul.bf16.gmra.mxu0 %v8979
        %v9322 = vpop.f32.mrf.mxu0
        %v9323 = vadd.f32 %v9310, %v9322
        %v9324 = vpop.f32.mrf.mxu0
        %9325 = vdwg.mxu0
        %9326 = vmatpush.bf16.msra.mxu0 %v9201
        %9327 = vmatpush.bf16.msra.mxu0 %v9197
        %9328 = vmatpush.bf16.msra.mxu0 %v9193
        %9329 = vmatpush.bf16.msra.mxu0 %v9189
        %9330 = vmatpush.bf16.msra.mxu0 %v9185
        %9331 = vmatpush.bf16.msra.mxu0 %v9181
        %9332 = vmatpush.bf16.msra.mxu0 %v9177
        %9333 = vmatpush.bf16.msra.mxu0 %v9173
        %9334 = vmatmul.bf16.gmra.mxu0 %v8978
        %v9335 = vpop.f32.mrf.mxu0
        %v9336 = vadd.f32 0.0, %v9335
        %v9337 = vpop.f32.mrf.mxu0
        %9338 = vdwg.mxu0
        %9339 = vmatpush.bf16.msra.mxu0 %v9233
        %9340 = vmatpush.bf16.msra.mxu0 %v9229
        %9341 = vmatpush.bf16.msra.mxu0 %v9225
        %9342 = vmatpush.bf16.msra.mxu0 %v9221
        %9343 = vmatpush.bf16.msra.mxu0 %v9217
        %9344 = vmatpush.bf16.msra.mxu0 %v9213
        %9345 = vmatpush.bf16.msra.mxu0 %v9209
        %9346 = vmatpush.bf16.msra.mxu0 %v9205
        %9347 = vmatmul.bf16.gmra.mxu0 %v8979
        %v9348 = vpop.f32.mrf.mxu0
        %v9349 = vadd.f32 %v9336, %v9348
        %v9350 = vpop.f32.mrf.mxu0
        %9351 = vdwg.mxu0
        %9352 = vmatpush.bf16.msra.mxu0 %v9202
        %9353 = vmatpush.bf16.msra.mxu0 %v9198
        %9354 = vmatpush.bf16.msra.mxu0 %v9194
        %9355 = vmatpush.bf16.msra.mxu0 %v9190
        %9356 = vmatpush.bf16.msra.mxu0 %v9186
        %9357 = vmatpush.bf16.msra.mxu0 %v9182
        %9358 = vmatpush.bf16.msra.mxu0 %v9178
        %9359 = vmatpush.bf16.msra.mxu0 %v9174
        %9360 = vmatmul.bf16.gmra.mxu0 %v8978
        %v9361 = vpop.f32.mrf.mxu0
        %v9362 = vadd.f32 0.0, %v9361
        %v9363 = vpop.f32.mrf.mxu0
        %9364 = vdwg.mxu0
        %9365 = vmatpush.bf16.msra.mxu0 %v9234
        %9366 = vmatpush.bf16.msra.mxu0 %v9230
        %9367 = vmatpush.bf16.msra.mxu0 %v9226
        %9368 = vmatpush.bf16.msra.mxu0 %v9222
        %9369 = vmatpush.bf16.msra.mxu0 %v9218
        %9370 = vmatpush.bf16.msra.mxu0 %v9214
        %9371 = vmatpush.bf16.msra.mxu0 %v9210
        %9372 = vmatpush.bf16.msra.mxu0 %v9206
        %9373 = vmatmul.bf16.gmra.mxu0 %v8979
        %v9374 = vpop.f32.mrf.mxu0
        %v9375 = vadd.f32 %v9362, %v9374
        %v9376 = vpop.f32.mrf.mxu0
        %9377 = vdwg.mxu0
        %9378 = vmatpush.bf16.msra.mxu0 %v9203
        %9379 = vmatpush.bf16.msra.mxu0 %v9199
        %9380 = vmatpush.bf16.msra.mxu0 %v9195
        %9381 = vmatpush.bf16.msra.mxu0 %v9191
        %9382 = vmatpush.bf16.msra.mxu0 %v9187
        %9383 = vmatpush.bf16.msra.mxu0 %v9183
        %9384 = vmatpush.bf16.msra.mxu0 %v9179
        %9385 = vmatpush.bf16.msra.mxu0 %v9175
        %9386 = vmatmul.bf16.gmra.mxu0 %v8978
        %v9387 = vpop.f32.mrf.mxu0
        %v9388 = vadd.f32 0.0, %v9387
        %v9389 = vpop.f32.mrf.mxu0
        %9390 = vdwg.mxu0
        %9391 = vmatpush.bf16.msra.mxu0 %v9235
        %9392 = vmatpush.bf16.msra.mxu0 %v9231
        %9393 = vmatpush.bf16.msra.mxu0 %v9227
        %9394 = vmatpush.bf16.msra.mxu0 %v9223
        %9395 = vmatpush.bf16.msra.mxu0 %v9219
        %9396 = vmatpush.bf16.msra.mxu0 %v9215
        %9397 = vmatpush.bf16.msra.mxu0 %v9211
        %9398 = vmatpush.bf16.msra.mxu0 %v9207
        %9399 = vmatmul.bf16.gmra.mxu0 %v8979
        %v9400 = vpop.f32.mrf.mxu0
        %v9401 = vadd.f32 %v9388, %v9400
        %v9402 = vpop.f32.mrf.mxu0
        %9403 = vdwg.mxu0
        %v9404 = vadd.f32 %v8900, %v9323
        %v9405 = vadd.f32 %v8901, %v9349
        %v9406 = vadd.f32 %v8902, %v9375
        %v9407 = vadd.f32 %v8903, %v9401
        %v9408 = vld [vmem:[#allocation2] sm:$0xff]
        %v9413 = vrot.slane %v9405, 6
        %v9414 = vrot.slane %v9406, 4
        %v9415 = vrot.slane %v9407, 2
        %vm9416 = vcmask 1041408
        %v9417 = vsel %vm9416, %v9404, %v9413
        %vm9418 = vcmask 1045508
        %v9419 = vsel %vm9418, %v9414, %v9415
        %vm9420 = vcmask 1043456
        %v9421 = vsel %vm9420, %v9417, %v9419
        %v9423 = vadd.f32 %v9408, %v9421
        %9424 = vst [vmem:[#allocation2] sm:$0xff] %v9423
        %p9425 = scmp.eq.s32.totalorder %s28, 3
        // Predicated region
        $region85: #{dis_forward.1} parent=75 // pred_check
          %p9426 = pneg %p9425
        $region86: #{dis_forward.1} parent=75 // pred_check_branch
          %9428 = sbr.rel (%p9426) target = $region88
        $region87: #{dis_forward.1} parent=75 // pred_region
          %v9429 = vld [vmem:[#allocation2] sm:$0xff]
          %v9430 = vld [vmem:[%s5] sm:$0xf]
          %v9432 = vperm.slane %v9430, 0
          %v9433 = vperm.slane %v9430, 1
          %v9434 = vperm.slane %v9430, 2
          %v9435 = vperm.slane %v9430, 3
          %v9436 = vrot.slane %v9433, 6
          %v9437 = vrot.slane %v9434, 4
          %v9438 = vrot.slane %v9435, 2
          %v9439 = vsel %vm9416, %v9432, %v9436
          %v9440 = vsel %vm9418, %v9437, %v9438
          %v9441 = vsel %vm9420, %v9439, %v9440
          %v9443 = vadd.f32 %v9429, %v9441
          %v9444 = vld [vmem:[%s6] sm:$0xf]
          %v9445 = vld [vmem:[%s7] sm:$0xf]
          %9447 = vst [vmem:[#allocation1] ss:$4 sm:$0xff] %v9443
          %v9448 = vld.sshfl [vmem:[#allocation1] sm:$0xff pattern:$0x73625140]
          %v9449 = vld.sshfl [vmem:[#allocation1 + $0x8] sm:$0xff pattern:$0x73625140]
          %v9450 = vld.sshfl [vmem:[#allocation1 + $0x10] sm:$0xff pattern:$0x73625140]
          %v9451 = vld.sshfl [vmem:[#allocation1 + $0x18] sm:$0xff pattern:$0x73625140]
          %v9456 = vsel %vm9416, %v9448, 0.0
          %v9457 = vrot.slane %v9456, 4
          %v9458 = vadd.f32 %v9456, %v9457
          %v9459 = vrot.slane %v9458, 2
          %v9460 = vadd.f32 %v9458, %v9459
          %v9461 = vrot.slane %v9460, 1
          %v9462 = vadd.f32 %v9460, %v9461
          %v9463 = vsel %vm9416, %v9449, 0.0
          %v9464 = vrot.slane %v9463, 4
          %v9465 = vadd.f32 %v9463, %v9464
          %v9466 = vrot.slane %v9465, 2
          %v9467 = vadd.f32 %v9465, %v9466
          %v9468 = vrot.slane %v9467, 1
          %v9469 = vadd.f32 %v9467, %v9468
          %v9470 = vsel %vm9416, %v9450, 0.0
          %v9471 = vrot.slane %v9470, 4
          %v9472 = vadd.f32 %v9470, %v9471
          %v9473 = vrot.slane %v9472, 2
          %v9474 = vadd.f32 %v9472, %v9473
          %v9475 = vrot.slane %v9474, 1
          %v9476 = vadd.f32 %v9474, %v9475
          %v9477 = vsel %vm9416, %v9451, 0.0
          %v9478 = vrot.slane %v9477, 4
          %v9479 = vadd.f32 %v9477, %v9478
          %v9480 = vrot.slane %v9479, 2
          %v9481 = vadd.f32 %v9479, %v9480
          %v9482 = vrot.slane %v9481, 1
          %v9483 = vadd.f32 %v9481, %v9482
          %v9484 = vrcp.pop 2.0
          %v9485 = vmul.f32 2.0, %v9484
          %v9486 = vsub.f32 1.0, %v9485
          %v9487 = vmul.f32 %v9484, %v9486
          %v9488 = vadd.f32 %v9484, %v9487
          %vm9489 = vweird.f32 %v9484
          %v9490 = vsel %vm9489, %v9484, %v9488
          %v9491 = vmul.f32 %v9462, %v9490
          %v9492 = vmul.f32 %v9469, %v9490
          %v9493 = vmul.f32 %v9476, %v9490
          %v9494 = vmul.f32 %v9483, %v9490
          %v9499 = vrot.slane %v9492, 6
          %v9500 = vrot.slane %v9493, 4
          %v9501 = vrot.slane %v9494, 2
          %v9502 = vsel %vm9416, %v9491, %v9499
          %v9503 = vsel %vm9418, %v9500, %v9501
          %v9504 = vsel %vm9420, %v9502, %v9503
          %v9506 = vsub.f32 %v9443, %v9504
          %v9507 = vmul.f32 %v9506, %v9506
          %9509 = vst [vmem:[#allocation1] ss:$4 sm:$0xff] %v9507
          %v9510 = vld.sshfl [vmem:[#allocation1] sm:$0xff pattern:$0x73625140]
          %v9511 = vld.sshfl [vmem:[#allocation1 + $0x8] sm:$0xff pattern:$0x73625140]
          %v9512 = vld.sshfl [vmem:[#allocation1 + $0x10] sm:$0xff pattern:$0x73625140]
          %v9513 = vld.sshfl [vmem:[#allocation1 + $0x18] sm:$0xff pattern:$0x73625140]
          %v9518 = vsel %vm9416, %v9510, 0.0
          %v9519 = vrot.slane %v9518, 4
          %v9520 = vadd.f32 %v9518, %v9519
          %v9521 = vrot.slane %v9520, 2
          %v9522 = vadd.f32 %v9520, %v9521
          %v9523 = vrot.slane %v9522, 1
          %v9524 = vadd.f32 %v9522, %v9523
          %v9525 = vsel %vm9416, %v9511, 0.0
          %v9526 = vrot.slane %v9525, 4
          %v9527 = vadd.f32 %v9525, %v9526
          %v9528 = vrot.slane %v9527, 2
          %v9529 = vadd.f32 %v9527, %v9528
          %v9530 = vrot.slane %v9529, 1
          %v9531 = vadd.f32 %v9529, %v9530
          %v9532 = vsel %vm9416, %v9512, 0.0
          %v9533 = vrot.slane %v9532, 4
          %v9534 = vadd.f32 %v9532, %v9533
          %v9535 = vrot.slane %v9534, 2
          %v9536 = vadd.f32 %v9534, %v9535
          %v9537 = vrot.slane %v9536, 1
          %v9538 = vadd.f32 %v9536, %v9537
          %v9539 = vsel %vm9416, %v9513, 0.0
          %v9540 = vrot.slane %v9539, 4
          %v9541 = vadd.f32 %v9539, %v9540
          %v9542 = vrot.slane %v9541, 2
          %v9543 = vadd.f32 %v9541, %v9542
          %v9544 = vrot.slane %v9543, 1
          %v9545 = vadd.f32 %v9543, %v9544
          %v9546 = vmul.f32 %v9524, %v9490
          %v9547 = vmul.f32 %v9531, %v9490
          %v9548 = vmul.f32 %v9538, %v9490
          %v9549 = vmul.f32 %v9545, %v9490
          %v9550 = vadd.f32 %v9546, 1e-05
          %v9551 = vadd.f32 %v9547, 1e-05
          %v9552 = vadd.f32 %v9548, 1e-05
          %v9553 = vadd.f32 %v9549, 1e-05
          %v9554 = vrsqrt.pop %v9550
          %v9555 = vmul.f32 %v9554, %v9550
          %v9556 = vmul.f32 %v9555, %v9554
          %v9557 = vmul.f32 0.5, %v9556
          %v9558 = vsub.f32 1.5, %v9557
          %v9559 = vmul.f32 %v9554, %v9558
          %vm9560 = vweird.f32 %v9550
          %vm9561 = vweird.f32 %v9554
          %vm9562 = vmor %vm9560, %vm9561
          %v9563 = vsel %vm9562, %v9554, %v9559
          %v9564 = vrsqrt.pop %v9551
          %v9565 = vmul.f32 %v9564, %v9551
          %v9566 = vmul.f32 %v9565, %v9564
          %v9567 = vmul.f32 0.5, %v9566
          %v9568 = vsub.f32 1.5, %v9567
          %v9569 = vmul.f32 %v9564, %v9568
          %vm9570 = vweird.f32 %v9551
          %vm9571 = vweird.f32 %v9564
          %vm9572 = vmor %vm9570, %vm9571
          %v9573 = vsel %vm9572, %v9564, %v9569
          %v9574 = vrsqrt.pop %v9552
          %v9575 = vmul.f32 %v9574, %v9552
          %v9576 = vmul.f32 %v9575, %v9574
          %v9577 = vmul.f32 0.5, %v9576
          %v9578 = vsub.f32 1.5, %v9577
          %v9579 = vmul.f32 %v9574, %v9578
          %vm9580 = vweird.f32 %v9552
          %vm9581 = vweird.f32 %v9574
          %vm9582 = vmor %vm9580, %vm9581
          %v9583 = vsel %vm9582, %v9574, %v9579
          %v9584 = vrsqrt.pop %v9553
          %v9585 = vmul.f32 %v9584, %v9553
          %v9586 = vmul.f32 %v9585, %v9584
          %v9587 = vmul.f32 0.5, %v9586
          %v9588 = vsub.f32 1.5, %v9587
          %v9589 = vmul.f32 %v9584, %v9588
          %vm9590 = vweird.f32 %v9553
          %vm9591 = vweird.f32 %v9584
          %vm9592 = vmor %vm9590, %vm9591
          %v9593 = vsel %vm9592, %v9584, %v9589
          %v9598 = vrot.slane %v9573, 6
          %v9599 = vrot.slane %v9583, 4
          %v9600 = vrot.slane %v9593, 2
          %v9601 = vsel %vm9416, %v9563, %v9598
          %v9602 = vsel %vm9418, %v9599, %v9600
          %v9603 = vsel %vm9420, %v9601, %v9602
          %v9605 = vmul.f32 %v9506, %v9603
          %v9607 = vperm.slane %v9444, 0
          %v9608 = vperm.slane %v9444, 1
          %v9609 = vperm.slane %v9444, 2
          %v9610 = vperm.slane %v9444, 3
          %v9611 = vrot.slane %v9608, 6
          %v9612 = vrot.slane %v9609, 4
          %v9613 = vrot.slane %v9610, 2
          %v9614 = vsel %vm9416, %v9607, %v9611
          %v9615 = vsel %vm9418, %v9612, %v9613
          %v9616 = vsel %vm9420, %v9614, %v9615
          %v9618 = vmul.f32 %v9605, %v9616
          %v9620 = vperm.slane %v9445, 0
          %v9621 = vperm.slane %v9445, 1
          %v9622 = vperm.slane %v9445, 2
          %v9623 = vperm.slane %v9445, 3
          %v9624 = vrot.slane %v9621, 6
          %v9625 = vrot.slane %v9622, 4
          %v9626 = vrot.slane %v9623, 2
          %v9627 = vsel %vm9416, %v9620, %v9624
          %v9628 = vsel %vm9418, %v9625, %v9626
          %v9629 = vsel %vm9420, %v9627, %v9628
          %v9631 = vadd.f32 %v9618, %v9629
          %vm9632 = vcmp.gt.f32.partialorder %v9631, 0.0
          %v9633 = vmul.f32 %v9631, 0.2
          %v9634 = vsel %vm9632, %v9631, %v9633
          %9636 = vst [vmem:[#allocation1] ss:$4 sm:$0xff] %v9634
          %v9637 = vld.sshfl [vmem:[#allocation1] sm:$0xff pattern:$0x73625140]
          %v9638 = vld.sshfl [vmem:[#allocation1 + $0x8] sm:$0xff pattern:$0x73625140]
          %v9639 = vld.sshfl [vmem:[#allocation1 + $0x10] sm:$0xff pattern:$0x73625140]
          %v9640 = vld.sshfl [vmem:[#allocation1 + $0x18] sm:$0xff pattern:$0x73625140]
          %v9645 = vpack.c.bf16 %v9637, %v9637
          %v9646 = vpack.c.bf16 %v9638, %v9638
          %v9647 = vpack.c.bf16 %v9639, %v9639
          %v9648 = vpack.c.bf16 %v9640, %v9640
          %v9649 = vld [vmem:[#allocation6] sm:$0xff]
          %v9650 = vld [vmem:[#allocation6 + $0x8] sm:$0xff]
          %v9651 = vld [vmem:[#allocation6 + $0x10] sm:$0xff]
          %v9652 = vld [vmem:[#allocation6 + $0x18] sm:$0xff]
          %v9653 = vld [vmem:[#allocation6 + $0x20] sm:$0xff]
          %v9654 = vld [vmem:[#allocation6 + $0x28] sm:$0xff]
          %v9655 = vld [vmem:[#allocation6 + $0x30] sm:$0xff]
          %v9656 = vld [vmem:[#allocation6 + $0x38] sm:$0xff]
          %v9657 = vld [vmem:[#allocation6 + $0x40] sm:$0xff]
          %v9658 = vld [vmem:[#allocation6 + $0x48] sm:$0xff]
          %v9659 = vld [vmem:[#allocation6 + $0x50] sm:$0xff]
          %v9660 = vld [vmem:[#allocation6 + $0x58] sm:$0xff]
          %v9661 = vld [vmem:[#allocation6 + $0x60] sm:$0xff]
          %v9662 = vld [vmem:[#allocation6 + $0x68] sm:$0xff]
          %v9663 = vld [vmem:[#allocation6 + $0x70] sm:$0xff]
          %v9664 = vld [vmem:[#allocation6 + $0x78] sm:$0xff]
          %v9665 = vld [vmem:[#allocation6 + $0x80] sm:$0xff]
          %v9666 = vld [vmem:[#allocation6 + $0x88] sm:$0xff]
          %v9667 = vld [vmem:[#allocation6 + $0x90] sm:$0xff]
          %v9668 = vld [vmem:[#allocation6 + $0x98] sm:$0xff]
          %v9669 = vld [vmem:[#allocation6 + $0xa0] sm:$0xff]
          %v9670 = vld [vmem:[#allocation6 + $0xa8] sm:$0xff]
          %v9671 = vld [vmem:[#allocation6 + $0xb0] sm:$0xff]
          %v9672 = vld [vmem:[#allocation6 + $0xb8] sm:$0xff]
          %v9673 = vld [vmem:[#allocation6 + $0xc0] sm:$0xff]
          %v9674 = vld [vmem:[#allocation6 + $0xc8] sm:$0xff]
          %v9675 = vld [vmem:[#allocation6 + $0xd0] sm:$0xff]
          %v9676 = vld [vmem:[#allocation6 + $0xd8] sm:$0xff]
          %v9677 = vld [vmem:[#allocation6 + $0xe0] sm:$0xff]
          %v9678 = vld [vmem:[#allocation6 + $0xe8] sm:$0xff]
          %v9679 = vld [vmem:[#allocation6 + $0xf0] sm:$0xff]
          %v9680 = vld [vmem:[#allocation6 + $0xf8] sm:$0xff]
          %v9681 = vld [vmem:[#allocation6 + $0x100] sm:$0xff]
          %v9682 = vld [vmem:[#allocation6 + $0x108] sm:$0xff]
          %v9683 = vld [vmem:[#allocation6 + $0x110] sm:$0xff]
          %v9684 = vld [vmem:[#allocation6 + $0x118] sm:$0xff]
          %v9685 = vld [vmem:[#allocation6 + $0x120] sm:$0xff]
          %v9686 = vld [vmem:[#allocation6 + $0x128] sm:$0xff]
          %v9687 = vld [vmem:[#allocation6 + $0x130] sm:$0xff]
          %v9688 = vld [vmem:[#allocation6 + $0x138] sm:$0xff]
          %v9689 = vld [vmem:[#allocation6 + $0x140] sm:$0xff]
          %v9690 = vld [vmem:[#allocation6 + $0x148] sm:$0xff]
          %v9691 = vld [vmem:[#allocation6 + $0x150] sm:$0xff]
          %v9692 = vld [vmem:[#allocation6 + $0x158] sm:$0xff]
          %v9693 = vld [vmem:[#allocation6 + $0x160] sm:$0xff]
          %v9694 = vld [vmem:[#allocation6 + $0x168] sm:$0xff]
          %v9695 = vld [vmem:[#allocation6 + $0x170] sm:$0xff]
          %v9696 = vld [vmem:[#allocation6 + $0x178] sm:$0xff]
          %v9697 = vld [vmem:[#allocation6 + $0x180] sm:$0xff]
          %v9698 = vld [vmem:[#allocation6 + $0x188] sm:$0xff]
          %v9699 = vld [vmem:[#allocation6 + $0x190] sm:$0xff]
          %v9700 = vld [vmem:[#allocation6 + $0x198] sm:$0xff]
          %v9701 = vld [vmem:[#allocation6 + $0x1a0] sm:$0xff]
          %v9702 = vld [vmem:[#allocation6 + $0x1a8] sm:$0xff]
          %v9703 = vld [vmem:[#allocation6 + $0x1b0] sm:$0xff]
          %v9704 = vld [vmem:[#allocation6 + $0x1b8] sm:$0xff]
          %v9705 = vld [vmem:[#allocation6 + $0x1c0] sm:$0xff]
          %v9706 = vld [vmem:[#allocation6 + $0x1c8] sm:$0xff]
          %v9707 = vld [vmem:[#allocation6 + $0x1d0] sm:$0xff]
          %v9708 = vld [vmem:[#allocation6 + $0x1d8] sm:$0xff]
          %v9709 = vld [vmem:[#allocation6 + $0x1e0] sm:$0xff]
          %v9710 = vld [vmem:[#allocation6 + $0x1e8] sm:$0xff]
          %v9711 = vld [vmem:[#allocation6 + $0x1f0] sm:$0xff]
          %v9712 = vld [vmem:[#allocation6 + $0x1f8] sm:$0xff]
          %v9713 = vld [vmem:[%s9] sm:$0x3]
          %v9715 = vperm.slane %v9713, 0
          %v9716 = vperm.slane %v9713, 1
          %v9783 = vunpack.c.l.b16 %v9649
          %v9784 = vunpack.c.h.b16 %v9649
          %v9785 = vunpack.c.l.b16 %v9650
          %v9786 = vunpack.c.h.b16 %v9650
          %v9787 = vunpack.c.l.b16 %v9651
          %v9788 = vunpack.c.h.b16 %v9651
          %v9789 = vunpack.c.l.b16 %v9652
          %v9790 = vunpack.c.h.b16 %v9652
          %v9791 = vunpack.c.l.b16 %v9653
          %v9792 = vunpack.c.h.b16 %v9653
          %v9793 = vunpack.c.l.b16 %v9654
          %v9794 = vunpack.c.h.b16 %v9654
          %v9795 = vunpack.c.l.b16 %v9655
          %v9796 = vunpack.c.h.b16 %v9655
          %v9797 = vunpack.c.l.b16 %v9656
          %v9798 = vunpack.c.h.b16 %v9656
          %v9799 = vunpack.c.l.b16 %v9657
          %v9800 = vunpack.c.h.b16 %v9657
          %v9801 = vunpack.c.l.b16 %v9658
          %v9802 = vunpack.c.h.b16 %v9658
          %v9803 = vunpack.c.l.b16 %v9659
          %v9804 = vunpack.c.h.b16 %v9659
          %v9805 = vunpack.c.l.b16 %v9660
          %v9806 = vunpack.c.h.b16 %v9660
          %v9807 = vunpack.c.l.b16 %v9661
          %v9808 = vunpack.c.h.b16 %v9661
          %v9809 = vunpack.c.l.b16 %v9662
          %v9810 = vunpack.c.h.b16 %v9662
          %v9811 = vunpack.c.l.b16 %v9663
          %v9812 = vunpack.c.h.b16 %v9663
          %v9813 = vunpack.c.l.b16 %v9664
          %v9814 = vunpack.c.h.b16 %v9664
          %v9815 = vunpack.c.l.b16 %v9665
          %v9816 = vunpack.c.h.b16 %v9665
          %v9817 = vunpack.c.l.b16 %v9666
          %v9818 = vunpack.c.h.b16 %v9666
          %v9819 = vunpack.c.l.b16 %v9667
          %v9820 = vunpack.c.h.b16 %v9667
          %v9821 = vunpack.c.l.b16 %v9668
          %v9822 = vunpack.c.h.b16 %v9668
          %v9823 = vunpack.c.l.b16 %v9669
          %v9824 = vunpack.c.h.b16 %v9669
          %v9825 = vunpack.c.l.b16 %v9670
          %v9826 = vunpack.c.h.b16 %v9670
          %v9827 = vunpack.c.l.b16 %v9671
          %v9828 = vunpack.c.h.b16 %v9671
          %v9829 = vunpack.c.l.b16 %v9672
          %v9830 = vunpack.c.h.b16 %v9672
          %v9831 = vunpack.c.l.b16 %v9673
          %v9832 = vunpack.c.h.b16 %v9673
          %v9833 = vunpack.c.l.b16 %v9674
          %v9834 = vunpack.c.h.b16 %v9674
          %v9835 = vunpack.c.l.b16 %v9675
          %v9836 = vunpack.c.h.b16 %v9675
          %v9837 = vunpack.c.l.b16 %v9676
          %v9838 = vunpack.c.h.b16 %v9676
          %v9839 = vunpack.c.l.b16 %v9677
          %v9840 = vunpack.c.h.b16 %v9677
          %v9841 = vunpack.c.l.b16 %v9678
          %v9842 = vunpack.c.h.b16 %v9678
          %v9843 = vunpack.c.l.b16 %v9679
          %v9844 = vunpack.c.h.b16 %v9679
          %v9845 = vunpack.c.l.b16 %v9680
          %v9846 = vunpack.c.h.b16 %v9680
          %v9847 = vunpack.c.l.b16 %v9681
          %v9848 = vunpack.c.h.b16 %v9681
          %v9849 = vunpack.c.l.b16 %v9682
          %v9850 = vunpack.c.h.b16 %v9682
          %v9851 = vunpack.c.l.b16 %v9683
          %v9852 = vunpack.c.h.b16 %v9683
          %v9853 = vunpack.c.l.b16 %v9684
          %v9854 = vunpack.c.h.b16 %v9684
          %v9855 = vunpack.c.l.b16 %v9685
          %v9856 = vunpack.c.h.b16 %v9685
          %v9857 = vunpack.c.l.b16 %v9686
          %v9858 = vunpack.c.h.b16 %v9686
          %v9859 = vunpack.c.l.b16 %v9687
          %v9860 = vunpack.c.h.b16 %v9687
          %v9861 = vunpack.c.l.b16 %v9688
          %v9862 = vunpack.c.h.b16 %v9688
          %v9863 = vunpack.c.l.b16 %v9689
          %v9864 = vunpack.c.h.b16 %v9689
          %v9865 = vunpack.c.l.b16 %v9690
          %v9866 = vunpack.c.h.b16 %v9690
          %v9867 = vunpack.c.l.b16 %v9691
          %v9868 = vunpack.c.h.b16 %v9691
          %v9869 = vunpack.c.l.b16 %v9692
          %v9870 = vunpack.c.h.b16 %v9692
          %v9871 = vunpack.c.l.b16 %v9693
          %v9872 = vunpack.c.h.b16 %v9693
          %v9873 = vunpack.c.l.b16 %v9694
          %v9874 = vunpack.c.h.b16 %v9694
          %v9875 = vunpack.c.l.b16 %v9695
          %v9876 = vunpack.c.h.b16 %v9695
          %v9877 = vunpack.c.l.b16 %v9696
          %v9878 = vunpack.c.h.b16 %v9696
          %v9879 = vunpack.c.l.b16 %v9697
          %v9880 = vunpack.c.h.b16 %v9697
          %v9881 = vunpack.c.l.b16 %v9698
          %v9882 = vunpack.c.h.b16 %v9698
          %v9883 = vunpack.c.l.b16 %v9699
          %v9884 = vunpack.c.h.b16 %v9699
          %v9885 = vunpack.c.l.b16 %v9700
          %v9886 = vunpack.c.h.b16 %v9700
          %v9887 = vunpack.c.l.b16 %v9701
          %v9888 = vunpack.c.h.b16 %v9701
          %v9889 = vunpack.c.l.b16 %v9702
          %v9890 = vunpack.c.h.b16 %v9702
          %v9891 = vunpack.c.l.b16 %v9703
          %v9892 = vunpack.c.h.b16 %v9703
          %v9893 = vunpack.c.l.b16 %v9704
          %v9894 = vunpack.c.h.b16 %v9704
          %v9895 = vunpack.c.l.b16 %v9705
          %v9896 = vunpack.c.h.b16 %v9705
          %v9897 = vunpack.c.l.b16 %v9706
          %v9898 = vunpack.c.h.b16 %v9706
          %v9899 = vunpack.c.l.b16 %v9707
          %v9900 = vunpack.c.h.b16 %v9707
          %v9901 = vunpack.c.l.b16 %v9708
          %v9902 = vunpack.c.h.b16 %v9708
          %v9903 = vunpack.c.l.b16 %v9709
          %v9904 = vunpack.c.h.b16 %v9709
          %v9905 = vunpack.c.l.b16 %v9710
          %v9906 = vunpack.c.h.b16 %v9710
          %v9907 = vunpack.c.l.b16 %v9711
          %v9908 = vunpack.c.h.b16 %v9711
          %v9909 = vunpack.c.l.b16 %v9712
          %v9910 = vunpack.c.h.b16 %v9712
          %v9911 = vpack.c.b16 %v9785, %v9783
          %v9912 = vpack.c.b16 %v9786, %v9784
          %v9913 = vpack.c.b16 %v9789, %v9787
          %v9914 = vpack.c.b16 %v9790, %v9788
          %v9915 = vpack.c.b16 %v9793, %v9791
          %v9916 = vpack.c.b16 %v9794, %v9792
          %v9917 = vpack.c.b16 %v9797, %v9795
          %v9918 = vpack.c.b16 %v9798, %v9796
          %v9919 = vpack.c.b16 %v9801, %v9799
          %v9920 = vpack.c.b16 %v9802, %v9800
          %v9921 = vpack.c.b16 %v9805, %v9803
          %v9922 = vpack.c.b16 %v9806, %v9804
          %v9923 = vpack.c.b16 %v9809, %v9807
          %v9924 = vpack.c.b16 %v9810, %v9808
          %v9925 = vpack.c.b16 %v9813, %v9811
          %v9926 = vpack.c.b16 %v9814, %v9812
          %v9927 = vpack.c.b16 %v9817, %v9815
          %v9928 = vpack.c.b16 %v9818, %v9816
          %v9929 = vpack.c.b16 %v9821, %v9819
          %v9930 = vpack.c.b16 %v9822, %v9820
          %v9931 = vpack.c.b16 %v9825, %v9823
          %v9932 = vpack.c.b16 %v9826, %v9824
          %v9933 = vpack.c.b16 %v9829, %v9827
          %v9934 = vpack.c.b16 %v9830, %v9828
          %v9935 = vpack.c.b16 %v9833, %v9831
          %v9936 = vpack.c.b16 %v9834, %v9832
          %v9937 = vpack.c.b16 %v9837, %v9835
          %v9938 = vpack.c.b16 %v9838, %v9836
          %v9939 = vpack.c.b16 %v9841, %v9839
          %v9940 = vpack.c.b16 %v9842, %v9840
          %v9941 = vpack.c.b16 %v9845, %v9843
          %v9942 = vpack.c.b16 %v9846, %v9844
          %v9943 = vpack.c.b16 %v9849, %v9847
          %v9944 = vpack.c.b16 %v9850, %v9848
          %v9945 = vpack.c.b16 %v9853, %v9851
          %v9946 = vpack.c.b16 %v9854, %v9852
          %v9947 = vpack.c.b16 %v9857, %v9855
          %v9948 = vpack.c.b16 %v9858, %v9856
          %v9949 = vpack.c.b16 %v9861, %v9859
          %v9950 = vpack.c.b16 %v9862, %v9860
          %v9951 = vpack.c.b16 %v9865, %v9863
          %v9952 = vpack.c.b16 %v9866, %v9864
          %v9953 = vpack.c.b16 %v9869, %v9867
          %v9954 = vpack.c.b16 %v9870, %v9868
          %v9955 = vpack.c.b16 %v9873, %v9871
          %v9956 = vpack.c.b16 %v9874, %v9872
          %v9957 = vpack.c.b16 %v9877, %v9875
          %v9958 = vpack.c.b16 %v9878, %v9876
          %v9959 = vpack.c.b16 %v9881, %v9879
          %v9960 = vpack.c.b16 %v9882, %v9880
          %v9961 = vpack.c.b16 %v9885, %v9883
          %v9962 = vpack.c.b16 %v9886, %v9884
          %v9963 = vpack.c.b16 %v9889, %v9887
          %v9964 = vpack.c.b16 %v9890, %v9888
          %v9965 = vpack.c.b16 %v9893, %v9891
          %v9966 = vpack.c.b16 %v9894, %v9892
          %v9967 = vpack.c.b16 %v9897, %v9895
          %v9968 = vpack.c.b16 %v9898, %v9896
          %v9969 = vpack.c.b16 %v9901, %v9899
          %v9970 = vpack.c.b16 %v9902, %v9900
          %v9971 = vpack.c.b16 %v9905, %v9903
          %v9972 = vpack.c.b16 %v9906, %v9904
          %v9973 = vpack.c.b16 %v9909, %v9907
          %v9974 = vpack.c.b16 %v9910, %v9908
          %10039 = vmatpush.bf16.msra.mxu0 %v9925
          %10040 = vmatpush.bf16.msra.mxu0 %v9923
          %10041 = vmatpush.bf16.msra.mxu0 %v9921
          %10042 = vmatpush.bf16.msra.mxu0 %v9919
          %10043 = vmatpush.bf16.msra.mxu0 %v9917
          %10044 = vmatpush.bf16.msra.mxu0 %v9915
          %10045 = vmatpush.bf16.msra.mxu0 %v9913
          %10046 = vmatpush.bf16.msra.mxu0 %v9911
          %10047 = vmatmul.bf16.gmra.mxu0 %v9645
          %v10048 = vpop.f32.mrf.mxu0
          %v10049 = vadd.f32 %v9715, %v10048
          %v10050 = vpop.f32.mrf.mxu0
          %10051 = vdwg.mxu0
          %10052 = vmatpush.bf16.msra.mxu0 %v9941
          %10053 = vmatpush.bf16.msra.mxu0 %v9939
          %10054 = vmatpush.bf16.msra.mxu0 %v9937
          %10055 = vmatpush.bf16.msra.mxu0 %v9935
          %10056 = vmatpush.bf16.msra.mxu0 %v9933
          %10057 = vmatpush.bf16.msra.mxu0 %v9931
          %10058 = vmatpush.bf16.msra.mxu0 %v9929
          %10059 = vmatpush.bf16.msra.mxu0 %v9927
          %10060 = vmatmul.bf16.gmra.mxu0 %v9646
          %v10061 = vpop.f32.mrf.mxu0
          %v10062 = vadd.f32 %v10049, %v10061
          %v10063 = vpop.f32.mrf.mxu0
          %10064 = vdwg.mxu0
          %10065 = vmatpush.bf16.msra.mxu0 %v9957
          %10066 = vmatpush.bf16.msra.mxu0 %v9955
          %10067 = vmatpush.bf16.msra.mxu0 %v9953
          %10068 = vmatpush.bf16.msra.mxu0 %v9951
          %10069 = vmatpush.bf16.msra.mxu0 %v9949
          %10070 = vmatpush.bf16.msra.mxu0 %v9947
          %10071 = vmatpush.bf16.msra.mxu0 %v9945
          %10072 = vmatpush.bf16.msra.mxu0 %v9943
          %10073 = vmatmul.bf16.gmra.mxu0 %v9647
          %v10074 = vpop.f32.mrf.mxu0
          %v10075 = vadd.f32 %v10062, %v10074
          %v10076 = vpop.f32.mrf.mxu0
          %10077 = vdwg.mxu0
          %10078 = vmatpush.bf16.msra.mxu0 %v9973
          %10079 = vmatpush.bf16.msra.mxu0 %v9971
          %10080 = vmatpush.bf16.msra.mxu0 %v9969
          %10081 = vmatpush.bf16.msra.mxu0 %v9967
          %10082 = vmatpush.bf16.msra.mxu0 %v9965
          %10083 = vmatpush.bf16.msra.mxu0 %v9963
          %10084 = vmatpush.bf16.msra.mxu0 %v9961
          %10085 = vmatpush.bf16.msra.mxu0 %v9959
          %10086 = vmatmul.bf16.gmra.mxu0 %v9648
          %v10087 = vpop.f32.mrf.mxu0
          %v10088 = vadd.f32 %v10075, %v10087
          %v10089 = vpop.f32.mrf.mxu0
          %10090 = vdwg.mxu0
          %10091 = vmatpush.bf16.msra.mxu0 %v9926
          %10092 = vmatpush.bf16.msra.mxu0 %v9924
          %10093 = vmatpush.bf16.msra.mxu0 %v9922
          %10094 = vmatpush.bf16.msra.mxu0 %v9920
          %10095 = vmatpush.bf16.msra.mxu0 %v9918
          %10096 = vmatpush.bf16.msra.mxu0 %v9916
          %10097 = vmatpush.bf16.msra.mxu0 %v9914
          %10098 = vmatpush.bf16.msra.mxu0 %v9912
          %10099 = vmatmul.bf16.gmra.mxu0 %v9645
          %v10100 = vpop.f32.mrf.mxu0
          %v10101 = vadd.f32 %v9716, %v10100
          %v10102 = vpop.f32.mrf.mxu0
          %10103 = vdwg.mxu0
          %10104 = vmatpush.bf16.msra.mxu0 %v9942
          %10105 = vmatpush.bf16.msra.mxu0 %v9940
          %10106 = vmatpush.bf16.msra.mxu0 %v9938
          %10107 = vmatpush.bf16.msra.mxu0 %v9936
          %10108 = vmatpush.bf16.msra.mxu0 %v9934
          %10109 = vmatpush.bf16.msra.mxu0 %v9932
          %10110 = vmatpush.bf16.msra.mxu0 %v9930
          %10111 = vmatpush.bf16.msra.mxu0 %v9928
          %10112 = vmatmul.bf16.gmra.mxu0 %v9646
          %v10113 = vpop.f32.mrf.mxu0
          %v10114 = vadd.f32 %v10101, %v10113
          %v10115 = vpop.f32.mrf.mxu0
          %10116 = vdwg.mxu0
          %10117 = vmatpush.bf16.msra.mxu0 %v9958
          %10118 = vmatpush.bf16.msra.mxu0 %v9956
          %10119 = vmatpush.bf16.msra.mxu0 %v9954
          %10120 = vmatpush.bf16.msra.mxu0 %v9952
          %10121 = vmatpush.bf16.msra.mxu0 %v9950
          %10122 = vmatpush.bf16.msra.mxu0 %v9948
          %10123 = vmatpush.bf16.msra.mxu0 %v9946
          %10124 = vmatpush.bf16.msra.mxu0 %v9944
          %10125 = vmatmul.bf16.gmra.mxu0 %v9647
          %v10126 = vpop.f32.mrf.mxu0
          %v10127 = vadd.f32 %v10114, %v10126
          %v10128 = vpop.f32.mrf.mxu0
          %10129 = vdwg.mxu0
          %10130 = vmatpush.bf16.msra.mxu0 %v9974
          %10131 = vmatpush.bf16.msra.mxu0 %v9972
          %10132 = vmatpush.bf16.msra.mxu0 %v9970
          %10133 = vmatpush.bf16.msra.mxu0 %v9968
          %10134 = vmatpush.bf16.msra.mxu0 %v9966
          %10135 = vmatpush.bf16.msra.mxu0 %v9964
          %10136 = vmatpush.bf16.msra.mxu0 %v9962
          %10137 = vmatpush.bf16.msra.mxu0 %v9960
          %10138 = vmatmul.bf16.gmra.mxu0 %v9648
          %v10139 = vpop.f32.mrf.mxu0
          %v10140 = vadd.f32 %v10127, %v10139
          %v10141 = vpop.f32.mrf.mxu0
          %10142 = vdwg.mxu0
          %v10143 = vld [vmem:[%s10] sm:$0x3]
          %v10144 = vld [vmem:[%s11] sm:$0x3]
          %v10145 = vsel %vm9416, %v10088, 0.0
          %v10146 = vrot.slane %v10145, 4
          %v10147 = vadd.f32 %v10145, %v10146
          %v10148 = vrot.slane %v10147, 2
          %v10149 = vadd.f32 %v10147, %v10148
          %v10150 = vrot.slane %v10149, 1
          %v10151 = vadd.f32 %v10149, %v10150
          %v10152 = vsel %vm9416, %v10140, 0.0
          %v10153 = vrot.slane %v10152, 4
          %v10154 = vadd.f32 %v10152, %v10153
          %v10155 = vrot.slane %v10154, 2
          %v10156 = vadd.f32 %v10154, %v10155
          %v10157 = vrot.slane %v10156, 1
          %v10158 = vadd.f32 %v10156, %v10157
          %v10159 = vmul.f32 %v10151, %v9490
          %v10160 = vmul.f32 %v10158, %v9490
          %v10161 = vsub.f32 %v10088, %v10159
          %v10162 = vsub.f32 %v10140, %v10160
          %v10163 = vmul.f32 %v10161, %v10161
          %v10164 = vmul.f32 %v10162, %v10162
          %v10165 = vsel %vm9416, %v10163, 0.0
          %v10166 = vrot.slane %v10165, 4
          %v10167 = vadd.f32 %v10165, %v10166
          %v10168 = vrot.slane %v10167, 2
          %v10169 = vadd.f32 %v10167, %v10168
          %v10170 = vrot.slane %v10169, 1
          %v10171 = vadd.f32 %v10169, %v10170
          %v10172 = vsel %vm9416, %v10164, 0.0
          %v10173 = vrot.slane %v10172, 4
          %v10174 = vadd.f32 %v10172, %v10173
          %v10175 = vrot.slane %v10174, 2
          %v10176 = vadd.f32 %v10174, %v10175
          %v10177 = vrot.slane %v10176, 1
          %v10178 = vadd.f32 %v10176, %v10177
          %v10179 = vmul.f32 %v10171, %v9490
          %v10180 = vmul.f32 %v10178, %v9490
          %v10181 = vadd.f32 %v10179, 1e-05
          %v10182 = vadd.f32 %v10180, 1e-05
          %v10183 = vrsqrt.pop %v10181
          %v10184 = vmul.f32 %v10183, %v10181
          %v10185 = vmul.f32 %v10184, %v10183
          %v10186 = vmul.f32 0.5, %v10185
          %v10187 = vsub.f32 1.5, %v10186
          %v10188 = vmul.f32 %v10183, %v10187
          %vm10189 = vweird.f32 %v10181
          %vm10190 = vweird.f32 %v10183
          %vm10191 = vmor %vm10189, %vm10190
          %v10192 = vsel %vm10191, %v10183, %v10188
          %v10193 = vrsqrt.pop %v10182
          %v10194 = vmul.f32 %v10193, %v10182
          %v10195 = vmul.f32 %v10194, %v10193
          %v10196 = vmul.f32 0.5, %v10195
          %v10197 = vsub.f32 1.5, %v10196
          %v10198 = vmul.f32 %v10193, %v10197
          %vm10199 = vweird.f32 %v10182
          %vm10200 = vweird.f32 %v10193
          %vm10201 = vmor %vm10199, %vm10200
          %v10202 = vsel %vm10201, %v10193, %v10198
          %v10203 = vmul.f32 %v10161, %v10192
          %v10204 = vmul.f32 %v10162, %v10202
          %v10206 = vperm.slane %v10143, 0
          %v10207 = vperm.slane %v10143, 1
          %v10210 = vmul.f32 %v10203, %v10206
          %v10211 = vmul.f32 %v10204, %v10207
          %v10213 = vperm.slane %v10144, 0
          %v10214 = vperm.slane %v10144, 1
          %v10217 = vadd.f32 %v10210, %v10213
          %v10218 = vadd.f32 %v10211, %v10214
          %vm10219 = vcmp.gt.f32.partialorder %v10217, 0.0
          %vm10220 = vcmp.gt.f32.partialorder %v10218, 0.0
          %v10221 = vmul.f32 %v10217, 0.2
          %v10222 = vmul.f32 %v10218, 0.2
          %v10223 = vsel %vm10219, %v10217, %v10221
          %v10224 = vsel %vm10220, %v10218, %v10222
          %v10225 = vld [vmem:[%s12] sm:$0x3]
          %v10227 = vperm.slane %v10225, 0
          %v10228 = vperm.slane %v10225, 1
          %v10231 = vmul.f32 %v10223, %v10227
          %v10232 = vmul.f32 %v10224, %v10228
          %v10233 = vsel %vm9416, %v10231, 0.0
          %v10234 = vsel %vm9416, %v10232, 0.0
          %v10235 = vadd.f32 %v10233, %v10234
          %10236 = vadd.xlane.f32.xlu0 %v10235
          %v10237 = vpop.xlane.xlu0 %10236
          %v10238 = vld [vmem:[#allocation5] sm:$0x1]
          %v10240 = vperm.slane %v10238, 0
          %v10242 = vadd.f32 %v10237, %v10240
          %v10243 = vsub.f32 0.0, %v10242
          %v10244 = vmul.f32 %v10243, 1.442695
          %v10245 = vpow.pop %v10244
          %v10246 = vadd.f32 %v10245, 1.0
          %v10247 = vrcp.pop %v10246
          %v10248 = vmul.f32 %v10246, %v10247
          %v10249 = vsub.f32 1.0, %v10248
          %v10250 = vmul.f32 %v10247, %v10249
          %v10251 = vadd.f32 %v10247, %v10250
          %vm10252 = vweird.f32 %v10246
          %vm10253 = vweird.f32 %v10247
          %vm10254 = vmor %vm10252, %vm10253
          %v10255 = vsel %vm10254, %v10247, %v10251
          %v10256 = vand.u32 2147483647, %v10246
          %vm10257 = vcmp.eq.f32.partialorder %v10256, 8.507059e+37
          %v10258 = vand.u32 %v10246, 2147483648
          %v10259 = vor.u32 1.1754944e-38, %v10258
          %v10260 = vsel %vm10257, %v10259, %v10255
          %v10261 = vmul.f32 1.0, %v10260
          %vm10262 = vcmask 1024
          %10263 = vst.msk [vmem:[%s14] sm:$0x3] %vm10262, %v10261
        $region88: #{dis_forward.1} parent=75 // pred_fallthru
          _
        // Predicated region
        $region89: #{dis_forward.1} parent=75 // pred_check
          %p10264 = pneg %p340
        $region90: #{dis_forward.1} parent=75 // pred_check_branch
          %10266 = sbr.rel (%p10264) target = $region92
        $region91: #{dis_forward.1} parent=75 // pred_region
          _
        $region92: #{dis_forward.1} parent=75 // pred_fallthru
          _
        // Predicated region
        $region93: #{dis_forward.1} parent=75 // pred_check
          %p10267 = pneg %p340
        $region94: #{dis_forward.1} parent=75 // pred_check_branch
          %10269 = sbr.rel (%p10267) target = $region96
        $region95: #{dis_forward.1} parent=75 // pred_region
          _
        $region96: #{dis_forward.1} parent=75 // pred_fallthru
          _
      $region76: #{dis_forward.1} parent=5 // pred_fallthru
        _
      %p10270 = scmp.le.s32.totalorder 2, %s23
      // Predicated region
      $region97: #{dis_forward.1} parent=5 // pred_check
        %p10271 = pneg %p10270
      $region98: #{dis_forward.1} parent=5 // pred_check_branch
        %10273 = sbr.rel (%p10271) target = $region100
      $region99: #{dis_forward.1} parent=5 // pred_region
        %s10274 = ssub.s32 %s23, 2
      $region100: #{dis_forward.1} parent=5 // pred_fallthru
        _
    $region6: #{dis_forward.1} parent=1 // loop_footer
      %s27 = sadd.s32 1, %s23
    $region7: #{dis_forward.1} parent=1 // loop_footer_branch
      %22 = sbr.rel target = $region3
    $region8: #{dis_forward.1} parent=1 // loop_exit
      _
    %10275 = vsyncpa [#allocation7], 1
    %s10276 = scalar_lea.sflag [#allocation7], 1
    %10277 = vsyncpa %s10276, 1

</llo_original>
